<compile_context>
chip_gen: v7x
topology: tpu7x:2x2x1
jax: 0.10.0
libtpu: 0.0.40
codegen_flags: <defaults>
</compile_context>

<pallas_src>
import functools

import jax
import jax.numpy as jnp
from jax.experimental import pallas as pl
from jax.experimental.pallas import tpu as pltpu


# ----------------------------------------------------------------------------
# Pallas kernel: fused (Cout, K) @ (K, M-tile) GEMM + bias + PReLU, lane-dense out
# ----------------------------------------------------------------------------
def _gemm_bias_prelu_kernel(w_ref, a_ref, bias_ref, alpha_ref, o_ref):
    acc = jnp.dot(w_ref[...], a_ref[...], preferred_element_type=jnp.float32)
    acc = acc + bias_ref[...]              # (Cout, 1) broadcasts across the M lanes
    alpha = alpha_ref[0]                   # scalar PReLU slope (SMEM); 1.0 => identity
    o_ref[...] = jnp.where(acc >= 0.0, acc, alpha * acc)


def _choose_tm(m_pad):
    """Largest M tile <= 2048 that keeps >= 2 grid steps (v7x dual-TC sharding)."""
    for tm in (2048, 1024, 512, 256, 128):
        if m_pad % tm == 0 and m_pad // tm >= 2:
            return tm
    return m_pad


@functools.lru_cache(maxsize=None)
def _make_gemm(m_pad, k, n, tm):
    flops = 2 * m_pad * k * n
    bytes_accessed = n * k * 2 + k * m_pad * 2 + n * 4 + n * m_pad * 4
    return pl.pallas_call(
        _gemm_bias_prelu_kernel,
        out_shape=jax.ShapeDtypeStruct((n, m_pad), jnp.float32),
        grid_spec=pltpu.PrefetchScalarGridSpec(
            num_scalar_prefetch=0,
            grid=(m_pad // tm,),
            in_specs=[
                pl.BlockSpec((n, k), lambda i: (0, 0)),      # weights: resident
                pl.BlockSpec((k, tm), lambda i: (0, i)),     # activations: tiled on M
                pl.BlockSpec((n, 1), lambda i: (0, 0)),      # bias: resident
                pl.BlockSpec(memory_space=pltpu.MemorySpace.SMEM),  # alpha scalar
            ],
            out_specs=pl.BlockSpec((n, tm), lambda i: (0, i)),
        ),
        compiler_params=pltpu.CompilerParams(dimension_semantics=("parallel",)),
        cost_estimate=pl.CostEstimate(
            flops=flops, transcendentals=0, bytes_accessed=bytes_accessed),
    )


def pallas_gemm_bias_prelu(wm, a, bias, alpha):
    """out = prelu(wm @ a + bias).  wm:(N,K) bf16, a:(K,M) bf16, bias:(N,1) f32."""
    n, k = wm.shape
    m = a.shape[1]
    m_pad = ((m + 255) // 256) * 256
    if m_pad != m:
        a = jnp.pad(a, ((0, 0), (0, m_pad - m)))
    tm = _choose_tm(m_pad)
    out = _make_gemm(m_pad, k, n, tm)(wm, a, bias, alpha)
    return out[:, :m] if m_pad != m else out


# ----------------------------------------------------------------------------
# Conv / sub-pixel Deconv built on the Pallas GEMM (channel-first activations)
# ----------------------------------------------------------------------------
def conv_block_cf(x, p, stride=1, padding=None):
    """Conv2d + bias + PReLU.  x:(Cin, B, H, W) -> (Cout, B, OH, OW)."""
    kh, kw = p["kh"], p["kw"]
    if padding is None:
        padding = (kh - 1) // 2                      # SRFBN ConvBlock "valid padding"
    cin, B, H, W = x.shape
    x = x.astype(jnp.bfloat16)
    if padding:
        x = jnp.pad(x, ((0, 0), (0, 0), (padding, padding), (padding, padding)))
    OH = (H + 2 * padding - kh) // stride + 1
    OW = (W + 2 * padding - kw) // stride + 1
    if kh == 1 and kw == 1 and stride == 1:
        A = x.reshape(cin, B * H * W)                # 1x1 conv: no im2col at all
    else:
        cols = []
        for i in range(kh):
            for j in range(kw):
                cols.append(x[:, :, i:i + (OH - 1) * stride + 1:stride,
                                    j:j + (OW - 1) * stride + 1:stride])
        A = jnp.stack(cols, axis=1).reshape(cin * kh * kw, B * OH * OW)
    out = pallas_gemm_bias_prelu(p["wm"], A, p["b"], p["alpha"])
    return out.reshape(p["cout"], B, OH, OW)


def deconv_block_cf(x, p):
    """ConvTranspose2d(k=8, s=4, p=2) + bias + PReLU via sub-pixel decomposition.

    The 16 output phases are folded into a single GEMM with K = Cin*9 and
    N = 16*Cout; the result is pixel-shuffled back onto the HR grid.
    """
    cin, B, H, W = x.shape
    cout = p["cout"]
    xp = jnp.pad(x.astype(jnp.bfloat16), ((0, 0), (0, 0), (1, 1), (1, 1)))
    cols = [xp[:, :, i:i + H, j:j + W] for i in range(3) for j in range(3)]
    A = jnp.stack(cols, axis=1).reshape(cin * 9, B * H * W)
    out = pallas_gemm_bias_prelu(p["wm"], A, p["b"], p["alpha"])   # (16*Cout, B*H*W)
    out = out.reshape(4, 4, cout, B, H, W)
    out = out.transpose(2, 3, 4, 0, 5, 1).reshape(cout, B, 4 * H, 4 * W)
    return out


# ----------------------------------------------------------------------------
# Bilinear upsample (align_corners=False), PyTorch semantics (glue, channel-first)
# ----------------------------------------------------------------------------
def bilinear_upsample(x, scale):
    _, _, H, W = x.shape

    def idx_w(in_size):
        out = in_size * scale
        src = (jnp.arange(out, dtype=jnp.float32) + 0.5) / scale - 0.5
        src = jnp.maximum(src, 0.0)
        i0 = jnp.minimum(jnp.floor(src).astype(jnp.int32), in_size - 1)
        i1 = jnp.minimum(i0 + 1, in_size - 1)
        w = src - i0.astype(jnp.float32)
        return i0, i1, w

    r0, r1, wr = idx_w(H)
    c0, c1, wc = idx_w(W)
    xr0, xr1 = jnp.take(x, r0, axis=2), jnp.take(x, r1, axis=2)
    a00, a01 = jnp.take(xr0, c0, axis=3), jnp.take(xr0, c1, axis=3)
    a10, a11 = jnp.take(xr1, c0, axis=3), jnp.take(xr1, c1, axis=3)
    wr = wr.reshape(1, 1, -1, 1)
    wc = wc.reshape(1, 1, 1, -1)
    top = a00 * (1 - wc) + a01 * wc
    bot = a10 * (1 - wc) + a11 * wc
    return top * (1 - wr) + bot * wr


# ----------------------------------------------------------------------------
# Parameter construction (deterministic, synthetic) + pre-packing for the kernel
# ----------------------------------------------------------------------------
class ParamGen:
    def __init__(self, seed=0):
        self.key = jax.random.PRNGKey(seed)

    def _next(self):
        self.key, sub = jax.random.split(self.key)
        return sub

    def conv(self, cin, cout, k, act=True):
        w = 0.05 * jax.random.normal(self._next(), (cout, cin, k, k), jnp.float32)
        b = 0.01 * jax.random.normal(self._next(), (cout,), jnp.float32)
        return dict(
            wm=w.reshape(cout, cin * k * k).astype(jnp.bfloat16),
            b=b.reshape(cout, 1).astype(jnp.float32),
            alpha=jnp.full((1,), 0.25 if act else 1.0, jnp.float32),  # 1.0 => no act
            kh=k, kw=k, cout=cout,
        )

    def deconv(self, cin, cout, k):
        assert k == 8, "sub-pixel deconv packing is specialized to k=8, s=4, p=2"
        w = 0.05 * jax.random.normal(self._next(), (cin, cout, k, k), jnp.float32)
        b = 0.01 * jax.random.normal(self._next(), (cout,), jnp.float32)
        # Pack ConvTranspose2d(k=8,s=4,p=2) into a (16*Cout, Cin*9) matrix over the
        # 3x3 anchor neighborhood of the (1,1)-padded LR input; row order (pi,pj,co),
        # output phase position ho = 4*a + pi  (exactly PyTorch semantics).
        wd = jnp.zeros((4, 4, cout, cin, 3, 3), jnp.float32)
        for pi in range(4):
            ri = (pi + 2) % 4
            pairs_i = [(0, ri + 4), (1, ri)] if ri >= 2 else [(1, ri + 4), (2, ri)]
            for pj in range(4):
                rj = (pj + 2) % 4
                pairs_j = [(0, rj + 4), (1, rj)] if rj >= 2 else [(1, rj + 4), (2, rj)]
                for wi, ii in pairs_i:
                    for wj, jj in pairs_j:
                        wd = wd.at[pi, pj, :, :, wi, wj].set(w[:, :, ii, jj].T)
        return dict(
            wm=wd.reshape(16 * cout, cin * 9).astype(jnp.bfloat16),
            b=jnp.tile(b, 16).reshape(16 * cout, 1).astype(jnp.float32),
            alpha=jnp.full((1,), 0.25, jnp.float32),
            cout=cout,
        )


def build_params(opt):
    g = ParamGen(0)
    nf = opt["num_features"]
    ng = opt["num_groups"]
    assert opt["scale"] == 4, "only scale=4 configured here"
    P = {}
    P["conv_in"] = g.conv(opt["in_channels"], 4 * nf, 3)
    P["feat_in"] = g.conv(4 * nf, nf, 1)

    def feedback_block(nf_in):
        return dict(
            compress_in=g.conv(nf_in, nf, 1),
            up=[g.deconv(nf, nf, 8) for _ in range(ng)],
            down=[g.conv(nf, nf, 8) for _ in range(ng)],
            uptran=[g.conv(nf * (i + 1), nf, 1) for i in range(1, ng)],
            downtran=[g.conv(nf * (i + 1), nf, 1) for i in range(1, ng)],
            compress_out=g.conv(ng * nf, nf, 1),
        )

    P["first_block"] = feedback_block(nf)
    P["block"] = feedback_block(2 * nf + opt["hg_num_keypoints"])
    P["out"] = g.deconv(nf, nf, 8)
    P["conv_out"] = g.conv(nf, opt["out_channels"], 3, act=False)

    # TODO(synk): StackedHourGlass source is not provided in the reference; it is
    # approximated by a downsample-by-4 conv stack with a feedback hidden state
    # and a 1x1 keypoint head (same I/O shapes as the real module).
    hgf = opt["hg_num_feature"]
    P["hg_pre1"] = g.conv(opt["out_channels"], hgf, 7)
    P["hg_pre2"] = g.conv(hgf, hgf, 3)
    P["hg_stack"] = [g.conv(hgf, hgf, 3) for _ in range(opt["hg_num_stack"])]
    P["hg_head"] = g.conv(hgf, opt["hg_num_keypoints"], 1, act=False)
    return P


# ----------------------------------------------------------------------------
# Forward passes (activations are channel-first: (C, B, H, W))
# ----------------------------------------------------------------------------
def feedback_block_forward(x, blk, num_groups):
    x = conv_block_cf(x, blk["compress_in"])                 # 1x1 compress
    lr_features = [x]
    hr_features = []
    for idx in range(num_groups):
        LD_L = jnp.concatenate(lr_features, axis=0)
        if idx > 0:
            LD_L = conv_block_cf(LD_L, blk["uptran"][idx - 1])
        LD_H = deconv_block_cf(LD_L, blk["up"][idx])
        hr_features.append(LD_H)
        LD_H = jnp.concatenate(hr_features, axis=0)
        if idx > 0:
            LD_H = conv_block_cf(LD_H, blk["downtran"][idx - 1])
        LD_L = conv_block_cf(LD_H, blk["down"][idx], stride=4, padding=2)
        lr_features.append(LD_L)
    out = jnp.concatenate(lr_features[1:], axis=0)
    return conv_block_cf(out, blk["compress_out"])


def hourglass_forward(h, last_hidden, P):
    f = conv_block_cf(h, P["hg_pre1"], stride=2, padding=3)   # HR/2
    f = conv_block_cf(f, P["hg_pre2"], stride=2, padding=1)   # HR/4 == LR
    if last_hidden is not None:
        f = f + last_hidden
    for sp in P["hg_stack"]:
        f = f + conv_block_cf(f, sp, stride=1, padding=1)
    heatmap = conv_block_cf(f, P["hg_head"])                  # 1x1, no activation
    return heatmap, f


def srfbn_hg_forward(x_nchw, params, opt):
    scale = opt["scale"]
    x = jnp.transpose(x_nchw, (1, 0, 2, 3))                   # -> (C, B, H, W)
    inter_res = bilinear_upsample(x, scale)
    x = conv_block_cf(x, params["conv_in"])
    x = conv_block_cf(x, params["feat_in"])
    sr_outs, heatmap_outs = [], []
    hg_last_hidden = None
    f_in = x
    factor = 1.0  # TODO(synk): `factor` is an undefined free variable in the reference forward; assumed 1.0
    for step in range(opt["num_steps"]):
        blk = params["first_block"] if step == 0 else params["block"]
        FB_out = feedback_block_forward(f_in, blk, opt["num_groups"])
        h = inter_res + conv_block_cf(deconv_block_cf(FB_out, params["out"]),
                                      params["conv_out"])
        heatmap, hg_last_hidden = hourglass_forward(h, hg_last_hidden, params)
        heatmap_out = factor * heatmap                        # scale==4 => HG_out is None
        f_in = jnp.concatenate((x, FB_out, heatmap_out), axis=0)
        sr_outs.append(jnp.transpose(h, (1, 0, 2, 3)))        # back to NCHW
        heatmap_outs.append(jnp.transpose(heatmap, (1, 0, 2, 3)))
    return sr_outs, heatmap_outs


# ----------------------------------------------------------------------------
if __name__ == "__main__":
    opt = dict(
        in_channels=3, out_channels=3,
        num_groups=2, num_steps=2, num_features=8, scale=4,
        hg_num_feature=8, hg_num_stack=2, hg_num_keypoints=5,
        hg_connect_type="cat",
    )
    params = build_params(opt)
    x = jax.random.normal(jax.random.PRNGKey(0), (2, 3, 16, 16), jnp.float32)

    fwd = jax.jit(functools.partial(srfbn_hg_forward, params=params, opt=opt))
    sr_outs, heatmap_outs = fwd(x)
    jax.block_until_ready(sr_outs)
    jax.block_until_ready(heatmap_outs)

    assert len(sr_outs) == opt["num_steps"] and len(heatmap_outs) == opt["num_steps"]
    assert sr_outs[0].shape == (2, 3, 64, 64)          # SR output at HR resolution
    assert heatmap_outs[0].shape == (2, 5, 16, 16)     # keypoint heatmaps at HR/4
    assert all(bool(jnp.isfinite(o).all()) for o in sr_outs + heatmap_outs)
    print("KERNEL_OK")
</pallas_src>

<mosaic_0001>
module attributes {stable_mosaic.version = 11 : i64} {
  func.func @_gemm_bias_prelu_kernel(%arg0: i32, %arg1: memref<32x27xbf16, #tpu.memory_space<vmem>>, %arg2: memref<27x256xbf16, #tpu.memory_space<vmem>>, %arg3: memref<32x1xf32, #tpu.memory_space<vmem>>, %arg4: memref<1xf32, #tpu.memory_space<smem>>, %arg5: memref<32x256xf32, #tpu.memory_space<vmem>>) attributes {dimension_semantics = [#tpu.dimension_semantics<parallel>], iteration_bounds = array<i64: 2>, scalar_prefetch = 0 : i64, scratch_operands = 0 : i64, tpu.core_type = #tpu.core_type<tc>, window_params = [{pipeline_mode = #tpu.pipeline_mode<synchronous>, transform_indices = @transform_0, window_bounds = array<i64: 32, 27>}, {transform_indices = @transform_1, window_bounds = array<i64: 27, 256>}, {pipeline_mode = #tpu.pipeline_mode<synchronous>, transform_indices = @transform_2, window_bounds = array<i64: 32, 1>}, {transform_indices = @transform_3, window_bounds = array<i64: 1>}, {transform_indices = @transform_4, window_bounds = array<i64: 32, 256>}]} {
    %c0 = arith.constant 0 : index
    %c0_0 = arith.constant 0 : index
    %0 = vector.load %arg1[%c0, %c0_0] : memref<32x27xbf16, #tpu.memory_space<vmem>>, vector<32x27xbf16>
    %c0_1 = arith.constant 0 : index
    %c0_2 = arith.constant 0 : index
    %1 = vector.load %arg2[%c0_1, %c0_2] : memref<27x256xbf16, #tpu.memory_space<vmem>>, vector<27x256xbf16>
    %cst = arith.constant dense<0.000000e+00> : vector<32x256xf32>
    %2 = tpu.matmul %0, %1, %cst {dimension_numbers = #tpu.dot_dimension_numbers<[1], [0], [0], [1], [0, 0, 1, 1], [], []>} : vector<32x27xbf16>, vector<27x256xbf16>, vector<32x256xf32> -> vector<32x256xf32>
    %c0_3 = arith.constant 0 : index
    %c0_4 = arith.constant 0 : index
    %3 = vector.load %arg3[%c0_3, %c0_4] : memref<32x1xf32, #tpu.memory_space<vmem>>, vector<32x1xf32>
    %4 = vector.broadcast %3 : vector<32x1xf32> to vector<32x256xf32>
    %5 = arith.addf %2, %4 : vector<32x256xf32>
    %c0_5 = arith.constant 0 : index
    %6 = memref.load %arg4[%c0_5] : memref<1xf32, #tpu.memory_space<smem>>
    %cst_6 = arith.constant 0.000000e+00 : f32
    %7 = vector.broadcast %cst_6 : f32 to vector<32x256xf32>
    %8 = arith.cmpf oge, %5, %7 : vector<32x256xf32>
    %9 = vector.broadcast %6 : f32 to vector<32x256xf32>
    %10 = arith.mulf %9, %5 : vector<32x256xf32>
    %11 = arith.select %8, %5, %10 : vector<32x256xi1>, vector<32x256xf32>
    %c0_7 = arith.constant 0 : index
    %c0_8 = arith.constant 0 : index
    %12 = vector.load %arg5[%c0_7, %c0_8] : memref<32x256xf32, #tpu.memory_space<vmem>>, vector<32x256xf32>
    tpu.vector_store %arg5[%c0_7, %c0_8], %11 {strides = array<i32>} : memref<32x256xf32, #tpu.memory_space<vmem>>, vector<32x256xf32>,
    return
  }
  func.func @transform_0(%arg0: i32) -> (i32, i32) {
    %c0_i32 = arith.constant 0 : i32
    %c0_i32_0 = arith.constant 0 : i32
    %c0_i32_1 = arith.constant 0 : i32
    return %c0_i32, %c0_i32_0 : i32, i32
  }
  func.func @transform_1(%arg0: i32) -> (i32, i32) {
    %c0_i32 = arith.constant 0 : i32
    %c0_i32_0 = arith.constant 0 : i32
    return %c0_i32, %arg0 : i32, i32
  }
  func.func @transform_2(%arg0: i32) -> (i32, i32) {
    %c0_i32 = arith.constant 0 : i32
    %c0_i32_0 = arith.constant 0 : i32
    %c0_i32_1 = arith.constant 0 : i32
    return %c0_i32, %c0_i32_0 : i32, i32
  }
  func.func @transform_3(%arg0: i32) -> i32 {
    %c0_i32 = arith.constant 0 : i32
    %c0_i32_0 = arith.constant 0 : i32
    return %c0_i32 : i32
  }
  func.func @transform_4(%arg0: i32) -> (i32, i32) {
    %c0_i32 = arith.constant 0 : i32
    %c0_i32_0 = arith.constant 0 : i32
    return %c0_i32, %arg0 : i32, i32
  }
}

module attributes {stable_mosaic.version = 11 : i64} {
  func.func @_gemm_bias_prelu_kernel(%arg0: i32, %arg1: memref<8x32xbf16, #tpu.memory_space<vmem>>, %arg2: memref<32x256xbf16, #tpu.memory_space<vmem>>, %arg3: memref<8x1xf32, #tpu.memory_space<vmem>>, %arg4: memref<1xf32, #tpu.memory_space<smem>>, %arg5: memref<8x256xf32, #tpu.memory_space<vmem>>) attributes {dimension_semantics = [#tpu.dimension_semantics<parallel>], iteration_bounds = array<i64: 2>, scalar_prefetch = 0 : i64, scratch_operands = 0 : i64, tpu.core_type = #tpu.core_type<tc>, window_params = [{pipeline_mode = #tpu.pipeline_mode<synchronous>, transform_indices = @transform_0, window_bounds = array<i64: 8, 32>}, {transform_indices = @transform_1, window_bounds = array<i64: 32, 256>}, {pipeline_mode = #tpu.pipeline_mode<synchronous>, transform_indices = @transform_2, window_bounds = array<i64: 8, 1>}, {transform_indices = @transform_3, window_bounds = array<i64: 1>}, {transform_indices = @transform_4, window_bounds = array<i64: 8, 256>}]} {
    %c0 = arith.constant 0 : index
    %c0_0 = arith.constant 0 : index
    %0 = vector.load %arg1[%c0, %c0_0] : memref<8x32xbf16, #tpu.memory_space<vmem>>, vector<8x32xbf16>
    %c0_1 = arith.constant 0 : index
    %c0_2 = arith.constant 0 : index
    %1 = vector.load %arg2[%c0_1, %c0_2] : memref<32x256xbf16, #tpu.memory_space<vmem>>, vector<32x256xbf16>
    %cst = arith.constant dense<0.000000e+00> : vector<8x256xf32>
    %2 = tpu.matmul %0, %1, %cst {dimension_numbers = #tpu.dot_dimension_numbers<[1], [0], [0], [1], [0, 0, 1, 1], [], []>} : vector<8x32xbf16>, vector<32x256xbf16>, vector<8x256xf32> -> vector<8x256xf32>
    %c0_3 = arith.constant 0 : index
    %c0_4 = arith.constant 0 : index
    %3 = vector.load %arg3[%c0_3, %c0_4] : memref<8x1xf32, #tpu.memory_space<vmem>>, vector<8x1xf32>
    %4 = vector.broadcast %3 : vector<8x1xf32> to vector<8x256xf32>
    %5 = arith.addf %2, %4 : vector<8x256xf32>
    %c0_5 = arith.constant 0 : index
    %6 = memref.load %arg4[%c0_5] : memref<1xf32, #tpu.memory_space<smem>>
    %cst_6 = arith.constant 0.000000e+00 : f32
    %7 = vector.broadcast %cst_6 : f32 to vector<8x256xf32>
    %8 = arith.cmpf oge, %5, %7 : vector<8x256xf32>
    %9 = vector.broadcast %6 : f32 to vector<8x256xf32>
    %10 = arith.mulf %9, %5 : vector<8x256xf32>
    %11 = arith.select %8, %5, %10 : vector<8x256xi1>, vector<8x256xf32>
    %c0_7 = arith.constant 0 : index
    %c0_8 = arith.constant 0 : index
    %12 = vector.load %arg5[%c0_7, %c0_8] : memref<8x256xf32, #tpu.memory_space<vmem>>, vector<8x256xf32>
    tpu.vector_store %arg5[%c0_7, %c0_8], %11 {strides = array<i32>} : memref<8x256xf32, #tpu.memory_space<vmem>>, vector<8x256xf32>,
    return
  }
  func.func @transform_0(%arg0: i32) -> (i32, i32) {
    %c0_i32 = arith.constant 0 : i32
    %c0_i32_0 = arith.constant 0 : i32
    %c0_i32_1 = arith.constant 0 : i32
    return %c0_i32, %c0_i32_0 : i32, i32
  }
  func.func @transform_1(%arg0: i32) -> (i32, i32) {
    %c0_i32 = arith.constant 0 : i32
    %c0_i32_0 = arith.constant 0 : i32
    return %c0_i32, %arg0 : i32, i32
  }
  func.func @transform_2(%arg0: i32) -> (i32, i32) {
    %c0_i32 = arith.constant 0 : i32
    %c0_i32_0 = arith.constant 0 : i32
    %c0_i32_1 = arith.constant 0 : i32
    return %c0_i32, %c0_i32_0 : i32, i32
  }
  func.func @transform_3(%arg0: i32) -> i32 {
    %c0_i32 = arith.constant 0 : i32
    %c0_i32_0 = arith.constant 0 : i32
    return %c0_i32 : i32
  }
  func.func @transform_4(%arg0: i32) -> (i32, i32) {
    %c0_i32 = arith.constant 0 : i32
    %c0_i32_0 = arith.constant 0 : i32
    return %c0_i32, %arg0 : i32, i32
  }
}

module attributes {stable_mosaic.version = 11 : i64} {
  func.func @_gemm_bias_prelu_kernel(%arg0: i32, %arg1: memref<8x8xbf16, #tpu.memory_space<vmem>>, %arg2: memref<8x256xbf16, #tpu.memory_space<vmem>>, %arg3: memref<8x1xf32, #tpu.memory_space<vmem>>, %arg4: memref<1xf32, #tpu.memory_space<smem>>, %arg5: memref<8x256xf32, #tpu.memory_space<vmem>>) attributes {dimension_semantics = [#tpu.dimension_semantics<parallel>], iteration_bounds = array<i64: 2>, scalar_prefetch = 0 : i64, scratch_operands = 0 : i64, tpu.core_type = #tpu.core_type<tc>, window_params = [{pipeline_mode = #tpu.pipeline_mode<synchronous>, transform_indices = @transform_0, window_bounds = array<i64: 8, 8>}, {transform_indices = @transform_1, window_bounds = array<i64: 8, 256>}, {pipeline_mode = #tpu.pipeline_mode<synchronous>, transform_indices = @transform_2, window_bounds = array<i64: 8, 1>}, {transform_indices = @transform_3, window_bounds = array<i64: 1>}, {transform_indices = @transform_4, window_bounds = array<i64: 8, 256>}]} {
    %c0 = arith.constant 0 : index
    %c0_0 = arith.constant 0 : index
    %0 = vector.load %arg1[%c0, %c0_0] : memref<8x8xbf16, #tpu.memory_space<vmem>>, vector<8x8xbf16>
    %c0_1 = arith.constant 0 : index
    %c0_2 = arith.constant 0 : index
    %1 = vector.load %arg2[%c0_1, %c0_2] : memref<8x256xbf16, #tpu.memory_space<vmem>>, vector<8x256xbf16>
    %cst = arith.constant dense<0.000000e+00> : vector<8x256xf32>
    %2 = tpu.matmul %0, %1, %cst {dimension_numbers = #tpu.dot_dimension_numbers<[1], [0], [0], [1], [0, 0, 1, 1], [], []>} : vector<8x8xbf16>, vector<8x256xbf16>, vector<8x256xf32> -> vector<8x256xf32>
    %c0_3 = arith.constant 0 : index
    %c0_4 = arith.constant 0 : index
    %3 = vector.load %arg3[%c0_3, %c0_4] : memref<8x1xf32, #tpu.memory_space<vmem>>, vector<8x1xf32>
    %4 = vector.broadcast %3 : vector<8x1xf32> to vector<8x256xf32>
    %5 = arith.addf %2, %4 : vector<8x256xf32>
    %c0_5 = arith.constant 0 : index
    %6 = memref.load %arg4[%c0_5] : memref<1xf32, #tpu.memory_space<smem>>
    %cst_6 = arith.constant 0.000000e+00 : f32
    %7 = vector.broadcast %cst_6 : f32 to vector<8x256xf32>
    %8 = arith.cmpf oge, %5, %7 : vector<8x256xf32>
    %9 = vector.broadcast %6 : f32 to vector<8x256xf32>
    %10 = arith.mulf %9, %5 : vector<8x256xf32>
    %11 = arith.select %8, %5, %10 : vector<8x256xi1>, vector<8x256xf32>
    %c0_7 = arith.constant 0 : index
    %c0_8 = arith.constant 0 : index
    %12 = vector.load %arg5[%c0_7, %c0_8] : memref<8x256xf32, #tpu.memory_space<vmem>>, vector<8x256xf32>
    tpu.vector_store %arg5[%c0_7, %c0_8], %11 {strides = array<i32>} : memref<8x256xf32, #tpu.memory_space<vmem>>, vector<8x256xf32>,
    return
  }
  func.func @transform_0(%arg0: i32) -> (i32, i32) {
    %c0_i32 = arith.constant 0 : i32
    %c0_i32_0 = arith.constant 0 : i32
    %c0_i32_1 = arith.constant 0 : i32
    return %c0_i32, %c0_i32_0 : i32, i32
  }
  func.func @transform_1(%arg0: i32) -> (i32, i32) {
    %c0_i32 = arith.constant 0 : i32
    %c0_i32_0 = arith.constant 0 : i32
    return %c0_i32, %arg0 : i32, i32
  }
  func.func @transform_2(%arg0: i32) -> (i32, i32) {
    %c0_i32 = arith.constant 0 : i32
    %c0_i32_0 = arith.constant 0 : i32
    %c0_i32_1 = arith.constant 0 : i32
    return %c0_i32, %c0_i32_0 : i32, i32
  }
  func.func @transform_3(%arg0: i32) -> i32 {
    %c0_i32 = arith.constant 0 : i32
    %c0_i32_0 = arith.constant 0 : i32
    return %c0_i32 : i32
  }
  func.func @transform_4(%arg0: i32) -> (i32, i32) {
    %c0_i32 = arith.constant 0 : i32
    %c0_i32_0 = arith.constant 0 : i32
    return %c0_i32, %arg0 : i32, i32
  }
}

module attributes {stable_mosaic.version = 11 : i64} {
  func.func @_gemm_bias_prelu_kernel(%arg0: i32, %arg1: memref<128x72xbf16, #tpu.memory_space<vmem>>, %arg2: memref<72x256xbf16, #tpu.memory_space<vmem>>, %arg3: memref<128x1xf32, #tpu.memory_space<vmem>>, %arg4: memref<1xf32, #tpu.memory_space<smem>>, %arg5: memref<128x256xf32, #tpu.memory_space<vmem>>) attributes {dimension_semantics = [#tpu.dimension_semantics<parallel>], iteration_bounds = array<i64: 2>, scalar_prefetch = 0 : i64, scratch_operands = 0 : i64, tpu.core_type = #tpu.core_type<tc>, window_params = [{pipeline_mode = #tpu.pipeline_mode<synchronous>, transform_indices = @transform_0, window_bounds = array<i64: 128, 72>}, {transform_indices = @transform_1, window_bounds = array<i64: 72, 256>}, {pipeline_mode = #tpu.pipeline_mode<synchronous>, transform_indices = @transform_2, window_bounds = array<i64: 128, 1>}, {transform_indices = @transform_3, window_bounds = array<i64: 1>}, {transform_indices = @transform_4, window_bounds = array<i64: 128, 256>}]} {
    %c0 = arith.constant 0 : index
    %c0_0 = arith.constant 0 : index
    %0 = vector.load %arg1[%c0, %c0_0] : memref<128x72xbf16, #tpu.memory_space<vmem>>, vector<128x72xbf16>
    %c0_1 = arith.constant 0 : index
    %c0_2 = arith.constant 0 : index
    %1 = vector.load %arg2[%c0_1, %c0_2] : memref<72x256xbf16, #tpu.memory_space<vmem>>, vector<72x256xbf16>
    %cst = arith.constant dense<0.000000e+00> : vector<128x256xf32>
    %2 = tpu.matmul %0, %1, %cst {dimension_numbers = #tpu.dot_dimension_numbers<[1], [0], [0], [1], [0, 0, 1, 1], [], []>} : vector<128x72xbf16>, vector<72x256xbf16>, vector<128x256xf32> -> vector<128x256xf32>
    %c0_3 = arith.constant 0 : index
    %c0_4 = arith.constant 0 : index
    %3 = vector.load %arg3[%c0_3, %c0_4] : memref<128x1xf32, #tpu.memory_space<vmem>>, vector<128x1xf32>
    %4 = vector.broadcast %3 : vector<128x1xf32> to vector<128x256xf32>
    %5 = arith.addf %2, %4 : vector<128x256xf32>
    %c0_5 = arith.constant 0 : index
    %6 = memref.load %arg4[%c0_5] : memref<1xf32, #tpu.memory_space<smem>>
    %cst_6 = arith.constant 0.000000e+00 : f32
    %7 = vector.broadcast %cst_6 : f32 to vector<128x256xf32>
    %8 = arith.cmpf oge, %5, %7 : vector<128x256xf32>
    %9 = vector.broadcast %6 : f32 to vector<128x256xf32>
    %10 = arith.mulf %9, %5 : vector<128x256xf32>
    %11 = arith.select %8, %5, %10 : vector<128x256xi1>, vector<128x256xf32>
    %c0_7 = arith.constant 0 : index
    %c0_8 = arith.constant 0 : index
    %12 = vector.load %arg5[%c0_7, %c0_8] : memref<128x256xf32, #tpu.memory_space<vmem>>, vector<128x256xf32>
    tpu.vector_store %arg5[%c0_7, %c0_8], %11 {strides = array<i32>} : memref<128x256xf32, #tpu.memory_space<vmem>>, vector<128x256xf32>,
    return
  }
  func.func @transform_0(%arg0: i32) -> (i32, i32) {
    %c0_i32 = arith.constant 0 : i32
    %c0_i32_0 = arith.constant 0 : i32
    %c0_i32_1 = arith.constant 0 : i32
    return %c0_i32, %c0_i32_0 : i32, i32
  }
  func.func @transform_1(%arg0: i32) -> (i32, i32) {
    %c0_i32 = arith.constant 0 : i32
    %c0_i32_0 = arith.constant 0 : i32
    return %c0_i32, %arg0 : i32, i32
  }
  func.func @transform_2(%arg0: i32) -> (i32, i32) {
    %c0_i32 = arith.constant 0 : i32
    %c0_i32_0 = arith.constant 0 : i32
    %c0_i32_1 = arith.constant 0 : i32
    return %c0_i32, %c0_i32_0 : i32, i32
  }
  func.func @transform_3(%arg0: i32) -> i32 {
    %c0_i32 = arith.constant 0 : i32
    %c0_i32_0 = arith.constant 0 : i32
    return %c0_i32 : i32
  }
  func.func @transform_4(%arg0: i32) -> (i32, i32) {
    %c0_i32 = arith.constant 0 : i32
    %c0_i32_0 = arith.constant 0 : i32
    return %c0_i32, %arg0 : i32, i32
  }
}

module attributes {stable_mosaic.version = 11 : i64} {
  func.func @_gemm_bias_prelu_kernel(%arg0: i32, %arg1: memref<8x512xbf16, #tpu.memory_space<vmem>>, %arg2: memref<512x256xbf16, #tpu.memory_space<vmem>>, %arg3: memref<8x1xf32, #tpu.memory_space<vmem>>, %arg4: memref<1xf32, #tpu.memory_space<smem>>, %arg5: memref<8x256xf32, #tpu.memory_space<vmem>>) attributes {dimension_semantics = [#tpu.dimension_semantics<parallel>], iteration_bounds = array<i64: 2>, scalar_prefetch = 0 : i64, scratch_operands = 0 : i64, tpu.core_type = #tpu.core_type<tc>, window_params = [{pipeline_mode = #tpu.pipeline_mode<synchronous>, transform_indices = @transform_0, window_bounds = array<i64: 8, 512>}, {transform_indices = @transform_1, window_bounds = array<i64: 512, 256>}, {pipeline_mode = #tpu.pipeline_mode<synchronous>, transform_indices = @transform_2, window_bounds = array<i64: 8, 1>}, {transform_indices = @transform_3, window_bounds = array<i64: 1>}, {transform_indices = @transform_4, window_bounds = array<i64: 8, 256>}]} {
    %c0 = arith.constant 0 : index
    %c0_0 = arith.constant 0 : index
    %0 = vector.load %arg1[%c0, %c0_0] : memref<8x512xbf16, #tpu.memory_space<vmem>>, vector<8x512xbf16>
    %c0_1 = arith.constant 0 : index
    %c0_2 = arith.constant 0 : index
    %1 = vector.load %arg2[%c0_1, %c0_2] : memref<512x256xbf16, #tpu.memory_space<vmem>>, vector<512x256xbf16>
    %cst = arith.constant dense<0.000000e+00> : vector<8x256xf32>
    %2 = tpu.matmul %0, %1, %cst {dimension_numbers = #tpu.dot_dimension_numbers<[1], [0], [0], [1], [0, 0, 1, 1], [], []>} : vector<8x512xbf16>, vector<512x256xbf16>, vector<8x256xf32> -> vector<8x256xf32>
    %c0_3 = arith.constant 0 : index
    %c0_4 = arith.constant 0 : index
    %3 = vector.load %arg3[%c0_3, %c0_4] : memref<8x1xf32, #tpu.memory_space<vmem>>, vector<8x1xf32>
    %4 = vector.broadcast %3 : vector<8x1xf32> to vector<8x256xf32>
    %5 = arith.addf %2, %4 : vector<8x256xf32>
    %c0_5 = arith.constant 0 : index
    %6 = memref.load %arg4[%c0_5] : memref<1xf32, #tpu.memory_space<smem>>
    %cst_6 = arith.constant 0.000000e+00 : f32
    %7 = vector.broadcast %cst_6 : f32 to vector<8x256xf32>
    %8 = arith.cmpf oge, %5, %7 : vector<8x256xf32>
    %9 = vector.broadcast %6 : f32 to vector<8x256xf32>
    %10 = arith.mulf %9, %5 : vector<8x256xf32>
    %11 = arith.select %8, %5, %10 : vector<8x256xi1>, vector<8x256xf32>
    %c0_7 = arith.constant 0 : index
    %c0_8 = arith.constant 0 : index
    %12 = vector.load %arg5[%c0_7, %c0_8] : memref<8x256xf32, #tpu.memory_space<vmem>>, vector<8x256xf32>
    tpu.vector_store %arg5[%c0_7, %c0_8], %11 {strides = array<i32>} : memref<8x256xf32, #tpu.memory_space<vmem>>, vector<8x256xf32>,
    return
  }
  func.func @transform_0(%arg0: i32) -> (i32, i32) {
    %c0_i32 = arith.constant 0 : i32
    %c0_i32_0 = arith.constant 0 : i32
    %c0_i32_1 = arith.constant 0 : i32
    return %c0_i32, %c0_i32_0 : i32, i32
  }
  func.func @transform_1(%arg0: i32) -> (i32, i32) {
    %c0_i32 = arith.constant 0 : i32
    %c0_i32_0 = arith.constant 0 : i32
    return %c0_i32, %arg0 : i32, i32
  }
  func.func @transform_2(%arg0: i32) -> (i32, i32) {
    %c0_i32 = arith.constant 0 : i32
    %c0_i32_0 = arith.constant 0 : i32
    %c0_i32_1 = arith.constant 0 : i32
    return %c0_i32, %c0_i32_0 : i32, i32
  }
  func.func @transform_3(%arg0: i32) -> i32 {
    %c0_i32 = arith.constant 0 : i32
    %c0_i32_0 = arith.constant 0 : i32
    return %c0_i32 : i32
  }
  func.func @transform_4(%arg0: i32) -> (i32, i32) {
    %c0_i32 = arith.constant 0 : i32
    %c0_i32_0 = arith.constant 0 : i32
    return %c0_i32, %arg0 : i32, i32
  }
}

module attributes {stable_mosaic.version = 11 : i64} {
  func.func @_gemm_bias_prelu_kernel(%arg0: i32, %arg1: memref<8x16xbf16, #tpu.memory_space<vmem>>, %arg2: memref<16x256xbf16, #tpu.memory_space<vmem>>, %arg3: memref<8x1xf32, #tpu.memory_space<vmem>>, %arg4: memref<1xf32, #tpu.memory_space<smem>>, %arg5: memref<8x256xf32, #tpu.memory_space<vmem>>) attributes {dimension_semantics = [#tpu.dimension_semantics<parallel>], iteration_bounds = array<i64: 2>, scalar_prefetch = 0 : i64, scratch_operands = 0 : i64, tpu.core_type = #tpu.core_type<tc>, window_params = [{pipeline_mode = #tpu.pipeline_mode<synchronous>, transform_indices = @transform_0, window_bounds = array<i64: 8, 16>}, {transform_indices = @transform_1, window_bounds = array<i64: 16, 256>}, {pipeline_mode = #tpu.pipeline_mode<synchronous>, transform_indices = @transform_2, window_bounds = array<i64: 8, 1>}, {transform_indices = @transform_3, window_bounds = array<i64: 1>}, {transform_indices = @transform_4, window_bounds = array<i64: 8, 256>}]} {
    %c0 = arith.constant 0 : index
    %c0_0 = arith.constant 0 : index
    %0 = vector.load %arg1[%c0, %c0_0] : memref<8x16xbf16, #tpu.memory_space<vmem>>, vector<8x16xbf16>
    %c0_1 = arith.constant 0 : index
    %c0_2 = arith.constant 0 : index
    %1 = vector.load %arg2[%c0_1, %c0_2] : memref<16x256xbf16, #tpu.memory_space<vmem>>, vector<16x256xbf16>
    %cst = arith.constant dense<0.000000e+00> : vector<8x256xf32>
    %2 = tpu.matmul %0, %1, %cst {dimension_numbers = #tpu.dot_dimension_numbers<[1], [0], [0], [1], [0, 0, 1, 1], [], []>} : vector<8x16xbf16>, vector<16x256xbf16>, vector<8x256xf32> -> vector<8x256xf32>
    %c0_3 = arith.constant 0 : index
    %c0_4 = arith.constant 0 : index
    %3 = vector.load %arg3[%c0_3, %c0_4] : memref<8x1xf32, #tpu.memory_space<vmem>>, vector<8x1xf32>
    %4 = vector.broadcast %3 : vector<8x1xf32> to vector<8x256xf32>
    %5 = arith.addf %2, %4 : vector<8x256xf32>
    %c0_5 = arith.constant 0 : index
    %6 = memref.load %arg4[%c0_5] : memref<1xf32, #tpu.memory_space<smem>>
    %cst_6 = arith.constant 0.000000e+00 : f32
    %7 = vector.broadcast %cst_6 : f32 to vector<8x256xf32>
    %8 = arith.cmpf oge, %5, %7 : vector<8x256xf32>
    %9 = vector.broadcast %6 : f32 to vector<8x256xf32>
    %10 = arith.mulf %9, %5 : vector<8x256xf32>
    %11 = arith.select %8, %5, %10 : vector<8x256xi1>, vector<8x256xf32>
    %c0_7 = arith.constant 0 : index
    %c0_8 = arith.constant 0 : index
    %12 = vector.load %arg5[%c0_7, %c0_8] : memref<8x256xf32, #tpu.memory_space<vmem>>, vector<8x256xf32>
    tpu.vector_store %arg5[%c0_7, %c0_8], %11 {strides = array<i32>} : memref<8x256xf32, #tpu.memory_space<vmem>>, vector<8x256xf32>,
    return
  }
  func.func @transform_0(%arg0: i32) -> (i32, i32) {
    %c0_i32 = arith.constant 0 : i32
    %c0_i32_0 = arith.constant 0 : i32
    %c0_i32_1 = arith.constant 0 : i32
    return %c0_i32, %c0_i32_0 : i32, i32
  }
  func.func @transform_1(%arg0: i32) -> (i32, i32) {
    %c0_i32 = arith.constant 0 : i32
    %c0_i32_0 = arith.constant 0 : i32
    return %c0_i32, %arg0 : i32, i32
  }
  func.func @transform_2(%arg0: i32) -> (i32, i32) {
    %c0_i32 = arith.constant 0 : i32
    %c0_i32_0 = arith.constant 0 : i32
    %c0_i32_1 = arith.constant 0 : i32
    return %c0_i32, %c0_i32_0 : i32, i32
  }
  func.func @transform_3(%arg0: i32) -> i32 {
    %c0_i32 = arith.constant 0 : i32
    %c0_i32_0 = arith.constant 0 : i32
    return %c0_i32 : i32
  }
  func.func @transform_4(%arg0: i32) -> (i32, i32) {
    %c0_i32 = arith.constant 0 : i32
    %c0_i32_0 = arith.constant 0 : i32
    return %c0_i32, %arg0 : i32, i32
  }
}

module attributes {stable_mosaic.version = 11 : i64} {
  func.func @_gemm_bias_prelu_kernel(%arg0: i32, %arg1: memref<8x16xbf16, #tpu.memory_space<vmem>>, %arg2: memref<16x2048xbf16, #tpu.memory_space<vmem>>, %arg3: memref<8x1xf32, #tpu.memory_space<vmem>>, %arg4: memref<1xf32, #tpu.memory_space<smem>>, %arg5: memref<8x2048xf32, #tpu.memory_space<vmem>>) attributes {dimension_semantics = [#tpu.dimension_semantics<parallel>], iteration_bounds = array<i64: 4>, scalar_prefetch = 0 : i64, scratch_operands = 0 : i64, tpu.core_type = #tpu.core_type<tc>, window_params = [{pipeline_mode = #tpu.pipeline_mode<synchronous>, transform_indices = @transform_0, window_bounds = array<i64: 8, 16>}, {transform_indices = @transform_1, window_bounds = array<i64: 16, 2048>}, {pipeline_mode = #tpu.pipeline_mode<synchronous>, transform_indices = @transform_2, window_bounds = array<i64: 8, 1>}, {transform_indices = @transform_3, window_bounds = array<i64: 1>}, {transform_indices = @transform_4, window_bounds = array<i64: 8, 2048>}]} {
    %c0 = arith.constant 0 : index
    %c0_0 = arith.constant 0 : index
    %0 = vector.load %arg1[%c0, %c0_0] : memref<8x16xbf16, #tpu.memory_space<vmem>>, vector<8x16xbf16>
    %c0_1 = arith.constant 0 : index
    %c0_2 = arith.constant 0 : index
    %1 = vector.load %arg2[%c0_1, %c0_2] : memref<16x2048xbf16, #tpu.memory_space<vmem>>, vector<16x2048xbf16>
    %cst = arith.constant dense<0.000000e+00> : vector<8x2048xf32>
    %2 = tpu.matmul %0, %1, %cst {dimension_numbers = #tpu.dot_dimension_numbers<[1], [0], [0], [1], [0, 0, 1, 1], [], []>} : vector<8x16xbf16>, vector<16x2048xbf16>, vector<8x2048xf32> -> vector<8x2048xf32>
    %c0_3 = arith.constant 0 : index
    %c0_4 = arith.constant 0 : index
    %3 = vector.load %arg3[%c0_3, %c0_4] : memref<8x1xf32, #tpu.memory_space<vmem>>, vector<8x1xf32>
    %4 = vector.broadcast %3 : vector<8x1xf32> to vector<8x2048xf32>
    %5 = arith.addf %2, %4 : vector<8x2048xf32>
    %c0_5 = arith.constant 0 : index
    %6 = memref.load %arg4[%c0_5] : memref<1xf32, #tpu.memory_space<smem>>
    %cst_6 = arith.constant 0.000000e+00 : f32
    %7 = vector.broadcast %cst_6 : f32 to vector<8x2048xf32>
    %8 = arith.cmpf oge, %5, %7 : vector<8x2048xf32>
    %9 = vector.broadcast %6 : f32 to vector<8x2048xf32>
    %10 = arith.mulf %9, %5 : vector<8x2048xf32>
    %11 = arith.select %8, %5, %10 : vector<8x2048xi1>, vector<8x2048xf32>
    %c0_7 = arith.constant 0 : index
    %c0_8 = arith.constant 0 : index
    %12 = vector.load %arg5[%c0_7, %c0_8] : memref<8x2048xf32, #tpu.memory_space<vmem>>, vector<8x2048xf32>
    tpu.vector_store %arg5[%c0_7, %c0_8], %11 {strides = array<i32>} : memref<8x2048xf32, #tpu.memory_space<vmem>>, vector<8x2048xf32>,
    return
  }
  func.func @transform_0(%arg0: i32) -> (i32, i32) {
    %c0_i32 = arith.constant 0 : i32
    %c0_i32_0 = arith.constant 0 : i32
    %c0_i32_1 = arith.constant 0 : i32
    return %c0_i32, %c0_i32_0 : i32, i32
  }
  func.func @transform_1(%arg0: i32) -> (i32, i32) {
    %c0_i32 = arith.constant 0 : i32
    %c0_i32_0 = arith.constant 0 : i32
    return %c0_i32, %arg0 : i32, i32
  }
  func.func @transform_2(%arg0: i32) -> (i32, i32) {
    %c0_i32 = arith.constant 0 : i32
    %c0_i32_0 = arith.constant 0 : i32
    %c0_i32_1 = arith.constant 0 : i32
    return %c0_i32, %c0_i32_0 : i32, i32
  }
  func.func @transform_3(%arg0: i32) -> i32 {
    %c0_i32 = arith.constant 0 : i32
    %c0_i32_0 = arith.constant 0 : i32
    return %c0_i32 : i32
  }
  func.func @transform_4(%arg0: i32) -> (i32, i32) {
    %c0_i32 = arith.constant 0 : i32
    %c0_i32_0 = arith.constant 0 : i32
    return %c0_i32, %arg0 : i32, i32
  }
}

module attributes {stable_mosaic.version = 11 : i64} {
  func.func @_gemm_bias_prelu_kernel(%arg0: i32, %arg1: memref<3x72xbf16, #tpu.memory_space<vmem>>, %arg2: memref<72x2048xbf16, #tpu.memory_space<vmem>>, %arg3: memref<3x1xf32, #tpu.memory_space<vmem>>, %arg4: memref<1xf32, #tpu.memory_space<smem>>, %arg5: memref<3x2048xf32, #tpu.memory_space<vmem>>) attributes {dimension_semantics = [#tpu.dimension_semantics<parallel>], iteration_bounds = array<i64: 4>, scalar_prefetch = 0 : i64, scratch_operands = 0 : i64, tpu.core_type = #tpu.core_type<tc>, window_params = [{pipeline_mode = #tpu.pipeline_mode<synchronous>, transform_indices = @transform_0, window_bounds = array<i64: 3, 72>}, {transform_indices = @transform_1, window_bounds = array<i64: 72, 2048>}, {pipeline_mode = #tpu.pipeline_mode<synchronous>, transform_indices = @transform_2, window_bounds = array<i64: 3, 1>}, {transform_indices = @transform_3, window_bounds = array<i64: 1>}, {transform_indices = @transform_4, window_bounds = array<i64: 3, 2048>}]} {
    %c0 = arith.constant 0 : index
    %c0_0 = arith.constant 0 : index
    %0 = vector.load %arg1[%c0, %c0_0] : memref<3x72xbf16, #tpu.memory_space<vmem>>, vector<3x72xbf16>
    %c0_1 = arith.constant 0 : index
    %c0_2 = arith.constant 0 : index
    %1 = vector.load %arg2[%c0_1, %c0_2] : memref<72x2048xbf16, #tpu.memory_space<vmem>>, vector<72x2048xbf16>
    %cst = arith.constant dense<0.000000e+00> : vector<3x2048xf32>
    %2 = tpu.matmul %0, %1, %cst {dimension_numbers = #tpu.dot_dimension_numbers<[1], [0], [0], [1], [0, 0, 1, 1], [], []>} : vector<3x72xbf16>, vector<72x2048xbf16>, vector<3x2048xf32> -> vector<3x2048xf32>
    %c0_3 = arith.constant 0 : index
    %c0_4 = arith.constant 0 : index
    %3 = vector.load %arg3[%c0_3, %c0_4] : memref<3x1xf32, #tpu.memory_space<vmem>>, vector<3x1xf32>
    %4 = vector.broadcast %3 : vector<3x1xf32> to vector<3x2048xf32>
    %5 = arith.addf %2, %4 : vector<3x2048xf32>
    %c0_5 = arith.constant 0 : index
    %6 = memref.load %arg4[%c0_5] : memref<1xf32, #tpu.memory_space<smem>>
    %cst_6 = arith.constant 0.000000e+00 : f32
    %7 = vector.broadcast %cst_6 : f32 to vector<3x2048xf32>
    %8 = arith.cmpf oge, %5, %7 : vector<3x2048xf32>
    %9 = vector.broadcast %6 : f32 to vector<3x2048xf32>
    %10 = arith.mulf %9, %5 : vector<3x2048xf32>
    %11 = arith.select %8, %5, %10 : vector<3x2048xi1>, vector<3x2048xf32>
    %c0_7 = arith.constant 0 : index
    %c0_8 = arith.constant 0 : index
    %12 = vector.load %arg5[%c0_7, %c0_8] : memref<3x2048xf32, #tpu.memory_space<vmem>>, vector<3x2048xf32>
    tpu.vector_store %arg5[%c0_7, %c0_8], %11 {strides = array<i32>} : memref<3x2048xf32, #tpu.memory_space<vmem>>, vector<3x2048xf32>,
    return
  }
  func.func @transform_0(%arg0: i32) -> (i32, i32) {
    %c0_i32 = arith.constant 0 : i32
    %c0_i32_0 = arith.constant 0 : i32
    %c0_i32_1 = arith.constant 0 : i32
    return %c0_i32, %c0_i32_0 : i32, i32
  }
  func.func @transform_1(%arg0: i32) -> (i32, i32) {
    %c0_i32 = arith.constant 0 : i32
    %c0_i32_0 = arith.constant 0 : i32
    return %c0_i32, %arg0 : i32, i32
  }
  func.func @transform_2(%arg0: i32) -> (i32, i32) {
    %c0_i32 = arith.constant 0 : i32
    %c0_i32_0 = arith.constant 0 : i32
    %c0_i32_1 = arith.constant 0 : i32
    return %c0_i32, %c0_i32_0 : i32, i32
  }
  func.func @transform_3(%arg0: i32) -> i32 {
    %c0_i32 = arith.constant 0 : i32
    %c0_i32_0 = arith.constant 0 : i32
    return %c0_i32 : i32
  }
  func.func @transform_4(%arg0: i32) -> (i32, i32) {
    %c0_i32 = arith.constant 0 : i32
    %c0_i32_0 = arith.constant 0 : i32
    return %c0_i32, %arg0 : i32, i32
  }
}

module attributes {stable_mosaic.version = 11 : i64} {
  func.func @_gemm_bias_prelu_kernel(%arg0: i32, %arg1: memref<8x147xbf16, #tpu.memory_space<vmem>>, %arg2: memref<147x1024xbf16, #tpu.memory_space<vmem>>, %arg3: memref<8x1xf32, #tpu.memory_space<vmem>>, %arg4: memref<1xf32, #tpu.memory_space<smem>>, %arg5: memref<8x1024xf32, #tpu.memory_space<vmem>>) attributes {dimension_semantics = [#tpu.dimension_semantics<parallel>], iteration_bounds = array<i64: 2>, scalar_prefetch = 0 : i64, scratch_operands = 0 : i64, tpu.core_type = #tpu.core_type<tc>, window_params = [{pipeline_mode = #tpu.pipeline_mode<synchronous>, transform_indices = @transform_0, window_bounds = array<i64: 8, 147>}, {transform_indices = @transform_1, window_bounds = array<i64: 147, 1024>}, {pipeline_mode = #tpu.pipeline_mode<synchronous>, transform_indices = @transform_2, window_bounds = array<i64: 8, 1>}, {transform_indices = @transform_3, window_bounds = array<i64: 1>}, {transform_indices = @transform_4, window_bounds = array<i64: 8, 1024>}]} {
    %c0 = arith.constant 0 : index
    %c0_0 = arith.constant 0 : index
    %0 = vector.load %arg1[%c0, %c0_0] : memref<8x147xbf16, #tpu.memory_space<vmem>>, vector<8x147xbf16>
    %c0_1 = arith.constant 0 : index
    %c0_2 = arith.constant 0 : index
    %1 = vector.load %arg2[%c0_1, %c0_2] : memref<147x1024xbf16, #tpu.memory_space<vmem>>, vector<147x1024xbf16>
    %cst = arith.constant dense<0.000000e+00> : vector<8x1024xf32>
    %2 = tpu.matmul %0, %1, %cst {dimension_numbers = #tpu.dot_dimension_numbers<[1], [0], [0], [1], [0, 0, 1, 1], [], []>} : vector<8x147xbf16>, vector<147x1024xbf16>, vector<8x1024xf32> -> vector<8x1024xf32>
    %c0_3 = arith.constant 0 : index
    %c0_4 = arith.constant 0 : index
    %3 = vector.load %arg3[%c0_3, %c0_4] : memref<8x1xf32, #tpu.memory_space<vmem>>, vector<8x1xf32>
    %4 = vector.broadcast %3 : vector<8x1xf32> to vector<8x1024xf32>
    %5 = arith.addf %2, %4 : vector<8x1024xf32>
    %c0_5 = arith.constant 0 : index
    %6 = memref.load %arg4[%c0_5] : memref<1xf32, #tpu.memory_space<smem>>
    %cst_6 = arith.constant 0.000000e+00 : f32
    %7 = vector.broadcast %cst_6 : f32 to vector<8x1024xf32>
    %8 = arith.cmpf oge, %5, %7 : vector<8x1024xf32>
    %9 = vector.broadcast %6 : f32 to vector<8x1024xf32>
    %10 = arith.mulf %9, %5 : vector<8x1024xf32>
    %11 = arith.select %8, %5, %10 : vector<8x1024xi1>, vector<8x1024xf32>
    %c0_7 = arith.constant 0 : index
    %c0_8 = arith.constant 0 : index
    %12 = vector.load %arg5[%c0_7, %c0_8] : memref<8x1024xf32, #tpu.memory_space<vmem>>, vector<8x1024xf32>
    tpu.vector_store %arg5[%c0_7, %c0_8], %11 {strides = array<i32>} : memref<8x1024xf32, #tpu.memory_space<vmem>>, vector<8x1024xf32>,
    return
  }
  func.func @transform_0(%arg0: i32) -> (i32, i32) {
    %c0_i32 = arith.constant 0 : i32
    %c0_i32_0 = arith.constant 0 : i32
    %c0_i32_1 = arith.constant 0 : i32
    return %c0_i32, %c0_i32_0 : i32, i32
  }
  func.func @transform_1(%arg0: i32) -> (i32, i32) {
    %c0_i32 = arith.constant 0 : i32
    %c0_i32_0 = arith.constant 0 : i32
    return %c0_i32, %arg0 : i32, i32
  }
  func.func @transform_2(%arg0: i32) -> (i32, i32) {
    %c0_i32 = arith.constant 0 : i32
    %c0_i32_0 = arith.constant 0 : i32
    %c0_i32_1 = arith.constant 0 : i32
    return %c0_i32, %c0_i32_0 : i32, i32
  }
  func.func @transform_3(%arg0: i32) -> i32 {
    %c0_i32 = arith.constant 0 : i32
    %c0_i32_0 = arith.constant 0 : i32
    return %c0_i32 : i32
  }
  func.func @transform_4(%arg0: i32) -> (i32, i32) {
    %c0_i32 = arith.constant 0 : i32
    %c0_i32_0 = arith.constant 0 : i32
    return %c0_i32, %arg0 : i32, i32
  }
}

module attributes {stable_mosaic.version = 11 : i64} {
  func.func @_gemm_bias_prelu_kernel(%arg0: i32, %arg1: memref<8x72xbf16, #tpu.memory_space<vmem>>, %arg2: memref<72x256xbf16, #tpu.memory_space<vmem>>, %arg3: memref<8x1xf32, #tpu.memory_space<vmem>>, %arg4: memref<1xf32, #tpu.memory_space<smem>>, %arg5: memref<8x256xf32, #tpu.memory_space<vmem>>) attributes {dimension_semantics = [#tpu.dimension_semantics<parallel>], iteration_bounds = array<i64: 2>, scalar_prefetch = 0 : i64, scratch_operands = 0 : i64, tpu.core_type = #tpu.core_type<tc>, window_params = [{pipeline_mode = #tpu.pipeline_mode<synchronous>, transform_indices = @transform_0, window_bounds = array<i64: 8, 72>}, {transform_indices = @transform_1, window_bounds = array<i64: 72, 256>}, {pipeline_mode = #tpu.pipeline_mode<synchronous>, transform_indices = @transform_2, window_bounds = array<i64: 8, 1>}, {transform_indices = @transform_3, window_bounds = array<i64: 1>}, {transform_indices = @transform_4, window_bounds = array<i64: 8, 256>}]} {
    %c0 = arith.constant 0 : index
    %c0_0 = arith.constant 0 : index
    %0 = vector.load %arg1[%c0, %c0_0] : memref<8x72xbf16, #tpu.memory_space<vmem>>, vector<8x72xbf16>
    %c0_1 = arith.constant 0 : index
    %c0_2 = arith.constant 0 : index
    %1 = vector.load %arg2[%c0_1, %c0_2] : memref<72x256xbf16, #tpu.memory_space<vmem>>, vector<72x256xbf16>
    %cst = arith.constant dense<0.000000e+00> : vector<8x256xf32>
    %2 = tpu.matmul %0, %1, %cst {dimension_numbers = #tpu.dot_dimension_numbers<[1], [0], [0], [1], [0, 0, 1, 1], [], []>} : vector<8x72xbf16>, vector<72x256xbf16>, vector<8x256xf32> -> vector<8x256xf32>
    %c0_3 = arith.constant 0 : index
    %c0_4 = arith.constant 0 : index
    %3 = vector.load %arg3[%c0_3, %c0_4] : memref<8x1xf32, #tpu.memory_space<vmem>>, vector<8x1xf32>
    %4 = vector.broadcast %3 : vector<8x1xf32> to vector<8x256xf32>
    %5 = arith.addf %2, %4 : vector<8x256xf32>
    %c0_5 = arith.constant 0 : index
    %6 = memref.load %arg4[%c0_5] : memref<1xf32, #tpu.memory_space<smem>>
    %cst_6 = arith.constant 0.000000e+00 : f32
    %7 = vector.broadcast %cst_6 : f32 to vector<8x256xf32>
    %8 = arith.cmpf oge, %5, %7 : vector<8x256xf32>
    %9 = vector.broadcast %6 : f32 to vector<8x256xf32>
    %10 = arith.mulf %9, %5 : vector<8x256xf32>
    %11 = arith.select %8, %5, %10 : vector<8x256xi1>, vector<8x256xf32>
    %c0_7 = arith.constant 0 : index
    %c0_8 = arith.constant 0 : index
    %12 = vector.load %arg5[%c0_7, %c0_8] : memref<8x256xf32, #tpu.memory_space<vmem>>, vector<8x256xf32>
    tpu.vector_store %arg5[%c0_7, %c0_8], %11 {strides = array<i32>} : memref<8x256xf32, #tpu.memory_space<vmem>>, vector<8x256xf32>,
    return
  }
  func.func @transform_0(%arg0: i32) -> (i32, i32) {
    %c0_i32 = arith.constant 0 : i32
    %c0_i32_0 = arith.constant 0 : i32
    %c0_i32_1 = arith.constant 0 : i32
    return %c0_i32, %c0_i32_0 : i32, i32
  }
  func.func @transform_1(%arg0: i32) -> (i32, i32) {
    %c0_i32 = arith.constant 0 : i32
    %c0_i32_0 = arith.constant 0 : i32
    return %c0_i32, %arg0 : i32, i32
  }
  func.func @transform_2(%arg0: i32) -> (i32, i32) {
    %c0_i32 = arith.constant 0 : i32
    %c0_i32_0 = arith.constant 0 : i32
    %c0_i32_1 = arith.constant 0 : i32
    return %c0_i32, %c0_i32_0 : i32, i32
  }
  func.func @transform_3(%arg0: i32) -> i32 {
    %c0_i32 = arith.constant 0 : i32
    %c0_i32_0 = arith.constant 0 : i32
    return %c0_i32 : i32
  }
  func.func @transform_4(%arg0: i32) -> (i32, i32) {
    %c0_i32 = arith.constant 0 : i32
    %c0_i32_0 = arith.constant 0 : i32
    return %c0_i32, %arg0 : i32, i32
  }
}

module attributes {stable_mosaic.version = 11 : i64} {
  func.func @_gemm_bias_prelu_kernel(%arg0: i32, %arg1: memref<5x8xbf16, #tpu.memory_space<vmem>>, %arg2: memref<8x256xbf16, #tpu.memory_space<vmem>>, %arg3: memref<5x1xf32, #tpu.memory_space<vmem>>, %arg4: memref<1xf32, #tpu.memory_space<smem>>, %arg5: memref<5x256xf32, #tpu.memory_space<vmem>>) attributes {dimension_semantics = [#tpu.dimension_semantics<parallel>], iteration_bounds = array<i64: 2>, scalar_prefetch = 0 : i64, scratch_operands = 0 : i64, tpu.core_type = #tpu.core_type<tc>, window_params = [{pipeline_mode = #tpu.pipeline_mode<synchronous>, transform_indices = @transform_0, window_bounds = array<i64: 5, 8>}, {transform_indices = @transform_1, window_bounds = array<i64: 8, 256>}, {pipeline_mode = #tpu.pipeline_mode<synchronous>, transform_indices = @transform_2, window_bounds = array<i64: 5, 1>}, {transform_indices = @transform_3, window_bounds = array<i64: 1>}, {transform_indices = @transform_4, window_bounds = array<i64: 5, 256>}]} {
    %c0 = arith.constant 0 : index
    %c0_0 = arith.constant 0 : index
    %0 = vector.load %arg1[%c0, %c0_0] : memref<5x8xbf16, #tpu.memory_space<vmem>>, vector<5x8xbf16>
    %c0_1 = arith.constant 0 : index
    %c0_2 = arith.constant 0 : index
    %1 = vector.load %arg2[%c0_1, %c0_2] : memref<8x256xbf16, #tpu.memory_space<vmem>>, vector<8x256xbf16>
    %cst = arith.constant dense<0.000000e+00> : vector<5x256xf32>
    %2 = tpu.matmul %0, %1, %cst {dimension_numbers = #tpu.dot_dimension_numbers<[1], [0], [0], [1], [0, 0, 1, 1], [], []>} : vector<5x8xbf16>, vector<8x256xbf16>, vector<5x256xf32> -> vector<5x256xf32>
    %c0_3 = arith.constant 0 : index
    %c0_4 = arith.constant 0 : index
    %3 = vector.load %arg3[%c0_3, %c0_4] : memref<5x1xf32, #tpu.memory_space<vmem>>, vector<5x1xf32>
    %4 = vector.broadcast %3 : vector<5x1xf32> to vector<5x256xf32>
    %5 = arith.addf %2, %4 : vector<5x256xf32>
    %c0_5 = arith.constant 0 : index
    %6 = memref.load %arg4[%c0_5] : memref<1xf32, #tpu.memory_space<smem>>
    %cst_6 = arith.constant 0.000000e+00 : f32
    %7 = vector.broadcast %cst_6 : f32 to vector<5x256xf32>
    %8 = arith.cmpf oge, %5, %7 : vector<5x256xf32>
    %9 = vector.broadcast %6 : f32 to vector<5x256xf32>
    %10 = arith.mulf %9, %5 : vector<5x256xf32>
    %11 = arith.select %8, %5, %10 : vector<5x256xi1>, vector<5x256xf32>
    %c0_7 = arith.constant 0 : index
    %c0_8 = arith.constant 0 : index
    %12 = vector.load %arg5[%c0_7, %c0_8] : memref<5x256xf32, #tpu.memory_space<vmem>>, vector<5x256xf32>
    tpu.vector_store %arg5[%c0_7, %c0_8], %11 {strides = array<i32>} : memref<5x256xf32, #tpu.memory_space<vmem>>, vector<5x256xf32>,
    return
  }
  func.func @transform_0(%arg0: i32) -> (i32, i32) {
    %c0_i32 = arith.constant 0 : i32
    %c0_i32_0 = arith.constant 0 : i32
    %c0_i32_1 = arith.constant 0 : i32
    return %c0_i32, %c0_i32_0 : i32, i32
  }
  func.func @transform_1(%arg0: i32) -> (i32, i32) {
    %c0_i32 = arith.constant 0 : i32
    %c0_i32_0 = arith.constant 0 : i32
    return %c0_i32, %arg0 : i32, i32
  }
  func.func @transform_2(%arg0: i32) -> (i32, i32) {
    %c0_i32 = arith.constant 0 : i32
    %c0_i32_0 = arith.constant 0 : i32
    %c0_i32_1 = arith.constant 0 : i32
    return %c0_i32, %c0_i32_0 : i32, i32
  }
  func.func @transform_3(%arg0: i32) -> i32 {
    %c0_i32 = arith.constant 0 : i32
    %c0_i32_0 = arith.constant 0 : i32
    return %c0_i32 : i32
  }
  func.func @transform_4(%arg0: i32) -> (i32, i32) {
    %c0_i32 = arith.constant 0 : i32
    %c0_i32_0 = arith.constant 0 : i32
    return %c0_i32, %arg0 : i32, i32
  }
}

module attributes {stable_mosaic.version = 11 : i64} {
  func.func @_gemm_bias_prelu_kernel(%arg0: i32, %arg1: memref<8x21xbf16, #tpu.memory_space<vmem>>, %arg2: memref<21x256xbf16, #tpu.memory_space<vmem>>, %arg3: memref<8x1xf32, #tpu.memory_space<vmem>>, %arg4: memref<1xf32, #tpu.memory_space<smem>>, %arg5: memref<8x256xf32, #tpu.memory_space<vmem>>) attributes {dimension_semantics = [#tpu.dimension_semantics<parallel>], iteration_bounds = array<i64: 2>, scalar_prefetch = 0 : i64, scratch_operands = 0 : i64, tpu.core_type = #tpu.core_type<tc>, window_params = [{pipeline_mode = #tpu.pipeline_mode<synchronous>, transform_indices = @transform_0, window_bounds = array<i64: 8, 21>}, {transform_indices = @transform_1, window_bounds = array<i64: 21, 256>}, {pipeline_mode = #tpu.pipeline_mode<synchronous>, transform_indices = @transform_2, window_bounds = array<i64: 8, 1>}, {transform_indices = @transform_3, window_bounds = array<i64: 1>}, {transform_indices = @transform_4, window_bounds = array<i64: 8, 256>}]} {
    %c0 = arith.constant 0 : index
    %c0_0 = arith.constant 0 : index
    %0 = vector.load %arg1[%c0, %c0_0] : memref<8x21xbf16, #tpu.memory_space<vmem>>, vector<8x21xbf16>
    %c0_1 = arith.constant 0 : index
    %c0_2 = arith.constant 0 : index
    %1 = vector.load %arg2[%c0_1, %c0_2] : memref<21x256xbf16, #tpu.memory_space<vmem>>, vector<21x256xbf16>
    %cst = arith.constant dense<0.000000e+00> : vector<8x256xf32>
    %2 = tpu.matmul %0, %1, %cst {dimension_numbers = #tpu.dot_dimension_numbers<[1], [0], [0], [1], [0, 0, 1, 1], [], []>} : vector<8x21xbf16>, vector<21x256xbf16>, vector<8x256xf32> -> vector<8x256xf32>
    %c0_3 = arith.constant 0 : index
    %c0_4 = arith.constant 0 : index
    %3 = vector.load %arg3[%c0_3, %c0_4] : memref<8x1xf32, #tpu.memory_space<vmem>>, vector<8x1xf32>
    %4 = vector.broadcast %3 : vector<8x1xf32> to vector<8x256xf32>
    %5 = arith.addf %2, %4 : vector<8x256xf32>
    %c0_5 = arith.constant 0 : index
    %6 = memref.load %arg4[%c0_5] : memref<1xf32, #tpu.memory_space<smem>>
    %cst_6 = arith.constant 0.000000e+00 : f32
    %7 = vector.broadcast %cst_6 : f32 to vector<8x256xf32>
    %8 = arith.cmpf oge, %5, %7 : vector<8x256xf32>
    %9 = vector.broadcast %6 : f32 to vector<8x256xf32>
    %10 = arith.mulf %9, %5 : vector<8x256xf32>
    %11 = arith.select %8, %5, %10 : vector<8x256xi1>, vector<8x256xf32>
    %c0_7 = arith.constant 0 : index
    %c0_8 = arith.constant 0 : index
    %12 = vector.load %arg5[%c0_7, %c0_8] : memref<8x256xf32, #tpu.memory_space<vmem>>, vector<8x256xf32>
    tpu.vector_store %arg5[%c0_7, %c0_8], %11 {strides = array<i32>} : memref<8x256xf32, #tpu.memory_space<vmem>>, vector<8x256xf32>,
    return
  }
  func.func @transform_0(%arg0: i32) -> (i32, i32) {
    %c0_i32 = arith.constant 0 : i32
    %c0_i32_0 = arith.constant 0 : i32
    %c0_i32_1 = arith.constant 0 : i32
    return %c0_i32, %c0_i32_0 : i32, i32
  }
  func.func @transform_1(%arg0: i32) -> (i32, i32) {
    %c0_i32 = arith.constant 0 : i32
    %c0_i32_0 = arith.constant 0 : i32
    return %c0_i32, %arg0 : i32, i32
  }
  func.func @transform_2(%arg0: i32) -> (i32, i32) {
    %c0_i32 = arith.constant 0 : i32
    %c0_i32_0 = arith.constant 0 : i32
    %c0_i32_1 = arith.constant 0 : i32
    return %c0_i32, %c0_i32_0 : i32, i32
  }
  func.func @transform_3(%arg0: i32) -> i32 {
    %c0_i32 = arith.constant 0 : i32
    %c0_i32_0 = arith.constant 0 : i32
    return %c0_i32 : i32
  }
  func.func @transform_4(%arg0: i32) -> (i32, i32) {
    %c0_i32 = arith.constant 0 : i32
    %c0_i32_0 = arith.constant 0 : i32
    return %c0_i32, %arg0 : i32, i32
  }
}

</mosaic_0001>

<llo_original>
// kernel: srfbn_hg_forward.32
$region0: #{srfbn_hg_forward.32}
  #allocation0 [shape = 'u32[]', space=smem, size = 0x4, offset = 0x4, fixed_abs, tag = 'smem constant byte address 0x4 - core index']
  #allocation1 [shape = 'u32[144,128]{1,0:T(1,128)}', space=vmem, size = 0x12000, scoped, tag = 'internal scratch']
  #allocation2 [shape = 'f32[1]{0:T(128)S(6)}', space=smem, size = 0x200, scoped, tag = 'scoped memory for srfbn_hg_forward.32']
  %s0 = inlined_call_operand.hbm [shape: bf16[32,27], index: 0, kind: input, shape index: {}]
  %s1 = inlined_call_operand.vmem [shape: bf16[27,512], index: 1, kind: input, shape index: {}]
  %s2 = inlined_call_operand.hbm [shape: f32[32,1], index: 2, kind: input, shape index: {}]
  %s3 = inlined_call_operand.<no memory space> [shape: f32[1], index: 3, kind: input, shape index: {}]
  %s4 = inlined_call_operand.vmem [shape: f32[32,512], index: 4, kind: output, shape index: {}]
  %s5 = sld [smem:[#allocation0]]
  $region114: #{srfbn_hg_forward.32} parent=0
    _
  %s7 = ssub.s32 1, %s5
  %s8 = scalar_select 0, %s7, %s5
  %9 = sst [smem:[#allocation2]] %s3
  $region1: #{srfbn_hg_forward.32} parent=0
    #allocation3 [shape = 'u8[8192]{0}', space=vmem, size = 0x2000, scoped, tag = 'input window, operand 0, single buffered']
    #allocation4 [shape = 's32[2]{0}', space=sflag, size = 0x8, scoped, tag = 'scoped memory for srfbn_hg_forward.32']
    #allocation5 [shape = 'u8[32768]{0}', space=vmem, size = 0x8000, scoped, tag = 'input window, operand 1']
    #allocation6 [shape = 'u8[16384]{0}', space=vmem, size = 0x4000, scoped, tag = 'input window, operand 2, single buffered']
    #allocation7 [shape = 's32[1]{0}', space=sflag, size = 0x4, scoped, tag = 'scoped memory for srfbn_hg_forward.32']
    #allocation8 [shape = 'u8[65536]{0}', space=vmem, size = 0x10000, scoped, tag = 'output window, operand 0']
    %10 = vsyncpa [#allocation4], 0
    %11 = vsyncpa [#allocation7], 0
    loop: start=0, step=1, limit=4
    $region2: #{srfbn_hg_forward.32} parent=1 // loop_pre_header
      _
    $region3: #{srfbn_hg_forward.32} parent=1 // loop_header
      %s13 = sphi 0, %s17
      %p14 = scmp.ge.s32.totalorder %s13, 4
      %s21 = sphi 0, %s21
      %s23 = sphi 0, %s21
      %s24 = sphi 0, %s23
      %s38 = sphi 0, %s24
      %s44 = sphi 0, %s46
      %s47 = sphi 0, %s44
      %s48 = sphi 0, %s47
      %s64 = sphi 0, %s48
      %s68 = sphi 0, %s68
      %s70 = sphi 0, %s68
      %s71 = sphi 0, %s70
      %s85 = sphi 0, %s71
      %s89 = sphi 0, %s89
      %s91 = sphi 0, %s89
      %s92 = sphi 0, %s91
      %s106 = sphi 0, %s92
      %s112 = sphi 0, %s114
      %s115 = sphi 0, %s112
      %s116 = sphi 0, %s115
      %s132 = sphi 0, %s116
    $region4: #{srfbn_hg_forward.32} parent=1 // loop_header_branch
      %16 = sbr.rel (%p14) target = $region8
    $region5: #{srfbn_hg_forward.32} parent=1 // loop_body
      %s18 = ssub.s32 %s13, 1
      %s19 = ssub.s32 %s13, 2
      %s20 = sadd.s32 %s13, 1
      %s22 = sadd.s32 %s21, 1
      %p25 = scmp.eq.s32.totalorder %s13, 1
      %p26 = scmp.ne.s32.totalorder %s21, %s23
      %p27 = scmp.eq.s32.totalorder %s13, 0
      %p28 = por %p26, %p27
      %p29 = scmp.ne.s32.totalorder %s21, %s23
      %p30 = scmp.eq.s32.totalorder %s18, 1
      %p31 = por %p29, %p30
      %p32 = scmp.ne.s32.totalorder %s23, %s24
      %p33 = scmp.eq.s32.totalorder %s18, 0
      %p34 = por %p32, %p33
      %p35 = scmp.ne.s32.totalorder %s23, %s24
      %p36 = scmp.eq.s32.totalorder %s19, 1
      %p37 = por %p35, %p36
      %p39 = scmp.ne.s32.totalorder %s24, %s38
      %p40 = scmp.eq.s32.totalorder %s19, 0
      %p41 = por %p39, %p40
      %s42 = ssub.s32 %s13, %s20
      %p43 = scmp.eq.s32.totalorder %s42, 0
      %s45 = sadd.s32 %s44, 1
      %s46 = scalar_select %p43, %s44, %s45
      %p49 = pneg %p43
      %p50 = scmp.eq.s32.totalorder %s13, 1
      %p51 = por %p49, %p50
      %p52 = scmp.ne.s32.totalorder %s44, %s47
      %p53 = scmp.eq.s32.totalorder %s13, 0
      %p54 = por %p52, %p53
      %p55 = scmp.ne.s32.totalorder %s44, %s47
      %p56 = scmp.eq.s32.totalorder %s18, 1
      %p57 = por %p55, %p56
      %p58 = scmp.ne.s32.totalorder %s47, %s48
      %p59 = scmp.eq.s32.totalorder %s18, 0
      %p60 = por %p58, %p59
      %p61 = scmp.ne.s32.totalorder %s47, %s48
      %p62 = scmp.eq.s32.totalorder %s19, 1
      %p63 = por %p61, %p62
      %p65 = scmp.ne.s32.totalorder %s48, %s64
      %p66 = scmp.eq.s32.totalorder %s19, 0
      %p67 = por %p65, %p66
      %s69 = sadd.s32 %s68, 1
      %p72 = scmp.eq.s32.totalorder %s13, 1
      %p73 = scmp.ne.s32.totalorder %s68, %s70
      %p74 = scmp.eq.s32.totalorder %s13, 0
      %p75 = por %p73, %p74
      %p76 = scmp.ne.s32.totalorder %s68, %s70
      %p77 = scmp.eq.s32.totalorder %s18, 1
      %p78 = por %p76, %p77
      %p79 = scmp.ne.s32.totalorder %s70, %s71
      %p80 = scmp.eq.s32.totalorder %s18, 0
      %p81 = por %p79, %p80
      %p82 = scmp.ne.s32.totalorder %s70, %s71
      %p83 = scmp.eq.s32.totalorder %s19, 1
      %p84 = por %p82, %p83
      %p86 = scmp.ne.s32.totalorder %s71, %s85
      %p87 = scmp.eq.s32.totalorder %s19, 0
      %p88 = por %p86, %p87
      %s90 = sadd.s32 %s89, 1
      %p93 = scmp.eq.s32.totalorder %s13, 1
      %p94 = scmp.ne.s32.totalorder %s89, %s91
      %p95 = scmp.eq.s32.totalorder %s13, 0
      %p96 = por %p94, %p95
      %p97 = scmp.ne.s32.totalorder %s89, %s91
      %p98 = scmp.eq.s32.totalorder %s18, 1
      %p99 = por %p97, %p98
      %p100 = scmp.ne.s32.totalorder %s91, %s92
      %p101 = scmp.eq.s32.totalorder %s18, 0
      %p102 = por %p100, %p101
      %p103 = scmp.ne.s32.totalorder %s91, %s92
      %p104 = scmp.eq.s32.totalorder %s19, 1
      %p105 = por %p103, %p104
      %p107 = scmp.ne.s32.totalorder %s92, %s106
      %p108 = scmp.eq.s32.totalorder %s19, 0
      %p109 = por %p107, %p108
      %s110 = ssub.s32 %s13, %s20
      %p111 = scmp.eq.s32.totalorder %s110, 0
      %s113 = sadd.s32 %s112, 1
      %s114 = scalar_select %p111, %s112, %s113
      %p117 = pneg %p111
      %p118 = scmp.eq.s32.totalorder %s13, 1
      %p119 = por %p117, %p118
      %p120 = scmp.ne.s32.totalorder %s112, %s115
      %p121 = scmp.eq.s32.totalorder %s13, 0
      %p122 = por %p120, %p121
      %p123 = scmp.ne.s32.totalorder %s112, %s115
      %p124 = scmp.eq.s32.totalorder %s18, 1
      %p125 = por %p123, %p124
      %p126 = scmp.ne.s32.totalorder %s115, %s116
      %p127 = scmp.eq.s32.totalorder %s18, 0
      %p128 = por %p126, %p127
      %p129 = scmp.ne.s32.totalorder %s115, %s116
      %p130 = scmp.eq.s32.totalorder %s19, 1
      %p131 = por %p129, %p130
      %p133 = scmp.ne.s32.totalorder %s116, %s132
      %p134 = scmp.eq.s32.totalorder %s19, 0
      %p135 = por %p133, %p134
      %p136 = scmp.le.s32.totalorder 1, %s13
      %p137 = scmp.lt.s32.totalorder %s13, 3
      %p138 = pnand %p136, %p137
      %p139 = pneg %p138
      // Predicated region
      $region9: #{srfbn_hg_forward.32} parent=5 // pred_check
        _
      $region10: #{srfbn_hg_forward.32} parent=5 // pred_check_branch
        %141 = sbr.rel (%p138) target = $region12
      $region11: #{srfbn_hg_forward.32} parent=5 // pred_region
        %s142 = ssub.s32 %s13, 1
        // Predicated region
        $region13: #{srfbn_hg_forward.32} parent=11 // pred_check
          %p143 = pneg %p34
        $region14: #{srfbn_hg_forward.32} parent=11 // pred_check_branch
          %145 = sbr.rel (%p143) target = $region16
        $region15: #{srfbn_hg_forward.32} parent=11 // pred_region
          %s147 = ssub.s32 256, 256
          %148 = vsyncadd [#allocation4], %s147
          %s149 = sshll.u32 [#allocation3], 4
          %s150 = int_to_ptr.vmem [resolvable:$true] %s149
          %155 = dma.hbm_to_vmem [thread:$0]  %s0, 256, %s150, [#allocation4], 64, 64, 4
        $region16: #{srfbn_hg_forward.32} parent=11 // pred_fallthru
          _
        // Predicated region
        $region17: #{srfbn_hg_forward.32} parent=11 // pred_check
          %p156 = pneg %p81
        $region18: #{srfbn_hg_forward.32} parent=11 // pred_check_branch
          %158 = sbr.rel (%p156) target = $region20
        $region19: #{srfbn_hg_forward.32} parent=11 // pred_region
          %s160 = ssub.s32 512, 512
          %161 = vsyncadd [#allocation7], %s160
          %s162 = sshll.u32 [#allocation6], 4
          %s163 = int_to_ptr.vmem [resolvable:$true] %s162
          %168 = dma.hbm_to_vmem [thread:$0]  %s2, 512, %s163, [#allocation7], 128, 128, 8
        $region20: #{srfbn_hg_forward.32} parent=11 // pred_fallthru
          _
        // Predicated region
        $region21: #{srfbn_hg_forward.32} parent=11 // pred_check
          %p169 = pneg %p102
        $region22: #{srfbn_hg_forward.32} parent=11 // pred_check_branch
          %171 = sbr.rel (%p169) target = $region24
        $region23: #{srfbn_hg_forward.32} parent=11 // pred_region
          _
        $region24: #{srfbn_hg_forward.32} parent=11 // pred_fallthru
          _
      $region12: #{srfbn_hg_forward.32} parent=5 // pred_fallthru
        _
      %p172 = scmp.lt.s32.totalorder %s13, 2
      // Predicated region
      $region25: #{srfbn_hg_forward.32} parent=5 // pred_check
        %p173 = pneg %p172
      $region26: #{srfbn_hg_forward.32} parent=5 // pred_check_branch
        %175 = sbr.rel (%p173) target = $region28
      $region27: #{srfbn_hg_forward.32} parent=5 // pred_region
        // Predicated region
        $region29: #{srfbn_hg_forward.32} parent=27 // pred_check
          %p176 = pneg %p54
        $region30: #{srfbn_hg_forward.32} parent=27 // pred_check_branch
          %178 = sbr.rel (%p176) target = $region32
        $region31: #{srfbn_hg_forward.32} parent=27 // pred_region
          %s179 = sand.u32 %s44, 1
          %s180 = sand.u32 %s44, 1
          %s181 = smul.addr %s180, 32
          %s182 = scalar_lea.vmem [#allocation5], %s181
          %s183 = smul.u32 2, %s13
          %s184 = smul.addr %s183, 4
          %s185 = scalar_lea.vmem %s1, %s184
          // Predicated region
          $region33: #{srfbn_hg_forward.32} parent=31 // pred_check
            _
          $region34: #{srfbn_hg_forward.32} parent=31 // pred_check_branch
            %187 = sbr.rel (0) target = $region36
          $region35: #{srfbn_hg_forward.32} parent=31 // pred_region
            // Predicated region
            $region37: #{srfbn_hg_forward.32} parent=35 // pred_check
              _
            $region38: #{srfbn_hg_forward.32} parent=35 // pred_check_branch
              %189 = sbr.rel (0) target = $region40
            $region39: #{srfbn_hg_forward.32} parent=35 // pred_region
              // Predicated region
              $region52: #{srfbn_hg_forward.32} parent=39 // pred_check
                _
              $region53: #{srfbn_hg_forward.32} parent=39 // pred_check_branch
                %210 = sbr.rel (0) target = $region55
              $region54: #{srfbn_hg_forward.32} parent=39 // pred_region
                loop: start=0, step=1, limit=1
                $region56: #{srfbn_hg_forward.32} parent=54 // loop_pre_header
                  _
                $region57: #{srfbn_hg_forward.32} parent=54 // loop_header
                  %s212 = sphi 0, %s216
                  %p213 = scmp.ge.s32.totalorder %s212, 1
                  %s217 = sphi %s185, %s185
                  %s218 = sphi %s182, %s182
                $region58: #{srfbn_hg_forward.32} parent=54 // loop_header_branch
                  %215 = sbr.rel (%p213) target = $region62
                $region59: #{srfbn_hg_forward.32} parent=54 // loop_body
                  %v219 = vld [vmem:[%s217] sm:$0xff]
                  %220 = vst [vmem:[%s218] sm:$0xff] %v219
                  %v221 = vld [vmem:[%s217 + $0x10] sm:$0xff]
                  %222 = vst [vmem:[%s218 + $0x8] sm:$0xff] %v221
                  %v223 = vld [vmem:[%s217 + $0x20] sm:$0xff]
                  %224 = vst [vmem:[%s218 + $0x10] sm:$0xff] %v223
                  %v225 = vld [vmem:[%s217 + $0x30] sm:$0xff]
                  %226 = vst [vmem:[%s218 + $0x18] sm:$0xff] %v225
                $region60: #{srfbn_hg_forward.32} parent=54 // loop_footer
                  %s216 = sadd.s32 1, %s212
                $region61: #{srfbn_hg_forward.32} parent=54 // loop_footer_branch
                  %211 = sbr.rel target = $region57
                $region62: #{srfbn_hg_forward.32} parent=54 // loop_exit
                  _
              $region55: #{srfbn_hg_forward.32} parent=39 // pred_fallthru
                _
              // Predicated region
              $region63: #{srfbn_hg_forward.32} parent=39 // pred_check
                _
              $region64: #{srfbn_hg_forward.32} parent=39 // pred_check_branch
                %228 = sbr.rel target = $region66
              $region65: #{srfbn_hg_forward.32} parent=39 // pred_region
                _
              $region66: #{srfbn_hg_forward.32} parent=39 // pred_fallthru
                _
            $region40: #{srfbn_hg_forward.32} parent=35 // pred_fallthru
              _
            // Predicated region
            $region41: #{srfbn_hg_forward.32} parent=35 // pred_check
              _
            $region42: #{srfbn_hg_forward.32} parent=35 // pred_check_branch
              %191 = sbr.rel target = $region44
            $region43: #{srfbn_hg_forward.32} parent=35 // pred_region
              loop: start=0, step=1, limit=1
              $region45: #{srfbn_hg_forward.32} parent=43 // loop_pre_header
                _
              $region46: #{srfbn_hg_forward.32} parent=43 // loop_header
                %s194 = sphi 0, %s198
                %p195 = scmp.ge.s32.totalorder %s194, 1
                %s199 = sphi %s185, %s185
                %s200 = sphi %s182, %s182
              $region47: #{srfbn_hg_forward.32} parent=43 // loop_header_branch
                %197 = sbr.rel (%p195) target = $region51
              $region48: #{srfbn_hg_forward.32} parent=43 // loop_body
                %v201 = vld [vmem:[%s199] sm:$0xff]
                %202 = vst [vmem:[%s200] sm:$0xff] %v201
                %v203 = vld [vmem:[%s199 + $0x10] sm:$0xff]
                %204 = vst [vmem:[%s200 + $0x8] sm:$0xff] %v203
                %v205 = vld [vmem:[%s199 + $0x20] sm:$0xff]
                %206 = vst [vmem:[%s200 + $0x10] sm:$0xff] %v205
                %v207 = vld [vmem:[%s199 + $0x30] sm:$0xff]
                %208 = vst [vmem:[%s200 + $0x18] sm:$0xff] %v207
              $region49: #{srfbn_hg_forward.32} parent=43 // loop_footer
                %s198 = sadd.s32 1, %s194
              $region50: #{srfbn_hg_forward.32} parent=43 // loop_footer_branch
                %193 = sbr.rel target = $region46
              $region51: #{srfbn_hg_forward.32} parent=43 // loop_exit
                _
            $region44: #{srfbn_hg_forward.32} parent=35 // pred_fallthru
              _
          $region36: #{srfbn_hg_forward.32} parent=31 // pred_fallthru
            _
          %229 = vnop
        $region32: #{srfbn_hg_forward.32} parent=27 // pred_fallthru
          _
      $region28: #{srfbn_hg_forward.32} parent=5 // pred_fallthru
        _
      %p230 = scmp.le.s32.totalorder 1, %s13
      %p231 = scmp.lt.s32.totalorder %s13, 3
      %p232 = pnand %p230, %p231
      %p233 = pneg %p232
      // Predicated region
      $region67: #{srfbn_hg_forward.32} parent=5 // pred_check
        _
      $region68: #{srfbn_hg_forward.32} parent=5 // pred_check_branch
        %235 = sbr.rel (%p232) target = $region70
      $region69: #{srfbn_hg_forward.32} parent=5 // pred_region
        %s236 = ssub.s32 %s13, 1
        // Predicated region
        $region71: #{srfbn_hg_forward.32} parent=69 // pred_check
          %p237 = pneg %p34
        $region72: #{srfbn_hg_forward.32} parent=69 // pred_check_branch
          %239 = sbr.rel (%p237) target = $region74
        $region73: #{srfbn_hg_forward.32} parent=69 // pred_region
          %240 = dma.done [#allocation4], 256
        $region74: #{srfbn_hg_forward.32} parent=69 // pred_fallthru
          _
        %s241 = sand.u32 %s47, 1
        %s242 = sand.u32 %s47, 1
        %s243 = smul.addr %s242, 32
        %s244 = scalar_lea.vmem [#allocation5], %s243
        // Predicated region
        $region75: #{srfbn_hg_forward.32} parent=69 // pred_check
          %p245 = pneg %p60
        $region76: #{srfbn_hg_forward.32} parent=69 // pred_check_branch
          %247 = sbr.rel (%p245) target = $region78
        $region77: #{srfbn_hg_forward.32} parent=69 // pred_region
          _
        $region78: #{srfbn_hg_forward.32} parent=69 // pred_fallthru
          _
        // Predicated region
        $region79: #{srfbn_hg_forward.32} parent=69 // pred_check
          %p248 = pneg %p81
        $region80: #{srfbn_hg_forward.32} parent=69 // pred_check_branch
          %250 = sbr.rel (%p248) target = $region82
        $region81: #{srfbn_hg_forward.32} parent=69 // pred_region
          %251 = dma.done [#allocation7], 512
        $region82: #{srfbn_hg_forward.32} parent=69 // pred_fallthru
          _
        %p252 = pneg %p34
        %p253 = pneg %p31
        %s254 = sand.u32 %s47, 1
        %s255 = sand.u32 %s47, 1
        %s256 = smul.addr %s255, 32
        %s257 = scalar_lea.vmem [#allocation5], %s256
        %p258 = pneg %p60
        %p259 = pneg %p57
        %p260 = pneg %p81
        %p261 = pneg %p78
        %p262 = pneg %p102
        %p263 = pneg %p99
        %p264 = pneg %p128
        %p265 = pneg %p125
        %s266 = sand.u32 %s115, 1
        %s267 = sand.u32 %s115, 1
        %s268 = smul.addr %s267, 64
        %s269 = scalar_lea.vmem [#allocation8], %s268
        %s270 = smul.u32 2, %s18
        %s271 = smul.u32 2, %s18
        %v273 = vld [vmem:[#allocation3] sm:$0xf]
        %v274 = vld [vmem:[#allocation3 + $0x4] sm:$0xf]
        %v275 = vld [vmem:[#allocation3 + $0x8] sm:$0xf]
        %v276 = vld [vmem:[#allocation3 + $0xc] sm:$0xf]
        %v277 = vld [vmem:[%s244] sm:$0xff]
        %v278 = vld [vmem:[%s244 + $0x8] sm:$0xff]
        %v279 = vld [vmem:[%s244 + $0x10] sm:$0xff]
        %v280 = vld [vmem:[%s244 + $0x18] sm:$0x33]
        %v281 = vld [vmem:[#allocation6] sm:$0xff]
        %v282 = vld [vmem:[#allocation6 + $0x8] sm:$0xff]
        %v283 = vld [vmem:[#allocation6 + $0x10] sm:$0xff]
        %v284 = vld [vmem:[#allocation6 + $0x18] sm:$0xff]
        %286 = vset.pattern.permute.xlu0 0
        %287 = vperm.xlu0 %286, %v281
        %v288 = vpop.permute.xlu0 %287
        %291 = vset.pattern.permute.xlu0 0
        %292 = vperm.xlu0 %291, %v282
        %v293 = vpop.permute.xlu0 %292
        %296 = vset.pattern.permute.xlu0 0
        %297 = vperm.xlu0 %296, %v283
        %v298 = vpop.permute.xlu0 %297
        %301 = vset.pattern.permute.xlu0 0
        %302 = vperm.xlu0 %301, %v284
        %v303 = vpop.permute.xlu0 %302
        %v309 = vunpack.c.l.b16 %v273
        %v310 = vunpack.c.l.b16 %v274
        %v311 = vunpack.c.l.b16 %v275
        %v312 = vunpack.c.l.b16 %v276
        %v313 = vpack.c.b16 %v310, %v309
        %v314 = vpack.c.b16 %v312, %v311
        %v319 = vunpack.c.l.b16 %v277
        %v320 = vunpack.c.h.b16 %v277
        %v321 = vunpack.c.l.b16 %v278
        %v322 = vunpack.c.h.b16 %v278
        %v323 = vunpack.c.l.b16 %v279
        %v324 = vunpack.c.h.b16 %v279
        %v325 = vunpack.c.l.b16 %v280
        %v326 = vunpack.c.h.b16 %v280
        %v327 = vpack.c.b16 %v321, %v319
        %v328 = vpack.c.b16 %v322, %v320
        %v329 = vpack.c.b16 %v325, %v323
        %v330 = vpack.c.b16 %v326, %v324
        %vm333 = vcmask 220160
        %v335 = vsel %vm333, %v313, 0
        %v338 = vsel %vm333, %v314, 0
        %vm340 = vcmask 1044480
        %vm341 = vcmask 1045504
        %v342 = vsel %vm340, 4294967295, 65535
        %v343 = vsel %vm341, %v342, 0
        %v345 = vand.u32 %v329, %v343
        %v348 = vand.u32 %v330, %v343
        %350 = vmatprep.subr.bf16.mxu0 %v328
        %351 = vmatpush1.bf16.msra.mxu0 %v327
        %352 = vmatprep.subr.bf16.mxu0 %v348
        %353 = vmatpush1.bf16.msra.mxu0 %v345
        %354 = vmatprep.subr.bf16.mxu0 0
        %355 = vmatpush1.bf16.msra.mxu0 0
        %356 = vmatprep.subr.bf16.mxu0 0
        %357 = vmatpush1.bf16.msra.mxu0 0
        %358 = vmatprep.subr.bf16.mxu0 0
        %359 = vmatpush1.bf16.msra.mxu0 0
        %360 = vmatprep.subr.bf16.mxu0 0
        %361 = vmatpush1.bf16.msra.mxu0 0
        %362 = vmatprep.subr.bf16.mxu0 0
        %363 = vmatpush1.bf16.msra.mxu0 0
        %364 = vmatprep.subr.bf16.mxu0 0
        %365 = vmatpush1.bf16.msra.mxu0 0
        %366 = vmatprep.subr.bf16.mxu0 0
        %367 = vmatpush1.bf16.msra.mxu0 0
        %368 = vmatprep.subr.bf16.mxu0 0
        %369 = vmatpush1.bf16.msra.mxu0 0
        %370 = vmatprep.subr.bf16.mxu0 0
        %371 = vmatpush1.bf16.msra.mxu0 0
        %372 = vmatprep.subr.bf16.mxu0 0
        %373 = vmatpush1.bf16.msra.mxu0 0
        %374 = vmatprep.subr.bf16.mxu0 0
        %375 = vmatpush1.bf16.msra.mxu0 0
        %376 = vmatprep.subr.bf16.mxu0 0
        %377 = vmatpush1.bf16.msra.mxu0 0
        %378 = vmatprep.subr.bf16.mxu0 0
        %379 = vmatpush1.bf16.msra.mxu0 0
        %380 = vmatprep.subr.bf16.mxu0 0
        %381 = vmatpush1.bf16.msra.mxu0 0
        %382 = vmatprep.mubr.bf16.mxu0 0
        %383 = vmatmul.mubr.bf16.gmra.mrb[0].mxu0 %v335
        %v384 = vpop.f32.mrb[0].mxu0
        %v385 = vadd.f32 %v288, %v384
        %v386 = vpop.f32.mrb[0].mxu0
        %v387 = vadd.f32 %v288, %v386
        %v388 = vpop.f32.mrb[0].mxu0
        %v389 = vadd.f32 %v293, %v388
        %v390 = vpop.f32.mrb[0].mxu0
        %v391 = vadd.f32 %v293, %v390
        %392 = vmatprep.mubr.bf16.mxu0 0
        %393 = vmatmul.mubr.bf16.gmra.mrb[0].mxu0 %v338
        %v394 = vpop.f32.mrb[0].mxu0
        %v395 = vadd.f32 %v298, %v394
        %v396 = vpop.f32.mrb[0].mxu0
        %v397 = vadd.f32 %v298, %v396
        %v398 = vpop.f32.mrb[0].mxu0
        %v399 = vadd.f32 %v303, %v398
        %v400 = vpop.f32.mrb[0].mxu0
        %v401 = vadd.f32 %v303, %v400
        %402 = vdwg.mxu0
        %s403 = sld [smem:[#allocation2]]
        %vm404 = vcmp.ge.f32.partialorder %v385, 0.0
        %vm405 = vcmp.ge.f32.partialorder %v387, 0.0
        %vm406 = vcmp.ge.f32.partialorder %v389, 0.0
        %vm407 = vcmp.ge.f32.partialorder %v391, 0.0
        %vm408 = vcmp.ge.f32.partialorder %v395, 0.0
        %vm409 = vcmp.ge.f32.partialorder %v397, 0.0
        %vm410 = vcmp.ge.f32.partialorder %v399, 0.0
        %vm411 = vcmp.ge.f32.partialorder %v401, 0.0
        %v412 = vstv %s403
        %v413 = vmul.f32 %v412, %v385
        %v414 = vmul.f32 %v412, %v387
        %v415 = vmul.f32 %v412, %v389
        %v416 = vmul.f32 %v412, %v391
        %v417 = vmul.f32 %v412, %v395
        %v418 = vmul.f32 %v412, %v397
        %v419 = vmul.f32 %v412, %v399
        %v420 = vmul.f32 %v412, %v401
        %v421 = vsel %vm404, %v385, %v413
        %v422 = vsel %vm405, %v387, %v414
        %v423 = vsel %vm406, %v389, %v415
        %v424 = vsel %vm407, %v391, %v416
        %v425 = vsel %vm408, %v395, %v417
        %v426 = vsel %vm409, %v397, %v418
        %v427 = vsel %vm410, %v399, %v419
        %v428 = vsel %vm411, %v401, %v420
        %429 = vst [vmem:[%s269] sm:$0xff] %v421
        %430 = vst [vmem:[%s269 + $0x8] sm:$0xff] %v422
        %431 = vst [vmem:[%s269 + $0x10] sm:$0xff] %v423
        %432 = vst [vmem:[%s269 + $0x18] sm:$0xff] %v424
        %433 = vst [vmem:[%s269 + $0x20] sm:$0xff] %v425
        %434 = vst [vmem:[%s269 + $0x28] sm:$0xff] %v426
        %435 = vst [vmem:[%s269 + $0x30] sm:$0xff] %v427
        %436 = vst [vmem:[%s269 + $0x38] sm:$0xff] %v428
        %s437 = sand.u32 %s115, 1
        %s438 = sand.u32 %s115, 1
        %s439 = smul.addr %s438, 64
        %s440 = scalar_lea.vmem [#allocation8], %s439
        // Predicated region
        $region83: #{srfbn_hg_forward.32} parent=69 // pred_check
          %p441 = pneg %p125
        $region84: #{srfbn_hg_forward.32} parent=69 // pred_check_branch
          %443 = sbr.rel (%p441) target = $region86
        $region85: #{srfbn_hg_forward.32} parent=69 // pred_region
          %s444 = smul.u32 2, %s18
          %s445 = smul.addr %s444, 8
          %s446 = scalar_lea.vmem %s4, %s445
          // Predicated region
          $region87: #{srfbn_hg_forward.32} parent=85 // pred_check
            _
          $region88: #{srfbn_hg_forward.32} parent=85 // pred_check_branch
            %448 = sbr.rel (0) target = $region90
          $region89: #{srfbn_hg_forward.32} parent=85 // pred_region
            // Predicated region
            $region91: #{srfbn_hg_forward.32} parent=89 // pred_check
              _
            $region92: #{srfbn_hg_forward.32} parent=89 // pred_check_branch
              %450 = sbr.rel (0) target = $region94
            $region93: #{srfbn_hg_forward.32} parent=89 // pred_region
              loop: start=0, step=1, limit=1
              $region95: #{srfbn_hg_forward.32} parent=93 // loop_pre_header
                _
              $region96: #{srfbn_hg_forward.32} parent=93 // loop_header
                %s452 = sphi 0, %s456
                %p453 = scmp.ge.s32.totalorder %s452, 1
                %s457 = sphi %s440, %s440
                %s458 = sphi %s446, %s446
              $region97: #{srfbn_hg_forward.32} parent=93 // loop_header_branch
                %455 = sbr.rel (%p453) target = $region101
              $region98: #{srfbn_hg_forward.32} parent=93 // loop_body
                %v459 = vld [vmem:[%s457] sm:$0xff]
                %460 = vst [vmem:[%s458] sm:$0xff] %v459
                %v461 = vld [vmem:[%s457 + $0x8] sm:$0xff]
                %462 = vst [vmem:[%s458 + $0x8] sm:$0xff] %v461
                %v463 = vld [vmem:[%s457 + $0x10] sm:$0xff]
                %464 = vst [vmem:[%s458 + $0x20] sm:$0xff] %v463
                %v465 = vld [vmem:[%s457 + $0x18] sm:$0xff]
                %466 = vst [vmem:[%s458 + $0x28] sm:$0xff] %v465
                %v467 = vld [vmem:[%s457 + $0x20] sm:$0xff]
                %468 = vst [vmem:[%s458 + $0x40] sm:$0xff] %v467
                %v469 = vld [vmem:[%s457 + $0x28] sm:$0xff]
                %470 = vst [vmem:[%s458 + $0x48] sm:$0xff] %v469
                %v471 = vld [vmem:[%s457 + $0x30] sm:$0xff]
                %472 = vst [vmem:[%s458 + $0x60] sm:$0xff] %v471
                %v473 = vld [vmem:[%s457 + $0x38] sm:$0xff]
                %474 = vst [vmem:[%s458 + $0x68] sm:$0xff] %v473
              $region99: #{srfbn_hg_forward.32} parent=93 // loop_footer
                %s456 = sadd.s32 1, %s452
              $region100: #{srfbn_hg_forward.32} parent=93 // loop_footer_branch
                %451 = sbr.rel target = $region96
              $region101: #{srfbn_hg_forward.32} parent=93 // loop_exit
                _
            $region94: #{srfbn_hg_forward.32} parent=89 // pred_fallthru
              _
            // Predicated region
            $region102: #{srfbn_hg_forward.32} parent=89 // pred_check
              _
            $region103: #{srfbn_hg_forward.32} parent=89 // pred_check_branch
              %476 = sbr.rel target = $region105
            $region104: #{srfbn_hg_forward.32} parent=89 // pred_region
              _
            $region105: #{srfbn_hg_forward.32} parent=89 // pred_fallthru
              _
          $region90: #{srfbn_hg_forward.32} parent=85 // pred_fallthru
            _
          %477 = vnop
        $region86: #{srfbn_hg_forward.32} parent=69 // pred_fallthru
          _
      $region70: #{srfbn_hg_forward.32} parent=5 // pred_fallthru
        _
      %p478 = scmp.le.s32.totalorder 2, %s13
      // Predicated region
      $region106: #{srfbn_hg_forward.32} parent=5 // pred_check
        %p479 = pneg %p478
      $region107: #{srfbn_hg_forward.32} parent=5 // pred_check_branch
        %481 = sbr.rel (%p479) target = $region109
      $region108: #{srfbn_hg_forward.32} parent=5 // pred_region
        %s482 = ssub.s32 %s13, 2
        // Predicated region
        $region110: #{srfbn_hg_forward.32} parent=108 // pred_check
          %p483 = pneg %p131
        $region111: #{srfbn_hg_forward.32} parent=108 // pred_check_branch
          %485 = sbr.rel (%p483) target = $region113
        $region112: #{srfbn_hg_forward.32} parent=108 // pred_region
          %s486 = sand.u32 %s116, 1
          %s487 = sand.u32 %s116, 1
          %s488 = smul.addr %s487, 64
          %s489 = scalar_lea.vmem [#allocation8], %s488
        $region113: #{srfbn_hg_forward.32} parent=108 // pred_fallthru
          _
      $region109: #{srfbn_hg_forward.32} parent=5 // pred_fallthru
        _
    $region6: #{srfbn_hg_forward.32} parent=1 // loop_footer
      %s17 = sadd.s32 1, %s13
    $region7: #{srfbn_hg_forward.32} parent=1 // loop_footer_branch
      %12 = sbr.rel target = $region3
    $region8: #{srfbn_hg_forward.32} parent=1 // loop_exit
      _
    %490 = vsyncpa [#allocation4], 1
    %s491 = scalar_lea.sflag [#allocation4], 1
    %492 = vsyncpa %s491, 1
    %493 = vsyncpa [#allocation7], 1

// kernel: srfbn_hg_forward.33
$region0: #{srfbn_hg_forward.33}
  #allocation0 [shape = 'u32[]', space=smem, size = 0x4, offset = 0x4, fixed_abs, tag = 'smem constant byte address 0x4 - core index']
  #allocation1 [shape = 'u32[144,128]{1,0:T(1,128)}', space=vmem, size = 0x12000, scoped, tag = 'internal scratch']
  #allocation2 [shape = 'f32[1]{0:T(128)S(6)}', space=smem, size = 0x200, scoped, tag = 'scoped memory for srfbn_hg_forward.33']
  %s0 = inlined_call_operand.hbm [shape: bf16[8,32], index: 0, kind: input, shape index: {}]
  %s1 = inlined_call_operand.vmem [shape: bf16[32,512], index: 1, kind: input, shape index: {}]
  %s2 = inlined_call_operand.hbm [shape: f32[8,1], index: 2, kind: input, shape index: {}]
  %s3 = inlined_call_operand.<no memory space> [shape: f32[1], index: 3, kind: input, shape index: {}]
  %s4 = inlined_call_operand.vmem [shape: f32[8,512], index: 4, kind: output, shape index: {}]
  %s5 = sld [smem:[#allocation0]]
  $region95: #{srfbn_hg_forward.33} parent=0
    _
  %s7 = ssub.s32 1, %s5
  %s8 = scalar_select 0, %s7, %s5
  %9 = sst [smem:[#allocation2]] %s3
  $region1: #{srfbn_hg_forward.33} parent=0
    #allocation3 [shape = 'u8[2048]{0}', space=vmem, size = 0x800, scoped, tag = 'input window, operand 0, single buffered']
    #allocation4 [shape = 's32[2]{0}', space=sflag, size = 0x8, scoped, tag = 'scoped memory for srfbn_hg_forward.33']
    #allocation5 [shape = 'u8[32768]{0}', space=vmem, size = 0x8000, scoped, tag = 'input window, operand 1']
    #allocation6 [shape = 'u8[4096]{0}', space=vmem, size = 0x1000, scoped, tag = 'input window, operand 2, single buffered']
    #allocation7 [shape = 's32[1]{0}', space=sflag, size = 0x4, scoped, tag = 'scoped memory for srfbn_hg_forward.33']
    %10 = vsyncpa [#allocation4], 0
    %11 = vsyncpa [#allocation7], 0
    loop: start=0, step=1, limit=4
    $region2: #{srfbn_hg_forward.33} parent=1 // loop_pre_header
      _
    $region3: #{srfbn_hg_forward.33} parent=1 // loop_header
      %s13 = sphi 0, %s17
      %p14 = scmp.ge.s32.totalorder %s13, 4
      %s21 = sphi 0, %s21
      %s23 = sphi 0, %s21
      %s24 = sphi 0, %s23
      %s38 = sphi 0, %s24
      %s44 = sphi 0, %s46
      %s47 = sphi 0, %s44
      %s48 = sphi 0, %s47
      %s64 = sphi 0, %s48
      %s68 = sphi 0, %s68
      %s70 = sphi 0, %s68
      %s71 = sphi 0, %s70
      %s85 = sphi 0, %s71
      %s89 = sphi 0, %s89
      %s91 = sphi 0, %s89
      %s92 = sphi 0, %s91
      %s106 = sphi 0, %s92
      %s112 = sphi 0, %s114
      %s115 = sphi 0, %s112
      %s116 = sphi 0, %s115
      %s132 = sphi 0, %s116
    $region4: #{srfbn_hg_forward.33} parent=1 // loop_header_branch
      %16 = sbr.rel (%p14) target = $region8
    $region5: #{srfbn_hg_forward.33} parent=1 // loop_body
      %s18 = ssub.s32 %s13, 1
      %s19 = ssub.s32 %s13, 2
      %s20 = sadd.s32 %s13, 1
      %s22 = sadd.s32 %s21, 1
      %p25 = scmp.eq.s32.totalorder %s13, 1
      %p26 = scmp.ne.s32.totalorder %s21, %s23
      %p27 = scmp.eq.s32.totalorder %s13, 0
      %p28 = por %p26, %p27
      %p29 = scmp.ne.s32.totalorder %s21, %s23
      %p30 = scmp.eq.s32.totalorder %s18, 1
      %p31 = por %p29, %p30
      %p32 = scmp.ne.s32.totalorder %s23, %s24
      %p33 = scmp.eq.s32.totalorder %s18, 0
      %p34 = por %p32, %p33
      %p35 = scmp.ne.s32.totalorder %s23, %s24
      %p36 = scmp.eq.s32.totalorder %s19, 1
      %p37 = por %p35, %p36
      %p39 = scmp.ne.s32.totalorder %s24, %s38
      %p40 = scmp.eq.s32.totalorder %s19, 0
      %p41 = por %p39, %p40
      %s42 = ssub.s32 %s13, %s20
      %p43 = scmp.eq.s32.totalorder %s42, 0
      %s45 = sadd.s32 %s44, 1
      %s46 = scalar_select %p43, %s44, %s45
      %p49 = pneg %p43
      %p50 = scmp.eq.s32.totalorder %s13, 1
      %p51 = por %p49, %p50
      %p52 = scmp.ne.s32.totalorder %s44, %s47
      %p53 = scmp.eq.s32.totalorder %s13, 0
      %p54 = por %p52, %p53
      %p55 = scmp.ne.s32.totalorder %s44, %s47
      %p56 = scmp.eq.s32.totalorder %s18, 1
      %p57 = por %p55, %p56
      %p58 = scmp.ne.s32.totalorder %s47, %s48
      %p59 = scmp.eq.s32.totalorder %s18, 0
      %p60 = por %p58, %p59
      %p61 = scmp.ne.s32.totalorder %s47, %s48
      %p62 = scmp.eq.s32.totalorder %s19, 1
      %p63 = por %p61, %p62
      %p65 = scmp.ne.s32.totalorder %s48, %s64
      %p66 = scmp.eq.s32.totalorder %s19, 0
      %p67 = por %p65, %p66
      %s69 = sadd.s32 %s68, 1
      %p72 = scmp.eq.s32.totalorder %s13, 1
      %p73 = scmp.ne.s32.totalorder %s68, %s70
      %p74 = scmp.eq.s32.totalorder %s13, 0
      %p75 = por %p73, %p74
      %p76 = scmp.ne.s32.totalorder %s68, %s70
      %p77 = scmp.eq.s32.totalorder %s18, 1
      %p78 = por %p76, %p77
      %p79 = scmp.ne.s32.totalorder %s70, %s71
      %p80 = scmp.eq.s32.totalorder %s18, 0
      %p81 = por %p79, %p80
      %p82 = scmp.ne.s32.totalorder %s70, %s71
      %p83 = scmp.eq.s32.totalorder %s19, 1
      %p84 = por %p82, %p83
      %p86 = scmp.ne.s32.totalorder %s71, %s85
      %p87 = scmp.eq.s32.totalorder %s19, 0
      %p88 = por %p86, %p87
      %s90 = sadd.s32 %s89, 1
      %p93 = scmp.eq.s32.totalorder %s13, 1
      %p94 = scmp.ne.s32.totalorder %s89, %s91
      %p95 = scmp.eq.s32.totalorder %s13, 0
      %p96 = por %p94, %p95
      %p97 = scmp.ne.s32.totalorder %s89, %s91
      %p98 = scmp.eq.s32.totalorder %s18, 1
      %p99 = por %p97, %p98
      %p100 = scmp.ne.s32.totalorder %s91, %s92
      %p101 = scmp.eq.s32.totalorder %s18, 0
      %p102 = por %p100, %p101
      %p103 = scmp.ne.s32.totalorder %s91, %s92
      %p104 = scmp.eq.s32.totalorder %s19, 1
      %p105 = por %p103, %p104
      %p107 = scmp.ne.s32.totalorder %s92, %s106
      %p108 = scmp.eq.s32.totalorder %s19, 0
      %p109 = por %p107, %p108
      %s110 = ssub.s32 %s13, %s20
      %p111 = scmp.eq.s32.totalorder %s110, 0
      %s113 = sadd.s32 %s112, 1
      %s114 = scalar_select %p111, %s112, %s113
      %p117 = pneg %p111
      %p118 = scmp.eq.s32.totalorder %s13, 1
      %p119 = por %p117, %p118
      %p120 = scmp.ne.s32.totalorder %s112, %s115
      %p121 = scmp.eq.s32.totalorder %s13, 0
      %p122 = por %p120, %p121
      %p123 = scmp.ne.s32.totalorder %s112, %s115
      %p124 = scmp.eq.s32.totalorder %s18, 1
      %p125 = por %p123, %p124
      %p126 = scmp.ne.s32.totalorder %s115, %s116
      %p127 = scmp.eq.s32.totalorder %s18, 0
      %p128 = por %p126, %p127
      %p129 = scmp.ne.s32.totalorder %s115, %s116
      %p130 = scmp.eq.s32.totalorder %s19, 1
      %p131 = por %p129, %p130
      %p133 = scmp.ne.s32.totalorder %s116, %s132
      %p134 = scmp.eq.s32.totalorder %s19, 0
      %p135 = por %p133, %p134
      %p136 = scmp.le.s32.totalorder 1, %s13
      %p137 = scmp.lt.s32.totalorder %s13, 3
      %p138 = pnand %p136, %p137
      %p139 = pneg %p138
      // Predicated region
      $region9: #{srfbn_hg_forward.33} parent=5 // pred_check
        _
      $region10: #{srfbn_hg_forward.33} parent=5 // pred_check_branch
        %141 = sbr.rel (%p138) target = $region12
      $region11: #{srfbn_hg_forward.33} parent=5 // pred_region
        %s142 = ssub.s32 %s13, 1
        // Predicated region
        $region13: #{srfbn_hg_forward.33} parent=11 // pred_check
          %p143 = pneg %p34
        $region14: #{srfbn_hg_forward.33} parent=11 // pred_check_branch
          %145 = sbr.rel (%p143) target = $region16
        $region15: #{srfbn_hg_forward.33} parent=11 // pred_region
          %s147 = ssub.s32 64, 64
          %148 = vsyncadd [#allocation4], %s147
          %s150 = sshll.u32 [#allocation3], 4
          %s151 = int_to_ptr.vmem [resolvable:$true] %s150
          %153 = dma.hbm_to_vmem [thread:$0]  %s0, 64, %s151, [#allocation4]
        $region16: #{srfbn_hg_forward.33} parent=11 // pred_fallthru
          _
        // Predicated region
        $region17: #{srfbn_hg_forward.33} parent=11 // pred_check
          %p154 = pneg %p81
        $region18: #{srfbn_hg_forward.33} parent=11 // pred_check_branch
          %156 = sbr.rel (%p154) target = $region20
        $region19: #{srfbn_hg_forward.33} parent=11 // pred_region
          %s158 = ssub.s32 128, 128
          %159 = vsyncadd [#allocation7], %s158
          %s161 = sshll.u32 [#allocation6], 4
          %s162 = int_to_ptr.vmem [resolvable:$true] %s161
          %164 = dma.hbm_to_vmem [thread:$0]  %s2, 128, %s162, [#allocation7]
        $region20: #{srfbn_hg_forward.33} parent=11 // pred_fallthru
          _
        // Predicated region
        $region21: #{srfbn_hg_forward.33} parent=11 // pred_check
          %p165 = pneg %p102
        $region22: #{srfbn_hg_forward.33} parent=11 // pred_check_branch
          %167 = sbr.rel (%p165) target = $region24
        $region23: #{srfbn_hg_forward.33} parent=11 // pred_region
          _
        $region24: #{srfbn_hg_forward.33} parent=11 // pred_fallthru
          _
      $region12: #{srfbn_hg_forward.33} parent=5 // pred_fallthru
        _
      %p168 = scmp.lt.s32.totalorder %s13, 2
      // Predicated region
      $region25: #{srfbn_hg_forward.33} parent=5 // pred_check
        %p169 = pneg %p168
      $region26: #{srfbn_hg_forward.33} parent=5 // pred_check_branch
        %171 = sbr.rel (%p169) target = $region28
      $region27: #{srfbn_hg_forward.33} parent=5 // pred_region
        // Predicated region
        $region29: #{srfbn_hg_forward.33} parent=27 // pred_check
          %p172 = pneg %p54
        $region30: #{srfbn_hg_forward.33} parent=27 // pred_check_branch
          %174 = sbr.rel (%p172) target = $region32
        $region31: #{srfbn_hg_forward.33} parent=27 // pred_region
          %s175 = sand.u32 %s44, 1
          %s176 = sand.u32 %s44, 1
          %s177 = smul.addr %s176, 32
          %s178 = scalar_lea.vmem [#allocation5], %s177
          %s179 = smul.u32 2, %s13
          %s180 = smul.addr %s179, 4
          %s181 = scalar_lea.vmem %s1, %s180
          // Predicated region
          $region33: #{srfbn_hg_forward.33} parent=31 // pred_check
            _
          $region34: #{srfbn_hg_forward.33} parent=31 // pred_check_branch
            %183 = sbr.rel (0) target = $region36
          $region35: #{srfbn_hg_forward.33} parent=31 // pred_region
            // Predicated region
            $region37: #{srfbn_hg_forward.33} parent=35 // pred_check
              _
            $region38: #{srfbn_hg_forward.33} parent=35 // pred_check_branch
              %185 = sbr.rel (0) target = $region40
            $region39: #{srfbn_hg_forward.33} parent=35 // pred_region
              // Predicated region
              $region52: #{srfbn_hg_forward.33} parent=39 // pred_check
                _
              $region53: #{srfbn_hg_forward.33} parent=39 // pred_check_branch
                %206 = sbr.rel (0) target = $region55
              $region54: #{srfbn_hg_forward.33} parent=39 // pred_region
                loop: start=0, step=1, limit=1
                $region56: #{srfbn_hg_forward.33} parent=54 // loop_pre_header
                  _
                $region57: #{srfbn_hg_forward.33} parent=54 // loop_header
                  %s208 = sphi 0, %s212
                  %p209 = scmp.ge.s32.totalorder %s208, 1
                  %s213 = sphi %s181, %s181
                  %s214 = sphi %s178, %s178
                $region58: #{srfbn_hg_forward.33} parent=54 // loop_header_branch
                  %211 = sbr.rel (%p209) target = $region62
                $region59: #{srfbn_hg_forward.33} parent=54 // loop_body
                  %v215 = vld [vmem:[%s213] sm:$0xff]
                  %216 = vst [vmem:[%s214] sm:$0xff] %v215
                  %v217 = vld [vmem:[%s213 + $0x10] sm:$0xff]
                  %218 = vst [vmem:[%s214 + $0x8] sm:$0xff] %v217
                  %v219 = vld [vmem:[%s213 + $0x20] sm:$0xff]
                  %220 = vst [vmem:[%s214 + $0x10] sm:$0xff] %v219
                  %v221 = vld [vmem:[%s213 + $0x30] sm:$0xff]
                  %222 = vst [vmem:[%s214 + $0x18] sm:$0xff] %v221
                $region60: #{srfbn_hg_forward.33} parent=54 // loop_footer
                  %s212 = sadd.s32 1, %s208
                $region61: #{srfbn_hg_forward.33} parent=54 // loop_footer_branch
                  %207 = sbr.rel target = $region57
                $region62: #{srfbn_hg_forward.33} parent=54 // loop_exit
                  _
              $region55: #{srfbn_hg_forward.33} parent=39 // pred_fallthru
                _
              // Predicated region
              $region63: #{srfbn_hg_forward.33} parent=39 // pred_check
                _
              $region64: #{srfbn_hg_forward.33} parent=39 // pred_check_branch
                %224 = sbr.rel target = $region66
              $region65: #{srfbn_hg_forward.33} parent=39 // pred_region
                _
              $region66: #{srfbn_hg_forward.33} parent=39 // pred_fallthru
                _
            $region40: #{srfbn_hg_forward.33} parent=35 // pred_fallthru
              _
            // Predicated region
            $region41: #{srfbn_hg_forward.33} parent=35 // pred_check
              _
            $region42: #{srfbn_hg_forward.33} parent=35 // pred_check_branch
              %187 = sbr.rel target = $region44
            $region43: #{srfbn_hg_forward.33} parent=35 // pred_region
              loop: start=0, step=1, limit=1
              $region45: #{srfbn_hg_forward.33} parent=43 // loop_pre_header
                _
              $region46: #{srfbn_hg_forward.33} parent=43 // loop_header
                %s190 = sphi 0, %s194
                %p191 = scmp.ge.s32.totalorder %s190, 1
                %s195 = sphi %s181, %s181
                %s196 = sphi %s178, %s178
              $region47: #{srfbn_hg_forward.33} parent=43 // loop_header_branch
                %193 = sbr.rel (%p191) target = $region51
              $region48: #{srfbn_hg_forward.33} parent=43 // loop_body
                %v197 = vld [vmem:[%s195] sm:$0xff]
                %198 = vst [vmem:[%s196] sm:$0xff] %v197
                %v199 = vld [vmem:[%s195 + $0x10] sm:$0xff]
                %200 = vst [vmem:[%s196 + $0x8] sm:$0xff] %v199
                %v201 = vld [vmem:[%s195 + $0x20] sm:$0xff]
                %202 = vst [vmem:[%s196 + $0x10] sm:$0xff] %v201
                %v203 = vld [vmem:[%s195 + $0x30] sm:$0xff]
                %204 = vst [vmem:[%s196 + $0x18] sm:$0xff] %v203
              $region49: #{srfbn_hg_forward.33} parent=43 // loop_footer
                %s194 = sadd.s32 1, %s190
              $region50: #{srfbn_hg_forward.33} parent=43 // loop_footer_branch
                %189 = sbr.rel target = $region46
              $region51: #{srfbn_hg_forward.33} parent=43 // loop_exit
                _
            $region44: #{srfbn_hg_forward.33} parent=35 // pred_fallthru
              _
          $region36: #{srfbn_hg_forward.33} parent=31 // pred_fallthru
            _
          %225 = vnop
        $region32: #{srfbn_hg_forward.33} parent=27 // pred_fallthru
          _
      $region28: #{srfbn_hg_forward.33} parent=5 // pred_fallthru
        _
      %p226 = scmp.le.s32.totalorder 1, %s13
      %p227 = scmp.lt.s32.totalorder %s13, 3
      %p228 = pnand %p226, %p227
      %p229 = pneg %p228
      // Predicated region
      $region67: #{srfbn_hg_forward.33} parent=5 // pred_check
        _
      $region68: #{srfbn_hg_forward.33} parent=5 // pred_check_branch
        %231 = sbr.rel (%p228) target = $region70
      $region69: #{srfbn_hg_forward.33} parent=5 // pred_region
        %s232 = ssub.s32 %s13, 1
        // Predicated region
        $region71: #{srfbn_hg_forward.33} parent=69 // pred_check
          %p233 = pneg %p34
        $region72: #{srfbn_hg_forward.33} parent=69 // pred_check_branch
          %235 = sbr.rel (%p233) target = $region74
        $region73: #{srfbn_hg_forward.33} parent=69 // pred_region
          %236 = dma.done [#allocation4], 64
        $region74: #{srfbn_hg_forward.33} parent=69 // pred_fallthru
          _
        %s237 = sand.u32 %s47, 1
        %s238 = sand.u32 %s47, 1
        %s239 = smul.addr %s238, 32
        %s240 = scalar_lea.vmem [#allocation5], %s239
        // Predicated region
        $region75: #{srfbn_hg_forward.33} parent=69 // pred_check
          %p241 = pneg %p60
        $region76: #{srfbn_hg_forward.33} parent=69 // pred_check_branch
          %243 = sbr.rel (%p241) target = $region78
        $region77: #{srfbn_hg_forward.33} parent=69 // pred_region
          _
        $region78: #{srfbn_hg_forward.33} parent=69 // pred_fallthru
          _
        // Predicated region
        $region79: #{srfbn_hg_forward.33} parent=69 // pred_check
          %p244 = pneg %p81
        $region80: #{srfbn_hg_forward.33} parent=69 // pred_check_branch
          %246 = sbr.rel (%p244) target = $region82
        $region81: #{srfbn_hg_forward.33} parent=69 // pred_region
          %247 = dma.done [#allocation7], 128
        $region82: #{srfbn_hg_forward.33} parent=69 // pred_fallthru
          _
        %p248 = pneg %p34
        %p249 = pneg %p31
        %s250 = sand.u32 %s47, 1
        %s251 = sand.u32 %s47, 1
        %s252 = smul.addr %s251, 32
        %s253 = scalar_lea.vmem [#allocation5], %s252
        %p254 = pneg %p60
        %p255 = pneg %p57
        %p256 = pneg %p81
        %p257 = pneg %p78
        %p258 = pneg %p102
        %p259 = pneg %p99
        %p260 = pneg %p128
        %p261 = pneg %p125
        %s262 = smul.u32 2, %s18
        %p263 = scmp.lt.s32.totalorder %s262, 3
        %s264 = scalar_select %p263, %s262, 3
        %s265 = smul.addr %s264, 8
        %s266 = scalar_lea.vmem %s4, %s265
        %s267 = smul.u32 2, %s18
        %s268 = smul.u32 2, %s18
        %p269 = scmp.lt.s32.totalorder %s268, 3
        %s270 = scalar_select %p269, %s268, 3
        %s271 = smul.addr %s270, 8
        %s272 = scalar_lea.vmem %s4, %s271
        %s273 = smul.u32 2, %s18
        %v275 = vld [vmem:[#allocation3] sm:$0xf]
        %v276 = vld [vmem:[%s240] sm:$0xff]
        %v277 = vld [vmem:[%s240 + $0x8] sm:$0xff]
        %v278 = vld [vmem:[%s240 + $0x10] sm:$0xff]
        %v279 = vld [vmem:[%s240 + $0x18] sm:$0xff]
        %v280 = vld [vmem:[#allocation6] sm:$0xff]
        %282 = vset.pattern.permute.xlu0 0
        %283 = vperm.xlu0 %282, %v280
        %v284 = vpop.permute.xlu0 %283
        %v290 = vunpack.c.l.b16 %v276
        %v291 = vunpack.c.h.b16 %v276
        %v292 = vunpack.c.l.b16 %v277
        %v293 = vunpack.c.h.b16 %v277
        %v294 = vunpack.c.l.b16 %v278
        %v295 = vunpack.c.h.b16 %v278
        %v296 = vunpack.c.l.b16 %v279
        %v297 = vunpack.c.h.b16 %v279
        %v298 = vpack.c.b16 %v292, %v290
        %v299 = vpack.c.b16 %v293, %v291
        %v300 = vpack.c.b16 %v296, %v294
        %v301 = vpack.c.b16 %v297, %v295
        %vm306 = vcmask 261120
        %v308 = vsel %vm306, %v275, 0
        %310 = vmatprep.subr.bf16.mxu0 %v299
        %311 = vmatpush1.bf16.msra.mxu0 %v298
        %312 = vmatprep.subr.bf16.mxu0 %v301
        %313 = vmatpush1.bf16.msra.mxu0 %v300
        %314 = vmatprep.subr.bf16.mxu0 0
        %315 = vmatpush1.bf16.msra.mxu0 0
        %316 = vmatprep.subr.bf16.mxu0 0
        %317 = vmatpush1.bf16.msra.mxu0 0
        %318 = vmatprep.subr.bf16.mxu0 0
        %319 = vmatpush1.bf16.msra.mxu0 0
        %320 = vmatprep.subr.bf16.mxu0 0
        %321 = vmatpush1.bf16.msra.mxu0 0
        %322 = vmatprep.subr.bf16.mxu0 0
        %323 = vmatpush1.bf16.msra.mxu0 0
        %324 = vmatprep.subr.bf16.mxu0 0
        %325 = vmatpush1.bf16.msra.mxu0 0
        %326 = vmatprep.subr.bf16.mxu0 0
        %327 = vmatpush1.bf16.msra.mxu0 0
        %328 = vmatprep.subr.bf16.mxu0 0
        %329 = vmatpush1.bf16.msra.mxu0 0
        %330 = vmatprep.subr.bf16.mxu0 0
        %331 = vmatpush1.bf16.msra.mxu0 0
        %332 = vmatprep.subr.bf16.mxu0 0
        %333 = vmatpush1.bf16.msra.mxu0 0
        %334 = vmatprep.subr.bf16.mxu0 0
        %335 = vmatpush1.bf16.msra.mxu0 0
        %336 = vmatprep.subr.bf16.mxu0 0
        %337 = vmatpush1.bf16.msra.mxu0 0
        %338 = vmatprep.subr.bf16.mxu0 0
        %339 = vmatpush1.bf16.msra.mxu0 0
        %340 = vmatprep.subr.bf16.mxu0 0
        %341 = vmatpush1.bf16.msra.mxu0 0
        %342 = vmatprep.mubr.bf16.mxu0 0
        %343 = vmatmul.mubr.bf16.gmra.mrb[0].mxu0 %v308
        %v344 = vpop.f32.mrb[0].mxu0
        %v345 = vadd.f32 %v284, %v344
        %v346 = vpop.f32.mrb[0].mxu0
        %v347 = vadd.f32 %v284, %v346
        %v348 = vpop.f32.mrb[0].mxu0
        %v349 = vpop.f32.mrb[0].mxu0
        %350 = vdwg.mxu0
        %s351 = sld [smem:[#allocation2]]
        %vm352 = vcmp.ge.f32.partialorder %v345, 0.0
        %vm353 = vcmp.ge.f32.partialorder %v347, 0.0
        %v354 = vstv %s351
        %v355 = vmul.f32 %v354, %v345
        %v356 = vmul.f32 %v354, %v347
        %v357 = vsel %vm352, %v345, %v355
        %v358 = vsel %vm353, %v347, %v356
        %359 = vst [vmem:[%s272] sm:$0xff] %v357
        %360 = vst [vmem:[%s272 + $0x8] sm:$0xff] %v358
        %s361 = smul.u32 2, %s18
        %p362 = scmp.lt.s32.totalorder %s361, 3
        %s363 = scalar_select %p362, %s361, 3
        %s364 = smul.addr %s363, 8
        %s365 = scalar_lea.vmem %s4, %s364
        // Predicated region
        $region83: #{srfbn_hg_forward.33} parent=69 // pred_check
          %p366 = pneg %p125
        $region84: #{srfbn_hg_forward.33} parent=69 // pred_check_branch
          %368 = sbr.rel (%p366) target = $region86
        $region85: #{srfbn_hg_forward.33} parent=69 // pred_region
          %s369 = smul.u32 2, %s18
        $region86: #{srfbn_hg_forward.33} parent=69 // pred_fallthru
          _
      $region70: #{srfbn_hg_forward.33} parent=5 // pred_fallthru
        _
      %p370 = scmp.le.s32.totalorder 2, %s13
      // Predicated region
      $region87: #{srfbn_hg_forward.33} parent=5 // pred_check
        %p371 = pneg %p370
      $region88: #{srfbn_hg_forward.33} parent=5 // pred_check_branch
        %373 = sbr.rel (%p371) target = $region90
      $region89: #{srfbn_hg_forward.33} parent=5 // pred_region
        %s374 = ssub.s32 %s13, 2
        // Predicated region
        $region91: #{srfbn_hg_forward.33} parent=89 // pred_check
          %p375 = pneg %p131
        $region92: #{srfbn_hg_forward.33} parent=89 // pred_check_branch
          %377 = sbr.rel (%p375) target = $region94
        $region93: #{srfbn_hg_forward.33} parent=89 // pred_region
          %s378 = smul.u32 2, %s19
          %p379 = scmp.lt.s32.totalorder %s378, 3
          %s380 = scalar_select %p379, %s378, 3
          %s381 = smul.addr %s380, 8
          %s382 = scalar_lea.vmem %s4, %s381
        $region94: #{srfbn_hg_forward.33} parent=89 // pred_fallthru
          _
      $region90: #{srfbn_hg_forward.33} parent=5 // pred_fallthru
        _
    $region6: #{srfbn_hg_forward.33} parent=1 // loop_footer
      %s17 = sadd.s32 1, %s13
    $region7: #{srfbn_hg_forward.33} parent=1 // loop_footer_branch
      %12 = sbr.rel target = $region3
    $region8: #{srfbn_hg_forward.33} parent=1 // loop_exit
      _
    %383 = vsyncpa [#allocation4], 1
    %s384 = scalar_lea.sflag [#allocation4], 1
    %385 = vsyncpa %s384, 1
    %386 = vsyncpa [#allocation7], 1

// kernel: srfbn_hg_forward.34
$region0: #{srfbn_hg_forward.34}
  #allocation0 [shape = 'u32[]', space=smem, size = 0x4, offset = 0x4, fixed_abs, tag = 'smem constant byte address 0x4 - core index']
  #allocation1 [shape = 'u32[144,128]{1,0:T(1,128)}', space=vmem, size = 0x12000, scoped, tag = 'internal scratch']
  #allocation2 [shape = 'f32[1]{0:T(128)S(6)}', space=smem, size = 0x200, scoped, tag = 'scoped memory for srfbn_hg_forward.34']
  %s0 = inlined_call_operand.hbm [shape: bf16[8,8], index: 0, kind: input, shape index: {}]
  %s1 = inlined_call_operand.vmem [shape: bf16[8,512], index: 1, kind: input, shape index: {}]
  %s2 = inlined_call_operand.hbm [shape: f32[8,1], index: 2, kind: input, shape index: {}]
  %s3 = inlined_call_operand.<no memory space> [shape: f32[1], index: 3, kind: input, shape index: {}]
  %s4 = inlined_call_operand.vmem [shape: f32[8,512], index: 4, kind: output, shape index: {}]
  %s5 = sld [smem:[#allocation0]]
  $region57: #{srfbn_hg_forward.34} parent=0
    _
  %s7 = ssub.s32 1, %s5
  %s8 = scalar_select 0, %s7, %s5
  %9 = sst [smem:[#allocation2]] %s3
  $region1: #{srfbn_hg_forward.34} parent=0
    #allocation3 [shape = 'u8[2048]{0}', space=vmem, size = 0x800, scoped, tag = 'input window, operand 0, single buffered']
    #allocation4 [shape = 's32[2]{0}', space=sflag, size = 0x8, scoped, tag = 'scoped memory for srfbn_hg_forward.34']
    #allocation5 [shape = 'u8[4096]{0}', space=vmem, size = 0x1000, scoped, tag = 'input window, operand 2, single buffered']
    #allocation6 [shape = 's32[1]{0}', space=sflag, size = 0x4, scoped, tag = 'scoped memory for srfbn_hg_forward.34']
    %10 = vsyncpa [#allocation4], 0
    %11 = vsyncpa [#allocation6], 0
    loop: start=0, step=1, limit=4
    $region2: #{srfbn_hg_forward.34} parent=1 // loop_pre_header
      _
    $region3: #{srfbn_hg_forward.34} parent=1 // loop_header
      %s13 = sphi 0, %s17
      %p14 = scmp.ge.s32.totalorder %s13, 4
      %s21 = sphi 0, %s21
      %s23 = sphi 0, %s21
      %s24 = sphi 0, %s23
      %s38 = sphi 0, %s24
      %s44 = sphi 0, %s46
      %s47 = sphi 0, %s44
      %s48 = sphi 0, %s47
      %s64 = sphi 0, %s48
      %s68 = sphi 0, %s68
      %s70 = sphi 0, %s68
      %s71 = sphi 0, %s70
      %s85 = sphi 0, %s71
      %s89 = sphi 0, %s89
      %s91 = sphi 0, %s89
      %s92 = sphi 0, %s91
      %s106 = sphi 0, %s92
      %s112 = sphi 0, %s114
      %s115 = sphi 0, %s112
      %s116 = sphi 0, %s115
      %s132 = sphi 0, %s116
    $region4: #{srfbn_hg_forward.34} parent=1 // loop_header_branch
      %16 = sbr.rel (%p14) target = $region8
    $region5: #{srfbn_hg_forward.34} parent=1 // loop_body
      %s18 = ssub.s32 %s13, 1
      %s19 = ssub.s32 %s13, 2
      %s20 = sadd.s32 %s13, 1
      %s22 = sadd.s32 %s21, 1
      %p25 = scmp.eq.s32.totalorder %s13, 1
      %p26 = scmp.ne.s32.totalorder %s21, %s23
      %p27 = scmp.eq.s32.totalorder %s13, 0
      %p28 = por %p26, %p27
      %p29 = scmp.ne.s32.totalorder %s21, %s23
      %p30 = scmp.eq.s32.totalorder %s18, 1
      %p31 = por %p29, %p30
      %p32 = scmp.ne.s32.totalorder %s23, %s24
      %p33 = scmp.eq.s32.totalorder %s18, 0
      %p34 = por %p32, %p33
      %p35 = scmp.ne.s32.totalorder %s23, %s24
      %p36 = scmp.eq.s32.totalorder %s19, 1
      %p37 = por %p35, %p36
      %p39 = scmp.ne.s32.totalorder %s24, %s38
      %p40 = scmp.eq.s32.totalorder %s19, 0
      %p41 = por %p39, %p40
      %s42 = ssub.s32 %s13, %s20
      %p43 = scmp.eq.s32.totalorder %s42, 0
      %s45 = sadd.s32 %s44, 1
      %s46 = scalar_select %p43, %s44, %s45
      %p49 = pneg %p43
      %p50 = scmp.eq.s32.totalorder %s13, 1
      %p51 = por %p49, %p50
      %p52 = scmp.ne.s32.totalorder %s44, %s47
      %p53 = scmp.eq.s32.totalorder %s13, 0
      %p54 = por %p52, %p53
      %p55 = scmp.ne.s32.totalorder %s44, %s47
      %p56 = scmp.eq.s32.totalorder %s18, 1
      %p57 = por %p55, %p56
      %p58 = scmp.ne.s32.totalorder %s47, %s48
      %p59 = scmp.eq.s32.totalorder %s18, 0
      %p60 = por %p58, %p59
      %p61 = scmp.ne.s32.totalorder %s47, %s48
      %p62 = scmp.eq.s32.totalorder %s19, 1
      %p63 = por %p61, %p62
      %p65 = scmp.ne.s32.totalorder %s48, %s64
      %p66 = scmp.eq.s32.totalorder %s19, 0
      %p67 = por %p65, %p66
      %s69 = sadd.s32 %s68, 1
      %p72 = scmp.eq.s32.totalorder %s13, 1
      %p73 = scmp.ne.s32.totalorder %s68, %s70
      %p74 = scmp.eq.s32.totalorder %s13, 0
      %p75 = por %p73, %p74
      %p76 = scmp.ne.s32.totalorder %s68, %s70
      %p77 = scmp.eq.s32.totalorder %s18, 1
      %p78 = por %p76, %p77
      %p79 = scmp.ne.s32.totalorder %s70, %s71
      %p80 = scmp.eq.s32.totalorder %s18, 0
      %p81 = por %p79, %p80
      %p82 = scmp.ne.s32.totalorder %s70, %s71
      %p83 = scmp.eq.s32.totalorder %s19, 1
      %p84 = por %p82, %p83
      %p86 = scmp.ne.s32.totalorder %s71, %s85
      %p87 = scmp.eq.s32.totalorder %s19, 0
      %p88 = por %p86, %p87
      %s90 = sadd.s32 %s89, 1
      %p93 = scmp.eq.s32.totalorder %s13, 1
      %p94 = scmp.ne.s32.totalorder %s89, %s91
      %p95 = scmp.eq.s32.totalorder %s13, 0
      %p96 = por %p94, %p95
      %p97 = scmp.ne.s32.totalorder %s89, %s91
      %p98 = scmp.eq.s32.totalorder %s18, 1
      %p99 = por %p97, %p98
      %p100 = scmp.ne.s32.totalorder %s91, %s92
      %p101 = scmp.eq.s32.totalorder %s18, 0
      %p102 = por %p100, %p101
      %p103 = scmp.ne.s32.totalorder %s91, %s92
      %p104 = scmp.eq.s32.totalorder %s19, 1
      %p105 = por %p103, %p104
      %p107 = scmp.ne.s32.totalorder %s92, %s106
      %p108 = scmp.eq.s32.totalorder %s19, 0
      %p109 = por %p107, %p108
      %s110 = ssub.s32 %s13, %s20
      %p111 = scmp.eq.s32.totalorder %s110, 0
      %s113 = sadd.s32 %s112, 1
      %s114 = scalar_select %p111, %s112, %s113
      %p117 = pneg %p111
      %p118 = scmp.eq.s32.totalorder %s13, 1
      %p119 = por %p117, %p118
      %p120 = scmp.ne.s32.totalorder %s112, %s115
      %p121 = scmp.eq.s32.totalorder %s13, 0
      %p122 = por %p120, %p121
      %p123 = scmp.ne.s32.totalorder %s112, %s115
      %p124 = scmp.eq.s32.totalorder %s18, 1
      %p125 = por %p123, %p124
      %p126 = scmp.ne.s32.totalorder %s115, %s116
      %p127 = scmp.eq.s32.totalorder %s18, 0
      %p128 = por %p126, %p127
      %p129 = scmp.ne.s32.totalorder %s115, %s116
      %p130 = scmp.eq.s32.totalorder %s19, 1
      %p131 = por %p129, %p130
      %p133 = scmp.ne.s32.totalorder %s116, %s132
      %p134 = scmp.eq.s32.totalorder %s19, 0
      %p135 = por %p133, %p134
      %p136 = scmp.le.s32.totalorder 1, %s13
      %p137 = scmp.lt.s32.totalorder %s13, 3
      %p138 = pnand %p136, %p137
      %p139 = pneg %p138
      // Predicated region
      $region9: #{srfbn_hg_forward.34} parent=5 // pred_check
        _
      $region10: #{srfbn_hg_forward.34} parent=5 // pred_check_branch
        %141 = sbr.rel (%p138) target = $region12
      $region11: #{srfbn_hg_forward.34} parent=5 // pred_region
        %s142 = ssub.s32 %s13, 1
        // Predicated region
        $region13: #{srfbn_hg_forward.34} parent=11 // pred_check
          %p143 = pneg %p34
        $region14: #{srfbn_hg_forward.34} parent=11 // pred_check_branch
          %145 = sbr.rel (%p143) target = $region16
        $region15: #{srfbn_hg_forward.34} parent=11 // pred_region
          %s147 = ssub.s32 64, 64
          %148 = vsyncadd [#allocation4], %s147
          %s150 = sshll.u32 [#allocation3], 4
          %s151 = int_to_ptr.vmem [resolvable:$true] %s150
          %153 = dma.hbm_to_vmem [thread:$0]  %s0, 64, %s151, [#allocation4]
        $region16: #{srfbn_hg_forward.34} parent=11 // pred_fallthru
          _
        // Predicated region
        $region17: #{srfbn_hg_forward.34} parent=11 // pred_check
          %p154 = pneg %p81
        $region18: #{srfbn_hg_forward.34} parent=11 // pred_check_branch
          %156 = sbr.rel (%p154) target = $region20
        $region19: #{srfbn_hg_forward.34} parent=11 // pred_region
          %s158 = ssub.s32 128, 128
          %159 = vsyncadd [#allocation6], %s158
          %s161 = sshll.u32 [#allocation5], 4
          %s162 = int_to_ptr.vmem [resolvable:$true] %s161
          %164 = dma.hbm_to_vmem [thread:$0]  %s2, 128, %s162, [#allocation6]
        $region20: #{srfbn_hg_forward.34} parent=11 // pred_fallthru
          _
        // Predicated region
        $region21: #{srfbn_hg_forward.34} parent=11 // pred_check
          %p165 = pneg %p102
        $region22: #{srfbn_hg_forward.34} parent=11 // pred_check_branch
          %167 = sbr.rel (%p165) target = $region24
        $region23: #{srfbn_hg_forward.34} parent=11 // pred_region
          _
        $region24: #{srfbn_hg_forward.34} parent=11 // pred_fallthru
          _
      $region12: #{srfbn_hg_forward.34} parent=5 // pred_fallthru
        _
      %p168 = scmp.lt.s32.totalorder %s13, 2
      // Predicated region
      $region25: #{srfbn_hg_forward.34} parent=5 // pred_check
        %p169 = pneg %p168
      $region26: #{srfbn_hg_forward.34} parent=5 // pred_check_branch
        %171 = sbr.rel (%p169) target = $region28
      $region27: #{srfbn_hg_forward.34} parent=5 // pred_region
        // Predicated region
        $region29: #{srfbn_hg_forward.34} parent=27 // pred_check
          %p172 = pneg %p54
        $region30: #{srfbn_hg_forward.34} parent=27 // pred_check_branch
          %174 = sbr.rel (%p172) target = $region32
        $region31: #{srfbn_hg_forward.34} parent=27 // pred_region
          %s175 = smul.u32 2, %s13
          %p176 = scmp.lt.s32.totalorder %s175, 3
          %s177 = scalar_select %p176, %s175, 3
          %s178 = smul.addr %s177, 4
          %s179 = scalar_lea.vmem %s1, %s178
          %s180 = smul.u32 2, %s13
        $region32: #{srfbn_hg_forward.34} parent=27 // pred_fallthru
          _
      $region28: #{srfbn_hg_forward.34} parent=5 // pred_fallthru
        _
      %p181 = scmp.le.s32.totalorder 1, %s13
      %p182 = scmp.lt.s32.totalorder %s13, 3
      %p183 = pnand %p181, %p182
      %p184 = pneg %p183
      // Predicated region
      $region33: #{srfbn_hg_forward.34} parent=5 // pred_check
        _
      $region34: #{srfbn_hg_forward.34} parent=5 // pred_check_branch
        %186 = sbr.rel (%p183) target = $region36
      $region35: #{srfbn_hg_forward.34} parent=5 // pred_region
        %s187 = ssub.s32 %s13, 1
        // Predicated region
        $region37: #{srfbn_hg_forward.34} parent=35 // pred_check
          %p188 = pneg %p34
        $region38: #{srfbn_hg_forward.34} parent=35 // pred_check_branch
          %190 = sbr.rel (%p188) target = $region40
        $region39: #{srfbn_hg_forward.34} parent=35 // pred_region
          %191 = dma.done [#allocation4], 64
        $region40: #{srfbn_hg_forward.34} parent=35 // pred_fallthru
          _
        // Predicated region
        $region41: #{srfbn_hg_forward.34} parent=35 // pred_check
          %p192 = pneg %p81
        $region42: #{srfbn_hg_forward.34} parent=35 // pred_check_branch
          %194 = sbr.rel (%p192) target = $region44
        $region43: #{srfbn_hg_forward.34} parent=35 // pred_region
          %195 = dma.done [#allocation6], 128
        $region44: #{srfbn_hg_forward.34} parent=35 // pred_fallthru
          _
        %p196 = pneg %p34
        %p197 = pneg %p31
        %s198 = smul.u32 2, %s18
        %p199 = scmp.lt.s32.totalorder %s198, 3
        %s200 = scalar_select %p199, %s198, 3
        %s201 = smul.addr %s200, 4
        %s202 = scalar_lea.vmem %s1, %s201
        %p203 = pneg %p60
        %p204 = pneg %p57
        %p205 = pneg %p81
        %p206 = pneg %p78
        %p207 = pneg %p102
        %p208 = pneg %p99
        %p209 = pneg %p128
        %p210 = pneg %p125
        %s211 = smul.u32 2, %s18
        %p212 = scmp.lt.s32.totalorder %s211, 3
        %s213 = scalar_select %p212, %s211, 3
        %s214 = smul.addr %s213, 8
        %s215 = scalar_lea.vmem %s4, %s214
        %s216 = smul.u32 2, %s18
        %p217 = scmp.lt.s32.totalorder %s216, 3
        %s218 = scalar_select %p217, %s216, 3
        %s219 = smul.addr %s218, 4
        %s220 = scalar_lea.vmem %s1, %s219
        %s221 = smul.u32 2, %s18
        %s222 = smul.u32 2, %s18
        %p223 = scmp.lt.s32.totalorder %s222, 3
        %s224 = scalar_select %p223, %s222, 3
        %s225 = smul.addr %s224, 8
        %s226 = scalar_lea.vmem %s4, %s225
        %s227 = smul.u32 2, %s18
        %v229 = vld [vmem:[#allocation3] sm:$0xf]
        %v230 = vld [vmem:[%s220] sm:$0xff]
        %v231 = vld [vmem:[#allocation5] sm:$0xff]
        %233 = vset.pattern.permute.xlu0 0
        %234 = vperm.xlu0 %233, %v231
        %v235 = vpop.permute.xlu0 %234
        %v238 = vunpack.c.l.b16 %v230
        %v239 = vunpack.c.h.b16 %v230
        %v240 = vpack.c.b16 %v238, %v238
        %v241 = vpack.c.b16 %v239, %v239
        %vm242 = vcmask 64512
        %v244 = vsel %vm242, %v229, 0
        %vm246 = vcmask 1043456
        %v248 = vsel %vm246, %v240, 0
        %v251 = vsel %vm246, %v241, 0
        %253 = vmatprep.subr.bf16.mxu0 %v251
        %254 = vmatpush1.bf16.msra.mxu0 %v248
        %255 = vmatprep.subr.bf16.mxu0 0
        %256 = vmatpush1.bf16.msra.mxu0 0
        %257 = vmatprep.subr.bf16.mxu0 0
        %258 = vmatpush1.bf16.msra.mxu0 0
        %259 = vmatprep.subr.bf16.mxu0 0
        %260 = vmatpush1.bf16.msra.mxu0 0
        %261 = vmatprep.subr.bf16.mxu0 0
        %262 = vmatpush1.bf16.msra.mxu0 0
        %263 = vmatprep.subr.bf16.mxu0 0
        %264 = vmatpush1.bf16.msra.mxu0 0
        %265 = vmatprep.subr.bf16.mxu0 0
        %266 = vmatpush1.bf16.msra.mxu0 0
        %267 = vmatprep.subr.bf16.mxu0 0
        %268 = vmatpush1.bf16.msra.mxu0 0
        %269 = vmatprep.subr.bf16.mxu0 0
        %270 = vmatpush1.bf16.msra.mxu0 0
        %271 = vmatprep.subr.bf16.mxu0 0
        %272 = vmatpush1.bf16.msra.mxu0 0
        %273 = vmatprep.subr.bf16.mxu0 0
        %274 = vmatpush1.bf16.msra.mxu0 0
        %275 = vmatprep.subr.bf16.mxu0 0
        %276 = vmatpush1.bf16.msra.mxu0 0
        %277 = vmatprep.subr.bf16.mxu0 0
        %278 = vmatpush1.bf16.msra.mxu0 0
        %279 = vmatprep.subr.bf16.mxu0 0
        %280 = vmatpush1.bf16.msra.mxu0 0
        %281 = vmatprep.subr.bf16.mxu0 0
        %282 = vmatpush1.bf16.msra.mxu0 0
        %283 = vmatprep.subr.bf16.mxu0 0
        %284 = vmatpush1.bf16.msra.mxu0 0
        %285 = vmatprep.mubr.bf16.mxu0 0
        %286 = vmatmul.mubr.bf16.gmra.mrb[0].mxu0 %v244
        %v287 = vpop.f32.mrb[0].mxu0
        %v288 = vadd.f32 %v235, %v287
        %v289 = vpop.f32.mrb[0].mxu0
        %v290 = vadd.f32 %v235, %v289
        %v291 = vpop.f32.mrb[0].mxu0
        %v292 = vpop.f32.mrb[0].mxu0
        %293 = vdwg.mxu0
        %s294 = sld [smem:[#allocation2]]
        %vm295 = vcmp.ge.f32.partialorder %v288, 0.0
        %vm296 = vcmp.ge.f32.partialorder %v290, 0.0
        %v297 = vstv %s294
        %v298 = vmul.f32 %v297, %v288
        %v299 = vmul.f32 %v297, %v290
        %v300 = vsel %vm295, %v288, %v298
        %v301 = vsel %vm296, %v290, %v299
        %302 = vst [vmem:[%s226] sm:$0xff] %v300
        %303 = vst [vmem:[%s226 + $0x8] sm:$0xff] %v301
        %s304 = smul.u32 2, %s18
        %p305 = scmp.lt.s32.totalorder %s304, 3
        %s306 = scalar_select %p305, %s304, 3
        %s307 = smul.addr %s306, 8
        %s308 = scalar_lea.vmem %s4, %s307
        // Predicated region
        $region45: #{srfbn_hg_forward.34} parent=35 // pred_check
          %p309 = pneg %p125
        $region46: #{srfbn_hg_forward.34} parent=35 // pred_check_branch
          %311 = sbr.rel (%p309) target = $region48
        $region47: #{srfbn_hg_forward.34} parent=35 // pred_region
          %s312 = smul.u32 2, %s18
        $region48: #{srfbn_hg_forward.34} parent=35 // pred_fallthru
          _
      $region36: #{srfbn_hg_forward.34} parent=5 // pred_fallthru
        _
      %p313 = scmp.le.s32.totalorder 2, %s13
      // Predicated region
      $region49: #{srfbn_hg_forward.34} parent=5 // pred_check
        %p314 = pneg %p313
      $region50: #{srfbn_hg_forward.34} parent=5 // pred_check_branch
        %316 = sbr.rel (%p314) target = $region52
      $region51: #{srfbn_hg_forward.34} parent=5 // pred_region
        %s317 = ssub.s32 %s13, 2
        // Predicated region
        $region53: #{srfbn_hg_forward.34} parent=51 // pred_check
          %p318 = pneg %p131
        $region54: #{srfbn_hg_forward.34} parent=51 // pred_check_branch
          %320 = sbr.rel (%p318) target = $region56
        $region55: #{srfbn_hg_forward.34} parent=51 // pred_region
          %s321 = smul.u32 2, %s19
          %p322 = scmp.lt.s32.totalorder %s321, 3
          %s323 = scalar_select %p322, %s321, 3
          %s324 = smul.addr %s323, 8
          %s325 = scalar_lea.vmem %s4, %s324
        $region56: #{srfbn_hg_forward.34} parent=51 // pred_fallthru
          _
      $region52: #{srfbn_hg_forward.34} parent=5 // pred_fallthru
        _
    $region6: #{srfbn_hg_forward.34} parent=1 // loop_footer
      %s17 = sadd.s32 1, %s13
    $region7: #{srfbn_hg_forward.34} parent=1 // loop_footer_branch
      %12 = sbr.rel target = $region3
    $region8: #{srfbn_hg_forward.34} parent=1 // loop_exit
      _
    %326 = vsyncpa [#allocation4], 1
    %s327 = scalar_lea.sflag [#allocation4], 1
    %328 = vsyncpa %s327, 1
    %329 = vsyncpa [#allocation6], 1

// kernel: srfbn_hg_forward.35
$region0: #{srfbn_hg_forward.35}
  #allocation0 [shape = 'u32[]', space=smem, size = 0x4, offset = 0x4, fixed_abs, tag = 'smem constant byte address 0x4 - core index']
  #allocation1 [shape = 'u32[144,128]{1,0:T(1,128)}', space=vmem, size = 0x12000, scoped, tag = 'internal scratch']
  #allocation2 [shape = 'f32[1]{0:T(128)S(6)}', space=smem, size = 0x200, scoped, tag = 'scoped memory for srfbn_hg_forward.35']
  %s0 = inlined_call_operand.vmem [shape: bf16[128,72], index: 0, kind: input, shape index: {}]
  %s1 = inlined_call_operand.vmem [shape: bf16[72,512], index: 1, kind: input, shape index: {}]
  %s2 = inlined_call_operand.vmem [shape: f32[128,1], index: 2, kind: input, shape index: {}]
  %s3 = inlined_call_operand.<no memory space> [shape: f32[1], index: 3, kind: input, shape index: {}]
  %s4 = inlined_call_operand.vmem [shape: f32[128,512], index: 4, kind: output, shape index: {}]
  %s5 = sld [smem:[#allocation0]]
  $region106: #{srfbn_hg_forward.35} parent=0
    _
  %s7 = ssub.s32 1, %s5
  %s8 = scalar_select 0, %s7, %s5
  %9 = sst [smem:[#allocation2]] %s3
  $region1: #{srfbn_hg_forward.35} parent=0
    #allocation3 [shape = 'u8[73728]{0}', space=vmem, size = 0x12000, scoped, tag = 'input window, operand 1']
    #allocation4 [shape = 'u8[262144]{0}', space=vmem, size = 0x40000, scoped, tag = 'output window, operand 0']
    loop: start=0, step=1, limit=4
    $region2: #{srfbn_hg_forward.35} parent=1 // loop_pre_header
      _
    $region3: #{srfbn_hg_forward.35} parent=1 // loop_header
      %s11 = sphi 0, %s15
      %p12 = scmp.ge.s32.totalorder %s11, 4
      %s19 = sphi 0, %s19
      %s21 = sphi 0, %s19
      %s22 = sphi 0, %s21
      %s36 = sphi 0, %s22
      %s42 = sphi 0, %s44
      %s45 = sphi 0, %s42
      %s46 = sphi 0, %s45
      %s62 = sphi 0, %s46
      %s66 = sphi 0, %s66
      %s68 = sphi 0, %s66
      %s69 = sphi 0, %s68
      %s83 = sphi 0, %s69
      %s87 = sphi 0, %s87
      %s89 = sphi 0, %s87
      %s90 = sphi 0, %s89
      %s104 = sphi 0, %s90
      %s110 = sphi 0, %s112
      %s113 = sphi 0, %s110
      %s114 = sphi 0, %s113
      %s130 = sphi 0, %s114
    $region4: #{srfbn_hg_forward.35} parent=1 // loop_header_branch
      %14 = sbr.rel (%p12) target = $region8
    $region5: #{srfbn_hg_forward.35} parent=1 // loop_body
      %s16 = ssub.s32 %s11, 1
      %s17 = ssub.s32 %s11, 2
      %s18 = sadd.s32 %s11, 1
      %s20 = sadd.s32 %s19, 1
      %p23 = scmp.eq.s32.totalorder %s11, 1
      %p24 = scmp.ne.s32.totalorder %s19, %s21
      %p25 = scmp.eq.s32.totalorder %s11, 0
      %p26 = por %p24, %p25
      %p27 = scmp.ne.s32.totalorder %s19, %s21
      %p28 = scmp.eq.s32.totalorder %s16, 1
      %p29 = por %p27, %p28
      %p30 = scmp.ne.s32.totalorder %s21, %s22
      %p31 = scmp.eq.s32.totalorder %s16, 0
      %p32 = por %p30, %p31
      %p33 = scmp.ne.s32.totalorder %s21, %s22
      %p34 = scmp.eq.s32.totalorder %s17, 1
      %p35 = por %p33, %p34
      %p37 = scmp.ne.s32.totalorder %s22, %s36
      %p38 = scmp.eq.s32.totalorder %s17, 0
      %p39 = por %p37, %p38
      %s40 = ssub.s32 %s11, %s18
      %p41 = scmp.eq.s32.totalorder %s40, 0
      %s43 = sadd.s32 %s42, 1
      %s44 = scalar_select %p41, %s42, %s43
      %p47 = pneg %p41
      %p48 = scmp.eq.s32.totalorder %s11, 1
      %p49 = por %p47, %p48
      %p50 = scmp.ne.s32.totalorder %s42, %s45
      %p51 = scmp.eq.s32.totalorder %s11, 0
      %p52 = por %p50, %p51
      %p53 = scmp.ne.s32.totalorder %s42, %s45
      %p54 = scmp.eq.s32.totalorder %s16, 1
      %p55 = por %p53, %p54
      %p56 = scmp.ne.s32.totalorder %s45, %s46
      %p57 = scmp.eq.s32.totalorder %s16, 0
      %p58 = por %p56, %p57
      %p59 = scmp.ne.s32.totalorder %s45, %s46
      %p60 = scmp.eq.s32.totalorder %s17, 1
      %p61 = por %p59, %p60
      %p63 = scmp.ne.s32.totalorder %s46, %s62
      %p64 = scmp.eq.s32.totalorder %s17, 0
      %p65 = por %p63, %p64
      %s67 = sadd.s32 %s66, 1
      %p70 = scmp.eq.s32.totalorder %s11, 1
      %p71 = scmp.ne.s32.totalorder %s66, %s68
      %p72 = scmp.eq.s32.totalorder %s11, 0
      %p73 = por %p71, %p72
      %p74 = scmp.ne.s32.totalorder %s66, %s68
      %p75 = scmp.eq.s32.totalorder %s16, 1
      %p76 = por %p74, %p75
      %p77 = scmp.ne.s32.totalorder %s68, %s69
      %p78 = scmp.eq.s32.totalorder %s16, 0
      %p79 = por %p77, %p78
      %p80 = scmp.ne.s32.totalorder %s68, %s69
      %p81 = scmp.eq.s32.totalorder %s17, 1
      %p82 = por %p80, %p81
      %p84 = scmp.ne.s32.totalorder %s69, %s83
      %p85 = scmp.eq.s32.totalorder %s17, 0
      %p86 = por %p84, %p85
      %s88 = sadd.s32 %s87, 1
      %p91 = scmp.eq.s32.totalorder %s11, 1
      %p92 = scmp.ne.s32.totalorder %s87, %s89
      %p93 = scmp.eq.s32.totalorder %s11, 0
      %p94 = por %p92, %p93
      %p95 = scmp.ne.s32.totalorder %s87, %s89
      %p96 = scmp.eq.s32.totalorder %s16, 1
      %p97 = por %p95, %p96
      %p98 = scmp.ne.s32.totalorder %s89, %s90
      %p99 = scmp.eq.s32.totalorder %s16, 0
      %p100 = por %p98, %p99
      %p101 = scmp.ne.s32.totalorder %s89, %s90
      %p102 = scmp.eq.s32.totalorder %s17, 1
      %p103 = por %p101, %p102
      %p105 = scmp.ne.s32.totalorder %s90, %s104
      %p106 = scmp.eq.s32.totalorder %s17, 0
      %p107 = por %p105, %p106
      %s108 = ssub.s32 %s11, %s18
      %p109 = scmp.eq.s32.totalorder %s108, 0
      %s111 = sadd.s32 %s110, 1
      %s112 = scalar_select %p109, %s110, %s111
      %p115 = pneg %p109
      %p116 = scmp.eq.s32.totalorder %s11, 1
      %p117 = por %p115, %p116
      %p118 = scmp.ne.s32.totalorder %s110, %s113
      %p119 = scmp.eq.s32.totalorder %s11, 0
      %p120 = por %p118, %p119
      %p121 = scmp.ne.s32.totalorder %s110, %s113
      %p122 = scmp.eq.s32.totalorder %s16, 1
      %p123 = por %p121, %p122
      %p124 = scmp.ne.s32.totalorder %s113, %s114
      %p125 = scmp.eq.s32.totalorder %s16, 0
      %p126 = por %p124, %p125
      %p127 = scmp.ne.s32.totalorder %s113, %s114
      %p128 = scmp.eq.s32.totalorder %s17, 1
      %p129 = por %p127, %p128
      %p131 = scmp.ne.s32.totalorder %s114, %s130
      %p132 = scmp.eq.s32.totalorder %s17, 0
      %p133 = por %p131, %p132
      %p134 = scmp.le.s32.totalorder 1, %s11
      %p135 = scmp.lt.s32.totalorder %s11, 3
      %p136 = pnand %p134, %p135
      %p137 = pneg %p136
      // Predicated region
      $region9: #{srfbn_hg_forward.35} parent=5 // pred_check
        _
      $region10: #{srfbn_hg_forward.35} parent=5 // pred_check_branch
        %139 = sbr.rel (%p136) target = $region12
      $region11: #{srfbn_hg_forward.35} parent=5 // pred_region
        %s140 = ssub.s32 %s11, 1
        // Predicated region
        $region13: #{srfbn_hg_forward.35} parent=11 // pred_check
          %p141 = pneg %p32
        $region14: #{srfbn_hg_forward.35} parent=11 // pred_check_branch
          %143 = sbr.rel (%p141) target = $region16
        $region15: #{srfbn_hg_forward.35} parent=11 // pred_region
          _
        $region16: #{srfbn_hg_forward.35} parent=11 // pred_fallthru
          _
        // Predicated region
        $region17: #{srfbn_hg_forward.35} parent=11 // pred_check
          %p144 = pneg %p79
        $region18: #{srfbn_hg_forward.35} parent=11 // pred_check_branch
          %146 = sbr.rel (%p144) target = $region20
        $region19: #{srfbn_hg_forward.35} parent=11 // pred_region
          _
        $region20: #{srfbn_hg_forward.35} parent=11 // pred_fallthru
          _
        // Predicated region
        $region21: #{srfbn_hg_forward.35} parent=11 // pred_check
          %p147 = pneg %p100
        $region22: #{srfbn_hg_forward.35} parent=11 // pred_check_branch
          %149 = sbr.rel (%p147) target = $region24
        $region23: #{srfbn_hg_forward.35} parent=11 // pred_region
          _
        $region24: #{srfbn_hg_forward.35} parent=11 // pred_fallthru
          _
      $region12: #{srfbn_hg_forward.35} parent=5 // pred_fallthru
        _
      %p150 = scmp.lt.s32.totalorder %s11, 2
      // Predicated region
      $region25: #{srfbn_hg_forward.35} parent=5 // pred_check
        %p151 = pneg %p150
      $region26: #{srfbn_hg_forward.35} parent=5 // pred_check_branch
        %153 = sbr.rel (%p151) target = $region28
      $region27: #{srfbn_hg_forward.35} parent=5 // pred_region
        // Predicated region
        $region29: #{srfbn_hg_forward.35} parent=27 // pred_check
          %p154 = pneg %p52
        $region30: #{srfbn_hg_forward.35} parent=27 // pred_check_branch
          %156 = sbr.rel (%p154) target = $region32
        $region31: #{srfbn_hg_forward.35} parent=27 // pred_region
          %s157 = sand.u32 %s42, 1
          %s158 = sand.u32 %s42, 1
          %s159 = smul.addr %s158, 72
          %s160 = scalar_lea.vmem [#allocation3], %s159
          %s161 = smul.u32 2, %s11
          %s162 = smul.addr %s161, 4
          %s163 = scalar_lea.vmem %s1, %s162
          // Predicated region
          $region33: #{srfbn_hg_forward.35} parent=31 // pred_check
            _
          $region34: #{srfbn_hg_forward.35} parent=31 // pred_check_branch
            %165 = sbr.rel (0) target = $region36
          $region35: #{srfbn_hg_forward.35} parent=31 // pred_region
            // Predicated region
            $region37: #{srfbn_hg_forward.35} parent=35 // pred_check
              _
            $region38: #{srfbn_hg_forward.35} parent=35 // pred_check_branch
              %167 = sbr.rel (0) target = $region40
            $region39: #{srfbn_hg_forward.35} parent=35 // pred_region
              // Predicated region
              $region52: #{srfbn_hg_forward.35} parent=39 // pred_check
                _
              $region53: #{srfbn_hg_forward.35} parent=39 // pred_check_branch
                %198 = sbr.rel (0) target = $region55
              $region54: #{srfbn_hg_forward.35} parent=39 // pred_region
                loop: start=0, step=1, limit=1
                $region56: #{srfbn_hg_forward.35} parent=54 // loop_pre_header
                  _
                $region57: #{srfbn_hg_forward.35} parent=54 // loop_header
                  %s200 = sphi 0, %s204
                  %p201 = scmp.ge.s32.totalorder %s200, 1
                  %s205 = sphi %s163, %s163
                  %s206 = sphi %s160, %s160
                $region58: #{srfbn_hg_forward.35} parent=54 // loop_header_branch
                  %203 = sbr.rel (%p201) target = $region62
                $region59: #{srfbn_hg_forward.35} parent=54 // loop_body
                  %v207 = vld [vmem:[%s205] sm:$0xff]
                  %208 = vst [vmem:[%s206] sm:$0xff] %v207
                  %v209 = vld [vmem:[%s205 + $0x10] sm:$0xff]
                  %210 = vst [vmem:[%s206 + $0x8] sm:$0xff] %v209
                  %v211 = vld [vmem:[%s205 + $0x20] sm:$0xff]
                  %212 = vst [vmem:[%s206 + $0x10] sm:$0xff] %v211
                  %v213 = vld [vmem:[%s205 + $0x30] sm:$0xff]
                  %214 = vst [vmem:[%s206 + $0x18] sm:$0xff] %v213
                  %v215 = vld [vmem:[%s205 + $0x40] sm:$0xff]
                  %216 = vst [vmem:[%s206 + $0x20] sm:$0xff] %v215
                  %v217 = vld [vmem:[%s205 + $0x50] sm:$0xff]
                  %218 = vst [vmem:[%s206 + $0x28] sm:$0xff] %v217
                  %v219 = vld [vmem:[%s205 + $0x60] sm:$0xff]
                  %220 = vst [vmem:[%s206 + $0x30] sm:$0xff] %v219
                  %v221 = vld [vmem:[%s205 + $0x70] sm:$0xff]
                  %222 = vst [vmem:[%s206 + $0x38] sm:$0xff] %v221
                  %v223 = vld [vmem:[%s205 + $0x80] sm:$0xff]
                  %224 = vst [vmem:[%s206 + $0x40] sm:$0xff] %v223
                $region60: #{srfbn_hg_forward.35} parent=54 // loop_footer
                  %s204 = sadd.s32 1, %s200
                $region61: #{srfbn_hg_forward.35} parent=54 // loop_footer_branch
                  %199 = sbr.rel target = $region57
                $region62: #{srfbn_hg_forward.35} parent=54 // loop_exit
                  _
              $region55: #{srfbn_hg_forward.35} parent=39 // pred_fallthru
                _
              // Predicated region
              $region63: #{srfbn_hg_forward.35} parent=39 // pred_check
                _
              $region64: #{srfbn_hg_forward.35} parent=39 // pred_check_branch
                %226 = sbr.rel target = $region66
              $region65: #{srfbn_hg_forward.35} parent=39 // pred_region
                _
              $region66: #{srfbn_hg_forward.35} parent=39 // pred_fallthru
                _
            $region40: #{srfbn_hg_forward.35} parent=35 // pred_fallthru
              _
            // Predicated region
            $region41: #{srfbn_hg_forward.35} parent=35 // pred_check
              _
            $region42: #{srfbn_hg_forward.35} parent=35 // pred_check_branch
              %169 = sbr.rel target = $region44
            $region43: #{srfbn_hg_forward.35} parent=35 // pred_region
              loop: start=0, step=1, limit=1
              $region45: #{srfbn_hg_forward.35} parent=43 // loop_pre_header
                _
              $region46: #{srfbn_hg_forward.35} parent=43 // loop_header
                %s172 = sphi 0, %s176
                %p173 = scmp.ge.s32.totalorder %s172, 1
                %s177 = sphi %s163, %s163
                %s178 = sphi %s160, %s160
              $region47: #{srfbn_hg_forward.35} parent=43 // loop_header_branch
                %175 = sbr.rel (%p173) target = $region51
              $region48: #{srfbn_hg_forward.35} parent=43 // loop_body
                %v179 = vld [vmem:[%s177] sm:$0xff]
                %180 = vst [vmem:[%s178] sm:$0xff] %v179
                %v181 = vld [vmem:[%s177 + $0x10] sm:$0xff]
                %182 = vst [vmem:[%s178 + $0x8] sm:$0xff] %v181
                %v183 = vld [vmem:[%s177 + $0x20] sm:$0xff]
                %184 = vst [vmem:[%s178 + $0x10] sm:$0xff] %v183
                %v185 = vld [vmem:[%s177 + $0x30] sm:$0xff]
                %186 = vst [vmem:[%s178 + $0x18] sm:$0xff] %v185
                %v187 = vld [vmem:[%s177 + $0x40] sm:$0xff]
                %188 = vst [vmem:[%s178 + $0x20] sm:$0xff] %v187
                %v189 = vld [vmem:[%s177 + $0x50] sm:$0xff]
                %190 = vst [vmem:[%s178 + $0x28] sm:$0xff] %v189
                %v191 = vld [vmem:[%s177 + $0x60] sm:$0xff]
                %192 = vst [vmem:[%s178 + $0x30] sm:$0xff] %v191
                %v193 = vld [vmem:[%s177 + $0x70] sm:$0xff]
                %194 = vst [vmem:[%s178 + $0x38] sm:$0xff] %v193
                %v195 = vld [vmem:[%s177 + $0x80] sm:$0xff]
                %196 = vst [vmem:[%s178 + $0x40] sm:$0xff] %v195
              $region49: #{srfbn_hg_forward.35} parent=43 // loop_footer
                %s176 = sadd.s32 1, %s172
              $region50: #{srfbn_hg_forward.35} parent=43 // loop_footer_branch
                %171 = sbr.rel target = $region46
              $region51: #{srfbn_hg_forward.35} parent=43 // loop_exit
                _
            $region44: #{srfbn_hg_forward.35} parent=35 // pred_fallthru
              _
          $region36: #{srfbn_hg_forward.35} parent=31 // pred_fallthru
            _
          %227 = vnop
        $region32: #{srfbn_hg_forward.35} parent=27 // pred_fallthru
          _
      $region28: #{srfbn_hg_forward.35} parent=5 // pred_fallthru
        _
      %p228 = scmp.le.s32.totalorder 1, %s11
      %p229 = scmp.lt.s32.totalorder %s11, 3
      %p230 = pnand %p228, %p229
      %p231 = pneg %p230
      // Predicated region
      $region67: #{srfbn_hg_forward.35} parent=5 // pred_check
        _
      $region68: #{srfbn_hg_forward.35} parent=5 // pred_check_branch
        %233 = sbr.rel (%p230) target = $region70
      $region69: #{srfbn_hg_forward.35} parent=5 // pred_region
        %s234 = ssub.s32 %s11, 1
        %s235 = sand.u32 %s45, 1
        %s236 = sand.u32 %s45, 1
        %s237 = smul.addr %s236, 72
        %s238 = scalar_lea.vmem [#allocation3], %s237
        // Predicated region
        $region71: #{srfbn_hg_forward.35} parent=69 // pred_check
          %p239 = pneg %p58
        $region72: #{srfbn_hg_forward.35} parent=69 // pred_check_branch
          %241 = sbr.rel (%p239) target = $region74
        $region73: #{srfbn_hg_forward.35} parent=69 // pred_region
          _
        $region74: #{srfbn_hg_forward.35} parent=69 // pred_fallthru
          _
        %p242 = pneg %p32
        %p243 = pneg %p29
        %s244 = sand.u32 %s45, 1
        %s245 = sand.u32 %s45, 1
        %s246 = smul.addr %s245, 72
        %s247 = scalar_lea.vmem [#allocation3], %s246
        %p248 = pneg %p58
        %p249 = pneg %p55
        %p250 = pneg %p79
        %p251 = pneg %p76
        %p252 = pneg %p100
        %p253 = pneg %p97
        %p254 = pneg %p126
        %p255 = pneg %p123
        %s256 = sand.u32 %s113, 1
        %s257 = sand.u32 %s113, 1
        %s258 = smul.addr %s257, 256
        %s259 = scalar_lea.vmem [#allocation4], %s258
        %s260 = smul.u32 2, %s16
        %s261 = smul.u32 2, %s16
        %v263 = vld [vmem:[%s0] sm:$0xf]
        %v264 = vld [vmem:[%s0 + $0x4] sm:$0xf]
        %v265 = vld [vmem:[%s0 + $0x8] sm:$0xf]
        %v266 = vld [vmem:[%s0 + $0xc] sm:$0xf]
        %v267 = vld [vmem:[%s0 + $0x10] sm:$0xf]
        %v268 = vld [vmem:[%s0 + $0x14] sm:$0xf]
        %v269 = vld [vmem:[%s0 + $0x18] sm:$0xf]
        %v270 = vld [vmem:[%s0 + $0x1c] sm:$0xf]
        %v271 = vld [vmem:[%s0 + $0x20] sm:$0xf]
        %v272 = vld [vmem:[%s0 + $0x24] sm:$0xf]
        %v273 = vld [vmem:[%s0 + $0x28] sm:$0xf]
        %v274 = vld [vmem:[%s0 + $0x2c] sm:$0xf]
        %v275 = vld [vmem:[%s0 + $0x30] sm:$0xf]
        %v276 = vld [vmem:[%s0 + $0x34] sm:$0xf]
        %v277 = vld [vmem:[%s0 + $0x38] sm:$0xf]
        %v278 = vld [vmem:[%s0 + $0x3c] sm:$0xf]
        %v279 = vld [vmem:[%s238] sm:$0xff]
        %v280 = vld [vmem:[%s238 + $0x8] sm:$0xff]
        %v281 = vld [vmem:[%s238 + $0x10] sm:$0xff]
        %v282 = vld [vmem:[%s238 + $0x18] sm:$0xff]
        %v283 = vld [vmem:[%s238 + $0x20] sm:$0xff]
        %v284 = vld [vmem:[%s238 + $0x28] sm:$0xff]
        %v285 = vld [vmem:[%s238 + $0x30] sm:$0xff]
        %v286 = vld [vmem:[%s238 + $0x38] sm:$0xff]
        %v287 = vld [vmem:[%s238 + $0x40] sm:$0xff]
        %v288 = vld [vmem:[%s2] sm:$0xff]
        %v289 = vld [vmem:[%s2 + $0x8] sm:$0xff]
        %v290 = vld [vmem:[%s2 + $0x10] sm:$0xff]
        %v291 = vld [vmem:[%s2 + $0x18] sm:$0xff]
        %v292 = vld [vmem:[%s2 + $0x20] sm:$0xff]
        %v293 = vld [vmem:[%s2 + $0x28] sm:$0xff]
        %v294 = vld [vmem:[%s2 + $0x30] sm:$0xff]
        %v295 = vld [vmem:[%s2 + $0x38] sm:$0xff]
        %v296 = vld [vmem:[%s2 + $0x40] sm:$0xff]
        %v297 = vld [vmem:[%s2 + $0x48] sm:$0xff]
        %v298 = vld [vmem:[%s2 + $0x50] sm:$0xff]
        %v299 = vld [vmem:[%s2 + $0x58] sm:$0xff]
        %v300 = vld [vmem:[%s2 + $0x60] sm:$0xff]
        %v301 = vld [vmem:[%s2 + $0x68] sm:$0xff]
        %v302 = vld [vmem:[%s2 + $0x70] sm:$0xff]
        %v303 = vld [vmem:[%s2 + $0x78] sm:$0xff]
        %305 = vset.pattern.permute.xlu0 0
        %306 = vperm.xlu0 %305, %v288
        %v307 = vpop.permute.xlu0 %306
        %310 = vset.pattern.permute.xlu0 0
        %311 = vperm.xlu0 %310, %v289
        %v312 = vpop.permute.xlu0 %311
        %315 = vset.pattern.permute.xlu0 0
        %316 = vperm.xlu0 %315, %v290
        %v317 = vpop.permute.xlu0 %316
        %320 = vset.pattern.permute.xlu0 0
        %321 = vperm.xlu0 %320, %v291
        %v322 = vpop.permute.xlu0 %321
        %325 = vset.pattern.permute.xlu0 0
        %326 = vperm.xlu0 %325, %v292
        %v327 = vpop.permute.xlu0 %326
        %330 = vset.pattern.permute.xlu0 0
        %331 = vperm.xlu0 %330, %v293
        %v332 = vpop.permute.xlu0 %331
        %335 = vset.pattern.permute.xlu0 0
        %336 = vperm.xlu0 %335, %v294
        %v337 = vpop.permute.xlu0 %336
        %340 = vset.pattern.permute.xlu0 0
        %341 = vperm.xlu0 %340, %v295
        %v342 = vpop.permute.xlu0 %341
        %345 = vset.pattern.permute.xlu0 0
        %346 = vperm.xlu0 %345, %v296
        %v347 = vpop.permute.xlu0 %346
        %350 = vset.pattern.permute.xlu0 0
        %351 = vperm.xlu0 %350, %v297
        %v352 = vpop.permute.xlu0 %351
        %355 = vset.pattern.permute.xlu0 0
        %356 = vperm.xlu0 %355, %v298
        %v357 = vpop.permute.xlu0 %356
        %360 = vset.pattern.permute.xlu0 0
        %361 = vperm.xlu0 %360, %v299
        %v362 = vpop.permute.xlu0 %361
        %365 = vset.pattern.permute.xlu0 0
        %366 = vperm.xlu0 %365, %v300
        %v367 = vpop.permute.xlu0 %366
        %370 = vset.pattern.permute.xlu0 0
        %371 = vperm.xlu0 %370, %v301
        %v372 = vpop.permute.xlu0 %371
        %375 = vset.pattern.permute.xlu0 0
        %376 = vperm.xlu0 %375, %v302
        %v377 = vpop.permute.xlu0 %376
        %380 = vset.pattern.permute.xlu0 0
        %381 = vperm.xlu0 %380, %v303
        %v382 = vpop.permute.xlu0 %381
        %v400 = vunpack.c.l.b16 %v263
        %v401 = vunpack.c.l.b16 %v264
        %v402 = vunpack.c.l.b16 %v265
        %v403 = vunpack.c.l.b16 %v266
        %v404 = vunpack.c.l.b16 %v267
        %v405 = vunpack.c.l.b16 %v268
        %v406 = vunpack.c.l.b16 %v269
        %v407 = vunpack.c.l.b16 %v270
        %v408 = vunpack.c.l.b16 %v271
        %v409 = vunpack.c.l.b16 %v272
        %v410 = vunpack.c.l.b16 %v273
        %v411 = vunpack.c.l.b16 %v274
        %v412 = vunpack.c.l.b16 %v275
        %v413 = vunpack.c.l.b16 %v276
        %v414 = vunpack.c.l.b16 %v277
        %v415 = vunpack.c.l.b16 %v278
        %v416 = vpack.c.b16 %v401, %v400
        %v417 = vpack.c.b16 %v403, %v402
        %v418 = vpack.c.b16 %v405, %v404
        %v419 = vpack.c.b16 %v407, %v406
        %v420 = vpack.c.b16 %v409, %v408
        %v421 = vpack.c.b16 %v411, %v410
        %v422 = vpack.c.b16 %v413, %v412
        %v423 = vpack.c.b16 %v415, %v414
        %v433 = vunpack.c.l.b16 %v279
        %v434 = vunpack.c.h.b16 %v279
        %v435 = vunpack.c.l.b16 %v280
        %v436 = vunpack.c.h.b16 %v280
        %v437 = vunpack.c.l.b16 %v281
        %v438 = vunpack.c.h.b16 %v281
        %v439 = vunpack.c.l.b16 %v282
        %v440 = vunpack.c.h.b16 %v282
        %v441 = vunpack.c.l.b16 %v283
        %v442 = vunpack.c.h.b16 %v283
        %v443 = vunpack.c.l.b16 %v284
        %v444 = vunpack.c.h.b16 %v284
        %v445 = vunpack.c.l.b16 %v285
        %v446 = vunpack.c.h.b16 %v285
        %v447 = vunpack.c.l.b16 %v286
        %v448 = vunpack.c.h.b16 %v286
        %v449 = vunpack.c.l.b16 %v287
        %v450 = vunpack.c.h.b16 %v287
        %v451 = vpack.c.b16 %v435, %v433
        %v452 = vpack.c.b16 %v436, %v434
        %v453 = vpack.c.b16 %v439, %v437
        %v454 = vpack.c.b16 %v440, %v438
        %v455 = vpack.c.b16 %v443, %v441
        %v456 = vpack.c.b16 %v444, %v442
        %v457 = vpack.c.b16 %v447, %v445
        %v458 = vpack.c.b16 %v448, %v446
        %v459 = vpack.c.b16 %v449, %v449
        %v460 = vpack.c.b16 %v450, %v450
        %vm469 = vcmask 588800
        %v471 = vsel %vm469, %v416, 0
        %v474 = vsel %vm469, %v417, 0
        %v477 = vsel %vm469, %v418, 0
        %v480 = vsel %vm469, %v419, 0
        %v483 = vsel %vm469, %v420, 0
        %v486 = vsel %vm469, %v421, 0
        %v489 = vsel %vm469, %v422, 0
        %v492 = vsel %vm469, %v423, 0
        %vm494 = vcmask 1043456
        %v496 = vsel %vm494, %v459, 0
        %v499 = vsel %vm494, %v460, 0
        %501 = vmatprep.subr.bf16.mxu0 %v452
        %502 = vmatpush1.bf16.msra.mxu0 %v451
        %503 = vmatprep.subr.bf16.mxu0 %v454
        %504 = vmatpush1.bf16.msra.mxu0 %v453
        %505 = vmatprep.subr.bf16.mxu0 %v456
        %506 = vmatpush1.bf16.msra.mxu0 %v455
        %507 = vmatprep.subr.bf16.mxu0 %v458
        %508 = vmatpush1.bf16.msra.mxu0 %v457
        %509 = vmatprep.subr.bf16.mxu0 %v499
        %510 = vmatpush1.bf16.msra.mxu0 %v496
        %511 = vmatprep.subr.bf16.mxu0 0
        %512 = vmatpush1.bf16.msra.mxu0 0
        %513 = vmatprep.subr.bf16.mxu0 0
        %514 = vmatpush1.bf16.msra.mxu0 0
        %515 = vmatprep.subr.bf16.mxu0 0
        %516 = vmatpush1.bf16.msra.mxu0 0
        %517 = vmatprep.subr.bf16.mxu0 0
        %518 = vmatpush1.bf16.msra.mxu0 0
        %519 = vmatprep.subr.bf16.mxu0 0
        %520 = vmatpush1.bf16.msra.mxu0 0
        %521 = vmatprep.subr.bf16.mxu0 0
        %522 = vmatpush1.bf16.msra.mxu0 0
        %523 = vmatprep.subr.bf16.mxu0 0
        %524 = vmatpush1.bf16.msra.mxu0 0
        %525 = vmatprep.subr.bf16.mxu0 0
        %526 = vmatpush1.bf16.msra.mxu0 0
        %527 = vmatprep.subr.bf16.mxu0 0
        %528 = vmatpush1.bf16.msra.mxu0 0
        %529 = vmatprep.subr.bf16.mxu0 0
        %530 = vmatpush1.bf16.msra.mxu0 0
        %531 = vmatprep.subr.bf16.mxu0 0
        %532 = vmatpush1.bf16.msra.mxu0 0
        %533 = vmatprep.mubr.bf16.mxu0 0
        %534 = vmatmul.mubr.bf16.gmra.mrb[0].mxu0 %v471
        %v535 = vpop.f32.mrb[0].mxu0
        %v536 = vadd.f32 %v307, %v535
        %v537 = vpop.f32.mrb[0].mxu0
        %v538 = vadd.f32 %v307, %v537
        %v539 = vpop.f32.mrb[0].mxu0
        %v540 = vadd.f32 %v312, %v539
        %v541 = vpop.f32.mrb[0].mxu0
        %v542 = vadd.f32 %v312, %v541
        %543 = vmatprep.mubr.bf16.mxu0 0
        %544 = vmatmul.mubr.bf16.gmra.mrb[0].mxu0 %v474
        %v545 = vpop.f32.mrb[0].mxu0
        %v546 = vadd.f32 %v317, %v545
        %v547 = vpop.f32.mrb[0].mxu0
        %v548 = vadd.f32 %v317, %v547
        %v549 = vpop.f32.mrb[0].mxu0
        %v550 = vadd.f32 %v322, %v549
        %v551 = vpop.f32.mrb[0].mxu0
        %v552 = vadd.f32 %v322, %v551
        %553 = vmatprep.mubr.bf16.mxu0 0
        %554 = vmatmul.mubr.bf16.gmra.mrb[0].mxu0 %v477
        %v555 = vpop.f32.mrb[0].mxu0
        %v556 = vadd.f32 %v327, %v555
        %v557 = vpop.f32.mrb[0].mxu0
        %v558 = vadd.f32 %v327, %v557
        %v559 = vpop.f32.mrb[0].mxu0
        %v560 = vadd.f32 %v332, %v559
        %v561 = vpop.f32.mrb[0].mxu0
        %v562 = vadd.f32 %v332, %v561
        %563 = vmatprep.mubr.bf16.mxu0 0
        %564 = vmatmul.mubr.bf16.gmra.mrb[0].mxu0 %v480
        %v565 = vpop.f32.mrb[0].mxu0
        %v566 = vadd.f32 %v337, %v565
        %v567 = vpop.f32.mrb[0].mxu0
        %v568 = vadd.f32 %v337, %v567
        %v569 = vpop.f32.mrb[0].mxu0
        %v570 = vadd.f32 %v342, %v569
        %v571 = vpop.f32.mrb[0].mxu0
        %v572 = vadd.f32 %v342, %v571
        %573 = vmatprep.mubr.bf16.mxu0 0
        %574 = vmatmul.mubr.bf16.gmra.mrb[0].mxu0 %v483
        %v575 = vpop.f32.mrb[0].mxu0
        %v576 = vadd.f32 %v347, %v575
        %v577 = vpop.f32.mrb[0].mxu0
        %v578 = vadd.f32 %v347, %v577
        %v579 = vpop.f32.mrb[0].mxu0
        %v580 = vadd.f32 %v352, %v579
        %v581 = vpop.f32.mrb[0].mxu0
        %v582 = vadd.f32 %v352, %v581
        %583 = vmatprep.mubr.bf16.mxu0 0
        %584 = vmatmul.mubr.bf16.gmra.mrb[0].mxu0 %v486
        %v585 = vpop.f32.mrb[0].mxu0
        %v586 = vadd.f32 %v357, %v585
        %v587 = vpop.f32.mrb[0].mxu0
        %v588 = vadd.f32 %v357, %v587
        %v589 = vpop.f32.mrb[0].mxu0
        %v590 = vadd.f32 %v362, %v589
        %v591 = vpop.f32.mrb[0].mxu0
        %v592 = vadd.f32 %v362, %v591
        %593 = vmatprep.mubr.bf16.mxu0 0
        %594 = vmatmul.mubr.bf16.gmra.mrb[0].mxu0 %v489
        %v595 = vpop.f32.mrb[0].mxu0
        %v596 = vadd.f32 %v367, %v595
        %v597 = vpop.f32.mrb[0].mxu0
        %v598 = vadd.f32 %v367, %v597
        %v599 = vpop.f32.mrb[0].mxu0
        %v600 = vadd.f32 %v372, %v599
        %v601 = vpop.f32.mrb[0].mxu0
        %v602 = vadd.f32 %v372, %v601
        %603 = vmatprep.mubr.bf16.mxu0 0
        %604 = vmatmul.mubr.bf16.gmra.mrb[0].mxu0 %v492
        %v605 = vpop.f32.mrb[0].mxu0
        %v606 = vadd.f32 %v377, %v605
        %v607 = vpop.f32.mrb[0].mxu0
        %v608 = vadd.f32 %v377, %v607
        %v609 = vpop.f32.mrb[0].mxu0
        %v610 = vadd.f32 %v382, %v609
        %v611 = vpop.f32.mrb[0].mxu0
        %v612 = vadd.f32 %v382, %v611
        %613 = vdwg.mxu0
        %s614 = sld [smem:[#allocation2]]
        %vm615 = vcmp.ge.f32.partialorder %v536, 0.0
        %vm616 = vcmp.ge.f32.partialorder %v538, 0.0
        %vm617 = vcmp.ge.f32.partialorder %v540, 0.0
        %vm618 = vcmp.ge.f32.partialorder %v542, 0.0
        %vm619 = vcmp.ge.f32.partialorder %v546, 0.0
        %vm620 = vcmp.ge.f32.partialorder %v548, 0.0
        %vm621 = vcmp.ge.f32.partialorder %v550, 0.0
        %vm622 = vcmp.ge.f32.partialorder %v552, 0.0
        %vm623 = vcmp.ge.f32.partialorder %v556, 0.0
        %vm624 = vcmp.ge.f32.partialorder %v558, 0.0
        %vm625 = vcmp.ge.f32.partialorder %v560, 0.0
        %vm626 = vcmp.ge.f32.partialorder %v562, 0.0
        %vm627 = vcmp.ge.f32.partialorder %v566, 0.0
        %vm628 = vcmp.ge.f32.partialorder %v568, 0.0
        %vm629 = vcmp.ge.f32.partialorder %v570, 0.0
        %vm630 = vcmp.ge.f32.partialorder %v572, 0.0
        %vm631 = vcmp.ge.f32.partialorder %v576, 0.0
        %vm632 = vcmp.ge.f32.partialorder %v578, 0.0
        %vm633 = vcmp.ge.f32.partialorder %v580, 0.0
        %vm634 = vcmp.ge.f32.partialorder %v582, 0.0
        %vm635 = vcmp.ge.f32.partialorder %v586, 0.0
        %vm636 = vcmp.ge.f32.partialorder %v588, 0.0
        %vm637 = vcmp.ge.f32.partialorder %v590, 0.0
        %vm638 = vcmp.ge.f32.partialorder %v592, 0.0
        %vm639 = vcmp.ge.f32.partialorder %v596, 0.0
        %vm640 = vcmp.ge.f32.partialorder %v598, 0.0
        %vm641 = vcmp.ge.f32.partialorder %v600, 0.0
        %vm642 = vcmp.ge.f32.partialorder %v602, 0.0
        %vm643 = vcmp.ge.f32.partialorder %v606, 0.0
        %vm644 = vcmp.ge.f32.partialorder %v608, 0.0
        %vm645 = vcmp.ge.f32.partialorder %v610, 0.0
        %vm646 = vcmp.ge.f32.partialorder %v612, 0.0
        %v647 = vstv %s614
        %v648 = vmul.f32 %v647, %v536
        %v649 = vmul.f32 %v647, %v538
        %v650 = vmul.f32 %v647, %v540
        %v651 = vmul.f32 %v647, %v542
        %v652 = vmul.f32 %v647, %v546
        %v653 = vmul.f32 %v647, %v548
        %v654 = vmul.f32 %v647, %v550
        %v655 = vmul.f32 %v647, %v552
        %v656 = vmul.f32 %v647, %v556
        %v657 = vmul.f32 %v647, %v558
        %v658 = vmul.f32 %v647, %v560
        %v659 = vmul.f32 %v647, %v562
        %v660 = vmul.f32 %v647, %v566
        %v661 = vmul.f32 %v647, %v568
        %v662 = vmul.f32 %v647, %v570
        %v663 = vmul.f32 %v647, %v572
        %v664 = vmul.f32 %v647, %v576
        %v665 = vmul.f32 %v647, %v578
        %v666 = vmul.f32 %v647, %v580
        %v667 = vmul.f32 %v647, %v582
        %v668 = vmul.f32 %v647, %v586
        %v669 = vmul.f32 %v647, %v588
        %v670 = vmul.f32 %v647, %v590
        %v671 = vmul.f32 %v647, %v592
        %v672 = vmul.f32 %v647, %v596
        %v673 = vmul.f32 %v647, %v598
        %v674 = vmul.f32 %v647, %v600
        %v675 = vmul.f32 %v647, %v602
        %v676 = vmul.f32 %v647, %v606
        %v677 = vmul.f32 %v647, %v608
        %v678 = vmul.f32 %v647, %v610
        %v679 = vmul.f32 %v647, %v612
        %v680 = vsel %vm615, %v536, %v648
        %v681 = vsel %vm616, %v538, %v649
        %v682 = vsel %vm617, %v540, %v650
        %v683 = vsel %vm618, %v542, %v651
        %v684 = vsel %vm619, %v546, %v652
        %v685 = vsel %vm620, %v548, %v653
        %v686 = vsel %vm621, %v550, %v654
        %v687 = vsel %vm622, %v552, %v655
        %v688 = vsel %vm623, %v556, %v656
        %v689 = vsel %vm624, %v558, %v657
        %v690 = vsel %vm625, %v560, %v658
        %v691 = vsel %vm626, %v562, %v659
        %v692 = vsel %vm627, %v566, %v660
        %v693 = vsel %vm628, %v568, %v661
        %v694 = vsel %vm629, %v570, %v662
        %v695 = vsel %vm630, %v572, %v663
        %v696 = vsel %vm631, %v576, %v664
        %v697 = vsel %vm632, %v578, %v665
        %v698 = vsel %vm633, %v580, %v666
        %v699 = vsel %vm634, %v582, %v667
        %v700 = vsel %vm635, %v586, %v668
        %v701 = vsel %vm636, %v588, %v669
        %v702 = vsel %vm637, %v590, %v670
        %v703 = vsel %vm638, %v592, %v671
        %v704 = vsel %vm639, %v596, %v672
        %v705 = vsel %vm640, %v598, %v673
        %v706 = vsel %vm641, %v600, %v674
        %v707 = vsel %vm642, %v602, %v675
        %v708 = vsel %vm643, %v606, %v676
        %v709 = vsel %vm644, %v608, %v677
        %v710 = vsel %vm645, %v610, %v678
        %v711 = vsel %vm646, %v612, %v679
        %712 = vst [vmem:[%s259] sm:$0xff] %v680
        %713 = vst [vmem:[%s259 + $0x8] sm:$0xff] %v681
        %714 = vst [vmem:[%s259 + $0x10] sm:$0xff] %v682
        %715 = vst [vmem:[%s259 + $0x18] sm:$0xff] %v683
        %716 = vst [vmem:[%s259 + $0x20] sm:$0xff] %v684
        %717 = vst [vmem:[%s259 + $0x28] sm:$0xff] %v685
        %718 = vst [vmem:[%s259 + $0x30] sm:$0xff] %v686
        %719 = vst [vmem:[%s259 + $0x38] sm:$0xff] %v687
        %720 = vst [vmem:[%s259 + $0x40] sm:$0xff] %v688
        %721 = vst [vmem:[%s259 + $0x48] sm:$0xff] %v689
        %722 = vst [vmem:[%s259 + $0x50] sm:$0xff] %v690
        %723 = vst [vmem:[%s259 + $0x58] sm:$0xff] %v691
        %724 = vst [vmem:[%s259 + $0x60] sm:$0xff] %v692
        %725 = vst [vmem:[%s259 + $0x68] sm:$0xff] %v693
        %726 = vst [vmem:[%s259 + $0x70] sm:$0xff] %v694
        %727 = vst [vmem:[%s259 + $0x78] sm:$0xff] %v695
        %728 = vst [vmem:[%s259 + $0x80] sm:$0xff] %v696
        %729 = vst [vmem:[%s259 + $0x88] sm:$0xff] %v697
        %730 = vst [vmem:[%s259 + $0x90] sm:$0xff] %v698
        %731 = vst [vmem:[%s259 + $0x98] sm:$0xff] %v699
        %732 = vst [vmem:[%s259 + $0xa0] sm:$0xff] %v700
        %733 = vst [vmem:[%s259 + $0xa8] sm:$0xff] %v701
        %734 = vst [vmem:[%s259 + $0xb0] sm:$0xff] %v702
        %735 = vst [vmem:[%s259 + $0xb8] sm:$0xff] %v703
        %736 = vst [vmem:[%s259 + $0xc0] sm:$0xff] %v704
        %737 = vst [vmem:[%s259 + $0xc8] sm:$0xff] %v705
        %738 = vst [vmem:[%s259 + $0xd0] sm:$0xff] %v706
        %739 = vst [vmem:[%s259 + $0xd8] sm:$0xff] %v707
        %740 = vst [vmem:[%s259 + $0xe0] sm:$0xff] %v708
        %741 = vst [vmem:[%s259 + $0xe8] sm:$0xff] %v709
        %742 = vst [vmem:[%s259 + $0xf0] sm:$0xff] %v710
        %743 = vst [vmem:[%s259 + $0xf8] sm:$0xff] %v711
        %s744 = sand.u32 %s113, 1
        %s745 = sand.u32 %s113, 1
        %s746 = smul.addr %s745, 256
        %s747 = scalar_lea.vmem [#allocation4], %s746
        // Predicated region
        $region75: #{srfbn_hg_forward.35} parent=69 // pred_check
          %p748 = pneg %p123
        $region76: #{srfbn_hg_forward.35} parent=69 // pred_check_branch
          %750 = sbr.rel (%p748) target = $region78
        $region77: #{srfbn_hg_forward.35} parent=69 // pred_region
          %s751 = smul.u32 2, %s16
          %s752 = smul.addr %s751, 8
          %s753 = scalar_lea.vmem %s4, %s752
          // Predicated region
          $region79: #{srfbn_hg_forward.35} parent=77 // pred_check
            _
          $region80: #{srfbn_hg_forward.35} parent=77 // pred_check_branch
            %755 = sbr.rel (0) target = $region82
          $region81: #{srfbn_hg_forward.35} parent=77 // pred_region
            // Predicated region
            $region83: #{srfbn_hg_forward.35} parent=81 // pred_check
              _
            $region84: #{srfbn_hg_forward.35} parent=81 // pred_check_branch
              %757 = sbr.rel (0) target = $region86
            $region85: #{srfbn_hg_forward.35} parent=81 // pred_region
              loop: start=0, step=1, limit=1
              $region87: #{srfbn_hg_forward.35} parent=85 // loop_pre_header
                _
              $region88: #{srfbn_hg_forward.35} parent=85 // loop_header
                %s759 = sphi 0, %s763
                %p760 = scmp.ge.s32.totalorder %s759, 1
                %s764 = sphi %s747, %s747
                %s765 = sphi %s753, %s753
              $region89: #{srfbn_hg_forward.35} parent=85 // loop_header_branch
                %762 = sbr.rel (%p760) target = $region93
              $region90: #{srfbn_hg_forward.35} parent=85 // loop_body
                %v766 = vld [vmem:[%s764] sm:$0xff]
                %767 = vst [vmem:[%s765] sm:$0xff] %v766
                %v768 = vld [vmem:[%s764 + $0x8] sm:$0xff]
                %769 = vst [vmem:[%s765 + $0x8] sm:$0xff] %v768
                %v770 = vld [vmem:[%s764 + $0x10] sm:$0xff]
                %771 = vst [vmem:[%s765 + $0x20] sm:$0xff] %v770
                %v772 = vld [vmem:[%s764 + $0x18] sm:$0xff]
                %773 = vst [vmem:[%s765 + $0x28] sm:$0xff] %v772
                %v774 = vld [vmem:[%s764 + $0x20] sm:$0xff]
                %775 = vst [vmem:[%s765 + $0x40] sm:$0xff] %v774
                %v776 = vld [vmem:[%s764 + $0x28] sm:$0xff]
                %777 = vst [vmem:[%s765 + $0x48] sm:$0xff] %v776
                %v778 = vld [vmem:[%s764 + $0x30] sm:$0xff]
                %779 = vst [vmem:[%s765 + $0x60] sm:$0xff] %v778
                %v780 = vld [vmem:[%s764 + $0x38] sm:$0xff]
                %781 = vst [vmem:[%s765 + $0x68] sm:$0xff] %v780
                %v782 = vld [vmem:[%s764 + $0x40] sm:$0xff]
                %783 = vst [vmem:[%s765 + $0x80] sm:$0xff] %v782
                %v784 = vld [vmem:[%s764 + $0x48] sm:$0xff]
                %785 = vst [vmem:[%s765 + $0x88] sm:$0xff] %v784
                %v786 = vld [vmem:[%s764 + $0x50] sm:$0xff]
                %787 = vst [vmem:[%s765 + $0xa0] sm:$0xff] %v786
                %v788 = vld [vmem:[%s764 + $0x58] sm:$0xff]
                %789 = vst [vmem:[%s765 + $0xa8] sm:$0xff] %v788
                %v790 = vld [vmem:[%s764 + $0x60] sm:$0xff]
                %791 = vst [vmem:[%s765 + $0xc0] sm:$0xff] %v790
                %v792 = vld [vmem:[%s764 + $0x68] sm:$0xff]
                %793 = vst [vmem:[%s765 + $0xc8] sm:$0xff] %v792
                %v794 = vld [vmem:[%s764 + $0x70] sm:$0xff]
                %795 = vst [vmem:[%s765 + $0xe0] sm:$0xff] %v794
                %v796 = vld [vmem:[%s764 + $0x78] sm:$0xff]
                %797 = vst [vmem:[%s765 + $0xe8] sm:$0xff] %v796
                %v798 = vld [vmem:[%s764 + $0x80] sm:$0xff]
                %799 = vst [vmem:[%s765 + $0x100] sm:$0xff] %v798
                %v800 = vld [vmem:[%s764 + $0x88] sm:$0xff]
                %801 = vst [vmem:[%s765 + $0x108] sm:$0xff] %v800
                %v802 = vld [vmem:[%s764 + $0x90] sm:$0xff]
                %803 = vst [vmem:[%s765 + $0x120] sm:$0xff] %v802
                %v804 = vld [vmem:[%s764 + $0x98] sm:$0xff]
                %805 = vst [vmem:[%s765 + $0x128] sm:$0xff] %v804
                %v806 = vld [vmem:[%s764 + $0xa0] sm:$0xff]
                %807 = vst [vmem:[%s765 + $0x140] sm:$0xff] %v806
                %v808 = vld [vmem:[%s764 + $0xa8] sm:$0xff]
                %809 = vst [vmem:[%s765 + $0x148] sm:$0xff] %v808
                %v810 = vld [vmem:[%s764 + $0xb0] sm:$0xff]
                %811 = vst [vmem:[%s765 + $0x160] sm:$0xff] %v810
                %v812 = vld [vmem:[%s764 + $0xb8] sm:$0xff]
                %813 = vst [vmem:[%s765 + $0x168] sm:$0xff] %v812
                %v814 = vld [vmem:[%s764 + $0xc0] sm:$0xff]
                %815 = vst [vmem:[%s765 + $0x180] sm:$0xff] %v814
                %v816 = vld [vmem:[%s764 + $0xc8] sm:$0xff]
                %817 = vst [vmem:[%s765 + $0x188] sm:$0xff] %v816
                %v818 = vld [vmem:[%s764 + $0xd0] sm:$0xff]
                %819 = vst [vmem:[%s765 + $0x1a0] sm:$0xff] %v818
                %v820 = vld [vmem:[%s764 + $0xd8] sm:$0xff]
                %821 = vst [vmem:[%s765 + $0x1a8] sm:$0xff] %v820
                %v822 = vld [vmem:[%s764 + $0xe0] sm:$0xff]
                %823 = vst [vmem:[%s765 + $0x1c0] sm:$0xff] %v822
                %v824 = vld [vmem:[%s764 + $0xe8] sm:$0xff]
                %825 = vst [vmem:[%s765 + $0x1c8] sm:$0xff] %v824
                %v826 = vld [vmem:[%s764 + $0xf0] sm:$0xff]
                %827 = vst [vmem:[%s765 + $0x1e0] sm:$0xff] %v826
                %v828 = vld [vmem:[%s764 + $0xf8] sm:$0xff]
                %829 = vst [vmem:[%s765 + $0x1e8] sm:$0xff] %v828
              $region91: #{srfbn_hg_forward.35} parent=85 // loop_footer
                %s763 = sadd.s32 1, %s759
              $region92: #{srfbn_hg_forward.35} parent=85 // loop_footer_branch
                %758 = sbr.rel target = $region88
              $region93: #{srfbn_hg_forward.35} parent=85 // loop_exit
                _
            $region86: #{srfbn_hg_forward.35} parent=81 // pred_fallthru
              _
            // Predicated region
            $region94: #{srfbn_hg_forward.35} parent=81 // pred_check
              _
            $region95: #{srfbn_hg_forward.35} parent=81 // pred_check_branch
              %831 = sbr.rel target = $region97
            $region96: #{srfbn_hg_forward.35} parent=81 // pred_region
              _
            $region97: #{srfbn_hg_forward.35} parent=81 // pred_fallthru
              _
          $region82: #{srfbn_hg_forward.35} parent=77 // pred_fallthru
            _
          %832 = vnop
        $region78: #{srfbn_hg_forward.35} parent=69 // pred_fallthru
          _
      $region70: #{srfbn_hg_forward.35} parent=5 // pred_fallthru
        _
      %p833 = scmp.le.s32.totalorder 2, %s11
      // Predicated region
      $region98: #{srfbn_hg_forward.35} parent=5 // pred_check
        %p834 = pneg %p833
      $region99: #{srfbn_hg_forward.35} parent=5 // pred_check_branch
        %836 = sbr.rel (%p834) target = $region101
      $region100: #{srfbn_hg_forward.35} parent=5 // pred_region
        %s837 = ssub.s32 %s11, 2
        // Predicated region
        $region102: #{srfbn_hg_forward.35} parent=100 // pred_check
          %p838 = pneg %p129
        $region103: #{srfbn_hg_forward.35} parent=100 // pred_check_branch
          %840 = sbr.rel (%p838) target = $region105
        $region104: #{srfbn_hg_forward.35} parent=100 // pred_region
          %s841 = sand.u32 %s114, 1
          %s842 = sand.u32 %s114, 1
          %s843 = smul.addr %s842, 256
          %s844 = scalar_lea.vmem [#allocation4], %s843
        $region105: #{srfbn_hg_forward.35} parent=100 // pred_fallthru
          _
      $region101: #{srfbn_hg_forward.35} parent=5 // pred_fallthru
        _
    $region6: #{srfbn_hg_forward.35} parent=1 // loop_footer
      %s15 = sadd.s32 1, %s11
    $region7: #{srfbn_hg_forward.35} parent=1 // loop_footer_branch
      %10 = sbr.rel target = $region3
    $region8: #{srfbn_hg_forward.35} parent=1 // loop_exit
      _

// kernel: srfbn_hg_forward.36
$region0: #{srfbn_hg_forward.36}
  #allocation0 [shape = 'u32[]', space=smem, size = 0x4, offset = 0x4, fixed_abs, tag = 'smem constant byte address 0x4 - core index']
  #allocation1 [shape = 'u32[144,128]{1,0:T(1,128)}', space=vmem, size = 0x12000, scoped, tag = 'internal scratch']
  #allocation2 [shape = 'f32[1]{0:T(128)S(6)}', space=smem, size = 0x200, scoped, tag = 'scoped memory for srfbn_hg_forward.36']
  %s0 = inlined_call_operand.vmem [shape: bf16[8,512], index: 0, kind: input, shape index: {}]
  %s1 = inlined_call_operand.vmem [shape: bf16[512,512], index: 1, kind: input, shape index: {}]
  %s2 = inlined_call_operand.vmem [shape: f32[8,1], index: 2, kind: input, shape index: {}]
  %s3 = inlined_call_operand.<no memory space> [shape: f32[1], index: 3, kind: input, shape index: {}]
  %s4 = inlined_call_operand.vmem [shape: f32[8,512], index: 4, kind: output, shape index: {}]
  %s5 = sld [smem:[#allocation0]]
  $region87: #{srfbn_hg_forward.36} parent=0
    _
  %s7 = ssub.s32 1, %s5
  %s8 = scalar_select 0, %s7, %s5
  %9 = sst [smem:[#allocation2]] %s3
  $region1: #{srfbn_hg_forward.36} parent=0
    #allocation3 [shape = 'u8[524288]{0}', space=vmem, size = 0x80000, scoped, tag = 'input window, operand 1']
    loop: start=0, step=1, limit=4
    $region2: #{srfbn_hg_forward.36} parent=1 // loop_pre_header
      _
    $region3: #{srfbn_hg_forward.36} parent=1 // loop_header
      %s11 = sphi 0, %s15
      %p12 = scmp.ge.s32.totalorder %s11, 4
      %s19 = sphi 0, %s19
      %s21 = sphi 0, %s19
      %s22 = sphi 0, %s21
      %s36 = sphi 0, %s22
      %s42 = sphi 0, %s44
      %s45 = sphi 0, %s42
      %s46 = sphi 0, %s45
      %s62 = sphi 0, %s46
      %s66 = sphi 0, %s66
      %s68 = sphi 0, %s66
      %s69 = sphi 0, %s68
      %s83 = sphi 0, %s69
      %s87 = sphi 0, %s87
      %s89 = sphi 0, %s87
      %s90 = sphi 0, %s89
      %s104 = sphi 0, %s90
      %s110 = sphi 0, %s112
      %s113 = sphi 0, %s110
      %s114 = sphi 0, %s113
      %s130 = sphi 0, %s114
    $region4: #{srfbn_hg_forward.36} parent=1 // loop_header_branch
      %14 = sbr.rel (%p12) target = $region8
    $region5: #{srfbn_hg_forward.36} parent=1 // loop_body
      %s16 = ssub.s32 %s11, 1
      %s17 = ssub.s32 %s11, 2
      %s18 = sadd.s32 %s11, 1
      %s20 = sadd.s32 %s19, 1
      %p23 = scmp.eq.s32.totalorder %s11, 1
      %p24 = scmp.ne.s32.totalorder %s19, %s21
      %p25 = scmp.eq.s32.totalorder %s11, 0
      %p26 = por %p24, %p25
      %p27 = scmp.ne.s32.totalorder %s19, %s21
      %p28 = scmp.eq.s32.totalorder %s16, 1
      %p29 = por %p27, %p28
      %p30 = scmp.ne.s32.totalorder %s21, %s22
      %p31 = scmp.eq.s32.totalorder %s16, 0
      %p32 = por %p30, %p31
      %p33 = scmp.ne.s32.totalorder %s21, %s22
      %p34 = scmp.eq.s32.totalorder %s17, 1
      %p35 = por %p33, %p34
      %p37 = scmp.ne.s32.totalorder %s22, %s36
      %p38 = scmp.eq.s32.totalorder %s17, 0
      %p39 = por %p37, %p38
      %s40 = ssub.s32 %s11, %s18
      %p41 = scmp.eq.s32.totalorder %s40, 0
      %s43 = sadd.s32 %s42, 1
      %s44 = scalar_select %p41, %s42, %s43
      %p47 = pneg %p41
      %p48 = scmp.eq.s32.totalorder %s11, 1
      %p49 = por %p47, %p48
      %p50 = scmp.ne.s32.totalorder %s42, %s45
      %p51 = scmp.eq.s32.totalorder %s11, 0
      %p52 = por %p50, %p51
      %p53 = scmp.ne.s32.totalorder %s42, %s45
      %p54 = scmp.eq.s32.totalorder %s16, 1
      %p55 = por %p53, %p54
      %p56 = scmp.ne.s32.totalorder %s45, %s46
      %p57 = scmp.eq.s32.totalorder %s16, 0
      %p58 = por %p56, %p57
      %p59 = scmp.ne.s32.totalorder %s45, %s46
      %p60 = scmp.eq.s32.totalorder %s17, 1
      %p61 = por %p59, %p60
      %p63 = scmp.ne.s32.totalorder %s46, %s62
      %p64 = scmp.eq.s32.totalorder %s17, 0
      %p65 = por %p63, %p64
      %s67 = sadd.s32 %s66, 1
      %p70 = scmp.eq.s32.totalorder %s11, 1
      %p71 = scmp.ne.s32.totalorder %s66, %s68
      %p72 = scmp.eq.s32.totalorder %s11, 0
      %p73 = por %p71, %p72
      %p74 = scmp.ne.s32.totalorder %s66, %s68
      %p75 = scmp.eq.s32.totalorder %s16, 1
      %p76 = por %p74, %p75
      %p77 = scmp.ne.s32.totalorder %s68, %s69
      %p78 = scmp.eq.s32.totalorder %s16, 0
      %p79 = por %p77, %p78
      %p80 = scmp.ne.s32.totalorder %s68, %s69
      %p81 = scmp.eq.s32.totalorder %s17, 1
      %p82 = por %p80, %p81
      %p84 = scmp.ne.s32.totalorder %s69, %s83
      %p85 = scmp.eq.s32.totalorder %s17, 0
      %p86 = por %p84, %p85
      %s88 = sadd.s32 %s87, 1
      %p91 = scmp.eq.s32.totalorder %s11, 1
      %p92 = scmp.ne.s32.totalorder %s87, %s89
      %p93 = scmp.eq.s32.totalorder %s11, 0
      %p94 = por %p92, %p93
      %p95 = scmp.ne.s32.totalorder %s87, %s89
      %p96 = scmp.eq.s32.totalorder %s16, 1
      %p97 = por %p95, %p96
      %p98 = scmp.ne.s32.totalorder %s89, %s90
      %p99 = scmp.eq.s32.totalorder %s16, 0
      %p100 = por %p98, %p99
      %p101 = scmp.ne.s32.totalorder %s89, %s90
      %p102 = scmp.eq.s32.totalorder %s17, 1
      %p103 = por %p101, %p102
      %p105 = scmp.ne.s32.totalorder %s90, %s104
      %p106 = scmp.eq.s32.totalorder %s17, 0
      %p107 = por %p105, %p106
      %s108 = ssub.s32 %s11, %s18
      %p109 = scmp.eq.s32.totalorder %s108, 0
      %s111 = sadd.s32 %s110, 1
      %s112 = scalar_select %p109, %s110, %s111
      %p115 = pneg %p109
      %p116 = scmp.eq.s32.totalorder %s11, 1
      %p117 = por %p115, %p116
      %p118 = scmp.ne.s32.totalorder %s110, %s113
      %p119 = scmp.eq.s32.totalorder %s11, 0
      %p120 = por %p118, %p119
      %p121 = scmp.ne.s32.totalorder %s110, %s113
      %p122 = scmp.eq.s32.totalorder %s16, 1
      %p123 = por %p121, %p122
      %p124 = scmp.ne.s32.totalorder %s113, %s114
      %p125 = scmp.eq.s32.totalorder %s16, 0
      %p126 = por %p124, %p125
      %p127 = scmp.ne.s32.totalorder %s113, %s114
      %p128 = scmp.eq.s32.totalorder %s17, 1
      %p129 = por %p127, %p128
      %p131 = scmp.ne.s32.totalorder %s114, %s130
      %p132 = scmp.eq.s32.totalorder %s17, 0
      %p133 = por %p131, %p132
      %p134 = scmp.le.s32.totalorder 1, %s11
      %p135 = scmp.lt.s32.totalorder %s11, 3
      %p136 = pnand %p134, %p135
      %p137 = pneg %p136
      // Predicated region
      $region9: #{srfbn_hg_forward.36} parent=5 // pred_check
        _
      $region10: #{srfbn_hg_forward.36} parent=5 // pred_check_branch
        %139 = sbr.rel (%p136) target = $region12
      $region11: #{srfbn_hg_forward.36} parent=5 // pred_region
        %s140 = ssub.s32 %s11, 1
        // Predicated region
        $region13: #{srfbn_hg_forward.36} parent=11 // pred_check
          %p141 = pneg %p32
        $region14: #{srfbn_hg_forward.36} parent=11 // pred_check_branch
          %143 = sbr.rel (%p141) target = $region16
        $region15: #{srfbn_hg_forward.36} parent=11 // pred_region
          _
        $region16: #{srfbn_hg_forward.36} parent=11 // pred_fallthru
          _
        // Predicated region
        $region17: #{srfbn_hg_forward.36} parent=11 // pred_check
          %p144 = pneg %p79
        $region18: #{srfbn_hg_forward.36} parent=11 // pred_check_branch
          %146 = sbr.rel (%p144) target = $region20
        $region19: #{srfbn_hg_forward.36} parent=11 // pred_region
          _
        $region20: #{srfbn_hg_forward.36} parent=11 // pred_fallthru
          _
        // Predicated region
        $region21: #{srfbn_hg_forward.36} parent=11 // pred_check
          %p147 = pneg %p100
        $region22: #{srfbn_hg_forward.36} parent=11 // pred_check_branch
          %149 = sbr.rel (%p147) target = $region24
        $region23: #{srfbn_hg_forward.36} parent=11 // pred_region
          _
        $region24: #{srfbn_hg_forward.36} parent=11 // pred_fallthru
          _
      $region12: #{srfbn_hg_forward.36} parent=5 // pred_fallthru
        _
      %p150 = scmp.lt.s32.totalorder %s11, 2
      // Predicated region
      $region25: #{srfbn_hg_forward.36} parent=5 // pred_check
        %p151 = pneg %p150
      $region26: #{srfbn_hg_forward.36} parent=5 // pred_check_branch
        %153 = sbr.rel (%p151) target = $region28
      $region27: #{srfbn_hg_forward.36} parent=5 // pred_region
        // Predicated region
        $region29: #{srfbn_hg_forward.36} parent=27 // pred_check
          %p154 = pneg %p52
        $region30: #{srfbn_hg_forward.36} parent=27 // pred_check_branch
          %156 = sbr.rel (%p154) target = $region32
        $region31: #{srfbn_hg_forward.36} parent=27 // pred_region
          %s157 = sand.u32 %s42, 1
          %s158 = sand.u32 %s42, 1
          %s159 = smul.addr %s158, 512
          %s160 = scalar_lea.vmem [#allocation3], %s159
          %s161 = smul.u32 2, %s11
          %s162 = smul.addr %s161, 4
          %s163 = scalar_lea.vmem %s1, %s162
          // Predicated region
          $region33: #{srfbn_hg_forward.36} parent=31 // pred_check
            _
          $region34: #{srfbn_hg_forward.36} parent=31 // pred_check_branch
            %165 = sbr.rel (0) target = $region36
          $region35: #{srfbn_hg_forward.36} parent=31 // pred_region
            // Predicated region
            $region37: #{srfbn_hg_forward.36} parent=35 // pred_check
              _
            $region38: #{srfbn_hg_forward.36} parent=35 // pred_check_branch
              %167 = sbr.rel (0) target = $region40
            $region39: #{srfbn_hg_forward.36} parent=35 // pred_region
              // Predicated region
              $region52: #{srfbn_hg_forward.36} parent=39 // pred_check
                _
              $region53: #{srfbn_hg_forward.36} parent=39 // pred_check_branch
                %308 = sbr.rel (0) target = $region55
              $region54: #{srfbn_hg_forward.36} parent=39 // pred_region
                loop: start=0, step=1, limit=1
                $region56: #{srfbn_hg_forward.36} parent=54 // loop_pre_header
                  _
                $region57: #{srfbn_hg_forward.36} parent=54 // loop_header
                  %s310 = sphi 0, %s314
                  %p311 = scmp.ge.s32.totalorder %s310, 1
                  %s315 = sphi %s163, %s163
                  %s316 = sphi %s160, %s160
                $region58: #{srfbn_hg_forward.36} parent=54 // loop_header_branch
                  %313 = sbr.rel (%p311) target = $region62
                $region59: #{srfbn_hg_forward.36} parent=54 // loop_body
                  %v317 = vld [vmem:[%s315] sm:$0xff]
                  %318 = vst [vmem:[%s316] sm:$0xff] %v317
                  %v319 = vld [vmem:[%s315 + $0x10] sm:$0xff]
                  %320 = vst [vmem:[%s316 + $0x8] sm:$0xff] %v319
                  %v321 = vld [vmem:[%s315 + $0x20] sm:$0xff]
                  %322 = vst [vmem:[%s316 + $0x10] sm:$0xff] %v321
                  %v323 = vld [vmem:[%s315 + $0x30] sm:$0xff]
                  %324 = vst [vmem:[%s316 + $0x18] sm:$0xff] %v323
                  %v325 = vld [vmem:[%s315 + $0x40] sm:$0xff]
                  %326 = vst [vmem:[%s316 + $0x20] sm:$0xff] %v325
                  %v327 = vld [vmem:[%s315 + $0x50] sm:$0xff]
                  %328 = vst [vmem:[%s316 + $0x28] sm:$0xff] %v327
                  %v329 = vld [vmem:[%s315 + $0x60] sm:$0xff]
                  %330 = vst [vmem:[%s316 + $0x30] sm:$0xff] %v329
                  %v331 = vld [vmem:[%s315 + $0x70] sm:$0xff]
                  %332 = vst [vmem:[%s316 + $0x38] sm:$0xff] %v331
                  %v333 = vld [vmem:[%s315 + $0x80] sm:$0xff]
                  %334 = vst [vmem:[%s316 + $0x40] sm:$0xff] %v333
                  %v335 = vld [vmem:[%s315 + $0x90] sm:$0xff]
                  %336 = vst [vmem:[%s316 + $0x48] sm:$0xff] %v335
                  %v337 = vld [vmem:[%s315 + $0xa0] sm:$0xff]
                  %338 = vst [vmem:[%s316 + $0x50] sm:$0xff] %v337
                  %v339 = vld [vmem:[%s315 + $0xb0] sm:$0xff]
                  %340 = vst [vmem:[%s316 + $0x58] sm:$0xff] %v339
                  %v341 = vld [vmem:[%s315 + $0xc0] sm:$0xff]
                  %342 = vst [vmem:[%s316 + $0x60] sm:$0xff] %v341
                  %v343 = vld [vmem:[%s315 + $0xd0] sm:$0xff]
                  %344 = vst [vmem:[%s316 + $0x68] sm:$0xff] %v343
                  %v345 = vld [vmem:[%s315 + $0xe0] sm:$0xff]
                  %346 = vst [vmem:[%s316 + $0x70] sm:$0xff] %v345
                  %v347 = vld [vmem:[%s315 + $0xf0] sm:$0xff]
                  %348 = vst [vmem:[%s316 + $0x78] sm:$0xff] %v347
                  %v349 = vld [vmem:[%s315 + $0x100] sm:$0xff]
                  %350 = vst [vmem:[%s316 + $0x80] sm:$0xff] %v349
                  %v351 = vld [vmem:[%s315 + $0x110] sm:$0xff]
                  %352 = vst [vmem:[%s316 + $0x88] sm:$0xff] %v351
                  %v353 = vld [vmem:[%s315 + $0x120] sm:$0xff]
                  %354 = vst [vmem:[%s316 + $0x90] sm:$0xff] %v353
                  %v355 = vld [vmem:[%s315 + $0x130] sm:$0xff]
                  %356 = vst [vmem:[%s316 + $0x98] sm:$0xff] %v355
                  %v357 = vld [vmem:[%s315 + $0x140] sm:$0xff]
                  %358 = vst [vmem:[%s316 + $0xa0] sm:$0xff] %v357
                  %v359 = vld [vmem:[%s315 + $0x150] sm:$0xff]
                  %360 = vst [vmem:[%s316 + $0xa8] sm:$0xff] %v359
                  %v361 = vld [vmem:[%s315 + $0x160] sm:$0xff]
                  %362 = vst [vmem:[%s316 + $0xb0] sm:$0xff] %v361
                  %v363 = vld [vmem:[%s315 + $0x170] sm:$0xff]
                  %364 = vst [vmem:[%s316 + $0xb8] sm:$0xff] %v363
                  %v365 = vld [vmem:[%s315 + $0x180] sm:$0xff]
                  %366 = vst [vmem:[%s316 + $0xc0] sm:$0xff] %v365
                  %v367 = vld [vmem:[%s315 + $0x190] sm:$0xff]
                  %368 = vst [vmem:[%s316 + $0xc8] sm:$0xff] %v367
                  %v369 = vld [vmem:[%s315 + $0x1a0] sm:$0xff]
                  %370 = vst [vmem:[%s316 + $0xd0] sm:$0xff] %v369
                  %v371 = vld [vmem:[%s315 + $0x1b0] sm:$0xff]
                  %372 = vst [vmem:[%s316 + $0xd8] sm:$0xff] %v371
                  %v373 = vld [vmem:[%s315 + $0x1c0] sm:$0xff]
                  %374 = vst [vmem:[%s316 + $0xe0] sm:$0xff] %v373
                  %v375 = vld [vmem:[%s315 + $0x1d0] sm:$0xff]
                  %376 = vst [vmem:[%s316 + $0xe8] sm:$0xff] %v375
                  %v377 = vld [vmem:[%s315 + $0x1e0] sm:$0xff]
                  %378 = vst [vmem:[%s316 + $0xf0] sm:$0xff] %v377
                  %v379 = vld [vmem:[%s315 + $0x1f0] sm:$0xff]
                  %380 = vst [vmem:[%s316 + $0xf8] sm:$0xff] %v379
                  %v381 = vld [vmem:[%s315 + $0x200] sm:$0xff]
                  %382 = vst [vmem:[%s316 + $0x100] sm:$0xff] %v381
                  %v383 = vld [vmem:[%s315 + $0x210] sm:$0xff]
                  %384 = vst [vmem:[%s316 + $0x108] sm:$0xff] %v383
                  %v385 = vld [vmem:[%s315 + $0x220] sm:$0xff]
                  %386 = vst [vmem:[%s316 + $0x110] sm:$0xff] %v385
                  %v387 = vld [vmem:[%s315 + $0x230] sm:$0xff]
                  %388 = vst [vmem:[%s316 + $0x118] sm:$0xff] %v387
                  %v389 = vld [vmem:[%s315 + $0x240] sm:$0xff]
                  %390 = vst [vmem:[%s316 + $0x120] sm:$0xff] %v389
                  %v391 = vld [vmem:[%s315 + $0x250] sm:$0xff]
                  %392 = vst [vmem:[%s316 + $0x128] sm:$0xff] %v391
                  %v393 = vld [vmem:[%s315 + $0x260] sm:$0xff]
                  %394 = vst [vmem:[%s316 + $0x130] sm:$0xff] %v393
                  %v395 = vld [vmem:[%s315 + $0x270] sm:$0xff]
                  %396 = vst [vmem:[%s316 + $0x138] sm:$0xff] %v395
                  %v397 = vld [vmem:[%s315 + $0x280] sm:$0xff]
                  %398 = vst [vmem:[%s316 + $0x140] sm:$0xff] %v397
                  %v399 = vld [vmem:[%s315 + $0x290] sm:$0xff]
                  %400 = vst [vmem:[%s316 + $0x148] sm:$0xff] %v399
                  %v401 = vld [vmem:[%s315 + $0x2a0] sm:$0xff]
                  %402 = vst [vmem:[%s316 + $0x150] sm:$0xff] %v401
                  %v403 = vld [vmem:[%s315 + $0x2b0] sm:$0xff]
                  %404 = vst [vmem:[%s316 + $0x158] sm:$0xff] %v403
                  %v405 = vld [vmem:[%s315 + $0x2c0] sm:$0xff]
                  %406 = vst [vmem:[%s316 + $0x160] sm:$0xff] %v405
                  %v407 = vld [vmem:[%s315 + $0x2d0] sm:$0xff]
                  %408 = vst [vmem:[%s316 + $0x168] sm:$0xff] %v407
                  %v409 = vld [vmem:[%s315 + $0x2e0] sm:$0xff]
                  %410 = vst [vmem:[%s316 + $0x170] sm:$0xff] %v409
                  %v411 = vld [vmem:[%s315 + $0x2f0] sm:$0xff]
                  %412 = vst [vmem:[%s316 + $0x178] sm:$0xff] %v411
                  %v413 = vld [vmem:[%s315 + $0x300] sm:$0xff]
                  %414 = vst [vmem:[%s316 + $0x180] sm:$0xff] %v413
                  %v415 = vld [vmem:[%s315 + $0x310] sm:$0xff]
                  %416 = vst [vmem:[%s316 + $0x188] sm:$0xff] %v415
                  %v417 = vld [vmem:[%s315 + $0x320] sm:$0xff]
                  %418 = vst [vmem:[%s316 + $0x190] sm:$0xff] %v417
                  %v419 = vld [vmem:[%s315 + $0x330] sm:$0xff]
                  %420 = vst [vmem:[%s316 + $0x198] sm:$0xff] %v419
                  %v421 = vld [vmem:[%s315 + $0x340] sm:$0xff]
                  %422 = vst [vmem:[%s316 + $0x1a0] sm:$0xff] %v421
                  %v423 = vld [vmem:[%s315 + $0x350] sm:$0xff]
                  %424 = vst [vmem:[%s316 + $0x1a8] sm:$0xff] %v423
                  %v425 = vld [vmem:[%s315 + $0x360] sm:$0xff]
                  %426 = vst [vmem:[%s316 + $0x1b0] sm:$0xff] %v425
                  %v427 = vld [vmem:[%s315 + $0x370] sm:$0xff]
                  %428 = vst [vmem:[%s316 + $0x1b8] sm:$0xff] %v427
                  %v429 = vld [vmem:[%s315 + $0x380] sm:$0xff]
                  %430 = vst [vmem:[%s316 + $0x1c0] sm:$0xff] %v429
                  %v431 = vld [vmem:[%s315 + $0x390] sm:$0xff]
                  %432 = vst [vmem:[%s316 + $0x1c8] sm:$0xff] %v431
                  %v433 = vld [vmem:[%s315 + $0x3a0] sm:$0xff]
                  %434 = vst [vmem:[%s316 + $0x1d0] sm:$0xff] %v433
                  %v435 = vld [vmem:[%s315 + $0x3b0] sm:$0xff]
                  %436 = vst [vmem:[%s316 + $0x1d8] sm:$0xff] %v435
                  %v437 = vld [vmem:[%s315 + $0x3c0] sm:$0xff]
                  %438 = vst [vmem:[%s316 + $0x1e0] sm:$0xff] %v437
                  %v439 = vld [vmem:[%s315 + $0x3d0] sm:$0xff]
                  %440 = vst [vmem:[%s316 + $0x1e8] sm:$0xff] %v439
                  %v441 = vld [vmem:[%s315 + $0x3e0] sm:$0xff]
                  %442 = vst [vmem:[%s316 + $0x1f0] sm:$0xff] %v441
                  %v443 = vld [vmem:[%s315 + $0x3f0] sm:$0xff]
                  %444 = vst [vmem:[%s316 + $0x1f8] sm:$0xff] %v443
                $region60: #{srfbn_hg_forward.36} parent=54 // loop_footer
                  %s314 = sadd.s32 1, %s310
                $region61: #{srfbn_hg_forward.36} parent=54 // loop_footer_branch
                  %309 = sbr.rel target = $region57
                $region62: #{srfbn_hg_forward.36} parent=54 // loop_exit
                  _
              $region55: #{srfbn_hg_forward.36} parent=39 // pred_fallthru
                _
              // Predicated region
              $region63: #{srfbn_hg_forward.36} parent=39 // pred_check
                _
              $region64: #{srfbn_hg_forward.36} parent=39 // pred_check_branch
                %446 = sbr.rel target = $region66
              $region65: #{srfbn_hg_forward.36} parent=39 // pred_region
                _
              $region66: #{srfbn_hg_forward.36} parent=39 // pred_fallthru
                _
            $region40: #{srfbn_hg_forward.36} parent=35 // pred_fallthru
              _
            // Predicated region
            $region41: #{srfbn_hg_forward.36} parent=35 // pred_check
              _
            $region42: #{srfbn_hg_forward.36} parent=35 // pred_check_branch
              %169 = sbr.rel target = $region44
            $region43: #{srfbn_hg_forward.36} parent=35 // pred_region
              loop: start=0, step=1, limit=1
              $region45: #{srfbn_hg_forward.36} parent=43 // loop_pre_header
                _
              $region46: #{srfbn_hg_forward.36} parent=43 // loop_header
                %s172 = sphi 0, %s176
                %p173 = scmp.ge.s32.totalorder %s172, 1
                %s177 = sphi %s163, %s163
                %s178 = sphi %s160, %s160
              $region47: #{srfbn_hg_forward.36} parent=43 // loop_header_branch
                %175 = sbr.rel (%p173) target = $region51
              $region48: #{srfbn_hg_forward.36} parent=43 // loop_body
                %v179 = vld [vmem:[%s177] sm:$0xff]
                %180 = vst [vmem:[%s178] sm:$0xff] %v179
                %v181 = vld [vmem:[%s177 + $0x10] sm:$0xff]
                %182 = vst [vmem:[%s178 + $0x8] sm:$0xff] %v181
                %v183 = vld [vmem:[%s177 + $0x20] sm:$0xff]
                %184 = vst [vmem:[%s178 + $0x10] sm:$0xff] %v183
                %v185 = vld [vmem:[%s177 + $0x30] sm:$0xff]
                %186 = vst [vmem:[%s178 + $0x18] sm:$0xff] %v185
                %v187 = vld [vmem:[%s177 + $0x40] sm:$0xff]
                %188 = vst [vmem:[%s178 + $0x20] sm:$0xff] %v187
                %v189 = vld [vmem:[%s177 + $0x50] sm:$0xff]
                %190 = vst [vmem:[%s178 + $0x28] sm:$0xff] %v189
                %v191 = vld [vmem:[%s177 + $0x60] sm:$0xff]
                %192 = vst [vmem:[%s178 + $0x30] sm:$0xff] %v191
                %v193 = vld [vmem:[%s177 + $0x70] sm:$0xff]
                %194 = vst [vmem:[%s178 + $0x38] sm:$0xff] %v193
                %v195 = vld [vmem:[%s177 + $0x80] sm:$0xff]
                %196 = vst [vmem:[%s178 + $0x40] sm:$0xff] %v195
                %v197 = vld [vmem:[%s177 + $0x90] sm:$0xff]
                %198 = vst [vmem:[%s178 + $0x48] sm:$0xff] %v197
                %v199 = vld [vmem:[%s177 + $0xa0] sm:$0xff]
                %200 = vst [vmem:[%s178 + $0x50] sm:$0xff] %v199
                %v201 = vld [vmem:[%s177 + $0xb0] sm:$0xff]
                %202 = vst [vmem:[%s178 + $0x58] sm:$0xff] %v201
                %v203 = vld [vmem:[%s177 + $0xc0] sm:$0xff]
                %204 = vst [vmem:[%s178 + $0x60] sm:$0xff] %v203
                %v205 = vld [vmem:[%s177 + $0xd0] sm:$0xff]
                %206 = vst [vmem:[%s178 + $0x68] sm:$0xff] %v205
                %v207 = vld [vmem:[%s177 + $0xe0] sm:$0xff]
                %208 = vst [vmem:[%s178 + $0x70] sm:$0xff] %v207
                %v209 = vld [vmem:[%s177 + $0xf0] sm:$0xff]
                %210 = vst [vmem:[%s178 + $0x78] sm:$0xff] %v209
                %v211 = vld [vmem:[%s177 + $0x100] sm:$0xff]
                %212 = vst [vmem:[%s178 + $0x80] sm:$0xff] %v211
                %v213 = vld [vmem:[%s177 + $0x110] sm:$0xff]
                %214 = vst [vmem:[%s178 + $0x88] sm:$0xff] %v213
                %v215 = vld [vmem:[%s177 + $0x120] sm:$0xff]
                %216 = vst [vmem:[%s178 + $0x90] sm:$0xff] %v215
                %v217 = vld [vmem:[%s177 + $0x130] sm:$0xff]
                %218 = vst [vmem:[%s178 + $0x98] sm:$0xff] %v217
                %v219 = vld [vmem:[%s177 + $0x140] sm:$0xff]
                %220 = vst [vmem:[%s178 + $0xa0] sm:$0xff] %v219
                %v221 = vld [vmem:[%s177 + $0x150] sm:$0xff]
                %222 = vst [vmem:[%s178 + $0xa8] sm:$0xff] %v221
                %v223 = vld [vmem:[%s177 + $0x160] sm:$0xff]
                %224 = vst [vmem:[%s178 + $0xb0] sm:$0xff] %v223
                %v225 = vld [vmem:[%s177 + $0x170] sm:$0xff]
                %226 = vst [vmem:[%s178 + $0xb8] sm:$0xff] %v225
                %v227 = vld [vmem:[%s177 + $0x180] sm:$0xff]
                %228 = vst [vmem:[%s178 + $0xc0] sm:$0xff] %v227
                %v229 = vld [vmem:[%s177 + $0x190] sm:$0xff]
                %230 = vst [vmem:[%s178 + $0xc8] sm:$0xff] %v229
                %v231 = vld [vmem:[%s177 + $0x1a0] sm:$0xff]
                %232 = vst [vmem:[%s178 + $0xd0] sm:$0xff] %v231
                %v233 = vld [vmem:[%s177 + $0x1b0] sm:$0xff]
                %234 = vst [vmem:[%s178 + $0xd8] sm:$0xff] %v233
                %v235 = vld [vmem:[%s177 + $0x1c0] sm:$0xff]
                %236 = vst [vmem:[%s178 + $0xe0] sm:$0xff] %v235
                %v237 = vld [vmem:[%s177 + $0x1d0] sm:$0xff]
                %238 = vst [vmem:[%s178 + $0xe8] sm:$0xff] %v237
                %v239 = vld [vmem:[%s177 + $0x1e0] sm:$0xff]
                %240 = vst [vmem:[%s178 + $0xf0] sm:$0xff] %v239
                %v241 = vld [vmem:[%s177 + $0x1f0] sm:$0xff]
                %242 = vst [vmem:[%s178 + $0xf8] sm:$0xff] %v241
                %v243 = vld [vmem:[%s177 + $0x200] sm:$0xff]
                %244 = vst [vmem:[%s178 + $0x100] sm:$0xff] %v243
                %v245 = vld [vmem:[%s177 + $0x210] sm:$0xff]
                %246 = vst [vmem:[%s178 + $0x108] sm:$0xff] %v245
                %v247 = vld [vmem:[%s177 + $0x220] sm:$0xff]
                %248 = vst [vmem:[%s178 + $0x110] sm:$0xff] %v247
                %v249 = vld [vmem:[%s177 + $0x230] sm:$0xff]
                %250 = vst [vmem:[%s178 + $0x118] sm:$0xff] %v249
                %v251 = vld [vmem:[%s177 + $0x240] sm:$0xff]
                %252 = vst [vmem:[%s178 + $0x120] sm:$0xff] %v251
                %v253 = vld [vmem:[%s177 + $0x250] sm:$0xff]
                %254 = vst [vmem:[%s178 + $0x128] sm:$0xff] %v253
                %v255 = vld [vmem:[%s177 + $0x260] sm:$0xff]
                %256 = vst [vmem:[%s178 + $0x130] sm:$0xff] %v255
                %v257 = vld [vmem:[%s177 + $0x270] sm:$0xff]
                %258 = vst [vmem:[%s178 + $0x138] sm:$0xff] %v257
                %v259 = vld [vmem:[%s177 + $0x280] sm:$0xff]
                %260 = vst [vmem:[%s178 + $0x140] sm:$0xff] %v259
                %v261 = vld [vmem:[%s177 + $0x290] sm:$0xff]
                %262 = vst [vmem:[%s178 + $0x148] sm:$0xff] %v261
                %v263 = vld [vmem:[%s177 + $0x2a0] sm:$0xff]
                %264 = vst [vmem:[%s178 + $0x150] sm:$0xff] %v263
                %v265 = vld [vmem:[%s177 + $0x2b0] sm:$0xff]
                %266 = vst [vmem:[%s178 + $0x158] sm:$0xff] %v265
                %v267 = vld [vmem:[%s177 + $0x2c0] sm:$0xff]
                %268 = vst [vmem:[%s178 + $0x160] sm:$0xff] %v267
                %v269 = vld [vmem:[%s177 + $0x2d0] sm:$0xff]
                %270 = vst [vmem:[%s178 + $0x168] sm:$0xff] %v269
                %v271 = vld [vmem:[%s177 + $0x2e0] sm:$0xff]
                %272 = vst [vmem:[%s178 + $0x170] sm:$0xff] %v271
                %v273 = vld [vmem:[%s177 + $0x2f0] sm:$0xff]
                %274 = vst [vmem:[%s178 + $0x178] sm:$0xff] %v273
                %v275 = vld [vmem:[%s177 + $0x300] sm:$0xff]
                %276 = vst [vmem:[%s178 + $0x180] sm:$0xff] %v275
                %v277 = vld [vmem:[%s177 + $0x310] sm:$0xff]
                %278 = vst [vmem:[%s178 + $0x188] sm:$0xff] %v277
                %v279 = vld [vmem:[%s177 + $0x320] sm:$0xff]
                %280 = vst [vmem:[%s178 + $0x190] sm:$0xff] %v279
                %v281 = vld [vmem:[%s177 + $0x330] sm:$0xff]
                %282 = vst [vmem:[%s178 + $0x198] sm:$0xff] %v281
                %v283 = vld [vmem:[%s177 + $0x340] sm:$0xff]
                %284 = vst [vmem:[%s178 + $0x1a0] sm:$0xff] %v283
                %v285 = vld [vmem:[%s177 + $0x350] sm:$0xff]
                %286 = vst [vmem:[%s178 + $0x1a8] sm:$0xff] %v285
                %v287 = vld [vmem:[%s177 + $0x360] sm:$0xff]
                %288 = vst [vmem:[%s178 + $0x1b0] sm:$0xff] %v287
                %v289 = vld [vmem:[%s177 + $0x370] sm:$0xff]
                %290 = vst [vmem:[%s178 + $0x1b8] sm:$0xff] %v289
                %v291 = vld [vmem:[%s177 + $0x380] sm:$0xff]
                %292 = vst [vmem:[%s178 + $0x1c0] sm:$0xff] %v291
                %v293 = vld [vmem:[%s177 + $0x390] sm:$0xff]
                %294 = vst [vmem:[%s178 + $0x1c8] sm:$0xff] %v293
                %v295 = vld [vmem:[%s177 + $0x3a0] sm:$0xff]
                %296 = vst [vmem:[%s178 + $0x1d0] sm:$0xff] %v295
                %v297 = vld [vmem:[%s177 + $0x3b0] sm:$0xff]
                %298 = vst [vmem:[%s178 + $0x1d8] sm:$0xff] %v297
                %v299 = vld [vmem:[%s177 + $0x3c0] sm:$0xff]
                %300 = vst [vmem:[%s178 + $0x1e0] sm:$0xff] %v299
                %v301 = vld [vmem:[%s177 + $0x3d0] sm:$0xff]
                %302 = vst [vmem:[%s178 + $0x1e8] sm:$0xff] %v301
                %v303 = vld [vmem:[%s177 + $0x3e0] sm:$0xff]
                %304 = vst [vmem:[%s178 + $0x1f0] sm:$0xff] %v303
                %v305 = vld [vmem:[%s177 + $0x3f0] sm:$0xff]
                %306 = vst [vmem:[%s178 + $0x1f8] sm:$0xff] %v305
              $region49: #{srfbn_hg_forward.36} parent=43 // loop_footer
                %s176 = sadd.s32 1, %s172
              $region50: #{srfbn_hg_forward.36} parent=43 // loop_footer_branch
                %171 = sbr.rel target = $region46
              $region51: #{srfbn_hg_forward.36} parent=43 // loop_exit
                _
            $region44: #{srfbn_hg_forward.36} parent=35 // pred_fallthru
              _
          $region36: #{srfbn_hg_forward.36} parent=31 // pred_fallthru
            _
          %447 = vnop
        $region32: #{srfbn_hg_forward.36} parent=27 // pred_fallthru
          _
      $region28: #{srfbn_hg_forward.36} parent=5 // pred_fallthru
        _
      %p448 = scmp.le.s32.totalorder 1, %s11
      %p449 = scmp.lt.s32.totalorder %s11, 3
      %p450 = pnand %p448, %p449
      %p451 = pneg %p450
      // Predicated region
      $region67: #{srfbn_hg_forward.36} parent=5 // pred_check
        _
      $region68: #{srfbn_hg_forward.36} parent=5 // pred_check_branch
        %453 = sbr.rel (%p450) target = $region70
      $region69: #{srfbn_hg_forward.36} parent=5 // pred_region
        %s454 = ssub.s32 %s11, 1
        %s455 = sand.u32 %s45, 1
        %s456 = sand.u32 %s45, 1
        %s457 = smul.addr %s456, 512
        %s458 = scalar_lea.vmem [#allocation3], %s457
        // Predicated region
        $region71: #{srfbn_hg_forward.36} parent=69 // pred_check
          %p459 = pneg %p58
        $region72: #{srfbn_hg_forward.36} parent=69 // pred_check_branch
          %461 = sbr.rel (%p459) target = $region74
        $region73: #{srfbn_hg_forward.36} parent=69 // pred_region
          _
        $region74: #{srfbn_hg_forward.36} parent=69 // pred_fallthru
          _
        %p462 = pneg %p32
        %p463 = pneg %p29
        %s464 = sand.u32 %s45, 1
        %s465 = sand.u32 %s45, 1
        %s466 = smul.addr %s465, 512
        %s467 = scalar_lea.vmem [#allocation3], %s466
        %p468 = pneg %p58
        %p469 = pneg %p55
        %p470 = pneg %p79
        %p471 = pneg %p76
        %p472 = pneg %p100
        %p473 = pneg %p97
        %p474 = pneg %p126
        %p475 = pneg %p123
        %s476 = smul.u32 2, %s16
        %p477 = scmp.lt.s32.totalorder %s476, 3
        %s478 = scalar_select %p477, %s476, 3
        %s479 = smul.addr %s478, 8
        %s480 = scalar_lea.vmem %s4, %s479
        %s481 = smul.u32 2, %s16
        %s482 = smul.u32 2, %s16
        %p483 = scmp.lt.s32.totalorder %s482, 3
        %s484 = scalar_select %p483, %s482, 3
        %s485 = smul.addr %s484, 8
        %s486 = scalar_lea.vmem %s4, %s485
        %s487 = smul.u32 2, %s16
        %v488 = vld [vmem:[%s0] sm:$0xff]
        %v489 = vld [vmem:[%s0 + $0x8] sm:$0xff]
        %v490 = vld [vmem:[%s458] sm:$0xff]
        %v491 = vld [vmem:[%s458 + $0x8] sm:$0xff]
        %v492 = vld [vmem:[%s458 + $0x10] sm:$0xff]
        %v493 = vld [vmem:[%s458 + $0x18] sm:$0xff]
        %v494 = vld [vmem:[%s458 + $0x20] sm:$0xff]
        %v495 = vld [vmem:[%s458 + $0x28] sm:$0xff]
        %v496 = vld [vmem:[%s458 + $0x30] sm:$0xff]
        %v497 = vld [vmem:[%s458 + $0x38] sm:$0xff]
        %v498 = vld [vmem:[%s458 + $0x40] sm:$0xff]
        %v499 = vld [vmem:[%s458 + $0x48] sm:$0xff]
        %v500 = vld [vmem:[%s458 + $0x50] sm:$0xff]
        %v501 = vld [vmem:[%s458 + $0x58] sm:$0xff]
        %v502 = vld [vmem:[%s458 + $0x60] sm:$0xff]
        %v503 = vld [vmem:[%s458 + $0x68] sm:$0xff]
        %v504 = vld [vmem:[%s458 + $0x70] sm:$0xff]
        %v505 = vld [vmem:[%s458 + $0x78] sm:$0xff]
        %v506 = vld [vmem:[%s458 + $0x80] sm:$0xff]
        %v507 = vld [vmem:[%s458 + $0x88] sm:$0xff]
        %v508 = vld [vmem:[%s458 + $0x90] sm:$0xff]
        %v509 = vld [vmem:[%s458 + $0x98] sm:$0xff]
        %v510 = vld [vmem:[%s458 + $0xa0] sm:$0xff]
        %v511 = vld [vmem:[%s458 + $0xa8] sm:$0xff]
        %v512 = vld [vmem:[%s458 + $0xb0] sm:$0xff]
        %v513 = vld [vmem:[%s458 + $0xb8] sm:$0xff]
        %v514 = vld [vmem:[%s458 + $0xc0] sm:$0xff]
        %v515 = vld [vmem:[%s458 + $0xc8] sm:$0xff]
        %v516 = vld [vmem:[%s458 + $0xd0] sm:$0xff]
        %v517 = vld [vmem:[%s458 + $0xd8] sm:$0xff]
        %v518 = vld [vmem:[%s458 + $0xe0] sm:$0xff]
        %v519 = vld [vmem:[%s458 + $0xe8] sm:$0xff]
        %v520 = vld [vmem:[%s458 + $0xf0] sm:$0xff]
        %v521 = vld [vmem:[%s458 + $0xf8] sm:$0xff]
        %v522 = vld [vmem:[%s458 + $0x100] sm:$0xff]
        %v523 = vld [vmem:[%s458 + $0x108] sm:$0xff]
        %v524 = vld [vmem:[%s458 + $0x110] sm:$0xff]
        %v525 = vld [vmem:[%s458 + $0x118] sm:$0xff]
        %v526 = vld [vmem:[%s458 + $0x120] sm:$0xff]
        %v527 = vld [vmem:[%s458 + $0x128] sm:$0xff]
        %v528 = vld [vmem:[%s458 + $0x130] sm:$0xff]
        %v529 = vld [vmem:[%s458 + $0x138] sm:$0xff]
        %v530 = vld [vmem:[%s458 + $0x140] sm:$0xff]
        %v531 = vld [vmem:[%s458 + $0x148] sm:$0xff]
        %v532 = vld [vmem:[%s458 + $0x150] sm:$0xff]
        %v533 = vld [vmem:[%s458 + $0x158] sm:$0xff]
        %v534 = vld [vmem:[%s458 + $0x160] sm:$0xff]
        %v535 = vld [vmem:[%s458 + $0x168] sm:$0xff]
        %v536 = vld [vmem:[%s458 + $0x170] sm:$0xff]
        %v537 = vld [vmem:[%s458 + $0x178] sm:$0xff]
        %v538 = vld [vmem:[%s458 + $0x180] sm:$0xff]
        %v539 = vld [vmem:[%s458 + $0x188] sm:$0xff]
        %v540 = vld [vmem:[%s458 + $0x190] sm:$0xff]
        %v541 = vld [vmem:[%s458 + $0x198] sm:$0xff]
        %v542 = vld [vmem:[%s458 + $0x1a0] sm:$0xff]
        %v543 = vld [vmem:[%s458 + $0x1a8] sm:$0xff]
        %v544 = vld [vmem:[%s458 + $0x1b0] sm:$0xff]
        %v545 = vld [vmem:[%s458 + $0x1b8] sm:$0xff]
        %v546 = vld [vmem:[%s458 + $0x1c0] sm:$0xff]
        %v547 = vld [vmem:[%s458 + $0x1c8] sm:$0xff]
        %v548 = vld [vmem:[%s458 + $0x1d0] sm:$0xff]
        %v549 = vld [vmem:[%s458 + $0x1d8] sm:$0xff]
        %v550 = vld [vmem:[%s458 + $0x1e0] sm:$0xff]
        %v551 = vld [vmem:[%s458 + $0x1e8] sm:$0xff]
        %v552 = vld [vmem:[%s458 + $0x1f0] sm:$0xff]
        %v553 = vld [vmem:[%s458 + $0x1f8] sm:$0xff]
        %v554 = vld [vmem:[%s2] sm:$0xff]
        %556 = vset.pattern.permute.xlu0 0
        %557 = vperm.xlu0 %556, %v554
        %v558 = vpop.permute.xlu0 %557
        %v562 = vunpack.c.l.b16 %v488
        %v563 = vunpack.c.h.b16 %v488
        %v564 = vunpack.c.l.b16 %v489
        %v565 = vunpack.c.h.b16 %v489
        %v566 = vpack.c.b16 %v562, %v562
        %v567 = vpack.c.b16 %v563, %v563
        %v568 = vpack.c.b16 %v564, %v564
        %v569 = vpack.c.b16 %v565, %v565
        %v638 = vunpack.c.l.b16 %v490
        %v639 = vunpack.c.h.b16 %v490
        %v640 = vunpack.c.l.b16 %v491
        %v641 = vunpack.c.h.b16 %v491
        %v642 = vunpack.c.l.b16 %v492
        %v643 = vunpack.c.h.b16 %v492
        %v644 = vunpack.c.l.b16 %v493
        %v645 = vunpack.c.h.b16 %v493
        %v646 = vunpack.c.l.b16 %v494
        %v647 = vunpack.c.h.b16 %v494
        %v648 = vunpack.c.l.b16 %v495
        %v649 = vunpack.c.h.b16 %v495
        %v650 = vunpack.c.l.b16 %v496
        %v651 = vunpack.c.h.b16 %v496
        %v652 = vunpack.c.l.b16 %v497
        %v653 = vunpack.c.h.b16 %v497
        %v654 = vunpack.c.l.b16 %v498
        %v655 = vunpack.c.h.b16 %v498
        %v656 = vunpack.c.l.b16 %v499
        %v657 = vunpack.c.h.b16 %v499
        %v658 = vunpack.c.l.b16 %v500
        %v659 = vunpack.c.h.b16 %v500
        %v660 = vunpack.c.l.b16 %v501
        %v661 = vunpack.c.h.b16 %v501
        %v662 = vunpack.c.l.b16 %v502
        %v663 = vunpack.c.h.b16 %v502
        %v664 = vunpack.c.l.b16 %v503
        %v665 = vunpack.c.h.b16 %v503
        %v666 = vunpack.c.l.b16 %v504
        %v667 = vunpack.c.h.b16 %v504
        %v668 = vunpack.c.l.b16 %v505
        %v669 = vunpack.c.h.b16 %v505
        %v670 = vunpack.c.l.b16 %v506
        %v671 = vunpack.c.h.b16 %v506
        %v672 = vunpack.c.l.b16 %v507
        %v673 = vunpack.c.h.b16 %v507
        %v674 = vunpack.c.l.b16 %v508
        %v675 = vunpack.c.h.b16 %v508
        %v676 = vunpack.c.l.b16 %v509
        %v677 = vunpack.c.h.b16 %v509
        %v678 = vunpack.c.l.b16 %v510
        %v679 = vunpack.c.h.b16 %v510
        %v680 = vunpack.c.l.b16 %v511
        %v681 = vunpack.c.h.b16 %v511
        %v682 = vunpack.c.l.b16 %v512
        %v683 = vunpack.c.h.b16 %v512
        %v684 = vunpack.c.l.b16 %v513
        %v685 = vunpack.c.h.b16 %v513
        %v686 = vunpack.c.l.b16 %v514
        %v687 = vunpack.c.h.b16 %v514
        %v688 = vunpack.c.l.b16 %v515
        %v689 = vunpack.c.h.b16 %v515
        %v690 = vunpack.c.l.b16 %v516
        %v691 = vunpack.c.h.b16 %v516
        %v692 = vunpack.c.l.b16 %v517
        %v693 = vunpack.c.h.b16 %v517
        %v694 = vunpack.c.l.b16 %v518
        %v695 = vunpack.c.h.b16 %v518
        %v696 = vunpack.c.l.b16 %v519
        %v697 = vunpack.c.h.b16 %v519
        %v698 = vunpack.c.l.b16 %v520
        %v699 = vunpack.c.h.b16 %v520
        %v700 = vunpack.c.l.b16 %v521
        %v701 = vunpack.c.h.b16 %v521
        %v702 = vunpack.c.l.b16 %v522
        %v703 = vunpack.c.h.b16 %v522
        %v704 = vunpack.c.l.b16 %v523
        %v705 = vunpack.c.h.b16 %v523
        %v706 = vunpack.c.l.b16 %v524
        %v707 = vunpack.c.h.b16 %v524
        %v708 = vunpack.c.l.b16 %v525
        %v709 = vunpack.c.h.b16 %v525
        %v710 = vunpack.c.l.b16 %v526
        %v711 = vunpack.c.h.b16 %v526
        %v712 = vunpack.c.l.b16 %v527
        %v713 = vunpack.c.h.b16 %v527
        %v714 = vunpack.c.l.b16 %v528
        %v715 = vunpack.c.h.b16 %v528
        %v716 = vunpack.c.l.b16 %v529
        %v717 = vunpack.c.h.b16 %v529
        %v718 = vunpack.c.l.b16 %v530
        %v719 = vunpack.c.h.b16 %v530
        %v720 = vunpack.c.l.b16 %v531
        %v721 = vunpack.c.h.b16 %v531
        %v722 = vunpack.c.l.b16 %v532
        %v723 = vunpack.c.h.b16 %v532
        %v724 = vunpack.c.l.b16 %v533
        %v725 = vunpack.c.h.b16 %v533
        %v726 = vunpack.c.l.b16 %v534
        %v727 = vunpack.c.h.b16 %v534
        %v728 = vunpack.c.l.b16 %v535
        %v729 = vunpack.c.h.b16 %v535
        %v730 = vunpack.c.l.b16 %v536
        %v731 = vunpack.c.h.b16 %v536
        %v732 = vunpack.c.l.b16 %v537
        %v733 = vunpack.c.h.b16 %v537
        %v734 = vunpack.c.l.b16 %v538
        %v735 = vunpack.c.h.b16 %v538
        %v736 = vunpack.c.l.b16 %v539
        %v737 = vunpack.c.h.b16 %v539
        %v738 = vunpack.c.l.b16 %v540
        %v739 = vunpack.c.h.b16 %v540
        %v740 = vunpack.c.l.b16 %v541
        %v741 = vunpack.c.h.b16 %v541
        %v742 = vunpack.c.l.b16 %v542
        %v743 = vunpack.c.h.b16 %v542
        %v744 = vunpack.c.l.b16 %v543
        %v745 = vunpack.c.h.b16 %v543
        %v746 = vunpack.c.l.b16 %v544
        %v747 = vunpack.c.h.b16 %v544
        %v748 = vunpack.c.l.b16 %v545
        %v749 = vunpack.c.h.b16 %v545
        %v750 = vunpack.c.l.b16 %v546
        %v751 = vunpack.c.h.b16 %v546
        %v752 = vunpack.c.l.b16 %v547
        %v753 = vunpack.c.h.b16 %v547
        %v754 = vunpack.c.l.b16 %v548
        %v755 = vunpack.c.h.b16 %v548
        %v756 = vunpack.c.l.b16 %v549
        %v757 = vunpack.c.h.b16 %v549
        %v758 = vunpack.c.l.b16 %v550
        %v759 = vunpack.c.h.b16 %v550
        %v760 = vunpack.c.l.b16 %v551
        %v761 = vunpack.c.h.b16 %v551
        %v762 = vunpack.c.l.b16 %v552
        %v763 = vunpack.c.h.b16 %v552
        %v764 = vunpack.c.l.b16 %v553
        %v765 = vunpack.c.h.b16 %v553
        %v766 = vpack.c.b16 %v640, %v638
        %v767 = vpack.c.b16 %v641, %v639
        %v768 = vpack.c.b16 %v644, %v642
        %v769 = vpack.c.b16 %v645, %v643
        %v770 = vpack.c.b16 %v648, %v646
        %v771 = vpack.c.b16 %v649, %v647
        %v772 = vpack.c.b16 %v652, %v650
        %v773 = vpack.c.b16 %v653, %v651
        %v774 = vpack.c.b16 %v656, %v654
        %v775 = vpack.c.b16 %v657, %v655
        %v776 = vpack.c.b16 %v660, %v658
        %v777 = vpack.c.b16 %v661, %v659
        %v778 = vpack.c.b16 %v664, %v662
        %v779 = vpack.c.b16 %v665, %v663
        %v780 = vpack.c.b16 %v668, %v666
        %v781 = vpack.c.b16 %v669, %v667
        %v782 = vpack.c.b16 %v672, %v670
        %v783 = vpack.c.b16 %v673, %v671
        %v784 = vpack.c.b16 %v676, %v674
        %v785 = vpack.c.b16 %v677, %v675
        %v786 = vpack.c.b16 %v680, %v678
        %v787 = vpack.c.b16 %v681, %v679
        %v788 = vpack.c.b16 %v684, %v682
        %v789 = vpack.c.b16 %v685, %v683
        %v790 = vpack.c.b16 %v688, %v686
        %v791 = vpack.c.b16 %v689, %v687
        %v792 = vpack.c.b16 %v692, %v690
        %v793 = vpack.c.b16 %v693, %v691
        %v794 = vpack.c.b16 %v696, %v694
        %v795 = vpack.c.b16 %v697, %v695
        %v796 = vpack.c.b16 %v700, %v698
        %v797 = vpack.c.b16 %v701, %v699
        %v798 = vpack.c.b16 %v704, %v702
        %v799 = vpack.c.b16 %v705, %v703
        %v800 = vpack.c.b16 %v708, %v706
        %v801 = vpack.c.b16 %v709, %v707
        %v802 = vpack.c.b16 %v712, %v710
        %v803 = vpack.c.b16 %v713, %v711
        %v804 = vpack.c.b16 %v716, %v714
        %v805 = vpack.c.b16 %v717, %v715
        %v806 = vpack.c.b16 %v720, %v718
        %v807 = vpack.c.b16 %v721, %v719
        %v808 = vpack.c.b16 %v724, %v722
        %v809 = vpack.c.b16 %v725, %v723
        %v810 = vpack.c.b16 %v728, %v726
        %v811 = vpack.c.b16 %v729, %v727
        %v812 = vpack.c.b16 %v732, %v730
        %v813 = vpack.c.b16 %v733, %v731
        %v814 = vpack.c.b16 %v736, %v734
        %v815 = vpack.c.b16 %v737, %v735
        %v816 = vpack.c.b16 %v740, %v738
        %v817 = vpack.c.b16 %v741, %v739
        %v818 = vpack.c.b16 %v744, %v742
        %v819 = vpack.c.b16 %v745, %v743
        %v820 = vpack.c.b16 %v748, %v746
        %v821 = vpack.c.b16 %v749, %v747
        %v822 = vpack.c.b16 %v752, %v750
        %v823 = vpack.c.b16 %v753, %v751
        %v824 = vpack.c.b16 %v756, %v754
        %v825 = vpack.c.b16 %v757, %v755
        %v826 = vpack.c.b16 %v760, %v758
        %v827 = vpack.c.b16 %v761, %v759
        %v828 = vpack.c.b16 %v764, %v762
        %v829 = vpack.c.b16 %v765, %v763
        %894 = vmatprep.subr.bf16.mxu0 %v767
        %895 = vmatpush1.bf16.msra.mxu0 %v766
        %896 = vmatprep.subr.bf16.mxu0 %v769
        %897 = vmatpush1.bf16.msra.mxu0 %v768
        %898 = vmatprep.subr.bf16.mxu0 %v771
        %899 = vmatpush1.bf16.msra.mxu0 %v770
        %900 = vmatprep.subr.bf16.mxu0 %v773
        %901 = vmatpush1.bf16.msra.mxu0 %v772
        %902 = vmatprep.subr.bf16.mxu0 %v775
        %903 = vmatpush1.bf16.msra.mxu0 %v774
        %904 = vmatprep.subr.bf16.mxu0 %v777
        %905 = vmatpush1.bf16.msra.mxu0 %v776
        %906 = vmatprep.subr.bf16.mxu0 %v779
        %907 = vmatpush1.bf16.msra.mxu0 %v778
        %908 = vmatprep.subr.bf16.mxu0 %v781
        %909 = vmatpush1.bf16.msra.mxu0 %v780
        %910 = vmatprep.subr.bf16.mxu0 %v783
        %911 = vmatpush1.bf16.msra.mxu0 %v782
        %912 = vmatprep.subr.bf16.mxu0 %v785
        %913 = vmatpush1.bf16.msra.mxu0 %v784
        %914 = vmatprep.subr.bf16.mxu0 %v787
        %915 = vmatpush1.bf16.msra.mxu0 %v786
        %916 = vmatprep.subr.bf16.mxu0 %v789
        %917 = vmatpush1.bf16.msra.mxu0 %v788
        %918 = vmatprep.subr.bf16.mxu0 %v791
        %919 = vmatpush1.bf16.msra.mxu0 %v790
        %920 = vmatprep.subr.bf16.mxu0 %v793
        %921 = vmatpush1.bf16.msra.mxu0 %v792
        %922 = vmatprep.subr.bf16.mxu0 %v795
        %923 = vmatpush1.bf16.msra.mxu0 %v794
        %924 = vmatprep.subr.bf16.mxu0 %v797
        %925 = vmatpush1.bf16.msra.mxu0 %v796
        %926 = vmatprep.mubr.bf16.mxu0 %v567
        %927 = vmatmul.mubr.bf16.gmra.mrb[0].mxu0 %v566
        %v928 = vpop.f32.mrb[0].mxu0
        %v929 = vadd.f32 %v558, %v928
        %v930 = vpop.f32.mrb[0].mxu0
        %v931 = vadd.f32 %v558, %v930
        %v932 = vpop.f32.mrb[0].mxu0
        %v933 = vpop.f32.mrb[0].mxu0
        %934 = vdwg.mxu0
        %935 = vmatprep.subr.bf16.mxu0 %v799
        %936 = vmatpush1.bf16.msra.mxu0 %v798
        %937 = vmatprep.subr.bf16.mxu0 %v801
        %938 = vmatpush1.bf16.msra.mxu0 %v800
        %939 = vmatprep.subr.bf16.mxu0 %v803
        %940 = vmatpush1.bf16.msra.mxu0 %v802
        %941 = vmatprep.subr.bf16.mxu0 %v805
        %942 = vmatpush1.bf16.msra.mxu0 %v804
        %943 = vmatprep.subr.bf16.mxu0 %v807
        %944 = vmatpush1.bf16.msra.mxu0 %v806
        %945 = vmatprep.subr.bf16.mxu0 %v809
        %946 = vmatpush1.bf16.msra.mxu0 %v808
        %947 = vmatprep.subr.bf16.mxu0 %v811
        %948 = vmatpush1.bf16.msra.mxu0 %v810
        %949 = vmatprep.subr.bf16.mxu0 %v813
        %950 = vmatpush1.bf16.msra.mxu0 %v812
        %951 = vmatprep.subr.bf16.mxu0 %v815
        %952 = vmatpush1.bf16.msra.mxu0 %v814
        %953 = vmatprep.subr.bf16.mxu0 %v817
        %954 = vmatpush1.bf16.msra.mxu0 %v816
        %955 = vmatprep.subr.bf16.mxu0 %v819
        %956 = vmatpush1.bf16.msra.mxu0 %v818
        %957 = vmatprep.subr.bf16.mxu0 %v821
        %958 = vmatpush1.bf16.msra.mxu0 %v820
        %959 = vmatprep.subr.bf16.mxu0 %v823
        %960 = vmatpush1.bf16.msra.mxu0 %v822
        %961 = vmatprep.subr.bf16.mxu0 %v825
        %962 = vmatpush1.bf16.msra.mxu0 %v824
        %963 = vmatprep.subr.bf16.mxu0 %v827
        %964 = vmatpush1.bf16.msra.mxu0 %v826
        %965 = vmatprep.subr.bf16.mxu0 %v829
        %966 = vmatpush1.bf16.msra.mxu0 %v828
        %967 = vmatprep.mubr.bf16.mxu0 %v569
        %968 = vmatmul.mubr.bf16.gmra.mrb[0].mxu0 %v568
        %v969 = vpop.f32.mrb[0].mxu0
        %v970 = vadd.f32 %v929, %v969
        %v971 = vpop.f32.mrb[0].mxu0
        %v972 = vadd.f32 %v931, %v971
        %v973 = vpop.f32.mrb[0].mxu0
        %v974 = vpop.f32.mrb[0].mxu0
        %975 = vdwg.mxu0
        %s976 = sld [smem:[#allocation2]]
        %vm977 = vcmp.ge.f32.partialorder %v970, 0.0
        %vm978 = vcmp.ge.f32.partialorder %v972, 0.0
        %v979 = vstv %s976
        %v980 = vmul.f32 %v979, %v970
        %v981 = vmul.f32 %v979, %v972
        %v982 = vsel %vm977, %v970, %v980
        %v983 = vsel %vm978, %v972, %v981
        %984 = vst [vmem:[%s486] sm:$0xff] %v982
        %985 = vst [vmem:[%s486 + $0x8] sm:$0xff] %v983
        %s986 = smul.u32 2, %s16
        %p987 = scmp.lt.s32.totalorder %s986, 3
        %s988 = scalar_select %p987, %s986, 3
        %s989 = smul.addr %s988, 8
        %s990 = scalar_lea.vmem %s4, %s989
        // Predicated region
        $region75: #{srfbn_hg_forward.36} parent=69 // pred_check
          %p991 = pneg %p123
        $region76: #{srfbn_hg_forward.36} parent=69 // pred_check_branch
          %993 = sbr.rel (%p991) target = $region78
        $region77: #{srfbn_hg_forward.36} parent=69 // pred_region
          %s994 = smul.u32 2, %s16
        $region78: #{srfbn_hg_forward.36} parent=69 // pred_fallthru
          _
      $region70: #{srfbn_hg_forward.36} parent=5 // pred_fallthru
        _
      %p995 = scmp.le.s32.totalorder 2, %s11
      // Predicated region
      $region79: #{srfbn_hg_forward.36} parent=5 // pred_check
        %p996 = pneg %p995
      $region80: #{srfbn_hg_forward.36} parent=5 // pred_check_branch
        %998 = sbr.rel (%p996) target = $region82
      $region81: #{srfbn_hg_forward.36} parent=5 // pred_region
        %s999 = ssub.s32 %s11, 2
        // Predicated region
        $region83: #{srfbn_hg_forward.36} parent=81 // pred_check
          %p1000 = pneg %p129
        $region84: #{srfbn_hg_forward.36} parent=81 // pred_check_branch
          %1002 = sbr.rel (%p1000) target = $region86
        $region85: #{srfbn_hg_forward.36} parent=81 // pred_region
          %s1003 = smul.u32 2, %s17
          %p1004 = scmp.lt.s32.totalorder %s1003, 3
          %s1005 = scalar_select %p1004, %s1003, 3
          %s1006 = smul.addr %s1005, 8
          %s1007 = scalar_lea.vmem %s4, %s1006
        $region86: #{srfbn_hg_forward.36} parent=81 // pred_fallthru
          _
      $region82: #{srfbn_hg_forward.36} parent=5 // pred_fallthru
        _
    $region6: #{srfbn_hg_forward.36} parent=1 // loop_footer
      %s15 = sadd.s32 1, %s11
    $region7: #{srfbn_hg_forward.36} parent=1 // loop_footer_branch
      %10 = sbr.rel target = $region3
    $region8: #{srfbn_hg_forward.36} parent=1 // loop_exit
      _

// kernel: srfbn_hg_forward.37
$region0: #{srfbn_hg_forward.37}
  #allocation0 [shape = 'u32[]', space=smem, size = 0x4, offset = 0x4, fixed_abs, tag = 'smem constant byte address 0x4 - core index']
  #allocation1 [shape = 'u32[144,128]{1,0:T(1,128)}', space=vmem, size = 0x12000, scoped, tag = 'internal scratch']
  #allocation2 [shape = 'f32[1]{0:T(128)S(6)}', space=smem, size = 0x200, scoped, tag = 'scoped memory for srfbn_hg_forward.37']
  %s0 = inlined_call_operand.vmem [shape: bf16[8,16], index: 0, kind: input, shape index: {}]
  %s1 = inlined_call_operand.vmem [shape: bf16[16,512], index: 1, kind: input, shape index: {}]
  %s2 = inlined_call_operand.vmem [shape: f32[8,1], index: 2, kind: input, shape index: {}]
  %s3 = inlined_call_operand.<no memory space> [shape: f32[1], index: 3, kind: input, shape index: {}]
  %s4 = inlined_call_operand.vmem [shape: f32[8,512], index: 4, kind: output, shape index: {}]
  %s5 = sld [smem:[#allocation0]]
  $region87: #{srfbn_hg_forward.37} parent=0
    _
  %s7 = ssub.s32 1, %s5
  %s8 = scalar_select 0, %s7, %s5
  %9 = sst [smem:[#allocation2]] %s3
  $region1: #{srfbn_hg_forward.37} parent=0
    #allocation3 [shape = 'u8[16384]{0}', space=vmem, size = 0x4000, scoped, tag = 'input window, operand 1']
    loop: start=0, step=1, limit=4
    $region2: #{srfbn_hg_forward.37} parent=1 // loop_pre_header
      _
    $region3: #{srfbn_hg_forward.37} parent=1 // loop_header
      %s11 = sphi 0, %s15
      %p12 = scmp.ge.s32.totalorder %s11, 4
      %s19 = sphi 0, %s19
      %s21 = sphi 0, %s19
      %s22 = sphi 0, %s21
      %s36 = sphi 0, %s22
      %s42 = sphi 0, %s44
      %s45 = sphi 0, %s42
      %s46 = sphi 0, %s45
      %s62 = sphi 0, %s46
      %s66 = sphi 0, %s66
      %s68 = sphi 0, %s66
      %s69 = sphi 0, %s68
      %s83 = sphi 0, %s69
      %s87 = sphi 0, %s87
      %s89 = sphi 0, %s87
      %s90 = sphi 0, %s89
      %s104 = sphi 0, %s90
      %s110 = sphi 0, %s112
      %s113 = sphi 0, %s110
      %s114 = sphi 0, %s113
      %s130 = sphi 0, %s114
    $region4: #{srfbn_hg_forward.37} parent=1 // loop_header_branch
      %14 = sbr.rel (%p12) target = $region8
    $region5: #{srfbn_hg_forward.37} parent=1 // loop_body
      %s16 = ssub.s32 %s11, 1
      %s17 = ssub.s32 %s11, 2
      %s18 = sadd.s32 %s11, 1
      %s20 = sadd.s32 %s19, 1
      %p23 = scmp.eq.s32.totalorder %s11, 1
      %p24 = scmp.ne.s32.totalorder %s19, %s21
      %p25 = scmp.eq.s32.totalorder %s11, 0
      %p26 = por %p24, %p25
      %p27 = scmp.ne.s32.totalorder %s19, %s21
      %p28 = scmp.eq.s32.totalorder %s16, 1
      %p29 = por %p27, %p28
      %p30 = scmp.ne.s32.totalorder %s21, %s22
      %p31 = scmp.eq.s32.totalorder %s16, 0
      %p32 = por %p30, %p31
      %p33 = scmp.ne.s32.totalorder %s21, %s22
      %p34 = scmp.eq.s32.totalorder %s17, 1
      %p35 = por %p33, %p34
      %p37 = scmp.ne.s32.totalorder %s22, %s36
      %p38 = scmp.eq.s32.totalorder %s17, 0
      %p39 = por %p37, %p38
      %s40 = ssub.s32 %s11, %s18
      %p41 = scmp.eq.s32.totalorder %s40, 0
      %s43 = sadd.s32 %s42, 1
      %s44 = scalar_select %p41, %s42, %s43
      %p47 = pneg %p41
      %p48 = scmp.eq.s32.totalorder %s11, 1
      %p49 = por %p47, %p48
      %p50 = scmp.ne.s32.totalorder %s42, %s45
      %p51 = scmp.eq.s32.totalorder %s11, 0
      %p52 = por %p50, %p51
      %p53 = scmp.ne.s32.totalorder %s42, %s45
      %p54 = scmp.eq.s32.totalorder %s16, 1
      %p55 = por %p53, %p54
      %p56 = scmp.ne.s32.totalorder %s45, %s46
      %p57 = scmp.eq.s32.totalorder %s16, 0
      %p58 = por %p56, %p57
      %p59 = scmp.ne.s32.totalorder %s45, %s46
      %p60 = scmp.eq.s32.totalorder %s17, 1
      %p61 = por %p59, %p60
      %p63 = scmp.ne.s32.totalorder %s46, %s62
      %p64 = scmp.eq.s32.totalorder %s17, 0
      %p65 = por %p63, %p64
      %s67 = sadd.s32 %s66, 1
      %p70 = scmp.eq.s32.totalorder %s11, 1
      %p71 = scmp.ne.s32.totalorder %s66, %s68
      %p72 = scmp.eq.s32.totalorder %s11, 0
      %p73 = por %p71, %p72
      %p74 = scmp.ne.s32.totalorder %s66, %s68
      %p75 = scmp.eq.s32.totalorder %s16, 1
      %p76 = por %p74, %p75
      %p77 = scmp.ne.s32.totalorder %s68, %s69
      %p78 = scmp.eq.s32.totalorder %s16, 0
      %p79 = por %p77, %p78
      %p80 = scmp.ne.s32.totalorder %s68, %s69
      %p81 = scmp.eq.s32.totalorder %s17, 1
      %p82 = por %p80, %p81
      %p84 = scmp.ne.s32.totalorder %s69, %s83
      %p85 = scmp.eq.s32.totalorder %s17, 0
      %p86 = por %p84, %p85
      %s88 = sadd.s32 %s87, 1
      %p91 = scmp.eq.s32.totalorder %s11, 1
      %p92 = scmp.ne.s32.totalorder %s87, %s89
      %p93 = scmp.eq.s32.totalorder %s11, 0
      %p94 = por %p92, %p93
      %p95 = scmp.ne.s32.totalorder %s87, %s89
      %p96 = scmp.eq.s32.totalorder %s16, 1
      %p97 = por %p95, %p96
      %p98 = scmp.ne.s32.totalorder %s89, %s90
      %p99 = scmp.eq.s32.totalorder %s16, 0
      %p100 = por %p98, %p99
      %p101 = scmp.ne.s32.totalorder %s89, %s90
      %p102 = scmp.eq.s32.totalorder %s17, 1
      %p103 = por %p101, %p102
      %p105 = scmp.ne.s32.totalorder %s90, %s104
      %p106 = scmp.eq.s32.totalorder %s17, 0
      %p107 = por %p105, %p106
      %s108 = ssub.s32 %s11, %s18
      %p109 = scmp.eq.s32.totalorder %s108, 0
      %s111 = sadd.s32 %s110, 1
      %s112 = scalar_select %p109, %s110, %s111
      %p115 = pneg %p109
      %p116 = scmp.eq.s32.totalorder %s11, 1
      %p117 = por %p115, %p116
      %p118 = scmp.ne.s32.totalorder %s110, %s113
      %p119 = scmp.eq.s32.totalorder %s11, 0
      %p120 = por %p118, %p119
      %p121 = scmp.ne.s32.totalorder %s110, %s113
      %p122 = scmp.eq.s32.totalorder %s16, 1
      %p123 = por %p121, %p122
      %p124 = scmp.ne.s32.totalorder %s113, %s114
      %p125 = scmp.eq.s32.totalorder %s16, 0
      %p126 = por %p124, %p125
      %p127 = scmp.ne.s32.totalorder %s113, %s114
      %p128 = scmp.eq.s32.totalorder %s17, 1
      %p129 = por %p127, %p128
      %p131 = scmp.ne.s32.totalorder %s114, %s130
      %p132 = scmp.eq.s32.totalorder %s17, 0
      %p133 = por %p131, %p132
      %p134 = scmp.le.s32.totalorder 1, %s11
      %p135 = scmp.lt.s32.totalorder %s11, 3
      %p136 = pnand %p134, %p135
      %p137 = pneg %p136
      // Predicated region
      $region9: #{srfbn_hg_forward.37} parent=5 // pred_check
        _
      $region10: #{srfbn_hg_forward.37} parent=5 // pred_check_branch
        %139 = sbr.rel (%p136) target = $region12
      $region11: #{srfbn_hg_forward.37} parent=5 // pred_region
        %s140 = ssub.s32 %s11, 1
        // Predicated region
        $region13: #{srfbn_hg_forward.37} parent=11 // pred_check
          %p141 = pneg %p32
        $region14: #{srfbn_hg_forward.37} parent=11 // pred_check_branch
          %143 = sbr.rel (%p141) target = $region16
        $region15: #{srfbn_hg_forward.37} parent=11 // pred_region
          _
        $region16: #{srfbn_hg_forward.37} parent=11 // pred_fallthru
          _
        // Predicated region
        $region17: #{srfbn_hg_forward.37} parent=11 // pred_check
          %p144 = pneg %p79
        $region18: #{srfbn_hg_forward.37} parent=11 // pred_check_branch
          %146 = sbr.rel (%p144) target = $region20
        $region19: #{srfbn_hg_forward.37} parent=11 // pred_region
          _
        $region20: #{srfbn_hg_forward.37} parent=11 // pred_fallthru
          _
        // Predicated region
        $region21: #{srfbn_hg_forward.37} parent=11 // pred_check
          %p147 = pneg %p100
        $region22: #{srfbn_hg_forward.37} parent=11 // pred_check_branch
          %149 = sbr.rel (%p147) target = $region24
        $region23: #{srfbn_hg_forward.37} parent=11 // pred_region
          _
        $region24: #{srfbn_hg_forward.37} parent=11 // pred_fallthru
          _
      $region12: #{srfbn_hg_forward.37} parent=5 // pred_fallthru
        _
      %p150 = scmp.lt.s32.totalorder %s11, 2
      // Predicated region
      $region25: #{srfbn_hg_forward.37} parent=5 // pred_check
        %p151 = pneg %p150
      $region26: #{srfbn_hg_forward.37} parent=5 // pred_check_branch
        %153 = sbr.rel (%p151) target = $region28
      $region27: #{srfbn_hg_forward.37} parent=5 // pred_region
        // Predicated region
        $region29: #{srfbn_hg_forward.37} parent=27 // pred_check
          %p154 = pneg %p52
        $region30: #{srfbn_hg_forward.37} parent=27 // pred_check_branch
          %156 = sbr.rel (%p154) target = $region32
        $region31: #{srfbn_hg_forward.37} parent=27 // pred_region
          %s157 = sand.u32 %s42, 1
          %s158 = sand.u32 %s42, 1
          %s159 = smul.addr %s158, 16
          %s160 = scalar_lea.vmem [#allocation3], %s159
          %s161 = smul.u32 2, %s11
          %s162 = smul.addr %s161, 4
          %s163 = scalar_lea.vmem %s1, %s162
          // Predicated region
          $region33: #{srfbn_hg_forward.37} parent=31 // pred_check
            _
          $region34: #{srfbn_hg_forward.37} parent=31 // pred_check_branch
            %165 = sbr.rel (0) target = $region36
          $region35: #{srfbn_hg_forward.37} parent=31 // pred_region
            // Predicated region
            $region37: #{srfbn_hg_forward.37} parent=35 // pred_check
              _
            $region38: #{srfbn_hg_forward.37} parent=35 // pred_check_branch
              %167 = sbr.rel (0) target = $region40
            $region39: #{srfbn_hg_forward.37} parent=35 // pred_region
              // Predicated region
              $region52: #{srfbn_hg_forward.37} parent=39 // pred_check
                _
              $region53: #{srfbn_hg_forward.37} parent=39 // pred_check_branch
                %184 = sbr.rel (0) target = $region55
              $region54: #{srfbn_hg_forward.37} parent=39 // pred_region
                loop: start=0, step=1, limit=1
                $region56: #{srfbn_hg_forward.37} parent=54 // loop_pre_header
                  _
                $region57: #{srfbn_hg_forward.37} parent=54 // loop_header
                  %s186 = sphi 0, %s190
                  %p187 = scmp.ge.s32.totalorder %s186, 1
                  %s191 = sphi %s163, %s163
                  %s192 = sphi %s160, %s160
                $region58: #{srfbn_hg_forward.37} parent=54 // loop_header_branch
                  %189 = sbr.rel (%p187) target = $region62
                $region59: #{srfbn_hg_forward.37} parent=54 // loop_body
                  %v193 = vld [vmem:[%s191] sm:$0xff]
                  %194 = vst [vmem:[%s192] sm:$0xff] %v193
                  %v195 = vld [vmem:[%s191 + $0x10] sm:$0xff]
                  %196 = vst [vmem:[%s192 + $0x8] sm:$0xff] %v195
                $region60: #{srfbn_hg_forward.37} parent=54 // loop_footer
                  %s190 = sadd.s32 1, %s186
                $region61: #{srfbn_hg_forward.37} parent=54 // loop_footer_branch
                  %185 = sbr.rel target = $region57
                $region62: #{srfbn_hg_forward.37} parent=54 // loop_exit
                  _
              $region55: #{srfbn_hg_forward.37} parent=39 // pred_fallthru
                _
              // Predicated region
              $region63: #{srfbn_hg_forward.37} parent=39 // pred_check
                _
              $region64: #{srfbn_hg_forward.37} parent=39 // pred_check_branch
                %198 = sbr.rel target = $region66
              $region65: #{srfbn_hg_forward.37} parent=39 // pred_region
                _
              $region66: #{srfbn_hg_forward.37} parent=39 // pred_fallthru
                _
            $region40: #{srfbn_hg_forward.37} parent=35 // pred_fallthru
              _
            // Predicated region
            $region41: #{srfbn_hg_forward.37} parent=35 // pred_check
              _
            $region42: #{srfbn_hg_forward.37} parent=35 // pred_check_branch
              %169 = sbr.rel target = $region44
            $region43: #{srfbn_hg_forward.37} parent=35 // pred_region
              loop: start=0, step=1, limit=1
              $region45: #{srfbn_hg_forward.37} parent=43 // loop_pre_header
                _
              $region46: #{srfbn_hg_forward.37} parent=43 // loop_header
                %s172 = sphi 0, %s176
                %p173 = scmp.ge.s32.totalorder %s172, 1
                %s177 = sphi %s163, %s163
                %s178 = sphi %s160, %s160
              $region47: #{srfbn_hg_forward.37} parent=43 // loop_header_branch
                %175 = sbr.rel (%p173) target = $region51
              $region48: #{srfbn_hg_forward.37} parent=43 // loop_body
                %v179 = vld [vmem:[%s177] sm:$0xff]
                %180 = vst [vmem:[%s178] sm:$0xff] %v179
                %v181 = vld [vmem:[%s177 + $0x10] sm:$0xff]
                %182 = vst [vmem:[%s178 + $0x8] sm:$0xff] %v181
              $region49: #{srfbn_hg_forward.37} parent=43 // loop_footer
                %s176 = sadd.s32 1, %s172
              $region50: #{srfbn_hg_forward.37} parent=43 // loop_footer_branch
                %171 = sbr.rel target = $region46
              $region51: #{srfbn_hg_forward.37} parent=43 // loop_exit
                _
            $region44: #{srfbn_hg_forward.37} parent=35 // pred_fallthru
              _
          $region36: #{srfbn_hg_forward.37} parent=31 // pred_fallthru
            _
          %199 = vnop
        $region32: #{srfbn_hg_forward.37} parent=27 // pred_fallthru
          _
      $region28: #{srfbn_hg_forward.37} parent=5 // pred_fallthru
        _
      %p200 = scmp.le.s32.totalorder 1, %s11
      %p201 = scmp.lt.s32.totalorder %s11, 3
      %p202 = pnand %p200, %p201
      %p203 = pneg %p202
      // Predicated region
      $region67: #{srfbn_hg_forward.37} parent=5 // pred_check
        _
      $region68: #{srfbn_hg_forward.37} parent=5 // pred_check_branch
        %205 = sbr.rel (%p202) target = $region70
      $region69: #{srfbn_hg_forward.37} parent=5 // pred_region
        %s206 = ssub.s32 %s11, 1
        %s207 = sand.u32 %s45, 1
        %s208 = sand.u32 %s45, 1
        %s209 = smul.addr %s208, 16
        %s210 = scalar_lea.vmem [#allocation3], %s209
        // Predicated region
        $region71: #{srfbn_hg_forward.37} parent=69 // pred_check
          %p211 = pneg %p58
        $region72: #{srfbn_hg_forward.37} parent=69 // pred_check_branch
          %213 = sbr.rel (%p211) target = $region74
        $region73: #{srfbn_hg_forward.37} parent=69 // pred_region
          _
        $region74: #{srfbn_hg_forward.37} parent=69 // pred_fallthru
          _
        %p214 = pneg %p32
        %p215 = pneg %p29
        %s216 = sand.u32 %s45, 1
        %s217 = sand.u32 %s45, 1
        %s218 = smul.addr %s217, 16
        %s219 = scalar_lea.vmem [#allocation3], %s218
        %p220 = pneg %p58
        %p221 = pneg %p55
        %p222 = pneg %p79
        %p223 = pneg %p76
        %p224 = pneg %p100
        %p225 = pneg %p97
        %p226 = pneg %p126
        %p227 = pneg %p123
        %s228 = smul.u32 2, %s16
        %p229 = scmp.lt.s32.totalorder %s228, 3
        %s230 = scalar_select %p229, %s228, 3
        %s231 = smul.addr %s230, 8
        %s232 = scalar_lea.vmem %s4, %s231
        %s233 = smul.u32 2, %s16
        %s234 = smul.u32 2, %s16
        %p235 = scmp.lt.s32.totalorder %s234, 3
        %s236 = scalar_select %p235, %s234, 3
        %s237 = smul.addr %s236, 8
        %s238 = scalar_lea.vmem %s4, %s237
        %s239 = smul.u32 2, %s16
        %v241 = vld [vmem:[%s0] sm:$0xf]
        %v242 = vld [vmem:[%s210] sm:$0xff]
        %v243 = vld [vmem:[%s210 + $0x8] sm:$0xff]
        %v244 = vld [vmem:[%s2] sm:$0xff]
        %246 = vset.pattern.permute.xlu0 0
        %247 = vperm.xlu0 %246, %v244
        %v248 = vpop.permute.xlu0 %247
        %v252 = vunpack.c.l.b16 %v242
        %v253 = vunpack.c.h.b16 %v242
        %v254 = vunpack.c.l.b16 %v243
        %v255 = vunpack.c.h.b16 %v243
        %v256 = vpack.c.b16 %v254, %v252
        %v257 = vpack.c.b16 %v255, %v253
        %vm260 = vcmask 130048
        %v262 = vsel %vm260, %v241, 0
        %264 = vmatprep.subr.bf16.mxu0 %v257
        %265 = vmatpush1.bf16.msra.mxu0 %v256
        %266 = vmatprep.subr.bf16.mxu0 0
        %267 = vmatpush1.bf16.msra.mxu0 0
        %268 = vmatprep.subr.bf16.mxu0 0
        %269 = vmatpush1.bf16.msra.mxu0 0
        %270 = vmatprep.subr.bf16.mxu0 0
        %271 = vmatpush1.bf16.msra.mxu0 0
        %272 = vmatprep.subr.bf16.mxu0 0
        %273 = vmatpush1.bf16.msra.mxu0 0
        %274 = vmatprep.subr.bf16.mxu0 0
        %275 = vmatpush1.bf16.msra.mxu0 0
        %276 = vmatprep.subr.bf16.mxu0 0
        %277 = vmatpush1.bf16.msra.mxu0 0
        %278 = vmatprep.subr.bf16.mxu0 0
        %279 = vmatpush1.bf16.msra.mxu0 0
        %280 = vmatprep.subr.bf16.mxu0 0
        %281 = vmatpush1.bf16.msra.mxu0 0
        %282 = vmatprep.subr.bf16.mxu0 0
        %283 = vmatpush1.bf16.msra.mxu0 0
        %284 = vmatprep.subr.bf16.mxu0 0
        %285 = vmatpush1.bf16.msra.mxu0 0
        %286 = vmatprep.subr.bf16.mxu0 0
        %287 = vmatpush1.bf16.msra.mxu0 0
        %288 = vmatprep.subr.bf16.mxu0 0
        %289 = vmatpush1.bf16.msra.mxu0 0
        %290 = vmatprep.subr.bf16.mxu0 0
        %291 = vmatpush1.bf16.msra.mxu0 0
        %292 = vmatprep.subr.bf16.mxu0 0
        %293 = vmatpush1.bf16.msra.mxu0 0
        %294 = vmatprep.subr.bf16.mxu0 0
        %295 = vmatpush1.bf16.msra.mxu0 0
        %296 = vmatprep.mubr.bf16.mxu0 0
        %297 = vmatmul.mubr.bf16.gmra.mrb[0].mxu0 %v262
        %v298 = vpop.f32.mrb[0].mxu0
        %v299 = vadd.f32 %v248, %v298
        %v300 = vpop.f32.mrb[0].mxu0
        %v301 = vadd.f32 %v248, %v300
        %v302 = vpop.f32.mrb[0].mxu0
        %v303 = vpop.f32.mrb[0].mxu0
        %304 = vdwg.mxu0
        %s305 = sld [smem:[#allocation2]]
        %vm306 = vcmp.ge.f32.partialorder %v299, 0.0
        %vm307 = vcmp.ge.f32.partialorder %v301, 0.0
        %v308 = vstv %s305
        %v309 = vmul.f32 %v308, %v299
        %v310 = vmul.f32 %v308, %v301
        %v311 = vsel %vm306, %v299, %v309
        %v312 = vsel %vm307, %v301, %v310
        %313 = vst [vmem:[%s238] sm:$0xff] %v311
        %314 = vst [vmem:[%s238 + $0x8] sm:$0xff] %v312
        %s315 = smul.u32 2, %s16
        %p316 = scmp.lt.s32.totalorder %s315, 3
        %s317 = scalar_select %p316, %s315, 3
        %s318 = smul.addr %s317, 8
        %s319 = scalar_lea.vmem %s4, %s318
        // Predicated region
        $region75: #{srfbn_hg_forward.37} parent=69 // pred_check
          %p320 = pneg %p123
        $region76: #{srfbn_hg_forward.37} parent=69 // pred_check_branch
          %322 = sbr.rel (%p320) target = $region78
        $region77: #{srfbn_hg_forward.37} parent=69 // pred_region
          %s323 = smul.u32 2, %s16
        $region78: #{srfbn_hg_forward.37} parent=69 // pred_fallthru
          _
      $region70: #{srfbn_hg_forward.37} parent=5 // pred_fallthru
        _
      %p324 = scmp.le.s32.totalorder 2, %s11
      // Predicated region
      $region79: #{srfbn_hg_forward.37} parent=5 // pred_check
        %p325 = pneg %p324
      $region80: #{srfbn_hg_forward.37} parent=5 // pred_check_branch
        %327 = sbr.rel (%p325) target = $region82
      $region81: #{srfbn_hg_forward.37} parent=5 // pred_region
        %s328 = ssub.s32 %s11, 2
        // Predicated region
        $region83: #{srfbn_hg_forward.37} parent=81 // pred_check
          %p329 = pneg %p129
        $region84: #{srfbn_hg_forward.37} parent=81 // pred_check_branch
          %331 = sbr.rel (%p329) target = $region86
        $region85: #{srfbn_hg_forward.37} parent=81 // pred_region
          %s332 = smul.u32 2, %s17
          %p333 = scmp.lt.s32.totalorder %s332, 3
          %s334 = scalar_select %p333, %s332, 3
          %s335 = smul.addr %s334, 8
          %s336 = scalar_lea.vmem %s4, %s335
        $region86: #{srfbn_hg_forward.37} parent=81 // pred_fallthru
          _
      $region82: #{srfbn_hg_forward.37} parent=5 // pred_fallthru
        _
    $region6: #{srfbn_hg_forward.37} parent=1 // loop_footer
      %s15 = sadd.s32 1, %s11
    $region7: #{srfbn_hg_forward.37} parent=1 // loop_footer_branch
      %10 = sbr.rel target = $region3
    $region8: #{srfbn_hg_forward.37} parent=1 // loop_exit
      _

// kernel: srfbn_hg_forward.39
$region0: #{srfbn_hg_forward.39}
  #allocation0 [shape = 'u32[]', space=smem, size = 0x4, offset = 0x4, fixed_abs, tag = 'smem constant byte address 0x4 - core index']
  #allocation1 [shape = 'u32[144,128]{1,0:T(1,128)}', space=vmem, size = 0x12000, scoped, tag = 'internal scratch']
  #allocation2 [shape = 'f32[1]{0:T(128)S(6)}', space=smem, size = 0x200, scoped, tag = 'scoped memory for srfbn_hg_forward.39']
  %s0 = inlined_call_operand.vmem [shape: bf16[8,16], index: 0, kind: input, shape index: {}]
  %s1 = inlined_call_operand.vmem [shape: bf16[16,8192], index: 1, kind: input, shape index: {}]
  %s2 = inlined_call_operand.vmem [shape: f32[8,1], index: 2, kind: input, shape index: {}]
  %s3 = inlined_call_operand.<no memory space> [shape: f32[1], index: 3, kind: input, shape index: {}]
  %s4 = inlined_call_operand.vmem [shape: f32[8,8192], index: 4, kind: output, shape index: {}]
  %s5 = sld [smem:[#allocation0]]
  $region72: #{srfbn_hg_forward.39} parent=0
    _
  %s7 = ssub.s32 1, %s5
  %s8 = scalar_select 0, %s7, %s5
  %9 = sst [smem:[#allocation2]] %s3
  $region1: #{srfbn_hg_forward.39} parent=0
    #allocation3 [shape = 'u8[131072]{0}', space=vmem, size = 0x20000, scoped, tag = 'input window, operand 1']
    loop: start=0, step=1, limit=6
    $region2: #{srfbn_hg_forward.39} parent=1 // loop_pre_header
      _
    $region3: #{srfbn_hg_forward.39} parent=1 // loop_header
      %s11 = sphi 0, %s15
      %p12 = scmp.ge.s32.totalorder %s11, 6
      %s19 = sphi 0, %s19
      %s21 = sphi 0, %s19
      %s22 = sphi 0, %s21
      %s36 = sphi 0, %s22
      %s42 = sphi 0, %s44
      %s45 = sphi 0, %s42
      %s46 = sphi 0, %s45
      %s62 = sphi 0, %s46
      %s66 = sphi 0, %s66
      %s68 = sphi 0, %s66
      %s69 = sphi 0, %s68
      %s83 = sphi 0, %s69
      %s87 = sphi 0, %s87
      %s89 = sphi 0, %s87
      %s90 = sphi 0, %s89
      %s104 = sphi 0, %s90
      %s110 = sphi 0, %s112
      %s113 = sphi 0, %s110
      %s114 = sphi 0, %s113
      %s130 = sphi 0, %s114
    $region4: #{srfbn_hg_forward.39} parent=1 // loop_header_branch
      %14 = sbr.rel (%p12) target = $region8
    $region5: #{srfbn_hg_forward.39} parent=1 // loop_body
      %s16 = ssub.s32 %s11, 1
      %s17 = ssub.s32 %s11, 2
      %s18 = sadd.s32 %s11, 1
      %s20 = sadd.s32 %s19, 1
      %p23 = scmp.eq.s32.totalorder %s11, 3
      %p24 = scmp.ne.s32.totalorder %s19, %s21
      %p25 = scmp.eq.s32.totalorder %s11, 0
      %p26 = por %p24, %p25
      %p27 = scmp.ne.s32.totalorder %s19, %s21
      %p28 = scmp.eq.s32.totalorder %s16, 3
      %p29 = por %p27, %p28
      %p30 = scmp.ne.s32.totalorder %s21, %s22
      %p31 = scmp.eq.s32.totalorder %s16, 0
      %p32 = por %p30, %p31
      %p33 = scmp.ne.s32.totalorder %s21, %s22
      %p34 = scmp.eq.s32.totalorder %s17, 3
      %p35 = por %p33, %p34
      %p37 = scmp.ne.s32.totalorder %s22, %s36
      %p38 = scmp.eq.s32.totalorder %s17, 0
      %p39 = por %p37, %p38
      %s40 = ssub.s32 %s11, %s18
      %p41 = scmp.eq.s32.totalorder %s40, 0
      %s43 = sadd.s32 %s42, 1
      %s44 = scalar_select %p41, %s42, %s43
      %p47 = pneg %p41
      %p48 = scmp.eq.s32.totalorder %s11, 3
      %p49 = por %p47, %p48
      %p50 = scmp.ne.s32.totalorder %s42, %s45
      %p51 = scmp.eq.s32.totalorder %s11, 0
      %p52 = por %p50, %p51
      %p53 = scmp.ne.s32.totalorder %s42, %s45
      %p54 = scmp.eq.s32.totalorder %s16, 3
      %p55 = por %p53, %p54
      %p56 = scmp.ne.s32.totalorder %s45, %s46
      %p57 = scmp.eq.s32.totalorder %s16, 0
      %p58 = por %p56, %p57
      %p59 = scmp.ne.s32.totalorder %s45, %s46
      %p60 = scmp.eq.s32.totalorder %s17, 3
      %p61 = por %p59, %p60
      %p63 = scmp.ne.s32.totalorder %s46, %s62
      %p64 = scmp.eq.s32.totalorder %s17, 0
      %p65 = por %p63, %p64
      %s67 = sadd.s32 %s66, 1
      %p70 = scmp.eq.s32.totalorder %s11, 3
      %p71 = scmp.ne.s32.totalorder %s66, %s68
      %p72 = scmp.eq.s32.totalorder %s11, 0
      %p73 = por %p71, %p72
      %p74 = scmp.ne.s32.totalorder %s66, %s68
      %p75 = scmp.eq.s32.totalorder %s16, 3
      %p76 = por %p74, %p75
      %p77 = scmp.ne.s32.totalorder %s68, %s69
      %p78 = scmp.eq.s32.totalorder %s16, 0
      %p79 = por %p77, %p78
      %p80 = scmp.ne.s32.totalorder %s68, %s69
      %p81 = scmp.eq.s32.totalorder %s17, 3
      %p82 = por %p80, %p81
      %p84 = scmp.ne.s32.totalorder %s69, %s83
      %p85 = scmp.eq.s32.totalorder %s17, 0
      %p86 = por %p84, %p85
      %s88 = sadd.s32 %s87, 1
      %p91 = scmp.eq.s32.totalorder %s11, 3
      %p92 = scmp.ne.s32.totalorder %s87, %s89
      %p93 = scmp.eq.s32.totalorder %s11, 0
      %p94 = por %p92, %p93
      %p95 = scmp.ne.s32.totalorder %s87, %s89
      %p96 = scmp.eq.s32.totalorder %s16, 3
      %p97 = por %p95, %p96
      %p98 = scmp.ne.s32.totalorder %s89, %s90
      %p99 = scmp.eq.s32.totalorder %s16, 0
      %p100 = por %p98, %p99
      %p101 = scmp.ne.s32.totalorder %s89, %s90
      %p102 = scmp.eq.s32.totalorder %s17, 3
      %p103 = por %p101, %p102
      %p105 = scmp.ne.s32.totalorder %s90, %s104
      %p106 = scmp.eq.s32.totalorder %s17, 0
      %p107 = por %p105, %p106
      %s108 = ssub.s32 %s11, %s18
      %p109 = scmp.eq.s32.totalorder %s108, 0
      %s111 = sadd.s32 %s110, 1
      %s112 = scalar_select %p109, %s110, %s111
      %p115 = pneg %p109
      %p116 = scmp.eq.s32.totalorder %s11, 3
      %p117 = por %p115, %p116
      %p118 = scmp.ne.s32.totalorder %s110, %s113
      %p119 = scmp.eq.s32.totalorder %s11, 0
      %p120 = por %p118, %p119
      %p121 = scmp.ne.s32.totalorder %s110, %s113
      %p122 = scmp.eq.s32.totalorder %s16, 3
      %p123 = por %p121, %p122
      %p124 = scmp.ne.s32.totalorder %s113, %s114
      %p125 = scmp.eq.s32.totalorder %s16, 0
      %p126 = por %p124, %p125
      %p127 = scmp.ne.s32.totalorder %s113, %s114
      %p128 = scmp.eq.s32.totalorder %s17, 3
      %p129 = por %p127, %p128
      %p131 = scmp.ne.s32.totalorder %s114, %s130
      %p132 = scmp.eq.s32.totalorder %s17, 0
      %p133 = por %p131, %p132
      %p134 = scmp.le.s32.totalorder 1, %s11
      %p135 = scmp.lt.s32.totalorder %s11, 5
      %p136 = pnand %p134, %p135
      %p137 = pneg %p136
      // Predicated region
      $region9: #{srfbn_hg_forward.39} parent=5 // pred_check
        _
      $region10: #{srfbn_hg_forward.39} parent=5 // pred_check_branch
        %139 = sbr.rel (%p136) target = $region12
      $region11: #{srfbn_hg_forward.39} parent=5 // pred_region
        %s140 = ssub.s32 %s11, 1
        // Predicated region
        $region13: #{srfbn_hg_forward.39} parent=11 // pred_check
          %p141 = pneg %p32
        $region14: #{srfbn_hg_forward.39} parent=11 // pred_check_branch
          %143 = sbr.rel (%p141) target = $region16
        $region15: #{srfbn_hg_forward.39} parent=11 // pred_region
          _
        $region16: #{srfbn_hg_forward.39} parent=11 // pred_fallthru
          _
        // Predicated region
        $region17: #{srfbn_hg_forward.39} parent=11 // pred_check
          %p144 = pneg %p79
        $region18: #{srfbn_hg_forward.39} parent=11 // pred_check_branch
          %146 = sbr.rel (%p144) target = $region20
        $region19: #{srfbn_hg_forward.39} parent=11 // pred_region
          _
        $region20: #{srfbn_hg_forward.39} parent=11 // pred_fallthru
          _
        // Predicated region
        $region21: #{srfbn_hg_forward.39} parent=11 // pred_check
          %p147 = pneg %p100
        $region22: #{srfbn_hg_forward.39} parent=11 // pred_check_branch
          %149 = sbr.rel (%p147) target = $region24
        $region23: #{srfbn_hg_forward.39} parent=11 // pred_region
          _
        $region24: #{srfbn_hg_forward.39} parent=11 // pred_fallthru
          _
      $region12: #{srfbn_hg_forward.39} parent=5 // pred_fallthru
        _
      %p150 = scmp.lt.s32.totalorder %s11, 4
      // Predicated region
      $region25: #{srfbn_hg_forward.39} parent=5 // pred_check
        %p151 = pneg %p150
      $region26: #{srfbn_hg_forward.39} parent=5 // pred_check_branch
        %153 = sbr.rel (%p151) target = $region28
      $region27: #{srfbn_hg_forward.39} parent=5 // pred_region
        // Predicated region
        $region29: #{srfbn_hg_forward.39} parent=27 // pred_check
          %p154 = pneg %p52
        $region30: #{srfbn_hg_forward.39} parent=27 // pred_check_branch
          %156 = sbr.rel (%p154) target = $region32
        $region31: #{srfbn_hg_forward.39} parent=27 // pred_region
          %s157 = sand.u32 %s42, 1
          %s158 = sand.u32 %s42, 1
          %s159 = smul.addr %s158, 128
          %s160 = scalar_lea.vmem [#allocation3], %s159
          %s161 = smul.u32 16, %s11
          %s162 = smul.addr %s161, 4
          %s163 = scalar_lea.vmem %s1, %s162
          // Predicated region
          $region33: #{srfbn_hg_forward.39} parent=31 // pred_check
            _
          $region34: #{srfbn_hg_forward.39} parent=31 // pred_check_branch
            %165 = sbr.rel (0) target = $region36
          $region35: #{srfbn_hg_forward.39} parent=31 // pred_region
            // Predicated region
            $region37: #{srfbn_hg_forward.39} parent=35 // pred_check
              _
            $region38: #{srfbn_hg_forward.39} parent=35 // pred_check_branch
              %167 = sbr.rel (0) target = $region40
            $region39: #{srfbn_hg_forward.39} parent=35 // pred_region
              loop: start=0, step=1, limit=1
              $region41: #{srfbn_hg_forward.39} parent=39 // loop_pre_header
                _
              $region42: #{srfbn_hg_forward.39} parent=39 // loop_header
                %s169 = sphi 0, %s173
                %p170 = scmp.ge.s32.totalorder %s169, 1
                %s174 = sphi %s163, %s163
                %s175 = sphi %s160, %s160
              $region43: #{srfbn_hg_forward.39} parent=39 // loop_header_branch
                %172 = sbr.rel (%p170) target = $region47
              $region44: #{srfbn_hg_forward.39} parent=39 // loop_body
                %v176 = vld [vmem:[%s174] sm:$0xff]
                %177 = vst [vmem:[%s175] sm:$0xff] %v176
                %v178 = vld [vmem:[%s174 + $0x8] sm:$0xff]
                %179 = vst [vmem:[%s175 + $0x8] sm:$0xff] %v178
                %v180 = vld [vmem:[%s174 + $0x10] sm:$0xff]
                %181 = vst [vmem:[%s175 + $0x10] sm:$0xff] %v180
                %v182 = vld [vmem:[%s174 + $0x18] sm:$0xff]
                %183 = vst [vmem:[%s175 + $0x18] sm:$0xff] %v182
                %v184 = vld [vmem:[%s174 + $0x20] sm:$0xff]
                %185 = vst [vmem:[%s175 + $0x20] sm:$0xff] %v184
                %v186 = vld [vmem:[%s174 + $0x28] sm:$0xff]
                %187 = vst [vmem:[%s175 + $0x28] sm:$0xff] %v186
                %v188 = vld [vmem:[%s174 + $0x30] sm:$0xff]
                %189 = vst [vmem:[%s175 + $0x30] sm:$0xff] %v188
                %v190 = vld [vmem:[%s174 + $0x38] sm:$0xff]
                %191 = vst [vmem:[%s175 + $0x38] sm:$0xff] %v190
                %v192 = vld [vmem:[%s174 + $0x100] sm:$0xff]
                %193 = vst [vmem:[%s175 + $0x40] sm:$0xff] %v192
                %v194 = vld [vmem:[%s174 + $0x108] sm:$0xff]
                %195 = vst [vmem:[%s175 + $0x48] sm:$0xff] %v194
                %v196 = vld [vmem:[%s174 + $0x110] sm:$0xff]
                %197 = vst [vmem:[%s175 + $0x50] sm:$0xff] %v196
                %v198 = vld [vmem:[%s174 + $0x118] sm:$0xff]
                %199 = vst [vmem:[%s175 + $0x58] sm:$0xff] %v198
                %v200 = vld [vmem:[%s174 + $0x120] sm:$0xff]
                %201 = vst [vmem:[%s175 + $0x60] sm:$0xff] %v200
                %v202 = vld [vmem:[%s174 + $0x128] sm:$0xff]
                %203 = vst [vmem:[%s175 + $0x68] sm:$0xff] %v202
                %v204 = vld [vmem:[%s174 + $0x130] sm:$0xff]
                %205 = vst [vmem:[%s175 + $0x70] sm:$0xff] %v204
                %v206 = vld [vmem:[%s174 + $0x138] sm:$0xff]
                %207 = vst [vmem:[%s175 + $0x78] sm:$0xff] %v206
              $region45: #{srfbn_hg_forward.39} parent=39 // loop_footer
                %s173 = sadd.s32 1, %s169
              $region46: #{srfbn_hg_forward.39} parent=39 // loop_footer_branch
                %168 = sbr.rel target = $region42
              $region47: #{srfbn_hg_forward.39} parent=39 // loop_exit
                _
            $region40: #{srfbn_hg_forward.39} parent=35 // pred_fallthru
              _
            // Predicated region
            $region48: #{srfbn_hg_forward.39} parent=35 // pred_check
              _
            $region49: #{srfbn_hg_forward.39} parent=35 // pred_check_branch
              %209 = sbr.rel target = $region51
            $region50: #{srfbn_hg_forward.39} parent=35 // pred_region
              _
            $region51: #{srfbn_hg_forward.39} parent=35 // pred_fallthru
              _
          $region36: #{srfbn_hg_forward.39} parent=31 // pred_fallthru
            _
          %210 = vnop
        $region32: #{srfbn_hg_forward.39} parent=27 // pred_fallthru
          _
      $region28: #{srfbn_hg_forward.39} parent=5 // pred_fallthru
        _
      %p211 = scmp.le.s32.totalorder 1, %s11
      %p212 = scmp.lt.s32.totalorder %s11, 5
      %p213 = pnand %p211, %p212
      %p214 = pneg %p213
      // Predicated region
      $region52: #{srfbn_hg_forward.39} parent=5 // pred_check
        _
      $region53: #{srfbn_hg_forward.39} parent=5 // pred_check_branch
        %216 = sbr.rel (%p213) target = $region55
      $region54: #{srfbn_hg_forward.39} parent=5 // pred_region
        %s217 = ssub.s32 %s11, 1
        %s218 = sand.u32 %s45, 1
        %s219 = sand.u32 %s45, 1
        %s220 = smul.addr %s219, 128
        %s221 = scalar_lea.vmem [#allocation3], %s220
        // Predicated region
        $region56: #{srfbn_hg_forward.39} parent=54 // pred_check
          %p222 = pneg %p58
        $region57: #{srfbn_hg_forward.39} parent=54 // pred_check_branch
          %224 = sbr.rel (%p222) target = $region59
        $region58: #{srfbn_hg_forward.39} parent=54 // pred_region
          _
        $region59: #{srfbn_hg_forward.39} parent=54 // pred_fallthru
          _
        %p225 = pneg %p32
        %p226 = pneg %p29
        %s227 = sand.u32 %s45, 1
        %s228 = sand.u32 %s45, 1
        %s229 = smul.addr %s228, 128
        %s230 = scalar_lea.vmem [#allocation3], %s229
        %p231 = pneg %p58
        %p232 = pneg %p55
        %p233 = pneg %p79
        %p234 = pneg %p76
        %p235 = pneg %p100
        %p236 = pneg %p97
        %p237 = pneg %p126
        %p238 = pneg %p123
        %s239 = smul.u32 16, %s16
        %p240 = scmp.lt.s32.totalorder %s239, 63
        %s241 = scalar_select %p240, %s239, 63
        %s242 = smul.addr %s241, 8
        %s243 = scalar_lea.vmem %s4, %s242
        %s244 = smul.u32 16, %s16
        %s245 = smul.u32 16, %s16
        %p246 = scmp.lt.s32.totalorder %s245, 63
        %s247 = scalar_select %p246, %s245, 63
        %s248 = smul.addr %s247, 8
        %s249 = scalar_lea.vmem %s4, %s248
        %s250 = smul.u32 16, %s16
        %v252 = vld [vmem:[%s0] sm:$0xf]
        %v253 = vld [vmem:[%s221] sm:$0xff]
        %v254 = vld [vmem:[%s221 + $0x8] sm:$0xff]
        %v255 = vld [vmem:[%s221 + $0x10] sm:$0xff]
        %v256 = vld [vmem:[%s221 + $0x18] sm:$0xff]
        %v257 = vld [vmem:[%s221 + $0x20] sm:$0xff]
        %v258 = vld [vmem:[%s221 + $0x28] sm:$0xff]
        %v259 = vld [vmem:[%s221 + $0x30] sm:$0xff]
        %v260 = vld [vmem:[%s221 + $0x38] sm:$0xff]
        %v261 = vld [vmem:[%s221 + $0x40] sm:$0xff]
        %v262 = vld [vmem:[%s221 + $0x48] sm:$0xff]
        %v263 = vld [vmem:[%s221 + $0x50] sm:$0xff]
        %v264 = vld [vmem:[%s221 + $0x58] sm:$0xff]
        %v265 = vld [vmem:[%s221 + $0x60] sm:$0xff]
        %v266 = vld [vmem:[%s221 + $0x68] sm:$0xff]
        %v267 = vld [vmem:[%s221 + $0x70] sm:$0xff]
        %v268 = vld [vmem:[%s221 + $0x78] sm:$0xff]
        %v269 = vld [vmem:[%s2] sm:$0xff]
        %271 = vset.pattern.permute.xlu0 0
        %272 = vperm.xlu0 %271, %v269
        %v273 = vpop.permute.xlu0 %272
        %v291 = vunpack.c.l.b16 %v253
        %v292 = vunpack.c.h.b16 %v253
        %v293 = vunpack.c.l.b16 %v254
        %v294 = vunpack.c.h.b16 %v254
        %v295 = vunpack.c.l.b16 %v255
        %v296 = vunpack.c.h.b16 %v255
        %v297 = vunpack.c.l.b16 %v256
        %v298 = vunpack.c.h.b16 %v256
        %v299 = vunpack.c.l.b16 %v257
        %v300 = vunpack.c.h.b16 %v257
        %v301 = vunpack.c.l.b16 %v258
        %v302 = vunpack.c.h.b16 %v258
        %v303 = vunpack.c.l.b16 %v259
        %v304 = vunpack.c.h.b16 %v259
        %v305 = vunpack.c.l.b16 %v260
        %v306 = vunpack.c.h.b16 %v260
        %v307 = vunpack.c.l.b16 %v261
        %v308 = vunpack.c.h.b16 %v261
        %v309 = vunpack.c.l.b16 %v262
        %v310 = vunpack.c.h.b16 %v262
        %v311 = vunpack.c.l.b16 %v263
        %v312 = vunpack.c.h.b16 %v263
        %v313 = vunpack.c.l.b16 %v264
        %v314 = vunpack.c.h.b16 %v264
        %v315 = vunpack.c.l.b16 %v265
        %v316 = vunpack.c.h.b16 %v265
        %v317 = vunpack.c.l.b16 %v266
        %v318 = vunpack.c.h.b16 %v266
        %v319 = vunpack.c.l.b16 %v267
        %v320 = vunpack.c.h.b16 %v267
        %v321 = vunpack.c.l.b16 %v268
        %v322 = vunpack.c.h.b16 %v268
        %v323 = vpack.c.b16 %v307, %v291
        %v324 = vpack.c.b16 %v308, %v292
        %v325 = vpack.c.b16 %v309, %v293
        %v326 = vpack.c.b16 %v310, %v294
        %v327 = vpack.c.b16 %v311, %v295
        %v328 = vpack.c.b16 %v312, %v296
        %v329 = vpack.c.b16 %v313, %v297
        %v330 = vpack.c.b16 %v314, %v298
        %v331 = vpack.c.b16 %v315, %v299
        %v332 = vpack.c.b16 %v316, %v300
        %v333 = vpack.c.b16 %v317, %v301
        %v334 = vpack.c.b16 %v318, %v302
        %v335 = vpack.c.b16 %v319, %v303
        %v336 = vpack.c.b16 %v320, %v304
        %v337 = vpack.c.b16 %v321, %v305
        %v338 = vpack.c.b16 %v322, %v306
        %vm355 = vcmask 130048
        %v357 = vsel %vm355, %v252, 0
        %359 = vmatprep.subr.bf16.mxu0 %v324
        %360 = vmatpush1.bf16.msra.mxu0 %v323
        %361 = vmatprep.subr.bf16.mxu0 0
        %362 = vmatpush1.bf16.msra.mxu0 0
        %363 = vmatprep.subr.bf16.mxu0 0
        %364 = vmatpush1.bf16.msra.mxu0 0
        %365 = vmatprep.subr.bf16.mxu0 0
        %366 = vmatpush1.bf16.msra.mxu0 0
        %367 = vmatprep.subr.bf16.mxu0 0
        %368 = vmatpush1.bf16.msra.mxu0 0
        %369 = vmatprep.subr.bf16.mxu0 0
        %370 = vmatpush1.bf16.msra.mxu0 0
        %371 = vmatprep.subr.bf16.mxu0 0
        %372 = vmatpush1.bf16.msra.mxu0 0
        %373 = vmatprep.subr.bf16.mxu0 0
        %374 = vmatpush1.bf16.msra.mxu0 0
        %375 = vmatprep.subr.bf16.mxu0 0
        %376 = vmatpush1.bf16.msra.mxu0 0
        %377 = vmatprep.subr.bf16.mxu0 0
        %378 = vmatpush1.bf16.msra.mxu0 0
        %379 = vmatprep.subr.bf16.mxu0 0
        %380 = vmatpush1.bf16.msra.mxu0 0
        %381 = vmatprep.subr.bf16.mxu0 0
        %382 = vmatpush1.bf16.msra.mxu0 0
        %383 = vmatprep.subr.bf16.mxu0 0
        %384 = vmatpush1.bf16.msra.mxu0 0
        %385 = vmatprep.subr.bf16.mxu0 0
        %386 = vmatpush1.bf16.msra.mxu0 0
        %387 = vmatprep.subr.bf16.mxu0 0
        %388 = vmatpush1.bf16.msra.mxu0 0
        %389 = vmatprep.subr.bf16.mxu0 0
        %390 = vmatpush1.bf16.msra.mxu0 0
        %391 = vmatprep.mubr.bf16.mxu0 0
        %392 = vmatmul.mubr.bf16.gmra.mrb[0].mxu0 %v357
        %v393 = vpop.f32.mrb[0].mxu0
        %v394 = vadd.f32 %v273, %v393
        %v395 = vpop.f32.mrb[0].mxu0
        %v396 = vadd.f32 %v273, %v395
        %v397 = vpop.f32.mrb[0].mxu0
        %v398 = vpop.f32.mrb[0].mxu0
        %399 = vdwg.mxu0
        %400 = vmatprep.subr.bf16.mxu0 %v326
        %401 = vmatpush1.bf16.msra.mxu0 %v325
        %402 = vmatprep.subr.bf16.mxu0 0
        %403 = vmatpush1.bf16.msra.mxu0 0
        %404 = vmatprep.subr.bf16.mxu0 0
        %405 = vmatpush1.bf16.msra.mxu0 0
        %406 = vmatprep.subr.bf16.mxu0 0
        %407 = vmatpush1.bf16.msra.mxu0 0
        %408 = vmatprep.subr.bf16.mxu0 0
        %409 = vmatpush1.bf16.msra.mxu0 0
        %410 = vmatprep.subr.bf16.mxu0 0
        %411 = vmatpush1.bf16.msra.mxu0 0
        %412 = vmatprep.subr.bf16.mxu0 0
        %413 = vmatpush1.bf16.msra.mxu0 0
        %414 = vmatprep.subr.bf16.mxu0 0
        %415 = vmatpush1.bf16.msra.mxu0 0
        %416 = vmatprep.subr.bf16.mxu0 0
        %417 = vmatpush1.bf16.msra.mxu0 0
        %418 = vmatprep.subr.bf16.mxu0 0
        %419 = vmatpush1.bf16.msra.mxu0 0
        %420 = vmatprep.subr.bf16.mxu0 0
        %421 = vmatpush1.bf16.msra.mxu0 0
        %422 = vmatprep.subr.bf16.mxu0 0
        %423 = vmatpush1.bf16.msra.mxu0 0
        %424 = vmatprep.subr.bf16.mxu0 0
        %425 = vmatpush1.bf16.msra.mxu0 0
        %426 = vmatprep.subr.bf16.mxu0 0
        %427 = vmatpush1.bf16.msra.mxu0 0
        %428 = vmatprep.subr.bf16.mxu0 0
        %429 = vmatpush1.bf16.msra.mxu0 0
        %430 = vmatprep.subr.bf16.mxu0 0
        %431 = vmatpush1.bf16.msra.mxu0 0
        %432 = vmatprep.mubr.bf16.mxu0 0
        %433 = vmatmul.mubr.bf16.gmra.mrb[0].mxu0 %v357
        %v434 = vpop.f32.mrb[0].mxu0
        %v435 = vadd.f32 %v273, %v434
        %v436 = vpop.f32.mrb[0].mxu0
        %v437 = vadd.f32 %v273, %v436
        %v438 = vpop.f32.mrb[0].mxu0
        %v439 = vpop.f32.mrb[0].mxu0
        %440 = vdwg.mxu0
        %441 = vmatprep.subr.bf16.mxu0 %v328
        %442 = vmatpush1.bf16.msra.mxu0 %v327
        %443 = vmatprep.subr.bf16.mxu0 0
        %444 = vmatpush1.bf16.msra.mxu0 0
        %445 = vmatprep.subr.bf16.mxu0 0
        %446 = vmatpush1.bf16.msra.mxu0 0
        %447 = vmatprep.subr.bf16.mxu0 0
        %448 = vmatpush1.bf16.msra.mxu0 0
        %449 = vmatprep.subr.bf16.mxu0 0
        %450 = vmatpush1.bf16.msra.mxu0 0
        %451 = vmatprep.subr.bf16.mxu0 0
        %452 = vmatpush1.bf16.msra.mxu0 0
        %453 = vmatprep.subr.bf16.mxu0 0
        %454 = vmatpush1.bf16.msra.mxu0 0
        %455 = vmatprep.subr.bf16.mxu0 0
        %456 = vmatpush1.bf16.msra.mxu0 0
        %457 = vmatprep.subr.bf16.mxu0 0
        %458 = vmatpush1.bf16.msra.mxu0 0
        %459 = vmatprep.subr.bf16.mxu0 0
        %460 = vmatpush1.bf16.msra.mxu0 0
        %461 = vmatprep.subr.bf16.mxu0 0
        %462 = vmatpush1.bf16.msra.mxu0 0
        %463 = vmatprep.subr.bf16.mxu0 0
        %464 = vmatpush1.bf16.msra.mxu0 0
        %465 = vmatprep.subr.bf16.mxu0 0
        %466 = vmatpush1.bf16.msra.mxu0 0
        %467 = vmatprep.subr.bf16.mxu0 0
        %468 = vmatpush1.bf16.msra.mxu0 0
        %469 = vmatprep.subr.bf16.mxu0 0
        %470 = vmatpush1.bf16.msra.mxu0 0
        %471 = vmatprep.subr.bf16.mxu0 0
        %472 = vmatpush1.bf16.msra.mxu0 0
        %473 = vmatprep.mubr.bf16.mxu0 0
        %474 = vmatmul.mubr.bf16.gmra.mrb[0].mxu0 %v357
        %v475 = vpop.f32.mrb[0].mxu0
        %v476 = vadd.f32 %v273, %v475
        %v477 = vpop.f32.mrb[0].mxu0
        %v478 = vadd.f32 %v273, %v477
        %v479 = vpop.f32.mrb[0].mxu0
        %v480 = vpop.f32.mrb[0].mxu0
        %481 = vdwg.mxu0
        %482 = vmatprep.subr.bf16.mxu0 %v330
        %483 = vmatpush1.bf16.msra.mxu0 %v329
        %484 = vmatprep.subr.bf16.mxu0 0
        %485 = vmatpush1.bf16.msra.mxu0 0
        %486 = vmatprep.subr.bf16.mxu0 0
        %487 = vmatpush1.bf16.msra.mxu0 0
        %488 = vmatprep.subr.bf16.mxu0 0
        %489 = vmatpush1.bf16.msra.mxu0 0
        %490 = vmatprep.subr.bf16.mxu0 0
        %491 = vmatpush1.bf16.msra.mxu0 0
        %492 = vmatprep.subr.bf16.mxu0 0
        %493 = vmatpush1.bf16.msra.mxu0 0
        %494 = vmatprep.subr.bf16.mxu0 0
        %495 = vmatpush1.bf16.msra.mxu0 0
        %496 = vmatprep.subr.bf16.mxu0 0
        %497 = vmatpush1.bf16.msra.mxu0 0
        %498 = vmatprep.subr.bf16.mxu0 0
        %499 = vmatpush1.bf16.msra.mxu0 0
        %500 = vmatprep.subr.bf16.mxu0 0
        %501 = vmatpush1.bf16.msra.mxu0 0
        %502 = vmatprep.subr.bf16.mxu0 0
        %503 = vmatpush1.bf16.msra.mxu0 0
        %504 = vmatprep.subr.bf16.mxu0 0
        %505 = vmatpush1.bf16.msra.mxu0 0
        %506 = vmatprep.subr.bf16.mxu0 0
        %507 = vmatpush1.bf16.msra.mxu0 0
        %508 = vmatprep.subr.bf16.mxu0 0
        %509 = vmatpush1.bf16.msra.mxu0 0
        %510 = vmatprep.subr.bf16.mxu0 0
        %511 = vmatpush1.bf16.msra.mxu0 0
        %512 = vmatprep.subr.bf16.mxu0 0
        %513 = vmatpush1.bf16.msra.mxu0 0
        %514 = vmatprep.mubr.bf16.mxu0 0
        %515 = vmatmul.mubr.bf16.gmra.mrb[0].mxu0 %v357
        %v516 = vpop.f32.mrb[0].mxu0
        %v517 = vadd.f32 %v273, %v516
        %v518 = vpop.f32.mrb[0].mxu0
        %v519 = vadd.f32 %v273, %v518
        %v520 = vpop.f32.mrb[0].mxu0
        %v521 = vpop.f32.mrb[0].mxu0
        %522 = vdwg.mxu0
        %523 = vmatprep.subr.bf16.mxu0 %v332
        %524 = vmatpush1.bf16.msra.mxu0 %v331
        %525 = vmatprep.subr.bf16.mxu0 0
        %526 = vmatpush1.bf16.msra.mxu0 0
        %527 = vmatprep.subr.bf16.mxu0 0
        %528 = vmatpush1.bf16.msra.mxu0 0
        %529 = vmatprep.subr.bf16.mxu0 0
        %530 = vmatpush1.bf16.msra.mxu0 0
        %531 = vmatprep.subr.bf16.mxu0 0
        %532 = vmatpush1.bf16.msra.mxu0 0
        %533 = vmatprep.subr.bf16.mxu0 0
        %534 = vmatpush1.bf16.msra.mxu0 0
        %535 = vmatprep.subr.bf16.mxu0 0
        %536 = vmatpush1.bf16.msra.mxu0 0
        %537 = vmatprep.subr.bf16.mxu0 0
        %538 = vmatpush1.bf16.msra.mxu0 0
        %539 = vmatprep.subr.bf16.mxu0 0
        %540 = vmatpush1.bf16.msra.mxu0 0
        %541 = vmatprep.subr.bf16.mxu0 0
        %542 = vmatpush1.bf16.msra.mxu0 0
        %543 = vmatprep.subr.bf16.mxu0 0
        %544 = vmatpush1.bf16.msra.mxu0 0
        %545 = vmatprep.subr.bf16.mxu0 0
        %546 = vmatpush1.bf16.msra.mxu0 0
        %547 = vmatprep.subr.bf16.mxu0 0
        %548 = vmatpush1.bf16.msra.mxu0 0
        %549 = vmatprep.subr.bf16.mxu0 0
        %550 = vmatpush1.bf16.msra.mxu0 0
        %551 = vmatprep.subr.bf16.mxu0 0
        %552 = vmatpush1.bf16.msra.mxu0 0
        %553 = vmatprep.subr.bf16.mxu0 0
        %554 = vmatpush1.bf16.msra.mxu0 0
        %555 = vmatprep.mubr.bf16.mxu0 0
        %556 = vmatmul.mubr.bf16.gmra.mrb[0].mxu0 %v357
        %v557 = vpop.f32.mrb[0].mxu0
        %v558 = vadd.f32 %v273, %v557
        %v559 = vpop.f32.mrb[0].mxu0
        %v560 = vadd.f32 %v273, %v559
        %v561 = vpop.f32.mrb[0].mxu0
        %v562 = vpop.f32.mrb[0].mxu0
        %563 = vdwg.mxu0
        %564 = vmatprep.subr.bf16.mxu0 %v334
        %565 = vmatpush1.bf16.msra.mxu0 %v333
        %566 = vmatprep.subr.bf16.mxu0 0
        %567 = vmatpush1.bf16.msra.mxu0 0
        %568 = vmatprep.subr.bf16.mxu0 0
        %569 = vmatpush1.bf16.msra.mxu0 0
        %570 = vmatprep.subr.bf16.mxu0 0
        %571 = vmatpush1.bf16.msra.mxu0 0
        %572 = vmatprep.subr.bf16.mxu0 0
        %573 = vmatpush1.bf16.msra.mxu0 0
        %574 = vmatprep.subr.bf16.mxu0 0
        %575 = vmatpush1.bf16.msra.mxu0 0
        %576 = vmatprep.subr.bf16.mxu0 0
        %577 = vmatpush1.bf16.msra.mxu0 0
        %578 = vmatprep.subr.bf16.mxu0 0
        %579 = vmatpush1.bf16.msra.mxu0 0
        %580 = vmatprep.subr.bf16.mxu0 0
        %581 = vmatpush1.bf16.msra.mxu0 0
        %582 = vmatprep.subr.bf16.mxu0 0
        %583 = vmatpush1.bf16.msra.mxu0 0
        %584 = vmatprep.subr.bf16.mxu0 0
        %585 = vmatpush1.bf16.msra.mxu0 0
        %586 = vmatprep.subr.bf16.mxu0 0
        %587 = vmatpush1.bf16.msra.mxu0 0
        %588 = vmatprep.subr.bf16.mxu0 0
        %589 = vmatpush1.bf16.msra.mxu0 0
        %590 = vmatprep.subr.bf16.mxu0 0
        %591 = vmatpush1.bf16.msra.mxu0 0
        %592 = vmatprep.subr.bf16.mxu0 0
        %593 = vmatpush1.bf16.msra.mxu0 0
        %594 = vmatprep.subr.bf16.mxu0 0
        %595 = vmatpush1.bf16.msra.mxu0 0
        %596 = vmatprep.mubr.bf16.mxu0 0
        %597 = vmatmul.mubr.bf16.gmra.mrb[0].mxu0 %v357
        %v598 = vpop.f32.mrb[0].mxu0
        %v599 = vadd.f32 %v273, %v598
        %v600 = vpop.f32.mrb[0].mxu0
        %v601 = vadd.f32 %v273, %v600
        %v602 = vpop.f32.mrb[0].mxu0
        %v603 = vpop.f32.mrb[0].mxu0
        %604 = vdwg.mxu0
        %605 = vmatprep.subr.bf16.mxu0 %v336
        %606 = vmatpush1.bf16.msra.mxu0 %v335
        %607 = vmatprep.subr.bf16.mxu0 0
        %608 = vmatpush1.bf16.msra.mxu0 0
        %609 = vmatprep.subr.bf16.mxu0 0
        %610 = vmatpush1.bf16.msra.mxu0 0
        %611 = vmatprep.subr.bf16.mxu0 0
        %612 = vmatpush1.bf16.msra.mxu0 0
        %613 = vmatprep.subr.bf16.mxu0 0
        %614 = vmatpush1.bf16.msra.mxu0 0
        %615 = vmatprep.subr.bf16.mxu0 0
        %616 = vmatpush1.bf16.msra.mxu0 0
        %617 = vmatprep.subr.bf16.mxu0 0
        %618 = vmatpush1.bf16.msra.mxu0 0
        %619 = vmatprep.subr.bf16.mxu0 0
        %620 = vmatpush1.bf16.msra.mxu0 0
        %621 = vmatprep.subr.bf16.mxu0 0
        %622 = vmatpush1.bf16.msra.mxu0 0
        %623 = vmatprep.subr.bf16.mxu0 0
        %624 = vmatpush1.bf16.msra.mxu0 0
        %625 = vmatprep.subr.bf16.mxu0 0
        %626 = vmatpush1.bf16.msra.mxu0 0
        %627 = vmatprep.subr.bf16.mxu0 0
        %628 = vmatpush1.bf16.msra.mxu0 0
        %629 = vmatprep.subr.bf16.mxu0 0
        %630 = vmatpush1.bf16.msra.mxu0 0
        %631 = vmatprep.subr.bf16.mxu0 0
        %632 = vmatpush1.bf16.msra.mxu0 0
        %633 = vmatprep.subr.bf16.mxu0 0
        %634 = vmatpush1.bf16.msra.mxu0 0
        %635 = vmatprep.subr.bf16.mxu0 0
        %636 = vmatpush1.bf16.msra.mxu0 0
        %637 = vmatprep.mubr.bf16.mxu0 0
        %638 = vmatmul.mubr.bf16.gmra.mrb[0].mxu0 %v357
        %v639 = vpop.f32.mrb[0].mxu0
        %v640 = vadd.f32 %v273, %v639
        %v641 = vpop.f32.mrb[0].mxu0
        %v642 = vadd.f32 %v273, %v641
        %v643 = vpop.f32.mrb[0].mxu0
        %v644 = vpop.f32.mrb[0].mxu0
        %645 = vdwg.mxu0
        %646 = vmatprep.subr.bf16.mxu0 %v338
        %647 = vmatpush1.bf16.msra.mxu0 %v337
        %648 = vmatprep.subr.bf16.mxu0 0
        %649 = vmatpush1.bf16.msra.mxu0 0
        %650 = vmatprep.subr.bf16.mxu0 0
        %651 = vmatpush1.bf16.msra.mxu0 0
        %652 = vmatprep.subr.bf16.mxu0 0
        %653 = vmatpush1.bf16.msra.mxu0 0
        %654 = vmatprep.subr.bf16.mxu0 0
        %655 = vmatpush1.bf16.msra.mxu0 0
        %656 = vmatprep.subr.bf16.mxu0 0
        %657 = vmatpush1.bf16.msra.mxu0 0
        %658 = vmatprep.subr.bf16.mxu0 0
        %659 = vmatpush1.bf16.msra.mxu0 0
        %660 = vmatprep.subr.bf16.mxu0 0
        %661 = vmatpush1.bf16.msra.mxu0 0
        %662 = vmatprep.subr.bf16.mxu0 0
        %663 = vmatpush1.bf16.msra.mxu0 0
        %664 = vmatprep.subr.bf16.mxu0 0
        %665 = vmatpush1.bf16.msra.mxu0 0
        %666 = vmatprep.subr.bf16.mxu0 0
        %667 = vmatpush1.bf16.msra.mxu0 0
        %668 = vmatprep.subr.bf16.mxu0 0
        %669 = vmatpush1.bf16.msra.mxu0 0
        %670 = vmatprep.subr.bf16.mxu0 0
        %671 = vmatpush1.bf16.msra.mxu0 0
        %672 = vmatprep.subr.bf16.mxu0 0
        %673 = vmatpush1.bf16.msra.mxu0 0
        %674 = vmatprep.subr.bf16.mxu0 0
        %675 = vmatpush1.bf16.msra.mxu0 0
        %676 = vmatprep.subr.bf16.mxu0 0
        %677 = vmatpush1.bf16.msra.mxu0 0
        %678 = vmatprep.mubr.bf16.mxu0 0
        %679 = vmatmul.mubr.bf16.gmra.mrb[0].mxu0 %v357
        %v680 = vpop.f32.mrb[0].mxu0
        %v681 = vadd.f32 %v273, %v680
        %v682 = vpop.f32.mrb[0].mxu0
        %v683 = vadd.f32 %v273, %v682
        %v684 = vpop.f32.mrb[0].mxu0
        %v685 = vpop.f32.mrb[0].mxu0
        %686 = vdwg.mxu0
        %s687 = sld [smem:[#allocation2]]
        %vm688 = vcmp.ge.f32.partialorder %v394, 0.0
        %vm689 = vcmp.ge.f32.partialorder %v396, 0.0
        %vm690 = vcmp.ge.f32.partialorder %v435, 0.0
        %vm691 = vcmp.ge.f32.partialorder %v437, 0.0
        %vm692 = vcmp.ge.f32.partialorder %v476, 0.0
        %vm693 = vcmp.ge.f32.partialorder %v478, 0.0
        %vm694 = vcmp.ge.f32.partialorder %v517, 0.0
        %vm695 = vcmp.ge.f32.partialorder %v519, 0.0
        %vm696 = vcmp.ge.f32.partialorder %v558, 0.0
        %vm697 = vcmp.ge.f32.partialorder %v560, 0.0
        %vm698 = vcmp.ge.f32.partialorder %v599, 0.0
        %vm699 = vcmp.ge.f32.partialorder %v601, 0.0
        %vm700 = vcmp.ge.f32.partialorder %v640, 0.0
        %vm701 = vcmp.ge.f32.partialorder %v642, 0.0
        %vm702 = vcmp.ge.f32.partialorder %v681, 0.0
        %vm703 = vcmp.ge.f32.partialorder %v683, 0.0
        %v704 = vstv %s687
        %v705 = vmul.f32 %v704, %v394
        %v706 = vmul.f32 %v704, %v396
        %v707 = vmul.f32 %v704, %v435
        %v708 = vmul.f32 %v704, %v437
        %v709 = vmul.f32 %v704, %v476
        %v710 = vmul.f32 %v704, %v478
        %v711 = vmul.f32 %v704, %v517
        %v712 = vmul.f32 %v704, %v519
        %v713 = vmul.f32 %v704, %v558
        %v714 = vmul.f32 %v704, %v560
        %v715 = vmul.f32 %v704, %v599
        %v716 = vmul.f32 %v704, %v601
        %v717 = vmul.f32 %v704, %v640
        %v718 = vmul.f32 %v704, %v642
        %v719 = vmul.f32 %v704, %v681
        %v720 = vmul.f32 %v704, %v683
        %v721 = vsel %vm688, %v394, %v705
        %v722 = vsel %vm689, %v396, %v706
        %v723 = vsel %vm690, %v435, %v707
        %v724 = vsel %vm691, %v437, %v708
        %v725 = vsel %vm692, %v476, %v709
        %v726 = vsel %vm693, %v478, %v710
        %v727 = vsel %vm694, %v517, %v711
        %v728 = vsel %vm695, %v519, %v712
        %v729 = vsel %vm696, %v558, %v713
        %v730 = vsel %vm697, %v560, %v714
        %v731 = vsel %vm698, %v599, %v715
        %v732 = vsel %vm699, %v601, %v716
        %v733 = vsel %vm700, %v640, %v717
        %v734 = vsel %vm701, %v642, %v718
        %v735 = vsel %vm702, %v681, %v719
        %v736 = vsel %vm703, %v683, %v720
        %737 = vst [vmem:[%s249] sm:$0xff] %v721
        %738 = vst [vmem:[%s249 + $0x8] sm:$0xff] %v722
        %739 = vst [vmem:[%s249 + $0x10] sm:$0xff] %v723
        %740 = vst [vmem:[%s249 + $0x18] sm:$0xff] %v724
        %741 = vst [vmem:[%s249 + $0x20] sm:$0xff] %v725
        %742 = vst [vmem:[%s249 + $0x28] sm:$0xff] %v726
        %743 = vst [vmem:[%s249 + $0x30] sm:$0xff] %v727
        %744 = vst [vmem:[%s249 + $0x38] sm:$0xff] %v728
        %745 = vst [vmem:[%s249 + $0x40] sm:$0xff] %v729
        %746 = vst [vmem:[%s249 + $0x48] sm:$0xff] %v730
        %747 = vst [vmem:[%s249 + $0x50] sm:$0xff] %v731
        %748 = vst [vmem:[%s249 + $0x58] sm:$0xff] %v732
        %749 = vst [vmem:[%s249 + $0x60] sm:$0xff] %v733
        %750 = vst [vmem:[%s249 + $0x68] sm:$0xff] %v734
        %751 = vst [vmem:[%s249 + $0x70] sm:$0xff] %v735
        %752 = vst [vmem:[%s249 + $0x78] sm:$0xff] %v736
        %s753 = smul.u32 16, %s16
        %p754 = scmp.lt.s32.totalorder %s753, 63
        %s755 = scalar_select %p754, %s753, 63
        %s756 = smul.addr %s755, 8
        %s757 = scalar_lea.vmem %s4, %s756
        // Predicated region
        $region60: #{srfbn_hg_forward.39} parent=54 // pred_check
          %p758 = pneg %p123
        $region61: #{srfbn_hg_forward.39} parent=54 // pred_check_branch
          %760 = sbr.rel (%p758) target = $region63
        $region62: #{srfbn_hg_forward.39} parent=54 // pred_region
          %s761 = smul.u32 16, %s16
        $region63: #{srfbn_hg_forward.39} parent=54 // pred_fallthru
          _
      $region55: #{srfbn_hg_forward.39} parent=5 // pred_fallthru
        _
      %p762 = scmp.le.s32.totalorder 2, %s11
      // Predicated region
      $region64: #{srfbn_hg_forward.39} parent=5 // pred_check
        %p763 = pneg %p762
      $region65: #{srfbn_hg_forward.39} parent=5 // pred_check_branch
        %765 = sbr.rel (%p763) target = $region67
      $region66: #{srfbn_hg_forward.39} parent=5 // pred_region
        %s766 = ssub.s32 %s11, 2
        // Predicated region
        $region68: #{srfbn_hg_forward.39} parent=66 // pred_check
          %p767 = pneg %p129
        $region69: #{srfbn_hg_forward.39} parent=66 // pred_check_branch
          %769 = sbr.rel (%p767) target = $region71
        $region70: #{srfbn_hg_forward.39} parent=66 // pred_region
          %s770 = smul.u32 16, %s17
          %p771 = scmp.lt.s32.totalorder %s770, 63
          %s772 = scalar_select %p771, %s770, 63
          %s773 = smul.addr %s772, 8
          %s774 = scalar_lea.vmem %s4, %s773
        $region71: #{srfbn_hg_forward.39} parent=66 // pred_fallthru
          _
      $region67: #{srfbn_hg_forward.39} parent=5 // pred_fallthru
        _
    $region6: #{srfbn_hg_forward.39} parent=1 // loop_footer
      %s15 = sadd.s32 1, %s11
    $region7: #{srfbn_hg_forward.39} parent=1 // loop_footer_branch
      %10 = sbr.rel target = $region3
    $region8: #{srfbn_hg_forward.39} parent=1 // loop_exit
      _

// kernel: srfbn_hg_forward.43
$region0: #{srfbn_hg_forward.43}
  #allocation0 [shape = 'u32[]', space=smem, size = 0x4, offset = 0x4, fixed_abs, tag = 'smem constant byte address 0x4 - core index']
  #allocation1 [shape = 'u32[144,128]{1,0:T(1,128)}', space=vmem, size = 0x12000, scoped, tag = 'internal scratch']
  #allocation2 [shape = 'f32[1]{0:T(128)S(6)}', space=smem, size = 0x200, scoped, tag = 'scoped memory for srfbn_hg_forward.43']
  %s0 = inlined_call_operand.vmem [shape: bf16[3,72], index: 0, kind: input, shape index: {}]
  %s1 = inlined_call_operand.vmem [shape: bf16[72,8192], index: 1, kind: input, shape index: {}]
  %s2 = inlined_call_operand.vmem [shape: f32[3,1], index: 2, kind: input, shape index: {}]
  %s3 = inlined_call_operand.<no memory space> [shape: f32[1], index: 3, kind: input, shape index: {}]
  %s4 = inlined_call_operand.vmem [shape: f32[3,8192], index: 4, kind: output, shape index: {}]
  %s5 = sld [smem:[#allocation0]]
  $region72: #{srfbn_hg_forward.43} parent=0
    _
  %s7 = ssub.s32 1, %s5
  %s8 = scalar_select 0, %s7, %s5
  %9 = sst [smem:[#allocation2]] %s3
  $region1: #{srfbn_hg_forward.43} parent=0
    #allocation3 [shape = 'u8[589824]{0}', space=vmem, size = 0x90000, scoped, tag = 'input window, operand 1']
    loop: start=0, step=1, limit=6
    $region2: #{srfbn_hg_forward.43} parent=1 // loop_pre_header
      _
    $region3: #{srfbn_hg_forward.43} parent=1 // loop_header
      %s11 = sphi 0, %s15
      %p12 = scmp.ge.s32.totalorder %s11, 6
      %s19 = sphi 0, %s19
      %s21 = sphi 0, %s19
      %s22 = sphi 0, %s21
      %s36 = sphi 0, %s22
      %s42 = sphi 0, %s44
      %s45 = sphi 0, %s42
      %s46 = sphi 0, %s45
      %s62 = sphi 0, %s46
      %s66 = sphi 0, %s66
      %s68 = sphi 0, %s66
      %s69 = sphi 0, %s68
      %s83 = sphi 0, %s69
      %s87 = sphi 0, %s87
      %s89 = sphi 0, %s87
      %s90 = sphi 0, %s89
      %s104 = sphi 0, %s90
      %s110 = sphi 0, %s112
      %s113 = sphi 0, %s110
      %s114 = sphi 0, %s113
      %s130 = sphi 0, %s114
    $region4: #{srfbn_hg_forward.43} parent=1 // loop_header_branch
      %14 = sbr.rel (%p12) target = $region8
    $region5: #{srfbn_hg_forward.43} parent=1 // loop_body
      %s16 = ssub.s32 %s11, 1
      %s17 = ssub.s32 %s11, 2
      %s18 = sadd.s32 %s11, 1
      %s20 = sadd.s32 %s19, 1
      %p23 = scmp.eq.s32.totalorder %s11, 3
      %p24 = scmp.ne.s32.totalorder %s19, %s21
      %p25 = scmp.eq.s32.totalorder %s11, 0
      %p26 = por %p24, %p25
      %p27 = scmp.ne.s32.totalorder %s19, %s21
      %p28 = scmp.eq.s32.totalorder %s16, 3
      %p29 = por %p27, %p28
      %p30 = scmp.ne.s32.totalorder %s21, %s22
      %p31 = scmp.eq.s32.totalorder %s16, 0
      %p32 = por %p30, %p31
      %p33 = scmp.ne.s32.totalorder %s21, %s22
      %p34 = scmp.eq.s32.totalorder %s17, 3
      %p35 = por %p33, %p34
      %p37 = scmp.ne.s32.totalorder %s22, %s36
      %p38 = scmp.eq.s32.totalorder %s17, 0
      %p39 = por %p37, %p38
      %s40 = ssub.s32 %s11, %s18
      %p41 = scmp.eq.s32.totalorder %s40, 0
      %s43 = sadd.s32 %s42, 1
      %s44 = scalar_select %p41, %s42, %s43
      %p47 = pneg %p41
      %p48 = scmp.eq.s32.totalorder %s11, 3
      %p49 = por %p47, %p48
      %p50 = scmp.ne.s32.totalorder %s42, %s45
      %p51 = scmp.eq.s32.totalorder %s11, 0
      %p52 = por %p50, %p51
      %p53 = scmp.ne.s32.totalorder %s42, %s45
      %p54 = scmp.eq.s32.totalorder %s16, 3
      %p55 = por %p53, %p54
      %p56 = scmp.ne.s32.totalorder %s45, %s46
      %p57 = scmp.eq.s32.totalorder %s16, 0
      %p58 = por %p56, %p57
      %p59 = scmp.ne.s32.totalorder %s45, %s46
      %p60 = scmp.eq.s32.totalorder %s17, 3
      %p61 = por %p59, %p60
      %p63 = scmp.ne.s32.totalorder %s46, %s62
      %p64 = scmp.eq.s32.totalorder %s17, 0
      %p65 = por %p63, %p64
      %s67 = sadd.s32 %s66, 1
      %p70 = scmp.eq.s32.totalorder %s11, 3
      %p71 = scmp.ne.s32.totalorder %s66, %s68
      %p72 = scmp.eq.s32.totalorder %s11, 0
      %p73 = por %p71, %p72
      %p74 = scmp.ne.s32.totalorder %s66, %s68
      %p75 = scmp.eq.s32.totalorder %s16, 3
      %p76 = por %p74, %p75
      %p77 = scmp.ne.s32.totalorder %s68, %s69
      %p78 = scmp.eq.s32.totalorder %s16, 0
      %p79 = por %p77, %p78
      %p80 = scmp.ne.s32.totalorder %s68, %s69
      %p81 = scmp.eq.s32.totalorder %s17, 3
      %p82 = por %p80, %p81
      %p84 = scmp.ne.s32.totalorder %s69, %s83
      %p85 = scmp.eq.s32.totalorder %s17, 0
      %p86 = por %p84, %p85
      %s88 = sadd.s32 %s87, 1
      %p91 = scmp.eq.s32.totalorder %s11, 3
      %p92 = scmp.ne.s32.totalorder %s87, %s89
      %p93 = scmp.eq.s32.totalorder %s11, 0
      %p94 = por %p92, %p93
      %p95 = scmp.ne.s32.totalorder %s87, %s89
      %p96 = scmp.eq.s32.totalorder %s16, 3
      %p97 = por %p95, %p96
      %p98 = scmp.ne.s32.totalorder %s89, %s90
      %p99 = scmp.eq.s32.totalorder %s16, 0
      %p100 = por %p98, %p99
      %p101 = scmp.ne.s32.totalorder %s89, %s90
      %p102 = scmp.eq.s32.totalorder %s17, 3
      %p103 = por %p101, %p102
      %p105 = scmp.ne.s32.totalorder %s90, %s104
      %p106 = scmp.eq.s32.totalorder %s17, 0
      %p107 = por %p105, %p106
      %s108 = ssub.s32 %s11, %s18
      %p109 = scmp.eq.s32.totalorder %s108, 0
      %s111 = sadd.s32 %s110, 1
      %s112 = scalar_select %p109, %s110, %s111
      %p115 = pneg %p109
      %p116 = scmp.eq.s32.totalorder %s11, 3
      %p117 = por %p115, %p116
      %p118 = scmp.ne.s32.totalorder %s110, %s113
      %p119 = scmp.eq.s32.totalorder %s11, 0
      %p120 = por %p118, %p119
      %p121 = scmp.ne.s32.totalorder %s110, %s113
      %p122 = scmp.eq.s32.totalorder %s16, 3
      %p123 = por %p121, %p122
      %p124 = scmp.ne.s32.totalorder %s113, %s114
      %p125 = scmp.eq.s32.totalorder %s16, 0
      %p126 = por %p124, %p125
      %p127 = scmp.ne.s32.totalorder %s113, %s114
      %p128 = scmp.eq.s32.totalorder %s17, 3
      %p129 = por %p127, %p128
      %p131 = scmp.ne.s32.totalorder %s114, %s130
      %p132 = scmp.eq.s32.totalorder %s17, 0
      %p133 = por %p131, %p132
      %p134 = scmp.le.s32.totalorder 1, %s11
      %p135 = scmp.lt.s32.totalorder %s11, 5
      %p136 = pnand %p134, %p135
      %p137 = pneg %p136
      // Predicated region
      $region9: #{srfbn_hg_forward.43} parent=5 // pred_check
        _
      $region10: #{srfbn_hg_forward.43} parent=5 // pred_check_branch
        %139 = sbr.rel (%p136) target = $region12
      $region11: #{srfbn_hg_forward.43} parent=5 // pred_region
        %s140 = ssub.s32 %s11, 1
        // Predicated region
        $region13: #{srfbn_hg_forward.43} parent=11 // pred_check
          %p141 = pneg %p32
        $region14: #{srfbn_hg_forward.43} parent=11 // pred_check_branch
          %143 = sbr.rel (%p141) target = $region16
        $region15: #{srfbn_hg_forward.43} parent=11 // pred_region
          _
        $region16: #{srfbn_hg_forward.43} parent=11 // pred_fallthru
          _
        // Predicated region
        $region17: #{srfbn_hg_forward.43} parent=11 // pred_check
          %p144 = pneg %p79
        $region18: #{srfbn_hg_forward.43} parent=11 // pred_check_branch
          %146 = sbr.rel (%p144) target = $region20
        $region19: #{srfbn_hg_forward.43} parent=11 // pred_region
          _
        $region20: #{srfbn_hg_forward.43} parent=11 // pred_fallthru
          _
        // Predicated region
        $region21: #{srfbn_hg_forward.43} parent=11 // pred_check
          %p147 = pneg %p100
        $region22: #{srfbn_hg_forward.43} parent=11 // pred_check_branch
          %149 = sbr.rel (%p147) target = $region24
        $region23: #{srfbn_hg_forward.43} parent=11 // pred_region
          _
        $region24: #{srfbn_hg_forward.43} parent=11 // pred_fallthru
          _
      $region12: #{srfbn_hg_forward.43} parent=5 // pred_fallthru
        _
      %p150 = scmp.lt.s32.totalorder %s11, 4
      // Predicated region
      $region25: #{srfbn_hg_forward.43} parent=5 // pred_check
        %p151 = pneg %p150
      $region26: #{srfbn_hg_forward.43} parent=5 // pred_check_branch
        %153 = sbr.rel (%p151) target = $region28
      $region27: #{srfbn_hg_forward.43} parent=5 // pred_region
        // Predicated region
        $region29: #{srfbn_hg_forward.43} parent=27 // pred_check
          %p154 = pneg %p52
        $region30: #{srfbn_hg_forward.43} parent=27 // pred_check_branch
          %156 = sbr.rel (%p154) target = $region32
        $region31: #{srfbn_hg_forward.43} parent=27 // pred_region
          %s157 = sand.u32 %s42, 1
          %s158 = sand.u32 %s42, 1
          %s159 = smul.addr %s158, 576
          %s160 = scalar_lea.vmem [#allocation3], %s159
          %s161 = smul.u32 16, %s11
          %s162 = smul.addr %s161, 4
          %s163 = scalar_lea.vmem %s1, %s162
          // Predicated region
          $region33: #{srfbn_hg_forward.43} parent=31 // pred_check
            _
          $region34: #{srfbn_hg_forward.43} parent=31 // pred_check_branch
            %165 = sbr.rel (0) target = $region36
          $region35: #{srfbn_hg_forward.43} parent=31 // pred_region
            // Predicated region
            $region37: #{srfbn_hg_forward.43} parent=35 // pred_check
              _
            $region38: #{srfbn_hg_forward.43} parent=35 // pred_check_branch
              %167 = sbr.rel (0) target = $region40
            $region39: #{srfbn_hg_forward.43} parent=35 // pred_region
              loop: start=0, step=1, limit=1
              $region41: #{srfbn_hg_forward.43} parent=39 // loop_pre_header
                _
              $region42: #{srfbn_hg_forward.43} parent=39 // loop_header
                %s169 = sphi 0, %s173
                %p170 = scmp.ge.s32.totalorder %s169, 1
                %s174 = sphi %s163, %s163
                %s175 = sphi %s160, %s160
              $region43: #{srfbn_hg_forward.43} parent=39 // loop_header_branch
                %172 = sbr.rel (%p170) target = $region47
              $region44: #{srfbn_hg_forward.43} parent=39 // loop_body
                %v176 = vld [vmem:[%s174] sm:$0xff]
                %177 = vst [vmem:[%s175] sm:$0xff] %v176
                %v178 = vld [vmem:[%s174 + $0x8] sm:$0xff]
                %179 = vst [vmem:[%s175 + $0x8] sm:$0xff] %v178
                %v180 = vld [vmem:[%s174 + $0x10] sm:$0xff]
                %181 = vst [vmem:[%s175 + $0x10] sm:$0xff] %v180
                %v182 = vld [vmem:[%s174 + $0x18] sm:$0xff]
                %183 = vst [vmem:[%s175 + $0x18] sm:$0xff] %v182
                %v184 = vld [vmem:[%s174 + $0x20] sm:$0xff]
                %185 = vst [vmem:[%s175 + $0x20] sm:$0xff] %v184
                %v186 = vld [vmem:[%s174 + $0x28] sm:$0xff]
                %187 = vst [vmem:[%s175 + $0x28] sm:$0xff] %v186
                %v188 = vld [vmem:[%s174 + $0x30] sm:$0xff]
                %189 = vst [vmem:[%s175 + $0x30] sm:$0xff] %v188
                %v190 = vld [vmem:[%s174 + $0x38] sm:$0xff]
                %191 = vst [vmem:[%s175 + $0x38] sm:$0xff] %v190
                %v192 = vld [vmem:[%s174 + $0x100] sm:$0xff]
                %193 = vst [vmem:[%s175 + $0x40] sm:$0xff] %v192
                %v194 = vld [vmem:[%s174 + $0x108] sm:$0xff]
                %195 = vst [vmem:[%s175 + $0x48] sm:$0xff] %v194
                %v196 = vld [vmem:[%s174 + $0x110] sm:$0xff]
                %197 = vst [vmem:[%s175 + $0x50] sm:$0xff] %v196
                %v198 = vld [vmem:[%s174 + $0x118] sm:$0xff]
                %199 = vst [vmem:[%s175 + $0x58] sm:$0xff] %v198
                %v200 = vld [vmem:[%s174 + $0x120] sm:$0xff]
                %201 = vst [vmem:[%s175 + $0x60] sm:$0xff] %v200
                %v202 = vld [vmem:[%s174 + $0x128] sm:$0xff]
                %203 = vst [vmem:[%s175 + $0x68] sm:$0xff] %v202
                %v204 = vld [vmem:[%s174 + $0x130] sm:$0xff]
                %205 = vst [vmem:[%s175 + $0x70] sm:$0xff] %v204
                %v206 = vld [vmem:[%s174 + $0x138] sm:$0xff]
                %207 = vst [vmem:[%s175 + $0x78] sm:$0xff] %v206
                %v208 = vld [vmem:[%s174 + $0x200] sm:$0xff]
                %209 = vst [vmem:[%s175 + $0x80] sm:$0xff] %v208
                %v210 = vld [vmem:[%s174 + $0x208] sm:$0xff]
                %211 = vst [vmem:[%s175 + $0x88] sm:$0xff] %v210
                %v212 = vld [vmem:[%s174 + $0x210] sm:$0xff]
                %213 = vst [vmem:[%s175 + $0x90] sm:$0xff] %v212
                %v214 = vld [vmem:[%s174 + $0x218] sm:$0xff]
                %215 = vst [vmem:[%s175 + $0x98] sm:$0xff] %v214
                %v216 = vld [vmem:[%s174 + $0x220] sm:$0xff]
                %217 = vst [vmem:[%s175 + $0xa0] sm:$0xff] %v216
                %v218 = vld [vmem:[%s174 + $0x228] sm:$0xff]
                %219 = vst [vmem:[%s175 + $0xa8] sm:$0xff] %v218
                %v220 = vld [vmem:[%s174 + $0x230] sm:$0xff]
                %221 = vst [vmem:[%s175 + $0xb0] sm:$0xff] %v220
                %v222 = vld [vmem:[%s174 + $0x238] sm:$0xff]
                %223 = vst [vmem:[%s175 + $0xb8] sm:$0xff] %v222
                %v224 = vld [vmem:[%s174 + $0x300] sm:$0xff]
                %225 = vst [vmem:[%s175 + $0xc0] sm:$0xff] %v224
                %v226 = vld [vmem:[%s174 + $0x308] sm:$0xff]
                %227 = vst [vmem:[%s175 + $0xc8] sm:$0xff] %v226
                %v228 = vld [vmem:[%s174 + $0x310] sm:$0xff]
                %229 = vst [vmem:[%s175 + $0xd0] sm:$0xff] %v228
                %v230 = vld [vmem:[%s174 + $0x318] sm:$0xff]
                %231 = vst [vmem:[%s175 + $0xd8] sm:$0xff] %v230
                %v232 = vld [vmem:[%s174 + $0x320] sm:$0xff]
                %233 = vst [vmem:[%s175 + $0xe0] sm:$0xff] %v232
                %v234 = vld [vmem:[%s174 + $0x328] sm:$0xff]
                %235 = vst [vmem:[%s175 + $0xe8] sm:$0xff] %v234
                %v236 = vld [vmem:[%s174 + $0x330] sm:$0xff]
                %237 = vst [vmem:[%s175 + $0xf0] sm:$0xff] %v236
                %v238 = vld [vmem:[%s174 + $0x338] sm:$0xff]
                %239 = vst [vmem:[%s175 + $0xf8] sm:$0xff] %v238
                %v240 = vld [vmem:[%s174 + $0x400] sm:$0xff]
                %241 = vst [vmem:[%s175 + $0x100] sm:$0xff] %v240
                %v242 = vld [vmem:[%s174 + $0x408] sm:$0xff]
                %243 = vst [vmem:[%s175 + $0x108] sm:$0xff] %v242
                %v244 = vld [vmem:[%s174 + $0x410] sm:$0xff]
                %245 = vst [vmem:[%s175 + $0x110] sm:$0xff] %v244
                %v246 = vld [vmem:[%s174 + $0x418] sm:$0xff]
                %247 = vst [vmem:[%s175 + $0x118] sm:$0xff] %v246
                %v248 = vld [vmem:[%s174 + $0x420] sm:$0xff]
                %249 = vst [vmem:[%s175 + $0x120] sm:$0xff] %v248
                %v250 = vld [vmem:[%s174 + $0x428] sm:$0xff]
                %251 = vst [vmem:[%s175 + $0x128] sm:$0xff] %v250
                %v252 = vld [vmem:[%s174 + $0x430] sm:$0xff]
                %253 = vst [vmem:[%s175 + $0x130] sm:$0xff] %v252
                %v254 = vld [vmem:[%s174 + $0x438] sm:$0xff]
                %255 = vst [vmem:[%s175 + $0x138] sm:$0xff] %v254
                %v256 = vld [vmem:[%s174 + $0x500] sm:$0xff]
                %257 = vst [vmem:[%s175 + $0x140] sm:$0xff] %v256
                %v258 = vld [vmem:[%s174 + $0x508] sm:$0xff]
                %259 = vst [vmem:[%s175 + $0x148] sm:$0xff] %v258
                %v260 = vld [vmem:[%s174 + $0x510] sm:$0xff]
                %261 = vst [vmem:[%s175 + $0x150] sm:$0xff] %v260
                %v262 = vld [vmem:[%s174 + $0x518] sm:$0xff]
                %263 = vst [vmem:[%s175 + $0x158] sm:$0xff] %v262
                %v264 = vld [vmem:[%s174 + $0x520] sm:$0xff]
                %265 = vst [vmem:[%s175 + $0x160] sm:$0xff] %v264
                %v266 = vld [vmem:[%s174 + $0x528] sm:$0xff]
                %267 = vst [vmem:[%s175 + $0x168] sm:$0xff] %v266
                %v268 = vld [vmem:[%s174 + $0x530] sm:$0xff]
                %269 = vst [vmem:[%s175 + $0x170] sm:$0xff] %v268
                %v270 = vld [vmem:[%s174 + $0x538] sm:$0xff]
                %271 = vst [vmem:[%s175 + $0x178] sm:$0xff] %v270
                %v272 = vld [vmem:[%s174 + $0x600] sm:$0xff]
                %273 = vst [vmem:[%s175 + $0x180] sm:$0xff] %v272
                %v274 = vld [vmem:[%s174 + $0x608] sm:$0xff]
                %275 = vst [vmem:[%s175 + $0x188] sm:$0xff] %v274
                %v276 = vld [vmem:[%s174 + $0x610] sm:$0xff]
                %277 = vst [vmem:[%s175 + $0x190] sm:$0xff] %v276
                %v278 = vld [vmem:[%s174 + $0x618] sm:$0xff]
                %279 = vst [vmem:[%s175 + $0x198] sm:$0xff] %v278
                %v280 = vld [vmem:[%s174 + $0x620] sm:$0xff]
                %281 = vst [vmem:[%s175 + $0x1a0] sm:$0xff] %v280
                %v282 = vld [vmem:[%s174 + $0x628] sm:$0xff]
                %283 = vst [vmem:[%s175 + $0x1a8] sm:$0xff] %v282
                %v284 = vld [vmem:[%s174 + $0x630] sm:$0xff]
                %285 = vst [vmem:[%s175 + $0x1b0] sm:$0xff] %v284
                %v286 = vld [vmem:[%s174 + $0x638] sm:$0xff]
                %287 = vst [vmem:[%s175 + $0x1b8] sm:$0xff] %v286
                %v288 = vld [vmem:[%s174 + $0x700] sm:$0xff]
                %289 = vst [vmem:[%s175 + $0x1c0] sm:$0xff] %v288
                %v290 = vld [vmem:[%s174 + $0x708] sm:$0xff]
                %291 = vst [vmem:[%s175 + $0x1c8] sm:$0xff] %v290
                %v292 = vld [vmem:[%s174 + $0x710] sm:$0xff]
                %293 = vst [vmem:[%s175 + $0x1d0] sm:$0xff] %v292
                %v294 = vld [vmem:[%s174 + $0x718] sm:$0xff]
                %295 = vst [vmem:[%s175 + $0x1d8] sm:$0xff] %v294
                %v296 = vld [vmem:[%s174 + $0x720] sm:$0xff]
                %297 = vst [vmem:[%s175 + $0x1e0] sm:$0xff] %v296
                %v298 = vld [vmem:[%s174 + $0x728] sm:$0xff]
                %299 = vst [vmem:[%s175 + $0x1e8] sm:$0xff] %v298
                %v300 = vld [vmem:[%s174 + $0x730] sm:$0xff]
                %301 = vst [vmem:[%s175 + $0x1f0] sm:$0xff] %v300
                %v302 = vld [vmem:[%s174 + $0x738] sm:$0xff]
                %303 = vst [vmem:[%s175 + $0x1f8] sm:$0xff] %v302
                %v304 = vld [vmem:[%s174 + $0x800] sm:$0xff]
                %305 = vst [vmem:[%s175 + $0x200] sm:$0xff] %v304
                %v306 = vld [vmem:[%s174 + $0x808] sm:$0xff]
                %307 = vst [vmem:[%s175 + $0x208] sm:$0xff] %v306
                %v308 = vld [vmem:[%s174 + $0x810] sm:$0xff]
                %309 = vst [vmem:[%s175 + $0x210] sm:$0xff] %v308
                %v310 = vld [vmem:[%s174 + $0x818] sm:$0xff]
                %311 = vst [vmem:[%s175 + $0x218] sm:$0xff] %v310
                %v312 = vld [vmem:[%s174 + $0x820] sm:$0xff]
                %313 = vst [vmem:[%s175 + $0x220] sm:$0xff] %v312
                %v314 = vld [vmem:[%s174 + $0x828] sm:$0xff]
                %315 = vst [vmem:[%s175 + $0x228] sm:$0xff] %v314
                %v316 = vld [vmem:[%s174 + $0x830] sm:$0xff]
                %317 = vst [vmem:[%s175 + $0x230] sm:$0xff] %v316
                %v318 = vld [vmem:[%s174 + $0x838] sm:$0xff]
                %319 = vst [vmem:[%s175 + $0x238] sm:$0xff] %v318
              $region45: #{srfbn_hg_forward.43} parent=39 // loop_footer
                %s173 = sadd.s32 1, %s169
              $region46: #{srfbn_hg_forward.43} parent=39 // loop_footer_branch
                %168 = sbr.rel target = $region42
              $region47: #{srfbn_hg_forward.43} parent=39 // loop_exit
                _
            $region40: #{srfbn_hg_forward.43} parent=35 // pred_fallthru
              _
            // Predicated region
            $region48: #{srfbn_hg_forward.43} parent=35 // pred_check
              _
            $region49: #{srfbn_hg_forward.43} parent=35 // pred_check_branch
              %321 = sbr.rel target = $region51
            $region50: #{srfbn_hg_forward.43} parent=35 // pred_region
              _
            $region51: #{srfbn_hg_forward.43} parent=35 // pred_fallthru
              _
          $region36: #{srfbn_hg_forward.43} parent=31 // pred_fallthru
            _
          %322 = vnop
        $region32: #{srfbn_hg_forward.43} parent=27 // pred_fallthru
          _
      $region28: #{srfbn_hg_forward.43} parent=5 // pred_fallthru
        _
      %p323 = scmp.le.s32.totalorder 1, %s11
      %p324 = scmp.lt.s32.totalorder %s11, 5
      %p325 = pnand %p323, %p324
      %p326 = pneg %p325
      // Predicated region
      $region52: #{srfbn_hg_forward.43} parent=5 // pred_check
        _
      $region53: #{srfbn_hg_forward.43} parent=5 // pred_check_branch
        %328 = sbr.rel (%p325) target = $region55
      $region54: #{srfbn_hg_forward.43} parent=5 // pred_region
        %s329 = ssub.s32 %s11, 1
        %s330 = sand.u32 %s45, 1
        %s331 = sand.u32 %s45, 1
        %s332 = smul.addr %s331, 576
        %s333 = scalar_lea.vmem [#allocation3], %s332
        // Predicated region
        $region56: #{srfbn_hg_forward.43} parent=54 // pred_check
          %p334 = pneg %p58
        $region57: #{srfbn_hg_forward.43} parent=54 // pred_check_branch
          %336 = sbr.rel (%p334) target = $region59
        $region58: #{srfbn_hg_forward.43} parent=54 // pred_region
          _
        $region59: #{srfbn_hg_forward.43} parent=54 // pred_fallthru
          _
        %p337 = pneg %p32
        %p338 = pneg %p29
        %s339 = sand.u32 %s45, 1
        %s340 = sand.u32 %s45, 1
        %s341 = smul.addr %s340, 576
        %s342 = scalar_lea.vmem [#allocation3], %s341
        %p343 = pneg %p58
        %p344 = pneg %p55
        %p345 = pneg %p79
        %p346 = pneg %p76
        %p347 = pneg %p100
        %p348 = pneg %p97
        %p349 = pneg %p126
        %p350 = pneg %p123
        %s351 = smul.u32 16, %s16
        %p352 = scmp.lt.s32.totalorder %s351, 63
        %s353 = scalar_select %p352, %s351, 63
        %s354 = smul.addr %s353, 4
        %s355 = scalar_lea.vmem %s4, %s354
        %s356 = smul.u32 16, %s16
        %s357 = smul.u32 16, %s16
        %p358 = scmp.lt.s32.totalorder %s357, 63
        %s359 = scalar_select %p358, %s357, 63
        %s360 = smul.addr %s359, 4
        %s361 = scalar_lea.vmem %s4, %s360
        %s362 = smul.u32 16, %s16
        %v364 = vld [vmem:[%s0] sm:$0x3]
        %v365 = vld [vmem:[%s333] sm:$0xff]
        %v366 = vld [vmem:[%s333 + $0x8] sm:$0xff]
        %v367 = vld [vmem:[%s333 + $0x10] sm:$0xff]
        %v368 = vld [vmem:[%s333 + $0x18] sm:$0xff]
        %v369 = vld [vmem:[%s333 + $0x20] sm:$0xff]
        %v370 = vld [vmem:[%s333 + $0x28] sm:$0xff]
        %v371 = vld [vmem:[%s333 + $0x30] sm:$0xff]
        %v372 = vld [vmem:[%s333 + $0x38] sm:$0xff]
        %v373 = vld [vmem:[%s333 + $0x40] sm:$0xff]
        %v374 = vld [vmem:[%s333 + $0x48] sm:$0xff]
        %v375 = vld [vmem:[%s333 + $0x50] sm:$0xff]
        %v376 = vld [vmem:[%s333 + $0x58] sm:$0xff]
        %v377 = vld [vmem:[%s333 + $0x60] sm:$0xff]
        %v378 = vld [vmem:[%s333 + $0x68] sm:$0xff]
        %v379 = vld [vmem:[%s333 + $0x70] sm:$0xff]
        %v380 = vld [vmem:[%s333 + $0x78] sm:$0xff]
        %v381 = vld [vmem:[%s333 + $0x80] sm:$0xff]
        %v382 = vld [vmem:[%s333 + $0x88] sm:$0xff]
        %v383 = vld [vmem:[%s333 + $0x90] sm:$0xff]
        %v384 = vld [vmem:[%s333 + $0x98] sm:$0xff]
        %v385 = vld [vmem:[%s333 + $0xa0] sm:$0xff]
        %v386 = vld [vmem:[%s333 + $0xa8] sm:$0xff]
        %v387 = vld [vmem:[%s333 + $0xb0] sm:$0xff]
        %v388 = vld [vmem:[%s333 + $0xb8] sm:$0xff]
        %v389 = vld [vmem:[%s333 + $0xc0] sm:$0xff]
        %v390 = vld [vmem:[%s333 + $0xc8] sm:$0xff]
        %v391 = vld [vmem:[%s333 + $0xd0] sm:$0xff]
        %v392 = vld [vmem:[%s333 + $0xd8] sm:$0xff]
        %v393 = vld [vmem:[%s333 + $0xe0] sm:$0xff]
        %v394 = vld [vmem:[%s333 + $0xe8] sm:$0xff]
        %v395 = vld [vmem:[%s333 + $0xf0] sm:$0xff]
        %v396 = vld [vmem:[%s333 + $0xf8] sm:$0xff]
        %v397 = vld [vmem:[%s333 + $0x100] sm:$0xff]
        %v398 = vld [vmem:[%s333 + $0x108] sm:$0xff]
        %v399 = vld [vmem:[%s333 + $0x110] sm:$0xff]
        %v400 = vld [vmem:[%s333 + $0x118] sm:$0xff]
        %v401 = vld [vmem:[%s333 + $0x120] sm:$0xff]
        %v402 = vld [vmem:[%s333 + $0x128] sm:$0xff]
        %v403 = vld [vmem:[%s333 + $0x130] sm:$0xff]
        %v404 = vld [vmem:[%s333 + $0x138] sm:$0xff]
        %v405 = vld [vmem:[%s333 + $0x140] sm:$0xff]
        %v406 = vld [vmem:[%s333 + $0x148] sm:$0xff]
        %v407 = vld [vmem:[%s333 + $0x150] sm:$0xff]
        %v408 = vld [vmem:[%s333 + $0x158] sm:$0xff]
        %v409 = vld [vmem:[%s333 + $0x160] sm:$0xff]
        %v410 = vld [vmem:[%s333 + $0x168] sm:$0xff]
        %v411 = vld [vmem:[%s333 + $0x170] sm:$0xff]
        %v412 = vld [vmem:[%s333 + $0x178] sm:$0xff]
        %v413 = vld [vmem:[%s333 + $0x180] sm:$0xff]
        %v414 = vld [vmem:[%s333 + $0x188] sm:$0xff]
        %v415 = vld [vmem:[%s333 + $0x190] sm:$0xff]
        %v416 = vld [vmem:[%s333 + $0x198] sm:$0xff]
        %v417 = vld [vmem:[%s333 + $0x1a0] sm:$0xff]
        %v418 = vld [vmem:[%s333 + $0x1a8] sm:$0xff]
        %v419 = vld [vmem:[%s333 + $0x1b0] sm:$0xff]
        %v420 = vld [vmem:[%s333 + $0x1b8] sm:$0xff]
        %v421 = vld [vmem:[%s333 + $0x1c0] sm:$0xff]
        %v422 = vld [vmem:[%s333 + $0x1c8] sm:$0xff]
        %v423 = vld [vmem:[%s333 + $0x1d0] sm:$0xff]
        %v424 = vld [vmem:[%s333 + $0x1d8] sm:$0xff]
        %v425 = vld [vmem:[%s333 + $0x1e0] sm:$0xff]
        %v426 = vld [vmem:[%s333 + $0x1e8] sm:$0xff]
        %v427 = vld [vmem:[%s333 + $0x1f0] sm:$0xff]
        %v428 = vld [vmem:[%s333 + $0x1f8] sm:$0xff]
        %v429 = vld [vmem:[%s333 + $0x200] sm:$0xff]
        %v430 = vld [vmem:[%s333 + $0x208] sm:$0xff]
        %v431 = vld [vmem:[%s333 + $0x210] sm:$0xff]
        %v432 = vld [vmem:[%s333 + $0x218] sm:$0xff]
        %v433 = vld [vmem:[%s333 + $0x220] sm:$0xff]
        %v434 = vld [vmem:[%s333 + $0x228] sm:$0xff]
        %v435 = vld [vmem:[%s333 + $0x230] sm:$0xff]
        %v436 = vld [vmem:[%s333 + $0x238] sm:$0xff]
        %v437 = vld [vmem:[%s2] sm:$0x7]
        %439 = vset.pattern.permute.xlu0 0
        %440 = vperm.xlu0 %439, %v437
        %v441 = vpop.permute.xlu0 %440
        %v515 = vunpack.c.l.b16 %v365
        %v516 = vunpack.c.h.b16 %v365
        %v517 = vunpack.c.l.b16 %v366
        %v518 = vunpack.c.h.b16 %v366
        %v519 = vunpack.c.l.b16 %v367
        %v520 = vunpack.c.h.b16 %v367
        %v521 = vunpack.c.l.b16 %v368
        %v522 = vunpack.c.h.b16 %v368
        %v523 = vunpack.c.l.b16 %v369
        %v524 = vunpack.c.h.b16 %v369
        %v525 = vunpack.c.l.b16 %v370
        %v526 = vunpack.c.h.b16 %v370
        %v527 = vunpack.c.l.b16 %v371
        %v528 = vunpack.c.h.b16 %v371
        %v529 = vunpack.c.l.b16 %v372
        %v530 = vunpack.c.h.b16 %v372
        %v531 = vunpack.c.l.b16 %v373
        %v532 = vunpack.c.h.b16 %v373
        %v533 = vunpack.c.l.b16 %v374
        %v534 = vunpack.c.h.b16 %v374
        %v535 = vunpack.c.l.b16 %v375
        %v536 = vunpack.c.h.b16 %v375
        %v537 = vunpack.c.l.b16 %v376
        %v538 = vunpack.c.h.b16 %v376
        %v539 = vunpack.c.l.b16 %v377
        %v540 = vunpack.c.h.b16 %v377
        %v541 = vunpack.c.l.b16 %v378
        %v542 = vunpack.c.h.b16 %v378
        %v543 = vunpack.c.l.b16 %v379
        %v544 = vunpack.c.h.b16 %v379
        %v545 = vunpack.c.l.b16 %v380
        %v546 = vunpack.c.h.b16 %v380
        %v547 = vunpack.c.l.b16 %v381
        %v548 = vunpack.c.h.b16 %v381
        %v549 = vunpack.c.l.b16 %v382
        %v550 = vunpack.c.h.b16 %v382
        %v551 = vunpack.c.l.b16 %v383
        %v552 = vunpack.c.h.b16 %v383
        %v553 = vunpack.c.l.b16 %v384
        %v554 = vunpack.c.h.b16 %v384
        %v555 = vunpack.c.l.b16 %v385
        %v556 = vunpack.c.h.b16 %v385
        %v557 = vunpack.c.l.b16 %v386
        %v558 = vunpack.c.h.b16 %v386
        %v559 = vunpack.c.l.b16 %v387
        %v560 = vunpack.c.h.b16 %v387
        %v561 = vunpack.c.l.b16 %v388
        %v562 = vunpack.c.h.b16 %v388
        %v563 = vunpack.c.l.b16 %v389
        %v564 = vunpack.c.h.b16 %v389
        %v565 = vunpack.c.l.b16 %v390
        %v566 = vunpack.c.h.b16 %v390
        %v567 = vunpack.c.l.b16 %v391
        %v568 = vunpack.c.h.b16 %v391
        %v569 = vunpack.c.l.b16 %v392
        %v570 = vunpack.c.h.b16 %v392
        %v571 = vunpack.c.l.b16 %v393
        %v572 = vunpack.c.h.b16 %v393
        %v573 = vunpack.c.l.b16 %v394
        %v574 = vunpack.c.h.b16 %v394
        %v575 = vunpack.c.l.b16 %v395
        %v576 = vunpack.c.h.b16 %v395
        %v577 = vunpack.c.l.b16 %v396
        %v578 = vunpack.c.h.b16 %v396
        %v579 = vunpack.c.l.b16 %v397
        %v580 = vunpack.c.h.b16 %v397
        %v581 = vunpack.c.l.b16 %v398
        %v582 = vunpack.c.h.b16 %v398
        %v583 = vunpack.c.l.b16 %v399
        %v584 = vunpack.c.h.b16 %v399
        %v585 = vunpack.c.l.b16 %v400
        %v586 = vunpack.c.h.b16 %v400
        %v587 = vunpack.c.l.b16 %v401
        %v588 = vunpack.c.h.b16 %v401
        %v589 = vunpack.c.l.b16 %v402
        %v590 = vunpack.c.h.b16 %v402
        %v591 = vunpack.c.l.b16 %v403
        %v592 = vunpack.c.h.b16 %v403
        %v593 = vunpack.c.l.b16 %v404
        %v594 = vunpack.c.h.b16 %v404
        %v595 = vunpack.c.l.b16 %v405
        %v596 = vunpack.c.h.b16 %v405
        %v597 = vunpack.c.l.b16 %v406
        %v598 = vunpack.c.h.b16 %v406
        %v599 = vunpack.c.l.b16 %v407
        %v600 = vunpack.c.h.b16 %v407
        %v601 = vunpack.c.l.b16 %v408
        %v602 = vunpack.c.h.b16 %v408
        %v603 = vunpack.c.l.b16 %v409
        %v604 = vunpack.c.h.b16 %v409
        %v605 = vunpack.c.l.b16 %v410
        %v606 = vunpack.c.h.b16 %v410
        %v607 = vunpack.c.l.b16 %v411
        %v608 = vunpack.c.h.b16 %v411
        %v609 = vunpack.c.l.b16 %v412
        %v610 = vunpack.c.h.b16 %v412
        %v611 = vunpack.c.l.b16 %v413
        %v612 = vunpack.c.h.b16 %v413
        %v613 = vunpack.c.l.b16 %v414
        %v614 = vunpack.c.h.b16 %v414
        %v615 = vunpack.c.l.b16 %v415
        %v616 = vunpack.c.h.b16 %v415
        %v617 = vunpack.c.l.b16 %v416
        %v618 = vunpack.c.h.b16 %v416
        %v619 = vunpack.c.l.b16 %v417
        %v620 = vunpack.c.h.b16 %v417
        %v621 = vunpack.c.l.b16 %v418
        %v622 = vunpack.c.h.b16 %v418
        %v623 = vunpack.c.l.b16 %v419
        %v624 = vunpack.c.h.b16 %v419
        %v625 = vunpack.c.l.b16 %v420
        %v626 = vunpack.c.h.b16 %v420
        %v627 = vunpack.c.l.b16 %v421
        %v628 = vunpack.c.h.b16 %v421
        %v629 = vunpack.c.l.b16 %v422
        %v630 = vunpack.c.h.b16 %v422
        %v631 = vunpack.c.l.b16 %v423
        %v632 = vunpack.c.h.b16 %v423
        %v633 = vunpack.c.l.b16 %v424
        %v634 = vunpack.c.h.b16 %v424
        %v635 = vunpack.c.l.b16 %v425
        %v636 = vunpack.c.h.b16 %v425
        %v637 = vunpack.c.l.b16 %v426
        %v638 = vunpack.c.h.b16 %v426
        %v639 = vunpack.c.l.b16 %v427
        %v640 = vunpack.c.h.b16 %v427
        %v641 = vunpack.c.l.b16 %v428
        %v642 = vunpack.c.h.b16 %v428
        %v643 = vunpack.c.l.b16 %v429
        %v644 = vunpack.c.h.b16 %v429
        %v645 = vunpack.c.l.b16 %v430
        %v646 = vunpack.c.h.b16 %v430
        %v647 = vunpack.c.l.b16 %v431
        %v648 = vunpack.c.h.b16 %v431
        %v649 = vunpack.c.l.b16 %v432
        %v650 = vunpack.c.h.b16 %v432
        %v651 = vunpack.c.l.b16 %v433
        %v652 = vunpack.c.h.b16 %v433
        %v653 = vunpack.c.l.b16 %v434
        %v654 = vunpack.c.h.b16 %v434
        %v655 = vunpack.c.l.b16 %v435
        %v656 = vunpack.c.h.b16 %v435
        %v657 = vunpack.c.l.b16 %v436
        %v658 = vunpack.c.h.b16 %v436
        %v659 = vpack.c.b16 %v531, %v515
        %v660 = vpack.c.b16 %v532, %v516
        %v661 = vpack.c.b16 %v533, %v517
        %v662 = vpack.c.b16 %v534, %v518
        %v663 = vpack.c.b16 %v535, %v519
        %v664 = vpack.c.b16 %v536, %v520
        %v665 = vpack.c.b16 %v537, %v521
        %v666 = vpack.c.b16 %v538, %v522
        %v667 = vpack.c.b16 %v539, %v523
        %v668 = vpack.c.b16 %v540, %v524
        %v669 = vpack.c.b16 %v541, %v525
        %v670 = vpack.c.b16 %v542, %v526
        %v671 = vpack.c.b16 %v543, %v527
        %v672 = vpack.c.b16 %v544, %v528
        %v673 = vpack.c.b16 %v545, %v529
        %v674 = vpack.c.b16 %v546, %v530
        %v675 = vpack.c.b16 %v563, %v547
        %v676 = vpack.c.b16 %v564, %v548
        %v677 = vpack.c.b16 %v565, %v549
        %v678 = vpack.c.b16 %v566, %v550
        %v679 = vpack.c.b16 %v567, %v551
        %v680 = vpack.c.b16 %v568, %v552
        %v681 = vpack.c.b16 %v569, %v553
        %v682 = vpack.c.b16 %v570, %v554
        %v683 = vpack.c.b16 %v571, %v555
        %v684 = vpack.c.b16 %v572, %v556
        %v685 = vpack.c.b16 %v573, %v557
        %v686 = vpack.c.b16 %v574, %v558
        %v687 = vpack.c.b16 %v575, %v559
        %v688 = vpack.c.b16 %v576, %v560
        %v689 = vpack.c.b16 %v577, %v561
        %v690 = vpack.c.b16 %v578, %v562
        %v691 = vpack.c.b16 %v595, %v579
        %v692 = vpack.c.b16 %v596, %v580
        %v693 = vpack.c.b16 %v597, %v581
        %v694 = vpack.c.b16 %v598, %v582
        %v695 = vpack.c.b16 %v599, %v583
        %v696 = vpack.c.b16 %v600, %v584
        %v697 = vpack.c.b16 %v601, %v585
        %v698 = vpack.c.b16 %v602, %v586
        %v699 = vpack.c.b16 %v603, %v587
        %v700 = vpack.c.b16 %v604, %v588
        %v701 = vpack.c.b16 %v605, %v589
        %v702 = vpack.c.b16 %v606, %v590
        %v703 = vpack.c.b16 %v607, %v591
        %v704 = vpack.c.b16 %v608, %v592
        %v705 = vpack.c.b16 %v609, %v593
        %v706 = vpack.c.b16 %v610, %v594
        %v707 = vpack.c.b16 %v627, %v611
        %v708 = vpack.c.b16 %v628, %v612
        %v709 = vpack.c.b16 %v629, %v613
        %v710 = vpack.c.b16 %v630, %v614
        %v711 = vpack.c.b16 %v631, %v615
        %v712 = vpack.c.b16 %v632, %v616
        %v713 = vpack.c.b16 %v633, %v617
        %v714 = vpack.c.b16 %v634, %v618
        %v715 = vpack.c.b16 %v635, %v619
        %v716 = vpack.c.b16 %v636, %v620
        %v717 = vpack.c.b16 %v637, %v621
        %v718 = vpack.c.b16 %v638, %v622
        %v719 = vpack.c.b16 %v639, %v623
        %v720 = vpack.c.b16 %v640, %v624
        %v721 = vpack.c.b16 %v641, %v625
        %v722 = vpack.c.b16 %v642, %v626
        %v723 = vpack.c.b16 %v643, %v643
        %v724 = vpack.c.b16 %v644, %v644
        %v725 = vpack.c.b16 %v645, %v645
        %v726 = vpack.c.b16 %v646, %v646
        %v727 = vpack.c.b16 %v647, %v647
        %v728 = vpack.c.b16 %v648, %v648
        %v729 = vpack.c.b16 %v649, %v649
        %v730 = vpack.c.b16 %v650, %v650
        %v731 = vpack.c.b16 %v651, %v651
        %v732 = vpack.c.b16 %v652, %v652
        %v733 = vpack.c.b16 %v653, %v653
        %v734 = vpack.c.b16 %v654, %v654
        %v735 = vpack.c.b16 %v655, %v655
        %v736 = vpack.c.b16 %v656, %v656
        %v737 = vpack.c.b16 %v657, %v657
        %v738 = vpack.c.b16 %v658, %v658
        %vm803 = vcmask 588800
        %v805 = vsel %vm803, %v364, 0
        %vm807 = vcmask 1043456
        %v809 = vsel %vm807, %v723, 0
        %v812 = vsel %vm807, %v724, 0
        %v815 = vsel %vm807, %v725, 0
        %v818 = vsel %vm807, %v726, 0
        %v821 = vsel %vm807, %v727, 0
        %v824 = vsel %vm807, %v728, 0
        %v827 = vsel %vm807, %v729, 0
        %v830 = vsel %vm807, %v730, 0
        %v833 = vsel %vm807, %v731, 0
        %v836 = vsel %vm807, %v732, 0
        %v839 = vsel %vm807, %v733, 0
        %v842 = vsel %vm807, %v734, 0
        %v845 = vsel %vm807, %v735, 0
        %v848 = vsel %vm807, %v736, 0
        %v851 = vsel %vm807, %v737, 0
        %v854 = vsel %vm807, %v738, 0
        %856 = vmatprep.subr.bf16.mxu0 %v660
        %857 = vmatpush1.bf16.msra.mxu0 %v659
        %858 = vmatprep.subr.bf16.mxu0 %v676
        %859 = vmatpush1.bf16.msra.mxu0 %v675
        %860 = vmatprep.subr.bf16.mxu0 %v692
        %861 = vmatpush1.bf16.msra.mxu0 %v691
        %862 = vmatprep.subr.bf16.mxu0 %v708
        %863 = vmatpush1.bf16.msra.mxu0 %v707
        %864 = vmatprep.subr.bf16.mxu0 %v812
        %865 = vmatpush1.bf16.msra.mxu0 %v809
        %866 = vmatprep.subr.bf16.mxu0 0
        %867 = vmatpush1.bf16.msra.mxu0 0
        %868 = vmatprep.subr.bf16.mxu0 0
        %869 = vmatpush1.bf16.msra.mxu0 0
        %870 = vmatprep.subr.bf16.mxu0 0
        %871 = vmatpush1.bf16.msra.mxu0 0
        %872 = vmatprep.subr.bf16.mxu0 0
        %873 = vmatpush1.bf16.msra.mxu0 0
        %874 = vmatprep.subr.bf16.mxu0 0
        %875 = vmatpush1.bf16.msra.mxu0 0
        %876 = vmatprep.subr.bf16.mxu0 0
        %877 = vmatpush1.bf16.msra.mxu0 0
        %878 = vmatprep.subr.bf16.mxu0 0
        %879 = vmatpush1.bf16.msra.mxu0 0
        %880 = vmatprep.subr.bf16.mxu0 0
        %881 = vmatpush1.bf16.msra.mxu0 0
        %882 = vmatprep.subr.bf16.mxu0 0
        %883 = vmatpush1.bf16.msra.mxu0 0
        %884 = vmatprep.subr.bf16.mxu0 0
        %885 = vmatpush1.bf16.msra.mxu0 0
        %886 = vmatprep.subr.bf16.mxu0 0
        %887 = vmatpush1.bf16.msra.mxu0 0
        %888 = vmatprep.mubr.bf16.mxu0 0
        %889 = vmatmul.mubr.bf16.gmra.mrb[0].mxu0 %v805
        %v890 = vpop.f32.mrb[0].mxu0
        %v891 = vadd.f32 %v441, %v890
        %v892 = vpop.f32.mrb[0].mxu0
        %v893 = vadd.f32 %v441, %v892
        %v894 = vpop.f32.mrb[0].mxu0
        %v895 = vpop.f32.mrb[0].mxu0
        %896 = vdwg.mxu0
        %897 = vmatprep.subr.bf16.mxu0 %v662
        %898 = vmatpush1.bf16.msra.mxu0 %v661
        %899 = vmatprep.subr.bf16.mxu0 %v678
        %900 = vmatpush1.bf16.msra.mxu0 %v677
        %901 = vmatprep.subr.bf16.mxu0 %v694
        %902 = vmatpush1.bf16.msra.mxu0 %v693
        %903 = vmatprep.subr.bf16.mxu0 %v710
        %904 = vmatpush1.bf16.msra.mxu0 %v709
        %905 = vmatprep.subr.bf16.mxu0 %v818
        %906 = vmatpush1.bf16.msra.mxu0 %v815
        %907 = vmatprep.subr.bf16.mxu0 0
        %908 = vmatpush1.bf16.msra.mxu0 0
        %909 = vmatprep.subr.bf16.mxu0 0
        %910 = vmatpush1.bf16.msra.mxu0 0
        %911 = vmatprep.subr.bf16.mxu0 0
        %912 = vmatpush1.bf16.msra.mxu0 0
        %913 = vmatprep.subr.bf16.mxu0 0
        %914 = vmatpush1.bf16.msra.mxu0 0
        %915 = vmatprep.subr.bf16.mxu0 0
        %916 = vmatpush1.bf16.msra.mxu0 0
        %917 = vmatprep.subr.bf16.mxu0 0
        %918 = vmatpush1.bf16.msra.mxu0 0
        %919 = vmatprep.subr.bf16.mxu0 0
        %920 = vmatpush1.bf16.msra.mxu0 0
        %921 = vmatprep.subr.bf16.mxu0 0
        %922 = vmatpush1.bf16.msra.mxu0 0
        %923 = vmatprep.subr.bf16.mxu0 0
        %924 = vmatpush1.bf16.msra.mxu0 0
        %925 = vmatprep.subr.bf16.mxu0 0
        %926 = vmatpush1.bf16.msra.mxu0 0
        %927 = vmatprep.subr.bf16.mxu0 0
        %928 = vmatpush1.bf16.msra.mxu0 0
        %929 = vmatprep.mubr.bf16.mxu0 0
        %930 = vmatmul.mubr.bf16.gmra.mrb[0].mxu0 %v805
        %v931 = vpop.f32.mrb[0].mxu0
        %v932 = vadd.f32 %v441, %v931
        %v933 = vpop.f32.mrb[0].mxu0
        %v934 = vadd.f32 %v441, %v933
        %v935 = vpop.f32.mrb[0].mxu0
        %v936 = vpop.f32.mrb[0].mxu0
        %937 = vdwg.mxu0
        %938 = vmatprep.subr.bf16.mxu0 %v664
        %939 = vmatpush1.bf16.msra.mxu0 %v663
        %940 = vmatprep.subr.bf16.mxu0 %v680
        %941 = vmatpush1.bf16.msra.mxu0 %v679
        %942 = vmatprep.subr.bf16.mxu0 %v696
        %943 = vmatpush1.bf16.msra.mxu0 %v695
        %944 = vmatprep.subr.bf16.mxu0 %v712
        %945 = vmatpush1.bf16.msra.mxu0 %v711
        %946 = vmatprep.subr.bf16.mxu0 %v824
        %947 = vmatpush1.bf16.msra.mxu0 %v821
        %948 = vmatprep.subr.bf16.mxu0 0
        %949 = vmatpush1.bf16.msra.mxu0 0
        %950 = vmatprep.subr.bf16.mxu0 0
        %951 = vmatpush1.bf16.msra.mxu0 0
        %952 = vmatprep.subr.bf16.mxu0 0
        %953 = vmatpush1.bf16.msra.mxu0 0
        %954 = vmatprep.subr.bf16.mxu0 0
        %955 = vmatpush1.bf16.msra.mxu0 0
        %956 = vmatprep.subr.bf16.mxu0 0
        %957 = vmatpush1.bf16.msra.mxu0 0
        %958 = vmatprep.subr.bf16.mxu0 0
        %959 = vmatpush1.bf16.msra.mxu0 0
        %960 = vmatprep.subr.bf16.mxu0 0
        %961 = vmatpush1.bf16.msra.mxu0 0
        %962 = vmatprep.subr.bf16.mxu0 0
        %963 = vmatpush1.bf16.msra.mxu0 0
        %964 = vmatprep.subr.bf16.mxu0 0
        %965 = vmatpush1.bf16.msra.mxu0 0
        %966 = vmatprep.subr.bf16.mxu0 0
        %967 = vmatpush1.bf16.msra.mxu0 0
        %968 = vmatprep.subr.bf16.mxu0 0
        %969 = vmatpush1.bf16.msra.mxu0 0
        %970 = vmatprep.mubr.bf16.mxu0 0
        %971 = vmatmul.mubr.bf16.gmra.mrb[0].mxu0 %v805
        %v972 = vpop.f32.mrb[0].mxu0
        %v973 = vadd.f32 %v441, %v972
        %v974 = vpop.f32.mrb[0].mxu0
        %v975 = vadd.f32 %v441, %v974
        %v976 = vpop.f32.mrb[0].mxu0
        %v977 = vpop.f32.mrb[0].mxu0
        %978 = vdwg.mxu0
        %979 = vmatprep.subr.bf16.mxu0 %v666
        %980 = vmatpush1.bf16.msra.mxu0 %v665
        %981 = vmatprep.subr.bf16.mxu0 %v682
        %982 = vmatpush1.bf16.msra.mxu0 %v681
        %983 = vmatprep.subr.bf16.mxu0 %v698
        %984 = vmatpush1.bf16.msra.mxu0 %v697
        %985 = vmatprep.subr.bf16.mxu0 %v714
        %986 = vmatpush1.bf16.msra.mxu0 %v713
        %987 = vmatprep.subr.bf16.mxu0 %v830
        %988 = vmatpush1.bf16.msra.mxu0 %v827
        %989 = vmatprep.subr.bf16.mxu0 0
        %990 = vmatpush1.bf16.msra.mxu0 0
        %991 = vmatprep.subr.bf16.mxu0 0
        %992 = vmatpush1.bf16.msra.mxu0 0
        %993 = vmatprep.subr.bf16.mxu0 0
        %994 = vmatpush1.bf16.msra.mxu0 0
        %995 = vmatprep.subr.bf16.mxu0 0
        %996 = vmatpush1.bf16.msra.mxu0 0
        %997 = vmatprep.subr.bf16.mxu0 0
        %998 = vmatpush1.bf16.msra.mxu0 0
        %999 = vmatprep.subr.bf16.mxu0 0
        %1000 = vmatpush1.bf16.msra.mxu0 0
        %1001 = vmatprep.subr.bf16.mxu0 0
        %1002 = vmatpush1.bf16.msra.mxu0 0
        %1003 = vmatprep.subr.bf16.mxu0 0
        %1004 = vmatpush1.bf16.msra.mxu0 0
        %1005 = vmatprep.subr.bf16.mxu0 0
        %1006 = vmatpush1.bf16.msra.mxu0 0
        %1007 = vmatprep.subr.bf16.mxu0 0
        %1008 = vmatpush1.bf16.msra.mxu0 0
        %1009 = vmatprep.subr.bf16.mxu0 0
        %1010 = vmatpush1.bf16.msra.mxu0 0
        %1011 = vmatprep.mubr.bf16.mxu0 0
        %1012 = vmatmul.mubr.bf16.gmra.mrb[0].mxu0 %v805
        %v1013 = vpop.f32.mrb[0].mxu0
        %v1014 = vadd.f32 %v441, %v1013
        %v1015 = vpop.f32.mrb[0].mxu0
        %v1016 = vadd.f32 %v441, %v1015
        %v1017 = vpop.f32.mrb[0].mxu0
        %v1018 = vpop.f32.mrb[0].mxu0
        %1019 = vdwg.mxu0
        %1020 = vmatprep.subr.bf16.mxu0 %v668
        %1021 = vmatpush1.bf16.msra.mxu0 %v667
        %1022 = vmatprep.subr.bf16.mxu0 %v684
        %1023 = vmatpush1.bf16.msra.mxu0 %v683
        %1024 = vmatprep.subr.bf16.mxu0 %v700
        %1025 = vmatpush1.bf16.msra.mxu0 %v699
        %1026 = vmatprep.subr.bf16.mxu0 %v716
        %1027 = vmatpush1.bf16.msra.mxu0 %v715
        %1028 = vmatprep.subr.bf16.mxu0 %v836
        %1029 = vmatpush1.bf16.msra.mxu0 %v833
        %1030 = vmatprep.subr.bf16.mxu0 0
        %1031 = vmatpush1.bf16.msra.mxu0 0
        %1032 = vmatprep.subr.bf16.mxu0 0
        %1033 = vmatpush1.bf16.msra.mxu0 0
        %1034 = vmatprep.subr.bf16.mxu0 0
        %1035 = vmatpush1.bf16.msra.mxu0 0
        %1036 = vmatprep.subr.bf16.mxu0 0
        %1037 = vmatpush1.bf16.msra.mxu0 0
        %1038 = vmatprep.subr.bf16.mxu0 0
        %1039 = vmatpush1.bf16.msra.mxu0 0
        %1040 = vmatprep.subr.bf16.mxu0 0
        %1041 = vmatpush1.bf16.msra.mxu0 0
        %1042 = vmatprep.subr.bf16.mxu0 0
        %1043 = vmatpush1.bf16.msra.mxu0 0
        %1044 = vmatprep.subr.bf16.mxu0 0
        %1045 = vmatpush1.bf16.msra.mxu0 0
        %1046 = vmatprep.subr.bf16.mxu0 0
        %1047 = vmatpush1.bf16.msra.mxu0 0
        %1048 = vmatprep.subr.bf16.mxu0 0
        %1049 = vmatpush1.bf16.msra.mxu0 0
        %1050 = vmatprep.subr.bf16.mxu0 0
        %1051 = vmatpush1.bf16.msra.mxu0 0
        %1052 = vmatprep.mubr.bf16.mxu0 0
        %1053 = vmatmul.mubr.bf16.gmra.mrb[0].mxu0 %v805
        %v1054 = vpop.f32.mrb[0].mxu0
        %v1055 = vadd.f32 %v441, %v1054
        %v1056 = vpop.f32.mrb[0].mxu0
        %v1057 = vadd.f32 %v441, %v1056
        %v1058 = vpop.f32.mrb[0].mxu0
        %v1059 = vpop.f32.mrb[0].mxu0
        %1060 = vdwg.mxu0
        %1061 = vmatprep.subr.bf16.mxu0 %v670
        %1062 = vmatpush1.bf16.msra.mxu0 %v669
        %1063 = vmatprep.subr.bf16.mxu0 %v686
        %1064 = vmatpush1.bf16.msra.mxu0 %v685
        %1065 = vmatprep.subr.bf16.mxu0 %v702
        %1066 = vmatpush1.bf16.msra.mxu0 %v701
        %1067 = vmatprep.subr.bf16.mxu0 %v718
        %1068 = vmatpush1.bf16.msra.mxu0 %v717
        %1069 = vmatprep.subr.bf16.mxu0 %v842
        %1070 = vmatpush1.bf16.msra.mxu0 %v839
        %1071 = vmatprep.subr.bf16.mxu0 0
        %1072 = vmatpush1.bf16.msra.mxu0 0
        %1073 = vmatprep.subr.bf16.mxu0 0
        %1074 = vmatpush1.bf16.msra.mxu0 0
        %1075 = vmatprep.subr.bf16.mxu0 0
        %1076 = vmatpush1.bf16.msra.mxu0 0
        %1077 = vmatprep.subr.bf16.mxu0 0
        %1078 = vmatpush1.bf16.msra.mxu0 0
        %1079 = vmatprep.subr.bf16.mxu0 0
        %1080 = vmatpush1.bf16.msra.mxu0 0
        %1081 = vmatprep.subr.bf16.mxu0 0
        %1082 = vmatpush1.bf16.msra.mxu0 0
        %1083 = vmatprep.subr.bf16.mxu0 0
        %1084 = vmatpush1.bf16.msra.mxu0 0
        %1085 = vmatprep.subr.bf16.mxu0 0
        %1086 = vmatpush1.bf16.msra.mxu0 0
        %1087 = vmatprep.subr.bf16.mxu0 0
        %1088 = vmatpush1.bf16.msra.mxu0 0
        %1089 = vmatprep.subr.bf16.mxu0 0
        %1090 = vmatpush1.bf16.msra.mxu0 0
        %1091 = vmatprep.subr.bf16.mxu0 0
        %1092 = vmatpush1.bf16.msra.mxu0 0
        %1093 = vmatprep.mubr.bf16.mxu0 0
        %1094 = vmatmul.mubr.bf16.gmra.mrb[0].mxu0 %v805
        %v1095 = vpop.f32.mrb[0].mxu0
        %v1096 = vadd.f32 %v441, %v1095
        %v1097 = vpop.f32.mrb[0].mxu0
        %v1098 = vadd.f32 %v441, %v1097
        %v1099 = vpop.f32.mrb[0].mxu0
        %v1100 = vpop.f32.mrb[0].mxu0
        %1101 = vdwg.mxu0
        %1102 = vmatprep.subr.bf16.mxu0 %v672
        %1103 = vmatpush1.bf16.msra.mxu0 %v671
        %1104 = vmatprep.subr.bf16.mxu0 %v688
        %1105 = vmatpush1.bf16.msra.mxu0 %v687
        %1106 = vmatprep.subr.bf16.mxu0 %v704
        %1107 = vmatpush1.bf16.msra.mxu0 %v703
        %1108 = vmatprep.subr.bf16.mxu0 %v720
        %1109 = vmatpush1.bf16.msra.mxu0 %v719
        %1110 = vmatprep.subr.bf16.mxu0 %v848
        %1111 = vmatpush1.bf16.msra.mxu0 %v845
        %1112 = vmatprep.subr.bf16.mxu0 0
        %1113 = vmatpush1.bf16.msra.mxu0 0
        %1114 = vmatprep.subr.bf16.mxu0 0
        %1115 = vmatpush1.bf16.msra.mxu0 0
        %1116 = vmatprep.subr.bf16.mxu0 0
        %1117 = vmatpush1.bf16.msra.mxu0 0
        %1118 = vmatprep.subr.bf16.mxu0 0
        %1119 = vmatpush1.bf16.msra.mxu0 0
        %1120 = vmatprep.subr.bf16.mxu0 0
        %1121 = vmatpush1.bf16.msra.mxu0 0
        %1122 = vmatprep.subr.bf16.mxu0 0
        %1123 = vmatpush1.bf16.msra.mxu0 0
        %1124 = vmatprep.subr.bf16.mxu0 0
        %1125 = vmatpush1.bf16.msra.mxu0 0
        %1126 = vmatprep.subr.bf16.mxu0 0
        %1127 = vmatpush1.bf16.msra.mxu0 0
        %1128 = vmatprep.subr.bf16.mxu0 0
        %1129 = vmatpush1.bf16.msra.mxu0 0
        %1130 = vmatprep.subr.bf16.mxu0 0
        %1131 = vmatpush1.bf16.msra.mxu0 0
        %1132 = vmatprep.subr.bf16.mxu0 0
        %1133 = vmatpush1.bf16.msra.mxu0 0
        %1134 = vmatprep.mubr.bf16.mxu0 0
        %1135 = vmatmul.mubr.bf16.gmra.mrb[0].mxu0 %v805
        %v1136 = vpop.f32.mrb[0].mxu0
        %v1137 = vadd.f32 %v441, %v1136
        %v1138 = vpop.f32.mrb[0].mxu0
        %v1139 = vadd.f32 %v441, %v1138
        %v1140 = vpop.f32.mrb[0].mxu0
        %v1141 = vpop.f32.mrb[0].mxu0
        %1142 = vdwg.mxu0
        %1143 = vmatprep.subr.bf16.mxu0 %v674
        %1144 = vmatpush1.bf16.msra.mxu0 %v673
        %1145 = vmatprep.subr.bf16.mxu0 %v690
        %1146 = vmatpush1.bf16.msra.mxu0 %v689
        %1147 = vmatprep.subr.bf16.mxu0 %v706
        %1148 = vmatpush1.bf16.msra.mxu0 %v705
        %1149 = vmatprep.subr.bf16.mxu0 %v722
        %1150 = vmatpush1.bf16.msra.mxu0 %v721
        %1151 = vmatprep.subr.bf16.mxu0 %v854
        %1152 = vmatpush1.bf16.msra.mxu0 %v851
        %1153 = vmatprep.subr.bf16.mxu0 0
        %1154 = vmatpush1.bf16.msra.mxu0 0
        %1155 = vmatprep.subr.bf16.mxu0 0
        %1156 = vmatpush1.bf16.msra.mxu0 0
        %1157 = vmatprep.subr.bf16.mxu0 0
        %1158 = vmatpush1.bf16.msra.mxu0 0
        %1159 = vmatprep.subr.bf16.mxu0 0
        %1160 = vmatpush1.bf16.msra.mxu0 0
        %1161 = vmatprep.subr.bf16.mxu0 0
        %1162 = vmatpush1.bf16.msra.mxu0 0
        %1163 = vmatprep.subr.bf16.mxu0 0
        %1164 = vmatpush1.bf16.msra.mxu0 0
        %1165 = vmatprep.subr.bf16.mxu0 0
        %1166 = vmatpush1.bf16.msra.mxu0 0
        %1167 = vmatprep.subr.bf16.mxu0 0
        %1168 = vmatpush1.bf16.msra.mxu0 0
        %1169 = vmatprep.subr.bf16.mxu0 0
        %1170 = vmatpush1.bf16.msra.mxu0 0
        %1171 = vmatprep.subr.bf16.mxu0 0
        %1172 = vmatpush1.bf16.msra.mxu0 0
        %1173 = vmatprep.subr.bf16.mxu0 0
        %1174 = vmatpush1.bf16.msra.mxu0 0
        %1175 = vmatprep.mubr.bf16.mxu0 0
        %1176 = vmatmul.mubr.bf16.gmra.mrb[0].mxu0 %v805
        %v1177 = vpop.f32.mrb[0].mxu0
        %v1178 = vadd.f32 %v441, %v1177
        %v1179 = vpop.f32.mrb[0].mxu0
        %v1180 = vadd.f32 %v441, %v1179
        %v1181 = vpop.f32.mrb[0].mxu0
        %v1182 = vpop.f32.mrb[0].mxu0
        %1183 = vdwg.mxu0
        %s1184 = sld [smem:[#allocation2]]
        %vm1185 = vcmp.ge.f32.partialorder %v891, 0.0
        %vm1186 = vcmp.ge.f32.partialorder %v893, 0.0
        %vm1187 = vcmp.ge.f32.partialorder %v932, 0.0
        %vm1188 = vcmp.ge.f32.partialorder %v934, 0.0
        %vm1189 = vcmp.ge.f32.partialorder %v973, 0.0
        %vm1190 = vcmp.ge.f32.partialorder %v975, 0.0
        %vm1191 = vcmp.ge.f32.partialorder %v1014, 0.0
        %vm1192 = vcmp.ge.f32.partialorder %v1016, 0.0
        %vm1193 = vcmp.ge.f32.partialorder %v1055, 0.0
        %vm1194 = vcmp.ge.f32.partialorder %v1057, 0.0
        %vm1195 = vcmp.ge.f32.partialorder %v1096, 0.0
        %vm1196 = vcmp.ge.f32.partialorder %v1098, 0.0
        %vm1197 = vcmp.ge.f32.partialorder %v1137, 0.0
        %vm1198 = vcmp.ge.f32.partialorder %v1139, 0.0
        %vm1199 = vcmp.ge.f32.partialorder %v1178, 0.0
        %vm1200 = vcmp.ge.f32.partialorder %v1180, 0.0
        %v1201 = vstv %s1184
        %v1202 = vmul.f32 %v1201, %v891
        %v1203 = vmul.f32 %v1201, %v893
        %v1204 = vmul.f32 %v1201, %v932
        %v1205 = vmul.f32 %v1201, %v934
        %v1206 = vmul.f32 %v1201, %v973
        %v1207 = vmul.f32 %v1201, %v975
        %v1208 = vmul.f32 %v1201, %v1014
        %v1209 = vmul.f32 %v1201, %v1016
        %v1210 = vmul.f32 %v1201, %v1055
        %v1211 = vmul.f32 %v1201, %v1057
        %v1212 = vmul.f32 %v1201, %v1096
        %v1213 = vmul.f32 %v1201, %v1098
        %v1214 = vmul.f32 %v1201, %v1137
        %v1215 = vmul.f32 %v1201, %v1139
        %v1216 = vmul.f32 %v1201, %v1178
        %v1217 = vmul.f32 %v1201, %v1180
        %v1218 = vsel %vm1185, %v891, %v1202
        %v1219 = vsel %vm1186, %v893, %v1203
        %v1220 = vsel %vm1187, %v932, %v1204
        %v1221 = vsel %vm1188, %v934, %v1205
        %v1222 = vsel %vm1189, %v973, %v1206
        %v1223 = vsel %vm1190, %v975, %v1207
        %v1224 = vsel %vm1191, %v1014, %v1208
        %v1225 = vsel %vm1192, %v1016, %v1209
        %v1226 = vsel %vm1193, %v1055, %v1210
        %v1227 = vsel %vm1194, %v1057, %v1211
        %v1228 = vsel %vm1195, %v1096, %v1212
        %v1229 = vsel %vm1196, %v1098, %v1213
        %v1230 = vsel %vm1197, %v1137, %v1214
        %v1231 = vsel %vm1198, %v1139, %v1215
        %v1232 = vsel %vm1199, %v1178, %v1216
        %v1233 = vsel %vm1200, %v1180, %v1217
        %v1250 = vcombine.low %v1218, %v1219
        %v1251 = vcombine.low %v1220, %v1221
        %v1252 = vcombine.low %v1222, %v1223
        %v1253 = vcombine.low %v1224, %v1225
        %v1254 = vcombine.low %v1226, %v1227
        %v1255 = vcombine.low %v1228, %v1229
        %v1256 = vcombine.low %v1230, %v1231
        %v1257 = vcombine.low %v1232, %v1233
        %1266 = vst [vmem:[%s361] sm:$0x77] %v1250
        %1267 = vst [vmem:[%s361 + $0x8] sm:$0x77] %v1251
        %1268 = vst [vmem:[%s361 + $0x10] sm:$0x77] %v1252
        %1269 = vst [vmem:[%s361 + $0x18] sm:$0x77] %v1253
        %1270 = vst [vmem:[%s361 + $0x20] sm:$0x77] %v1254
        %1271 = vst [vmem:[%s361 + $0x28] sm:$0x77] %v1255
        %1272 = vst [vmem:[%s361 + $0x30] sm:$0x77] %v1256
        %1273 = vst [vmem:[%s361 + $0x38] sm:$0x77] %v1257
        %s1274 = smul.u32 16, %s16
        %p1275 = scmp.lt.s32.totalorder %s1274, 63
        %s1276 = scalar_select %p1275, %s1274, 63
        %s1277 = smul.addr %s1276, 4
        %s1278 = scalar_lea.vmem %s4, %s1277
        // Predicated region
        $region60: #{srfbn_hg_forward.43} parent=54 // pred_check
          %p1279 = pneg %p123
        $region61: #{srfbn_hg_forward.43} parent=54 // pred_check_branch
          %1281 = sbr.rel (%p1279) target = $region63
        $region62: #{srfbn_hg_forward.43} parent=54 // pred_region
          %s1282 = smul.u32 16, %s16
        $region63: #{srfbn_hg_forward.43} parent=54 // pred_fallthru
          _
      $region55: #{srfbn_hg_forward.43} parent=5 // pred_fallthru
        _
      %p1283 = scmp.le.s32.totalorder 2, %s11
      // Predicated region
      $region64: #{srfbn_hg_forward.43} parent=5 // pred_check
        %p1284 = pneg %p1283
      $region65: #{srfbn_hg_forward.43} parent=5 // pred_check_branch
        %1286 = sbr.rel (%p1284) target = $region67
      $region66: #{srfbn_hg_forward.43} parent=5 // pred_region
        %s1287 = ssub.s32 %s11, 2
        // Predicated region
        $region68: #{srfbn_hg_forward.43} parent=66 // pred_check
          %p1288 = pneg %p129
        $region69: #{srfbn_hg_forward.43} parent=66 // pred_check_branch
          %1290 = sbr.rel (%p1288) target = $region71
        $region70: #{srfbn_hg_forward.43} parent=66 // pred_region
          %s1291 = smul.u32 16, %s17
          %p1292 = scmp.lt.s32.totalorder %s1291, 63
          %s1293 = scalar_select %p1292, %s1291, 63
          %s1294 = smul.addr %s1293, 4
          %s1295 = scalar_lea.vmem %s4, %s1294
        $region71: #{srfbn_hg_forward.43} parent=66 // pred_fallthru
          _
      $region67: #{srfbn_hg_forward.43} parent=5 // pred_fallthru
        _
    $region6: #{srfbn_hg_forward.43} parent=1 // loop_footer
      %s15 = sadd.s32 1, %s11
    $region7: #{srfbn_hg_forward.43} parent=1 // loop_footer_branch
      %10 = sbr.rel target = $region3
    $region8: #{srfbn_hg_forward.43} parent=1 // loop_exit
      _

// kernel: srfbn_hg_forward.44
$region0: #{srfbn_hg_forward.44}
  #allocation0 [shape = 'u32[]', space=smem, size = 0x4, offset = 0x4, fixed_abs, tag = 'smem constant byte address 0x4 - core index']
  #allocation1 [shape = 'u32[144,128]{1,0:T(1,128)}', space=vmem, size = 0x12000, scoped, tag = 'internal scratch']
  #allocation2 [shape = 'f32[1]{0:T(128)S(6)}', space=smem, size = 0x200, scoped, tag = 'scoped memory for srfbn_hg_forward.44']
  %s0 = inlined_call_operand.vmem [shape: bf16[8,147], index: 0, kind: input, shape index: {}]
  %s1 = inlined_call_operand.vmem [shape: bf16[147,2048], index: 1, kind: input, shape index: {}]
  %s2 = inlined_call_operand.vmem [shape: f32[8,1], index: 2, kind: input, shape index: {}]
  %s3 = inlined_call_operand.<no memory space> [shape: f32[1], index: 3, kind: input, shape index: {}]
  %s4 = inlined_call_operand.vmem [shape: f32[8,2048], index: 4, kind: output, shape index: {}]
  %s5 = sld [smem:[#allocation0]]
  $region72: #{srfbn_hg_forward.44} parent=0
    _
  %s7 = ssub.s32 1, %s5
  %s8 = scalar_select 0, %s7, %s5
  %9 = sst [smem:[#allocation2]] %s3
  $region1: #{srfbn_hg_forward.44} parent=0
    #allocation3 [shape = 'u8[622592]{0}', space=vmem, size = 0x98000, scoped, tag = 'input window, operand 1']
    loop: start=0, step=1, limit=4
    $region2: #{srfbn_hg_forward.44} parent=1 // loop_pre_header
      _
    $region3: #{srfbn_hg_forward.44} parent=1 // loop_header
      %s11 = sphi 0, %s15
      %p12 = scmp.ge.s32.totalorder %s11, 4
      %s19 = sphi 0, %s19
      %s21 = sphi 0, %s19
      %s22 = sphi 0, %s21
      %s36 = sphi 0, %s22
      %s42 = sphi 0, %s44
      %s45 = sphi 0, %s42
      %s46 = sphi 0, %s45
      %s62 = sphi 0, %s46
      %s66 = sphi 0, %s66
      %s68 = sphi 0, %s66
      %s69 = sphi 0, %s68
      %s83 = sphi 0, %s69
      %s87 = sphi 0, %s87
      %s89 = sphi 0, %s87
      %s90 = sphi 0, %s89
      %s104 = sphi 0, %s90
      %s110 = sphi 0, %s112
      %s113 = sphi 0, %s110
      %s114 = sphi 0, %s113
      %s130 = sphi 0, %s114
    $region4: #{srfbn_hg_forward.44} parent=1 // loop_header_branch
      %14 = sbr.rel (%p12) target = $region8
    $region5: #{srfbn_hg_forward.44} parent=1 // loop_body
      %s16 = ssub.s32 %s11, 1
      %s17 = ssub.s32 %s11, 2
      %s18 = sadd.s32 %s11, 1
      %s20 = sadd.s32 %s19, 1
      %p23 = scmp.eq.s32.totalorder %s11, 1
      %p24 = scmp.ne.s32.totalorder %s19, %s21
      %p25 = scmp.eq.s32.totalorder %s11, 0
      %p26 = por %p24, %p25
      %p27 = scmp.ne.s32.totalorder %s19, %s21
      %p28 = scmp.eq.s32.totalorder %s16, 1
      %p29 = por %p27, %p28
      %p30 = scmp.ne.s32.totalorder %s21, %s22
      %p31 = scmp.eq.s32.totalorder %s16, 0
      %p32 = por %p30, %p31
      %p33 = scmp.ne.s32.totalorder %s21, %s22
      %p34 = scmp.eq.s32.totalorder %s17, 1
      %p35 = por %p33, %p34
      %p37 = scmp.ne.s32.totalorder %s22, %s36
      %p38 = scmp.eq.s32.totalorder %s17, 0
      %p39 = por %p37, %p38
      %s40 = ssub.s32 %s11, %s18
      %p41 = scmp.eq.s32.totalorder %s40, 0
      %s43 = sadd.s32 %s42, 1
      %s44 = scalar_select %p41, %s42, %s43
      %p47 = pneg %p41
      %p48 = scmp.eq.s32.totalorder %s11, 1
      %p49 = por %p47, %p48
      %p50 = scmp.ne.s32.totalorder %s42, %s45
      %p51 = scmp.eq.s32.totalorder %s11, 0
      %p52 = por %p50, %p51
      %p53 = scmp.ne.s32.totalorder %s42, %s45
      %p54 = scmp.eq.s32.totalorder %s16, 1
      %p55 = por %p53, %p54
      %p56 = scmp.ne.s32.totalorder %s45, %s46
      %p57 = scmp.eq.s32.totalorder %s16, 0
      %p58 = por %p56, %p57
      %p59 = scmp.ne.s32.totalorder %s45, %s46
      %p60 = scmp.eq.s32.totalorder %s17, 1
      %p61 = por %p59, %p60
      %p63 = scmp.ne.s32.totalorder %s46, %s62
      %p64 = scmp.eq.s32.totalorder %s17, 0
      %p65 = por %p63, %p64
      %s67 = sadd.s32 %s66, 1
      %p70 = scmp.eq.s32.totalorder %s11, 1
      %p71 = scmp.ne.s32.totalorder %s66, %s68
      %p72 = scmp.eq.s32.totalorder %s11, 0
      %p73 = por %p71, %p72
      %p74 = scmp.ne.s32.totalorder %s66, %s68
      %p75 = scmp.eq.s32.totalorder %s16, 1
      %p76 = por %p74, %p75
      %p77 = scmp.ne.s32.totalorder %s68, %s69
      %p78 = scmp.eq.s32.totalorder %s16, 0
      %p79 = por %p77, %p78
      %p80 = scmp.ne.s32.totalorder %s68, %s69
      %p81 = scmp.eq.s32.totalorder %s17, 1
      %p82 = por %p80, %p81
      %p84 = scmp.ne.s32.totalorder %s69, %s83
      %p85 = scmp.eq.s32.totalorder %s17, 0
      %p86 = por %p84, %p85
      %s88 = sadd.s32 %s87, 1
      %p91 = scmp.eq.s32.totalorder %s11, 1
      %p92 = scmp.ne.s32.totalorder %s87, %s89
      %p93 = scmp.eq.s32.totalorder %s11, 0
      %p94 = por %p92, %p93
      %p95 = scmp.ne.s32.totalorder %s87, %s89
      %p96 = scmp.eq.s32.totalorder %s16, 1
      %p97 = por %p95, %p96
      %p98 = scmp.ne.s32.totalorder %s89, %s90
      %p99 = scmp.eq.s32.totalorder %s16, 0
      %p100 = por %p98, %p99
      %p101 = scmp.ne.s32.totalorder %s89, %s90
      %p102 = scmp.eq.s32.totalorder %s17, 1
      %p103 = por %p101, %p102
      %p105 = scmp.ne.s32.totalorder %s90, %s104
      %p106 = scmp.eq.s32.totalorder %s17, 0
      %p107 = por %p105, %p106
      %s108 = ssub.s32 %s11, %s18
      %p109 = scmp.eq.s32.totalorder %s108, 0
      %s111 = sadd.s32 %s110, 1
      %s112 = scalar_select %p109, %s110, %s111
      %p115 = pneg %p109
      %p116 = scmp.eq.s32.totalorder %s11, 1
      %p117 = por %p115, %p116
      %p118 = scmp.ne.s32.totalorder %s110, %s113
      %p119 = scmp.eq.s32.totalorder %s11, 0
      %p120 = por %p118, %p119
      %p121 = scmp.ne.s32.totalorder %s110, %s113
      %p122 = scmp.eq.s32.totalorder %s16, 1
      %p123 = por %p121, %p122
      %p124 = scmp.ne.s32.totalorder %s113, %s114
      %p125 = scmp.eq.s32.totalorder %s16, 0
      %p126 = por %p124, %p125
      %p127 = scmp.ne.s32.totalorder %s113, %s114
      %p128 = scmp.eq.s32.totalorder %s17, 1
      %p129 = por %p127, %p128
      %p131 = scmp.ne.s32.totalorder %s114, %s130
      %p132 = scmp.eq.s32.totalorder %s17, 0
      %p133 = por %p131, %p132
      %p134 = scmp.le.s32.totalorder 1, %s11
      %p135 = scmp.lt.s32.totalorder %s11, 3
      %p136 = pnand %p134, %p135
      %p137 = pneg %p136
      // Predicated region
      $region9: #{srfbn_hg_forward.44} parent=5 // pred_check
        _
      $region10: #{srfbn_hg_forward.44} parent=5 // pred_check_branch
        %139 = sbr.rel (%p136) target = $region12
      $region11: #{srfbn_hg_forward.44} parent=5 // pred_region
        %s140 = ssub.s32 %s11, 1
        // Predicated region
        $region13: #{srfbn_hg_forward.44} parent=11 // pred_check
          %p141 = pneg %p32
        $region14: #{srfbn_hg_forward.44} parent=11 // pred_check_branch
          %143 = sbr.rel (%p141) target = $region16
        $region15: #{srfbn_hg_forward.44} parent=11 // pred_region
          _
        $region16: #{srfbn_hg_forward.44} parent=11 // pred_fallthru
          _
        // Predicated region
        $region17: #{srfbn_hg_forward.44} parent=11 // pred_check
          %p144 = pneg %p79
        $region18: #{srfbn_hg_forward.44} parent=11 // pred_check_branch
          %146 = sbr.rel (%p144) target = $region20
        $region19: #{srfbn_hg_forward.44} parent=11 // pred_region
          _
        $region20: #{srfbn_hg_forward.44} parent=11 // pred_fallthru
          _
        // Predicated region
        $region21: #{srfbn_hg_forward.44} parent=11 // pred_check
          %p147 = pneg %p100
        $region22: #{srfbn_hg_forward.44} parent=11 // pred_check_branch
          %149 = sbr.rel (%p147) target = $region24
        $region23: #{srfbn_hg_forward.44} parent=11 // pred_region
          _
        $region24: #{srfbn_hg_forward.44} parent=11 // pred_fallthru
          _
      $region12: #{srfbn_hg_forward.44} parent=5 // pred_fallthru
        _
      %p150 = scmp.lt.s32.totalorder %s11, 2
      // Predicated region
      $region25: #{srfbn_hg_forward.44} parent=5 // pred_check
        %p151 = pneg %p150
      $region26: #{srfbn_hg_forward.44} parent=5 // pred_check_branch
        %153 = sbr.rel (%p151) target = $region28
      $region27: #{srfbn_hg_forward.44} parent=5 // pred_region
        // Predicated region
        $region29: #{srfbn_hg_forward.44} parent=27 // pred_check
          %p154 = pneg %p52
        $region30: #{srfbn_hg_forward.44} parent=27 // pred_check_branch
          %156 = sbr.rel (%p154) target = $region32
        $region31: #{srfbn_hg_forward.44} parent=27 // pred_region
          %s157 = sand.u32 %s42, 1
          %s158 = sand.u32 %s42, 1
          %s159 = smul.addr %s158, 608
          %s160 = scalar_lea.vmem [#allocation3], %s159
          %s161 = smul.u32 8, %s11
          %s162 = smul.addr %s161, 4
          %s163 = scalar_lea.vmem %s1, %s162
          // Predicated region
          $region33: #{srfbn_hg_forward.44} parent=31 // pred_check
            _
          $region34: #{srfbn_hg_forward.44} parent=31 // pred_check_branch
            %165 = sbr.rel (0) target = $region36
          $region35: #{srfbn_hg_forward.44} parent=31 // pred_region
            // Predicated region
            $region37: #{srfbn_hg_forward.44} parent=35 // pred_check
              _
            $region38: #{srfbn_hg_forward.44} parent=35 // pred_check_branch
              %167 = sbr.rel (0) target = $region40
            $region39: #{srfbn_hg_forward.44} parent=35 // pred_region
              loop: start=0, step=1, limit=1
              $region41: #{srfbn_hg_forward.44} parent=39 // loop_pre_header
                _
              $region42: #{srfbn_hg_forward.44} parent=39 // loop_header
                %s169 = sphi 0, %s173
                %p170 = scmp.ge.s32.totalorder %s169, 1
                %s174 = sphi %s163, %s163
                %s175 = sphi %s160, %s160
              $region43: #{srfbn_hg_forward.44} parent=39 // loop_header_branch
                %172 = sbr.rel (%p170) target = $region47
              $region44: #{srfbn_hg_forward.44} parent=39 // loop_body
                %v176 = vld [vmem:[%s174] sm:$0xff]
                %177 = vst [vmem:[%s175] sm:$0xff] %v176
                %v178 = vld [vmem:[%s174 + $0x8] sm:$0xff]
                %179 = vst [vmem:[%s175 + $0x8] sm:$0xff] %v178
                %v180 = vld [vmem:[%s174 + $0x10] sm:$0xff]
                %181 = vst [vmem:[%s175 + $0x10] sm:$0xff] %v180
                %v182 = vld [vmem:[%s174 + $0x18] sm:$0xff]
                %183 = vst [vmem:[%s175 + $0x18] sm:$0xff] %v182
                %v184 = vld [vmem:[%s174 + $0x40] sm:$0xff]
                %185 = vst [vmem:[%s175 + $0x20] sm:$0xff] %v184
                %v186 = vld [vmem:[%s174 + $0x48] sm:$0xff]
                %187 = vst [vmem:[%s175 + $0x28] sm:$0xff] %v186
                %v188 = vld [vmem:[%s174 + $0x50] sm:$0xff]
                %189 = vst [vmem:[%s175 + $0x30] sm:$0xff] %v188
                %v190 = vld [vmem:[%s174 + $0x58] sm:$0xff]
                %191 = vst [vmem:[%s175 + $0x38] sm:$0xff] %v190
                %v192 = vld [vmem:[%s174 + $0x80] sm:$0xff]
                %193 = vst [vmem:[%s175 + $0x40] sm:$0xff] %v192
                %v194 = vld [vmem:[%s174 + $0x88] sm:$0xff]
                %195 = vst [vmem:[%s175 + $0x48] sm:$0xff] %v194
                %v196 = vld [vmem:[%s174 + $0x90] sm:$0xff]
                %197 = vst [vmem:[%s175 + $0x50] sm:$0xff] %v196
                %v198 = vld [vmem:[%s174 + $0x98] sm:$0xff]
                %199 = vst [vmem:[%s175 + $0x58] sm:$0xff] %v198
                %v200 = vld [vmem:[%s174 + $0xc0] sm:$0xff]
                %201 = vst [vmem:[%s175 + $0x60] sm:$0xff] %v200
                %v202 = vld [vmem:[%s174 + $0xc8] sm:$0xff]
                %203 = vst [vmem:[%s175 + $0x68] sm:$0xff] %v202
                %v204 = vld [vmem:[%s174 + $0xd0] sm:$0xff]
                %205 = vst [vmem:[%s175 + $0x70] sm:$0xff] %v204
                %v206 = vld [vmem:[%s174 + $0xd8] sm:$0xff]
                %207 = vst [vmem:[%s175 + $0x78] sm:$0xff] %v206
                %v208 = vld [vmem:[%s174 + $0x100] sm:$0xff]
                %209 = vst [vmem:[%s175 + $0x80] sm:$0xff] %v208
                %v210 = vld [vmem:[%s174 + $0x108] sm:$0xff]
                %211 = vst [vmem:[%s175 + $0x88] sm:$0xff] %v210
                %v212 = vld [vmem:[%s174 + $0x110] sm:$0xff]
                %213 = vst [vmem:[%s175 + $0x90] sm:$0xff] %v212
                %v214 = vld [vmem:[%s174 + $0x118] sm:$0xff]
                %215 = vst [vmem:[%s175 + $0x98] sm:$0xff] %v214
                %v216 = vld [vmem:[%s174 + $0x140] sm:$0xff]
                %217 = vst [vmem:[%s175 + $0xa0] sm:$0xff] %v216
                %v218 = vld [vmem:[%s174 + $0x148] sm:$0xff]
                %219 = vst [vmem:[%s175 + $0xa8] sm:$0xff] %v218
                %v220 = vld [vmem:[%s174 + $0x150] sm:$0xff]
                %221 = vst [vmem:[%s175 + $0xb0] sm:$0xff] %v220
                %v222 = vld [vmem:[%s174 + $0x158] sm:$0xff]
                %223 = vst [vmem:[%s175 + $0xb8] sm:$0xff] %v222
                %v224 = vld [vmem:[%s174 + $0x180] sm:$0xff]
                %225 = vst [vmem:[%s175 + $0xc0] sm:$0xff] %v224
                %v226 = vld [vmem:[%s174 + $0x188] sm:$0xff]
                %227 = vst [vmem:[%s175 + $0xc8] sm:$0xff] %v226
                %v228 = vld [vmem:[%s174 + $0x190] sm:$0xff]
                %229 = vst [vmem:[%s175 + $0xd0] sm:$0xff] %v228
                %v230 = vld [vmem:[%s174 + $0x198] sm:$0xff]
                %231 = vst [vmem:[%s175 + $0xd8] sm:$0xff] %v230
                %v232 = vld [vmem:[%s174 + $0x1c0] sm:$0xff]
                %233 = vst [vmem:[%s175 + $0xe0] sm:$0xff] %v232
                %v234 = vld [vmem:[%s174 + $0x1c8] sm:$0xff]
                %235 = vst [vmem:[%s175 + $0xe8] sm:$0xff] %v234
                %v236 = vld [vmem:[%s174 + $0x1d0] sm:$0xff]
                %237 = vst [vmem:[%s175 + $0xf0] sm:$0xff] %v236
                %v238 = vld [vmem:[%s174 + $0x1d8] sm:$0xff]
                %239 = vst [vmem:[%s175 + $0xf8] sm:$0xff] %v238
                %v240 = vld [vmem:[%s174 + $0x200] sm:$0xff]
                %241 = vst [vmem:[%s175 + $0x100] sm:$0xff] %v240
                %v242 = vld [vmem:[%s174 + $0x208] sm:$0xff]
                %243 = vst [vmem:[%s175 + $0x108] sm:$0xff] %v242
                %v244 = vld [vmem:[%s174 + $0x210] sm:$0xff]
                %245 = vst [vmem:[%s175 + $0x110] sm:$0xff] %v244
                %v246 = vld [vmem:[%s174 + $0x218] sm:$0xff]
                %247 = vst [vmem:[%s175 + $0x118] sm:$0xff] %v246
                %v248 = vld [vmem:[%s174 + $0x240] sm:$0xff]
                %249 = vst [vmem:[%s175 + $0x120] sm:$0xff] %v248
                %v250 = vld [vmem:[%s174 + $0x248] sm:$0xff]
                %251 = vst [vmem:[%s175 + $0x128] sm:$0xff] %v250
                %v252 = vld [vmem:[%s174 + $0x250] sm:$0xff]
                %253 = vst [vmem:[%s175 + $0x130] sm:$0xff] %v252
                %v254 = vld [vmem:[%s174 + $0x258] sm:$0xff]
                %255 = vst [vmem:[%s175 + $0x138] sm:$0xff] %v254
                %v256 = vld [vmem:[%s174 + $0x280] sm:$0xff]
                %257 = vst [vmem:[%s175 + $0x140] sm:$0xff] %v256
                %v258 = vld [vmem:[%s174 + $0x288] sm:$0xff]
                %259 = vst [vmem:[%s175 + $0x148] sm:$0xff] %v258
                %v260 = vld [vmem:[%s174 + $0x290] sm:$0xff]
                %261 = vst [vmem:[%s175 + $0x150] sm:$0xff] %v260
                %v262 = vld [vmem:[%s174 + $0x298] sm:$0xff]
                %263 = vst [vmem:[%s175 + $0x158] sm:$0xff] %v262
                %v264 = vld [vmem:[%s174 + $0x2c0] sm:$0xff]
                %265 = vst [vmem:[%s175 + $0x160] sm:$0xff] %v264
                %v266 = vld [vmem:[%s174 + $0x2c8] sm:$0xff]
                %267 = vst [vmem:[%s175 + $0x168] sm:$0xff] %v266
                %v268 = vld [vmem:[%s174 + $0x2d0] sm:$0xff]
                %269 = vst [vmem:[%s175 + $0x170] sm:$0xff] %v268
                %v270 = vld [vmem:[%s174 + $0x2d8] sm:$0xff]
                %271 = vst [vmem:[%s175 + $0x178] sm:$0xff] %v270
                %v272 = vld [vmem:[%s174 + $0x300] sm:$0xff]
                %273 = vst [vmem:[%s175 + $0x180] sm:$0xff] %v272
                %v274 = vld [vmem:[%s174 + $0x308] sm:$0xff]
                %275 = vst [vmem:[%s175 + $0x188] sm:$0xff] %v274
                %v276 = vld [vmem:[%s174 + $0x310] sm:$0xff]
                %277 = vst [vmem:[%s175 + $0x190] sm:$0xff] %v276
                %v278 = vld [vmem:[%s174 + $0x318] sm:$0xff]
                %279 = vst [vmem:[%s175 + $0x198] sm:$0xff] %v278
                %v280 = vld [vmem:[%s174 + $0x340] sm:$0xff]
                %281 = vst [vmem:[%s175 + $0x1a0] sm:$0xff] %v280
                %v282 = vld [vmem:[%s174 + $0x348] sm:$0xff]
                %283 = vst [vmem:[%s175 + $0x1a8] sm:$0xff] %v282
                %v284 = vld [vmem:[%s174 + $0x350] sm:$0xff]
                %285 = vst [vmem:[%s175 + $0x1b0] sm:$0xff] %v284
                %v286 = vld [vmem:[%s174 + $0x358] sm:$0xff]
                %287 = vst [vmem:[%s175 + $0x1b8] sm:$0xff] %v286
                %v288 = vld [vmem:[%s174 + $0x380] sm:$0xff]
                %289 = vst [vmem:[%s175 + $0x1c0] sm:$0xff] %v288
                %v290 = vld [vmem:[%s174 + $0x388] sm:$0xff]
                %291 = vst [vmem:[%s175 + $0x1c8] sm:$0xff] %v290
                %v292 = vld [vmem:[%s174 + $0x390] sm:$0xff]
                %293 = vst [vmem:[%s175 + $0x1d0] sm:$0xff] %v292
                %v294 = vld [vmem:[%s174 + $0x398] sm:$0xff]
                %295 = vst [vmem:[%s175 + $0x1d8] sm:$0xff] %v294
                %v296 = vld [vmem:[%s174 + $0x3c0] sm:$0xff]
                %297 = vst [vmem:[%s175 + $0x1e0] sm:$0xff] %v296
                %v298 = vld [vmem:[%s174 + $0x3c8] sm:$0xff]
                %299 = vst [vmem:[%s175 + $0x1e8] sm:$0xff] %v298
                %v300 = vld [vmem:[%s174 + $0x3d0] sm:$0xff]
                %301 = vst [vmem:[%s175 + $0x1f0] sm:$0xff] %v300
                %v302 = vld [vmem:[%s174 + $0x3d8] sm:$0xff]
                %303 = vst [vmem:[%s175 + $0x1f8] sm:$0xff] %v302
                %v304 = vld [vmem:[%s174 + $0x400] sm:$0xff]
                %305 = vst [vmem:[%s175 + $0x200] sm:$0xff] %v304
                %v306 = vld [vmem:[%s174 + $0x408] sm:$0xff]
                %307 = vst [vmem:[%s175 + $0x208] sm:$0xff] %v306
                %v308 = vld [vmem:[%s174 + $0x410] sm:$0xff]
                %309 = vst [vmem:[%s175 + $0x210] sm:$0xff] %v308
                %v310 = vld [vmem:[%s174 + $0x418] sm:$0xff]
                %311 = vst [vmem:[%s175 + $0x218] sm:$0xff] %v310
                %v312 = vld [vmem:[%s174 + $0x440] sm:$0xff]
                %313 = vst [vmem:[%s175 + $0x220] sm:$0xff] %v312
                %v314 = vld [vmem:[%s174 + $0x448] sm:$0xff]
                %315 = vst [vmem:[%s175 + $0x228] sm:$0xff] %v314
                %v316 = vld [vmem:[%s174 + $0x450] sm:$0xff]
                %317 = vst [vmem:[%s175 + $0x230] sm:$0xff] %v316
                %v318 = vld [vmem:[%s174 + $0x458] sm:$0xff]
                %319 = vst [vmem:[%s175 + $0x238] sm:$0xff] %v318
                %v320 = vld [vmem:[%s174 + $0x480] sm:$0xff]
                %321 = vst [vmem:[%s175 + $0x240] sm:$0xff] %v320
                %v322 = vld [vmem:[%s174 + $0x488] sm:$0xff]
                %323 = vst [vmem:[%s175 + $0x248] sm:$0xff] %v322
                %v324 = vld [vmem:[%s174 + $0x490] sm:$0xff]
                %325 = vst [vmem:[%s175 + $0x250] sm:$0xff] %v324
                %v326 = vld [vmem:[%s174 + $0x498] sm:$0xff]
                %327 = vst [vmem:[%s175 + $0x258] sm:$0xff] %v326
              $region45: #{srfbn_hg_forward.44} parent=39 // loop_footer
                %s173 = sadd.s32 1, %s169
              $region46: #{srfbn_hg_forward.44} parent=39 // loop_footer_branch
                %168 = sbr.rel target = $region42
              $region47: #{srfbn_hg_forward.44} parent=39 // loop_exit
                _
            $region40: #{srfbn_hg_forward.44} parent=35 // pred_fallthru
              _
            // Predicated region
            $region48: #{srfbn_hg_forward.44} parent=35 // pred_check
              _
            $region49: #{srfbn_hg_forward.44} parent=35 // pred_check_branch
              %329 = sbr.rel target = $region51
            $region50: #{srfbn_hg_forward.44} parent=35 // pred_region
              _
            $region51: #{srfbn_hg_forward.44} parent=35 // pred_fallthru
              _
          $region36: #{srfbn_hg_forward.44} parent=31 // pred_fallthru
            _
          %330 = vnop
        $region32: #{srfbn_hg_forward.44} parent=27 // pred_fallthru
          _
      $region28: #{srfbn_hg_forward.44} parent=5 // pred_fallthru
        _
      %p331 = scmp.le.s32.totalorder 1, %s11
      %p332 = scmp.lt.s32.totalorder %s11, 3
      %p333 = pnand %p331, %p332
      %p334 = pneg %p333
      // Predicated region
      $region52: #{srfbn_hg_forward.44} parent=5 // pred_check
        _
      $region53: #{srfbn_hg_forward.44} parent=5 // pred_check_branch
        %336 = sbr.rel (%p333) target = $region55
      $region54: #{srfbn_hg_forward.44} parent=5 // pred_region
        %s337 = ssub.s32 %s11, 1
        %s338 = sand.u32 %s45, 1
        %s339 = sand.u32 %s45, 1
        %s340 = smul.addr %s339, 608
        %s341 = scalar_lea.vmem [#allocation3], %s340
        // Predicated region
        $region56: #{srfbn_hg_forward.44} parent=54 // pred_check
          %p342 = pneg %p58
        $region57: #{srfbn_hg_forward.44} parent=54 // pred_check_branch
          %344 = sbr.rel (%p342) target = $region59
        $region58: #{srfbn_hg_forward.44} parent=54 // pred_region
          _
        $region59: #{srfbn_hg_forward.44} parent=54 // pred_fallthru
          _
        %p345 = pneg %p32
        %p346 = pneg %p29
        %s347 = sand.u32 %s45, 1
        %s348 = sand.u32 %s45, 1
        %s349 = smul.addr %s348, 608
        %s350 = scalar_lea.vmem [#allocation3], %s349
        %p351 = pneg %p58
        %p352 = pneg %p55
        %p353 = pneg %p79
        %p354 = pneg %p76
        %p355 = pneg %p100
        %p356 = pneg %p97
        %p357 = pneg %p126
        %p358 = pneg %p123
        %s359 = smul.u32 8, %s16
        %p360 = scmp.lt.s32.totalorder %s359, 15
        %s361 = scalar_select %p360, %s359, 15
        %s362 = smul.addr %s361, 8
        %s363 = scalar_lea.vmem %s4, %s362
        %s364 = smul.u32 8, %s16
        %s365 = smul.u32 8, %s16
        %p366 = scmp.lt.s32.totalorder %s365, 15
        %s367 = scalar_select %p366, %s365, 15
        %s368 = smul.addr %s367, 8
        %s369 = scalar_lea.vmem %s4, %s368
        %s370 = smul.u32 8, %s16
        %v372 = vld [vmem:[%s0] sm:$0xff]
        %v373 = vld [vmem:[%s341] sm:$0xff]
        %v374 = vld [vmem:[%s341 + $0x8] sm:$0xff]
        %v375 = vld [vmem:[%s341 + $0x10] sm:$0xff]
        %v376 = vld [vmem:[%s341 + $0x18] sm:$0xff]
        %v377 = vld [vmem:[%s341 + $0x20] sm:$0xff]
        %v378 = vld [vmem:[%s341 + $0x28] sm:$0xff]
        %v379 = vld [vmem:[%s341 + $0x30] sm:$0xff]
        %v380 = vld [vmem:[%s341 + $0x38] sm:$0xff]
        %v381 = vld [vmem:[%s341 + $0x40] sm:$0xff]
        %v382 = vld [vmem:[%s341 + $0x48] sm:$0xff]
        %v383 = vld [vmem:[%s341 + $0x50] sm:$0xff]
        %v384 = vld [vmem:[%s341 + $0x58] sm:$0xff]
        %v385 = vld [vmem:[%s341 + $0x60] sm:$0xff]
        %v386 = vld [vmem:[%s341 + $0x68] sm:$0xff]
        %v387 = vld [vmem:[%s341 + $0x70] sm:$0xff]
        %v388 = vld [vmem:[%s341 + $0x78] sm:$0xff]
        %v389 = vld [vmem:[%s341 + $0x80] sm:$0xff]
        %v390 = vld [vmem:[%s341 + $0x88] sm:$0xff]
        %v391 = vld [vmem:[%s341 + $0x90] sm:$0xff]
        %v392 = vld [vmem:[%s341 + $0x98] sm:$0xff]
        %v393 = vld [vmem:[%s341 + $0xa0] sm:$0xff]
        %v394 = vld [vmem:[%s341 + $0xa8] sm:$0xff]
        %v395 = vld [vmem:[%s341 + $0xb0] sm:$0xff]
        %v396 = vld [vmem:[%s341 + $0xb8] sm:$0xff]
        %v397 = vld [vmem:[%s341 + $0xc0] sm:$0xff]
        %v398 = vld [vmem:[%s341 + $0xc8] sm:$0xff]
        %v399 = vld [vmem:[%s341 + $0xd0] sm:$0xff]
        %v400 = vld [vmem:[%s341 + $0xd8] sm:$0xff]
        %v401 = vld [vmem:[%s341 + $0xe0] sm:$0xff]
        %v402 = vld [vmem:[%s341 + $0xe8] sm:$0xff]
        %v403 = vld [vmem:[%s341 + $0xf0] sm:$0xff]
        %v404 = vld [vmem:[%s341 + $0xf8] sm:$0xff]
        %v405 = vld [vmem:[%s341 + $0x100] sm:$0xff]
        %v406 = vld [vmem:[%s341 + $0x108] sm:$0xff]
        %v407 = vld [vmem:[%s341 + $0x110] sm:$0xff]
        %v408 = vld [vmem:[%s341 + $0x118] sm:$0xff]
        %v409 = vld [vmem:[%s341 + $0x120] sm:$0xff]
        %v410 = vld [vmem:[%s341 + $0x128] sm:$0xff]
        %v411 = vld [vmem:[%s341 + $0x130] sm:$0xff]
        %v412 = vld [vmem:[%s341 + $0x138] sm:$0xff]
        %v413 = vld [vmem:[%s341 + $0x140] sm:$0xff]
        %v414 = vld [vmem:[%s341 + $0x148] sm:$0xff]
        %v415 = vld [vmem:[%s341 + $0x150] sm:$0xff]
        %v416 = vld [vmem:[%s341 + $0x158] sm:$0xff]
        %v417 = vld [vmem:[%s341 + $0x160] sm:$0xff]
        %v418 = vld [vmem:[%s341 + $0x168] sm:$0xff]
        %v419 = vld [vmem:[%s341 + $0x170] sm:$0xff]
        %v420 = vld [vmem:[%s341 + $0x178] sm:$0xff]
        %v421 = vld [vmem:[%s341 + $0x180] sm:$0xff]
        %v422 = vld [vmem:[%s341 + $0x188] sm:$0xff]
        %v423 = vld [vmem:[%s341 + $0x190] sm:$0xff]
        %v424 = vld [vmem:[%s341 + $0x198] sm:$0xff]
        %v425 = vld [vmem:[%s341 + $0x1a0] sm:$0xff]
        %v426 = vld [vmem:[%s341 + $0x1a8] sm:$0xff]
        %v427 = vld [vmem:[%s341 + $0x1b0] sm:$0xff]
        %v428 = vld [vmem:[%s341 + $0x1b8] sm:$0xff]
        %v429 = vld [vmem:[%s341 + $0x1c0] sm:$0xff]
        %v430 = vld [vmem:[%s341 + $0x1c8] sm:$0xff]
        %v431 = vld [vmem:[%s341 + $0x1d0] sm:$0xff]
        %v432 = vld [vmem:[%s341 + $0x1d8] sm:$0xff]
        %v433 = vld [vmem:[%s341 + $0x1e0] sm:$0xff]
        %v434 = vld [vmem:[%s341 + $0x1e8] sm:$0xff]
        %v435 = vld [vmem:[%s341 + $0x1f0] sm:$0xff]
        %v436 = vld [vmem:[%s341 + $0x1f8] sm:$0xff]
        %v437 = vld [vmem:[%s341 + $0x200] sm:$0xff]
        %v438 = vld [vmem:[%s341 + $0x208] sm:$0xff]
        %v439 = vld [vmem:[%s341 + $0x210] sm:$0xff]
        %v440 = vld [vmem:[%s341 + $0x218] sm:$0xff]
        %v441 = vld [vmem:[%s341 + $0x220] sm:$0xff]
        %v442 = vld [vmem:[%s341 + $0x228] sm:$0xff]
        %v443 = vld [vmem:[%s341 + $0x230] sm:$0xff]
        %v444 = vld [vmem:[%s341 + $0x238] sm:$0xff]
        %v445 = vld [vmem:[%s341 + $0x240] sm:$0x33]
        %v446 = vld [vmem:[%s341 + $0x248] sm:$0x33]
        %v447 = vld [vmem:[%s341 + $0x250] sm:$0x33]
        %v448 = vld [vmem:[%s341 + $0x258] sm:$0x33]
        %v449 = vld [vmem:[%s2] sm:$0xff]
        %451 = vset.pattern.permute.xlu0 0
        %452 = vperm.xlu0 %451, %v449
        %v453 = vpop.permute.xlu0 %452
        %v456 = vunpack.c.l.b16 %v372
        %v457 = vunpack.c.h.b16 %v372
        %v458 = vpack.c.b16 %v456, %v456
        %v459 = vpack.c.b16 %v457, %v457
        %v537 = vunpack.c.l.b16 %v373
        %v538 = vunpack.c.h.b16 %v373
        %v539 = vunpack.c.l.b16 %v374
        %v540 = vunpack.c.h.b16 %v374
        %v541 = vunpack.c.l.b16 %v375
        %v542 = vunpack.c.h.b16 %v375
        %v543 = vunpack.c.l.b16 %v376
        %v544 = vunpack.c.h.b16 %v376
        %v545 = vunpack.c.l.b16 %v377
        %v546 = vunpack.c.h.b16 %v377
        %v547 = vunpack.c.l.b16 %v378
        %v548 = vunpack.c.h.b16 %v378
        %v549 = vunpack.c.l.b16 %v379
        %v550 = vunpack.c.h.b16 %v379
        %v551 = vunpack.c.l.b16 %v380
        %v552 = vunpack.c.h.b16 %v380
        %v553 = vunpack.c.l.b16 %v381
        %v554 = vunpack.c.h.b16 %v381
        %v555 = vunpack.c.l.b16 %v382
        %v556 = vunpack.c.h.b16 %v382
        %v557 = vunpack.c.l.b16 %v383
        %v558 = vunpack.c.h.b16 %v383
        %v559 = vunpack.c.l.b16 %v384
        %v560 = vunpack.c.h.b16 %v384
        %v561 = vunpack.c.l.b16 %v385
        %v562 = vunpack.c.h.b16 %v385
        %v563 = vunpack.c.l.b16 %v386
        %v564 = vunpack.c.h.b16 %v386
        %v565 = vunpack.c.l.b16 %v387
        %v566 = vunpack.c.h.b16 %v387
        %v567 = vunpack.c.l.b16 %v388
        %v568 = vunpack.c.h.b16 %v388
        %v569 = vunpack.c.l.b16 %v389
        %v570 = vunpack.c.h.b16 %v389
        %v571 = vunpack.c.l.b16 %v390
        %v572 = vunpack.c.h.b16 %v390
        %v573 = vunpack.c.l.b16 %v391
        %v574 = vunpack.c.h.b16 %v391
        %v575 = vunpack.c.l.b16 %v392
        %v576 = vunpack.c.h.b16 %v392
        %v577 = vunpack.c.l.b16 %v393
        %v578 = vunpack.c.h.b16 %v393
        %v579 = vunpack.c.l.b16 %v394
        %v580 = vunpack.c.h.b16 %v394
        %v581 = vunpack.c.l.b16 %v395
        %v582 = vunpack.c.h.b16 %v395
        %v583 = vunpack.c.l.b16 %v396
        %v584 = vunpack.c.h.b16 %v396
        %v585 = vunpack.c.l.b16 %v397
        %v586 = vunpack.c.h.b16 %v397
        %v587 = vunpack.c.l.b16 %v398
        %v588 = vunpack.c.h.b16 %v398
        %v589 = vunpack.c.l.b16 %v399
        %v590 = vunpack.c.h.b16 %v399
        %v591 = vunpack.c.l.b16 %v400
        %v592 = vunpack.c.h.b16 %v400
        %v593 = vunpack.c.l.b16 %v401
        %v594 = vunpack.c.h.b16 %v401
        %v595 = vunpack.c.l.b16 %v402
        %v596 = vunpack.c.h.b16 %v402
        %v597 = vunpack.c.l.b16 %v403
        %v598 = vunpack.c.h.b16 %v403
        %v599 = vunpack.c.l.b16 %v404
        %v600 = vunpack.c.h.b16 %v404
        %v601 = vunpack.c.l.b16 %v405
        %v602 = vunpack.c.h.b16 %v405
        %v603 = vunpack.c.l.b16 %v406
        %v604 = vunpack.c.h.b16 %v406
        %v605 = vunpack.c.l.b16 %v407
        %v606 = vunpack.c.h.b16 %v407
        %v607 = vunpack.c.l.b16 %v408
        %v608 = vunpack.c.h.b16 %v408
        %v609 = vunpack.c.l.b16 %v409
        %v610 = vunpack.c.h.b16 %v409
        %v611 = vunpack.c.l.b16 %v410
        %v612 = vunpack.c.h.b16 %v410
        %v613 = vunpack.c.l.b16 %v411
        %v614 = vunpack.c.h.b16 %v411
        %v615 = vunpack.c.l.b16 %v412
        %v616 = vunpack.c.h.b16 %v412
        %v617 = vunpack.c.l.b16 %v413
        %v618 = vunpack.c.h.b16 %v413
        %v619 = vunpack.c.l.b16 %v414
        %v620 = vunpack.c.h.b16 %v414
        %v621 = vunpack.c.l.b16 %v415
        %v622 = vunpack.c.h.b16 %v415
        %v623 = vunpack.c.l.b16 %v416
        %v624 = vunpack.c.h.b16 %v416
        %v625 = vunpack.c.l.b16 %v417
        %v626 = vunpack.c.h.b16 %v417
        %v627 = vunpack.c.l.b16 %v418
        %v628 = vunpack.c.h.b16 %v418
        %v629 = vunpack.c.l.b16 %v419
        %v630 = vunpack.c.h.b16 %v419
        %v631 = vunpack.c.l.b16 %v420
        %v632 = vunpack.c.h.b16 %v420
        %v633 = vunpack.c.l.b16 %v421
        %v634 = vunpack.c.h.b16 %v421
        %v635 = vunpack.c.l.b16 %v422
        %v636 = vunpack.c.h.b16 %v422
        %v637 = vunpack.c.l.b16 %v423
        %v638 = vunpack.c.h.b16 %v423
        %v639 = vunpack.c.l.b16 %v424
        %v640 = vunpack.c.h.b16 %v424
        %v641 = vunpack.c.l.b16 %v425
        %v642 = vunpack.c.h.b16 %v425
        %v643 = vunpack.c.l.b16 %v426
        %v644 = vunpack.c.h.b16 %v426
        %v645 = vunpack.c.l.b16 %v427
        %v646 = vunpack.c.h.b16 %v427
        %v647 = vunpack.c.l.b16 %v428
        %v648 = vunpack.c.h.b16 %v428
        %v649 = vunpack.c.l.b16 %v429
        %v650 = vunpack.c.h.b16 %v429
        %v651 = vunpack.c.l.b16 %v430
        %v652 = vunpack.c.h.b16 %v430
        %v653 = vunpack.c.l.b16 %v431
        %v654 = vunpack.c.h.b16 %v431
        %v655 = vunpack.c.l.b16 %v432
        %v656 = vunpack.c.h.b16 %v432
        %v657 = vunpack.c.l.b16 %v433
        %v658 = vunpack.c.h.b16 %v433
        %v659 = vunpack.c.l.b16 %v434
        %v660 = vunpack.c.h.b16 %v434
        %v661 = vunpack.c.l.b16 %v435
        %v662 = vunpack.c.h.b16 %v435
        %v663 = vunpack.c.l.b16 %v436
        %v664 = vunpack.c.h.b16 %v436
        %v665 = vunpack.c.l.b16 %v437
        %v666 = vunpack.c.h.b16 %v437
        %v667 = vunpack.c.l.b16 %v438
        %v668 = vunpack.c.h.b16 %v438
        %v669 = vunpack.c.l.b16 %v439
        %v670 = vunpack.c.h.b16 %v439
        %v671 = vunpack.c.l.b16 %v440
        %v672 = vunpack.c.h.b16 %v440
        %v673 = vunpack.c.l.b16 %v441
        %v674 = vunpack.c.h.b16 %v441
        %v675 = vunpack.c.l.b16 %v442
        %v676 = vunpack.c.h.b16 %v442
        %v677 = vunpack.c.l.b16 %v443
        %v678 = vunpack.c.h.b16 %v443
        %v679 = vunpack.c.l.b16 %v444
        %v680 = vunpack.c.h.b16 %v444
        %v681 = vunpack.c.l.b16 %v445
        %v682 = vunpack.c.h.b16 %v445
        %v683 = vunpack.c.l.b16 %v446
        %v684 = vunpack.c.h.b16 %v446
        %v685 = vunpack.c.l.b16 %v447
        %v686 = vunpack.c.h.b16 %v447
        %v687 = vunpack.c.l.b16 %v448
        %v688 = vunpack.c.h.b16 %v448
        %v689 = vpack.c.b16 %v545, %v537
        %v690 = vpack.c.b16 %v546, %v538
        %v691 = vpack.c.b16 %v547, %v539
        %v692 = vpack.c.b16 %v548, %v540
        %v693 = vpack.c.b16 %v549, %v541
        %v694 = vpack.c.b16 %v550, %v542
        %v695 = vpack.c.b16 %v551, %v543
        %v696 = vpack.c.b16 %v552, %v544
        %v697 = vpack.c.b16 %v561, %v553
        %v698 = vpack.c.b16 %v562, %v554
        %v699 = vpack.c.b16 %v563, %v555
        %v700 = vpack.c.b16 %v564, %v556
        %v701 = vpack.c.b16 %v565, %v557
        %v702 = vpack.c.b16 %v566, %v558
        %v703 = vpack.c.b16 %v567, %v559
        %v704 = vpack.c.b16 %v568, %v560
        %v705 = vpack.c.b16 %v577, %v569
        %v706 = vpack.c.b16 %v578, %v570
        %v707 = vpack.c.b16 %v579, %v571
        %v708 = vpack.c.b16 %v580, %v572
        %v709 = vpack.c.b16 %v581, %v573
        %v710 = vpack.c.b16 %v582, %v574
        %v711 = vpack.c.b16 %v583, %v575
        %v712 = vpack.c.b16 %v584, %v576
        %v713 = vpack.c.b16 %v593, %v585
        %v714 = vpack.c.b16 %v594, %v586
        %v715 = vpack.c.b16 %v595, %v587
        %v716 = vpack.c.b16 %v596, %v588
        %v717 = vpack.c.b16 %v597, %v589
        %v718 = vpack.c.b16 %v598, %v590
        %v719 = vpack.c.b16 %v599, %v591
        %v720 = vpack.c.b16 %v600, %v592
        %v721 = vpack.c.b16 %v609, %v601
        %v722 = vpack.c.b16 %v610, %v602
        %v723 = vpack.c.b16 %v611, %v603
        %v724 = vpack.c.b16 %v612, %v604
        %v725 = vpack.c.b16 %v613, %v605
        %v726 = vpack.c.b16 %v614, %v606
        %v727 = vpack.c.b16 %v615, %v607
        %v728 = vpack.c.b16 %v616, %v608
        %v729 = vpack.c.b16 %v625, %v617
        %v730 = vpack.c.b16 %v626, %v618
        %v731 = vpack.c.b16 %v627, %v619
        %v732 = vpack.c.b16 %v628, %v620
        %v733 = vpack.c.b16 %v629, %v621
        %v734 = vpack.c.b16 %v630, %v622
        %v735 = vpack.c.b16 %v631, %v623
        %v736 = vpack.c.b16 %v632, %v624
        %v737 = vpack.c.b16 %v641, %v633
        %v738 = vpack.c.b16 %v642, %v634
        %v739 = vpack.c.b16 %v643, %v635
        %v740 = vpack.c.b16 %v644, %v636
        %v741 = vpack.c.b16 %v645, %v637
        %v742 = vpack.c.b16 %v646, %v638
        %v743 = vpack.c.b16 %v647, %v639
        %v744 = vpack.c.b16 %v648, %v640
        %v745 = vpack.c.b16 %v657, %v649
        %v746 = vpack.c.b16 %v658, %v650
        %v747 = vpack.c.b16 %v659, %v651
        %v748 = vpack.c.b16 %v660, %v652
        %v749 = vpack.c.b16 %v661, %v653
        %v750 = vpack.c.b16 %v662, %v654
        %v751 = vpack.c.b16 %v663, %v655
        %v752 = vpack.c.b16 %v664, %v656
        %v753 = vpack.c.b16 %v673, %v665
        %v754 = vpack.c.b16 %v674, %v666
        %v755 = vpack.c.b16 %v675, %v667
        %v756 = vpack.c.b16 %v676, %v668
        %v757 = vpack.c.b16 %v677, %v669
        %v758 = vpack.c.b16 %v678, %v670
        %v759 = vpack.c.b16 %v679, %v671
        %v760 = vpack.c.b16 %v680, %v672
        %v761 = vpack.c.b16 %v681, %v681
        %v762 = vpack.c.b16 %v682, %v682
        %v763 = vpack.c.b16 %v683, %v683
        %v764 = vpack.c.b16 %v684, %v684
        %v765 = vpack.c.b16 %v685, %v685
        %v766 = vpack.c.b16 %v686, %v686
        %v767 = vpack.c.b16 %v687, %v687
        %v768 = vpack.c.b16 %v688, %v688
        %vm841 = vcmask 154624
        %v843 = vsel %vm841, %v459, 0
        %vm845 = vcmask 1040384
        %vm846 = vcmask 1041408
        %v847 = vsel %vm845, 4294967295, 65535
        %v848 = vsel %vm846, %v847, 0
        %v850 = vand.u32 %v761, %v848
        %v853 = vand.u32 %v762, %v848
        %v856 = vand.u32 %v763, %v848
        %v859 = vand.u32 %v764, %v848
        %v862 = vand.u32 %v765, %v848
        %v865 = vand.u32 %v766, %v848
        %v868 = vand.u32 %v767, %v848
        %v871 = vand.u32 %v768, %v848
        %873 = vmatprep.subr.bf16.mxu0 %v690
        %874 = vmatpush1.bf16.msra.mxu0 %v689
        %875 = vmatprep.subr.bf16.mxu0 %v698
        %876 = vmatpush1.bf16.msra.mxu0 %v697
        %877 = vmatprep.subr.bf16.mxu0 %v706
        %878 = vmatpush1.bf16.msra.mxu0 %v705
        %879 = vmatprep.subr.bf16.mxu0 %v714
        %880 = vmatpush1.bf16.msra.mxu0 %v713
        %881 = vmatprep.subr.bf16.mxu0 %v722
        %882 = vmatpush1.bf16.msra.mxu0 %v721
        %883 = vmatprep.subr.bf16.mxu0 %v730
        %884 = vmatpush1.bf16.msra.mxu0 %v729
        %885 = vmatprep.subr.bf16.mxu0 %v738
        %886 = vmatpush1.bf16.msra.mxu0 %v737
        %887 = vmatprep.subr.bf16.mxu0 %v746
        %888 = vmatpush1.bf16.msra.mxu0 %v745
        %889 = vmatprep.subr.bf16.mxu0 %v754
        %890 = vmatpush1.bf16.msra.mxu0 %v753
        %891 = vmatprep.subr.bf16.mxu0 %v853
        %892 = vmatpush1.bf16.msra.mxu0 %v850
        %893 = vmatprep.subr.bf16.mxu0 0
        %894 = vmatpush1.bf16.msra.mxu0 0
        %895 = vmatprep.subr.bf16.mxu0 0
        %896 = vmatpush1.bf16.msra.mxu0 0
        %897 = vmatprep.subr.bf16.mxu0 0
        %898 = vmatpush1.bf16.msra.mxu0 0
        %899 = vmatprep.subr.bf16.mxu0 0
        %900 = vmatpush1.bf16.msra.mxu0 0
        %901 = vmatprep.subr.bf16.mxu0 0
        %902 = vmatpush1.bf16.msra.mxu0 0
        %903 = vmatprep.subr.bf16.mxu0 0
        %904 = vmatpush1.bf16.msra.mxu0 0
        %905 = vmatprep.mubr.bf16.mxu0 %v843
        %906 = vmatmul.mubr.bf16.gmra.mrb[0].mxu0 %v458
        %v907 = vpop.f32.mrb[0].mxu0
        %v908 = vadd.f32 %v453, %v907
        %v909 = vpop.f32.mrb[0].mxu0
        %v910 = vadd.f32 %v453, %v909
        %v911 = vpop.f32.mrb[0].mxu0
        %v912 = vpop.f32.mrb[0].mxu0
        %913 = vdwg.mxu0
        %914 = vmatprep.subr.bf16.mxu0 %v692
        %915 = vmatpush1.bf16.msra.mxu0 %v691
        %916 = vmatprep.subr.bf16.mxu0 %v700
        %917 = vmatpush1.bf16.msra.mxu0 %v699
        %918 = vmatprep.subr.bf16.mxu0 %v708
        %919 = vmatpush1.bf16.msra.mxu0 %v707
        %920 = vmatprep.subr.bf16.mxu0 %v716
        %921 = vmatpush1.bf16.msra.mxu0 %v715
        %922 = vmatprep.subr.bf16.mxu0 %v724
        %923 = vmatpush1.bf16.msra.mxu0 %v723
        %924 = vmatprep.subr.bf16.mxu0 %v732
        %925 = vmatpush1.bf16.msra.mxu0 %v731
        %926 = vmatprep.subr.bf16.mxu0 %v740
        %927 = vmatpush1.bf16.msra.mxu0 %v739
        %928 = vmatprep.subr.bf16.mxu0 %v748
        %929 = vmatpush1.bf16.msra.mxu0 %v747
        %930 = vmatprep.subr.bf16.mxu0 %v756
        %931 = vmatpush1.bf16.msra.mxu0 %v755
        %932 = vmatprep.subr.bf16.mxu0 %v859
        %933 = vmatpush1.bf16.msra.mxu0 %v856
        %934 = vmatprep.subr.bf16.mxu0 0
        %935 = vmatpush1.bf16.msra.mxu0 0
        %936 = vmatprep.subr.bf16.mxu0 0
        %937 = vmatpush1.bf16.msra.mxu0 0
        %938 = vmatprep.subr.bf16.mxu0 0
        %939 = vmatpush1.bf16.msra.mxu0 0
        %940 = vmatprep.subr.bf16.mxu0 0
        %941 = vmatpush1.bf16.msra.mxu0 0
        %942 = vmatprep.subr.bf16.mxu0 0
        %943 = vmatpush1.bf16.msra.mxu0 0
        %944 = vmatprep.subr.bf16.mxu0 0
        %945 = vmatpush1.bf16.msra.mxu0 0
        %946 = vmatprep.mubr.bf16.mxu0 %v843
        %947 = vmatmul.mubr.bf16.gmra.mrb[0].mxu0 %v458
        %v948 = vpop.f32.mrb[0].mxu0
        %v949 = vadd.f32 %v453, %v948
        %v950 = vpop.f32.mrb[0].mxu0
        %v951 = vadd.f32 %v453, %v950
        %v952 = vpop.f32.mrb[0].mxu0
        %v953 = vpop.f32.mrb[0].mxu0
        %954 = vdwg.mxu0
        %955 = vmatprep.subr.bf16.mxu0 %v694
        %956 = vmatpush1.bf16.msra.mxu0 %v693
        %957 = vmatprep.subr.bf16.mxu0 %v702
        %958 = vmatpush1.bf16.msra.mxu0 %v701
        %959 = vmatprep.subr.bf16.mxu0 %v710
        %960 = vmatpush1.bf16.msra.mxu0 %v709
        %961 = vmatprep.subr.bf16.mxu0 %v718
        %962 = vmatpush1.bf16.msra.mxu0 %v717
        %963 = vmatprep.subr.bf16.mxu0 %v726
        %964 = vmatpush1.bf16.msra.mxu0 %v725
        %965 = vmatprep.subr.bf16.mxu0 %v734
        %966 = vmatpush1.bf16.msra.mxu0 %v733
        %967 = vmatprep.subr.bf16.mxu0 %v742
        %968 = vmatpush1.bf16.msra.mxu0 %v741
        %969 = vmatprep.subr.bf16.mxu0 %v750
        %970 = vmatpush1.bf16.msra.mxu0 %v749
        %971 = vmatprep.subr.bf16.mxu0 %v758
        %972 = vmatpush1.bf16.msra.mxu0 %v757
        %973 = vmatprep.subr.bf16.mxu0 %v865
        %974 = vmatpush1.bf16.msra.mxu0 %v862
        %975 = vmatprep.subr.bf16.mxu0 0
        %976 = vmatpush1.bf16.msra.mxu0 0
        %977 = vmatprep.subr.bf16.mxu0 0
        %978 = vmatpush1.bf16.msra.mxu0 0
        %979 = vmatprep.subr.bf16.mxu0 0
        %980 = vmatpush1.bf16.msra.mxu0 0
        %981 = vmatprep.subr.bf16.mxu0 0
        %982 = vmatpush1.bf16.msra.mxu0 0
        %983 = vmatprep.subr.bf16.mxu0 0
        %984 = vmatpush1.bf16.msra.mxu0 0
        %985 = vmatprep.subr.bf16.mxu0 0
        %986 = vmatpush1.bf16.msra.mxu0 0
        %987 = vmatprep.mubr.bf16.mxu0 %v843
        %988 = vmatmul.mubr.bf16.gmra.mrb[0].mxu0 %v458
        %v989 = vpop.f32.mrb[0].mxu0
        %v990 = vadd.f32 %v453, %v989
        %v991 = vpop.f32.mrb[0].mxu0
        %v992 = vadd.f32 %v453, %v991
        %v993 = vpop.f32.mrb[0].mxu0
        %v994 = vpop.f32.mrb[0].mxu0
        %995 = vdwg.mxu0
        %996 = vmatprep.subr.bf16.mxu0 %v696
        %997 = vmatpush1.bf16.msra.mxu0 %v695
        %998 = vmatprep.subr.bf16.mxu0 %v704
        %999 = vmatpush1.bf16.msra.mxu0 %v703
        %1000 = vmatprep.subr.bf16.mxu0 %v712
        %1001 = vmatpush1.bf16.msra.mxu0 %v711
        %1002 = vmatprep.subr.bf16.mxu0 %v720
        %1003 = vmatpush1.bf16.msra.mxu0 %v719
        %1004 = vmatprep.subr.bf16.mxu0 %v728
        %1005 = vmatpush1.bf16.msra.mxu0 %v727
        %1006 = vmatprep.subr.bf16.mxu0 %v736
        %1007 = vmatpush1.bf16.msra.mxu0 %v735
        %1008 = vmatprep.subr.bf16.mxu0 %v744
        %1009 = vmatpush1.bf16.msra.mxu0 %v743
        %1010 = vmatprep.subr.bf16.mxu0 %v752
        %1011 = vmatpush1.bf16.msra.mxu0 %v751
        %1012 = vmatprep.subr.bf16.mxu0 %v760
        %1013 = vmatpush1.bf16.msra.mxu0 %v759
        %1014 = vmatprep.subr.bf16.mxu0 %v871
        %1015 = vmatpush1.bf16.msra.mxu0 %v868
        %1016 = vmatprep.subr.bf16.mxu0 0
        %1017 = vmatpush1.bf16.msra.mxu0 0
        %1018 = vmatprep.subr.bf16.mxu0 0
        %1019 = vmatpush1.bf16.msra.mxu0 0
        %1020 = vmatprep.subr.bf16.mxu0 0
        %1021 = vmatpush1.bf16.msra.mxu0 0
        %1022 = vmatprep.subr.bf16.mxu0 0
        %1023 = vmatpush1.bf16.msra.mxu0 0
        %1024 = vmatprep.subr.bf16.mxu0 0
        %1025 = vmatpush1.bf16.msra.mxu0 0
        %1026 = vmatprep.subr.bf16.mxu0 0
        %1027 = vmatpush1.bf16.msra.mxu0 0
        %1028 = vmatprep.mubr.bf16.mxu0 %v843
        %1029 = vmatmul.mubr.bf16.gmra.mrb[0].mxu0 %v458
        %v1030 = vpop.f32.mrb[0].mxu0
        %v1031 = vadd.f32 %v453, %v1030
        %v1032 = vpop.f32.mrb[0].mxu0
        %v1033 = vadd.f32 %v453, %v1032
        %v1034 = vpop.f32.mrb[0].mxu0
        %v1035 = vpop.f32.mrb[0].mxu0
        %1036 = vdwg.mxu0
        %s1037 = sld [smem:[#allocation2]]
        %vm1038 = vcmp.ge.f32.partialorder %v908, 0.0
        %vm1039 = vcmp.ge.f32.partialorder %v910, 0.0
        %vm1040 = vcmp.ge.f32.partialorder %v949, 0.0
        %vm1041 = vcmp.ge.f32.partialorder %v951, 0.0
        %vm1042 = vcmp.ge.f32.partialorder %v990, 0.0
        %vm1043 = vcmp.ge.f32.partialorder %v992, 0.0
        %vm1044 = vcmp.ge.f32.partialorder %v1031, 0.0
        %vm1045 = vcmp.ge.f32.partialorder %v1033, 0.0
        %v1046 = vstv %s1037
        %v1047 = vmul.f32 %v1046, %v908
        %v1048 = vmul.f32 %v1046, %v910
        %v1049 = vmul.f32 %v1046, %v949
        %v1050 = vmul.f32 %v1046, %v951
        %v1051 = vmul.f32 %v1046, %v990
        %v1052 = vmul.f32 %v1046, %v992
        %v1053 = vmul.f32 %v1046, %v1031
        %v1054 = vmul.f32 %v1046, %v1033
        %v1055 = vsel %vm1038, %v908, %v1047
        %v1056 = vsel %vm1039, %v910, %v1048
        %v1057 = vsel %vm1040, %v949, %v1049
        %v1058 = vsel %vm1041, %v951, %v1050
        %v1059 = vsel %vm1042, %v990, %v1051
        %v1060 = vsel %vm1043, %v992, %v1052
        %v1061 = vsel %vm1044, %v1031, %v1053
        %v1062 = vsel %vm1045, %v1033, %v1054
        %1063 = vst [vmem:[%s369] sm:$0xff] %v1055
        %1064 = vst [vmem:[%s369 + $0x8] sm:$0xff] %v1056
        %1065 = vst [vmem:[%s369 + $0x10] sm:$0xff] %v1057
        %1066 = vst [vmem:[%s369 + $0x18] sm:$0xff] %v1058
        %1067 = vst [vmem:[%s369 + $0x20] sm:$0xff] %v1059
        %1068 = vst [vmem:[%s369 + $0x28] sm:$0xff] %v1060
        %1069 = vst [vmem:[%s369 + $0x30] sm:$0xff] %v1061
        %1070 = vst [vmem:[%s369 + $0x38] sm:$0xff] %v1062
        %s1071 = smul.u32 8, %s16
        %p1072 = scmp.lt.s32.totalorder %s1071, 15
        %s1073 = scalar_select %p1072, %s1071, 15
        %s1074 = smul.addr %s1073, 8
        %s1075 = scalar_lea.vmem %s4, %s1074
        // Predicated region
        $region60: #{srfbn_hg_forward.44} parent=54 // pred_check
          %p1076 = pneg %p123
        $region61: #{srfbn_hg_forward.44} parent=54 // pred_check_branch
          %1078 = sbr.rel (%p1076) target = $region63
        $region62: #{srfbn_hg_forward.44} parent=54 // pred_region
          %s1079 = smul.u32 8, %s16
        $region63: #{srfbn_hg_forward.44} parent=54 // pred_fallthru
          _
      $region55: #{srfbn_hg_forward.44} parent=5 // pred_fallthru
        _
      %p1080 = scmp.le.s32.totalorder 2, %s11
      // Predicated region
      $region64: #{srfbn_hg_forward.44} parent=5 // pred_check
        %p1081 = pneg %p1080
      $region65: #{srfbn_hg_forward.44} parent=5 // pred_check_branch
        %1083 = sbr.rel (%p1081) target = $region67
      $region66: #{srfbn_hg_forward.44} parent=5 // pred_region
        %s1084 = ssub.s32 %s11, 2
        // Predicated region
        $region68: #{srfbn_hg_forward.44} parent=66 // pred_check
          %p1085 = pneg %p129
        $region69: #{srfbn_hg_forward.44} parent=66 // pred_check_branch
          %1087 = sbr.rel (%p1085) target = $region71
        $region70: #{srfbn_hg_forward.44} parent=66 // pred_region
          %s1088 = smul.u32 8, %s17
          %p1089 = scmp.lt.s32.totalorder %s1088, 15
          %s1090 = scalar_select %p1089, %s1088, 15
          %s1091 = smul.addr %s1090, 8
          %s1092 = scalar_lea.vmem %s4, %s1091
        $region71: #{srfbn_hg_forward.44} parent=66 // pred_fallthru
          _
      $region67: #{srfbn_hg_forward.44} parent=5 // pred_fallthru
        _
    $region6: #{srfbn_hg_forward.44} parent=1 // loop_footer
      %s15 = sadd.s32 1, %s11
    $region7: #{srfbn_hg_forward.44} parent=1 // loop_footer_branch
      %10 = sbr.rel target = $region3
    $region8: #{srfbn_hg_forward.44} parent=1 // loop_exit
      _

// kernel: srfbn_hg_forward.45
$region0: #{srfbn_hg_forward.45}
  #allocation0 [shape = 'u32[]', space=smem, size = 0x4, offset = 0x4, fixed_abs, tag = 'smem constant byte address 0x4 - core index']
  #allocation1 [shape = 'u32[144,128]{1,0:T(1,128)}', space=vmem, size = 0x12000, scoped, tag = 'internal scratch']
  #allocation2 [shape = 'f32[1]{0:T(128)S(6)}', space=smem, size = 0x200, scoped, tag = 'scoped memory for srfbn_hg_forward.45']
  %s0 = inlined_call_operand.vmem [shape: bf16[8,72], index: 0, kind: input, shape index: {}]
  %s1 = inlined_call_operand.vmem [shape: bf16[72,512], index: 1, kind: input, shape index: {}]
  %s2 = inlined_call_operand.vmem [shape: f32[8,1], index: 2, kind: input, shape index: {}]
  %s3 = inlined_call_operand.<no memory space> [shape: f32[1], index: 3, kind: input, shape index: {}]
  %s4 = inlined_call_operand.vmem [shape: f32[8,512], index: 4, kind: output, shape index: {}]
  %s5 = sld [smem:[#allocation0]]
  $region87: #{srfbn_hg_forward.45} parent=0
    _
  %s7 = ssub.s32 1, %s5
  %s8 = scalar_select 0, %s7, %s5
  %9 = sst [smem:[#allocation2]] %s3
  $region1: #{srfbn_hg_forward.45} parent=0
    #allocation3 [shape = 'u8[73728]{0}', space=vmem, size = 0x12000, scoped, tag = 'input window, operand 1']
    loop: start=0, step=1, limit=4
    $region2: #{srfbn_hg_forward.45} parent=1 // loop_pre_header
      _
    $region3: #{srfbn_hg_forward.45} parent=1 // loop_header
      %s11 = sphi 0, %s15
      %p12 = scmp.ge.s32.totalorder %s11, 4
      %s19 = sphi 0, %s19
      %s21 = sphi 0, %s19
      %s22 = sphi 0, %s21
      %s36 = sphi 0, %s22
      %s42 = sphi 0, %s44
      %s45 = sphi 0, %s42
      %s46 = sphi 0, %s45
      %s62 = sphi 0, %s46
      %s66 = sphi 0, %s66
      %s68 = sphi 0, %s66
      %s69 = sphi 0, %s68
      %s83 = sphi 0, %s69
      %s87 = sphi 0, %s87
      %s89 = sphi 0, %s87
      %s90 = sphi 0, %s89
      %s104 = sphi 0, %s90
      %s110 = sphi 0, %s112
      %s113 = sphi 0, %s110
      %s114 = sphi 0, %s113
      %s130 = sphi 0, %s114
    $region4: #{srfbn_hg_forward.45} parent=1 // loop_header_branch
      %14 = sbr.rel (%p12) target = $region8
    $region5: #{srfbn_hg_forward.45} parent=1 // loop_body
      %s16 = ssub.s32 %s11, 1
      %s17 = ssub.s32 %s11, 2
      %s18 = sadd.s32 %s11, 1
      %s20 = sadd.s32 %s19, 1
      %p23 = scmp.eq.s32.totalorder %s11, 1
      %p24 = scmp.ne.s32.totalorder %s19, %s21
      %p25 = scmp.eq.s32.totalorder %s11, 0
      %p26 = por %p24, %p25
      %p27 = scmp.ne.s32.totalorder %s19, %s21
      %p28 = scmp.eq.s32.totalorder %s16, 1
      %p29 = por %p27, %p28
      %p30 = scmp.ne.s32.totalorder %s21, %s22
      %p31 = scmp.eq.s32.totalorder %s16, 0
      %p32 = por %p30, %p31
      %p33 = scmp.ne.s32.totalorder %s21, %s22
      %p34 = scmp.eq.s32.totalorder %s17, 1
      %p35 = por %p33, %p34
      %p37 = scmp.ne.s32.totalorder %s22, %s36
      %p38 = scmp.eq.s32.totalorder %s17, 0
      %p39 = por %p37, %p38
      %s40 = ssub.s32 %s11, %s18
      %p41 = scmp.eq.s32.totalorder %s40, 0
      %s43 = sadd.s32 %s42, 1
      %s44 = scalar_select %p41, %s42, %s43
      %p47 = pneg %p41
      %p48 = scmp.eq.s32.totalorder %s11, 1
      %p49 = por %p47, %p48
      %p50 = scmp.ne.s32.totalorder %s42, %s45
      %p51 = scmp.eq.s32.totalorder %s11, 0
      %p52 = por %p50, %p51
      %p53 = scmp.ne.s32.totalorder %s42, %s45
      %p54 = scmp.eq.s32.totalorder %s16, 1
      %p55 = por %p53, %p54
      %p56 = scmp.ne.s32.totalorder %s45, %s46
      %p57 = scmp.eq.s32.totalorder %s16, 0
      %p58 = por %p56, %p57
      %p59 = scmp.ne.s32.totalorder %s45, %s46
      %p60 = scmp.eq.s32.totalorder %s17, 1
      %p61 = por %p59, %p60
      %p63 = scmp.ne.s32.totalorder %s46, %s62
      %p64 = scmp.eq.s32.totalorder %s17, 0
      %p65 = por %p63, %p64
      %s67 = sadd.s32 %s66, 1
      %p70 = scmp.eq.s32.totalorder %s11, 1
      %p71 = scmp.ne.s32.totalorder %s66, %s68
      %p72 = scmp.eq.s32.totalorder %s11, 0
      %p73 = por %p71, %p72
      %p74 = scmp.ne.s32.totalorder %s66, %s68
      %p75 = scmp.eq.s32.totalorder %s16, 1
      %p76 = por %p74, %p75
      %p77 = scmp.ne.s32.totalorder %s68, %s69
      %p78 = scmp.eq.s32.totalorder %s16, 0
      %p79 = por %p77, %p78
      %p80 = scmp.ne.s32.totalorder %s68, %s69
      %p81 = scmp.eq.s32.totalorder %s17, 1
      %p82 = por %p80, %p81
      %p84 = scmp.ne.s32.totalorder %s69, %s83
      %p85 = scmp.eq.s32.totalorder %s17, 0
      %p86 = por %p84, %p85
      %s88 = sadd.s32 %s87, 1
      %p91 = scmp.eq.s32.totalorder %s11, 1
      %p92 = scmp.ne.s32.totalorder %s87, %s89
      %p93 = scmp.eq.s32.totalorder %s11, 0
      %p94 = por %p92, %p93
      %p95 = scmp.ne.s32.totalorder %s87, %s89
      %p96 = scmp.eq.s32.totalorder %s16, 1
      %p97 = por %p95, %p96
      %p98 = scmp.ne.s32.totalorder %s89, %s90
      %p99 = scmp.eq.s32.totalorder %s16, 0
      %p100 = por %p98, %p99
      %p101 = scmp.ne.s32.totalorder %s89, %s90
      %p102 = scmp.eq.s32.totalorder %s17, 1
      %p103 = por %p101, %p102
      %p105 = scmp.ne.s32.totalorder %s90, %s104
      %p106 = scmp.eq.s32.totalorder %s17, 0
      %p107 = por %p105, %p106
      %s108 = ssub.s32 %s11, %s18
      %p109 = scmp.eq.s32.totalorder %s108, 0
      %s111 = sadd.s32 %s110, 1
      %s112 = scalar_select %p109, %s110, %s111
      %p115 = pneg %p109
      %p116 = scmp.eq.s32.totalorder %s11, 1
      %p117 = por %p115, %p116
      %p118 = scmp.ne.s32.totalorder %s110, %s113
      %p119 = scmp.eq.s32.totalorder %s11, 0
      %p120 = por %p118, %p119
      %p121 = scmp.ne.s32.totalorder %s110, %s113
      %p122 = scmp.eq.s32.totalorder %s16, 1
      %p123 = por %p121, %p122
      %p124 = scmp.ne.s32.totalorder %s113, %s114
      %p125 = scmp.eq.s32.totalorder %s16, 0
      %p126 = por %p124, %p125
      %p127 = scmp.ne.s32.totalorder %s113, %s114
      %p128 = scmp.eq.s32.totalorder %s17, 1
      %p129 = por %p127, %p128
      %p131 = scmp.ne.s32.totalorder %s114, %s130
      %p132 = scmp.eq.s32.totalorder %s17, 0
      %p133 = por %p131, %p132
      %p134 = scmp.le.s32.totalorder 1, %s11
      %p135 = scmp.lt.s32.totalorder %s11, 3
      %p136 = pnand %p134, %p135
      %p137 = pneg %p136
      // Predicated region
      $region9: #{srfbn_hg_forward.45} parent=5 // pred_check
        _
      $region10: #{srfbn_hg_forward.45} parent=5 // pred_check_branch
        %139 = sbr.rel (%p136) target = $region12
      $region11: #{srfbn_hg_forward.45} parent=5 // pred_region
        %s140 = ssub.s32 %s11, 1
        // Predicated region
        $region13: #{srfbn_hg_forward.45} parent=11 // pred_check
          %p141 = pneg %p32
        $region14: #{srfbn_hg_forward.45} parent=11 // pred_check_branch
          %143 = sbr.rel (%p141) target = $region16
        $region15: #{srfbn_hg_forward.45} parent=11 // pred_region
          _
        $region16: #{srfbn_hg_forward.45} parent=11 // pred_fallthru
          _
        // Predicated region
        $region17: #{srfbn_hg_forward.45} parent=11 // pred_check
          %p144 = pneg %p79
        $region18: #{srfbn_hg_forward.45} parent=11 // pred_check_branch
          %146 = sbr.rel (%p144) target = $region20
        $region19: #{srfbn_hg_forward.45} parent=11 // pred_region
          _
        $region20: #{srfbn_hg_forward.45} parent=11 // pred_fallthru
          _
        // Predicated region
        $region21: #{srfbn_hg_forward.45} parent=11 // pred_check
          %p147 = pneg %p100
        $region22: #{srfbn_hg_forward.45} parent=11 // pred_check_branch
          %149 = sbr.rel (%p147) target = $region24
        $region23: #{srfbn_hg_forward.45} parent=11 // pred_region
          _
        $region24: #{srfbn_hg_forward.45} parent=11 // pred_fallthru
          _
      $region12: #{srfbn_hg_forward.45} parent=5 // pred_fallthru
        _
      %p150 = scmp.lt.s32.totalorder %s11, 2
      // Predicated region
      $region25: #{srfbn_hg_forward.45} parent=5 // pred_check
        %p151 = pneg %p150
      $region26: #{srfbn_hg_forward.45} parent=5 // pred_check_branch
        %153 = sbr.rel (%p151) target = $region28
      $region27: #{srfbn_hg_forward.45} parent=5 // pred_region
        // Predicated region
        $region29: #{srfbn_hg_forward.45} parent=27 // pred_check
          %p154 = pneg %p52
        $region30: #{srfbn_hg_forward.45} parent=27 // pred_check_branch
          %156 = sbr.rel (%p154) target = $region32
        $region31: #{srfbn_hg_forward.45} parent=27 // pred_region
          %s157 = sand.u32 %s42, 1
          %s158 = sand.u32 %s42, 1
          %s159 = smul.addr %s158, 72
          %s160 = scalar_lea.vmem [#allocation3], %s159
          %s161 = smul.u32 2, %s11
          %s162 = smul.addr %s161, 4
          %s163 = scalar_lea.vmem %s1, %s162
          // Predicated region
          $region33: #{srfbn_hg_forward.45} parent=31 // pred_check
            _
          $region34: #{srfbn_hg_forward.45} parent=31 // pred_check_branch
            %165 = sbr.rel (0) target = $region36
          $region35: #{srfbn_hg_forward.45} parent=31 // pred_region
            // Predicated region
            $region37: #{srfbn_hg_forward.45} parent=35 // pred_check
              _
            $region38: #{srfbn_hg_forward.45} parent=35 // pred_check_branch
              %167 = sbr.rel (0) target = $region40
            $region39: #{srfbn_hg_forward.45} parent=35 // pred_region
              // Predicated region
              $region52: #{srfbn_hg_forward.45} parent=39 // pred_check
                _
              $region53: #{srfbn_hg_forward.45} parent=39 // pred_check_branch
                %198 = sbr.rel (0) target = $region55
              $region54: #{srfbn_hg_forward.45} parent=39 // pred_region
                loop: start=0, step=1, limit=1
                $region56: #{srfbn_hg_forward.45} parent=54 // loop_pre_header
                  _
                $region57: #{srfbn_hg_forward.45} parent=54 // loop_header
                  %s200 = sphi 0, %s204
                  %p201 = scmp.ge.s32.totalorder %s200, 1
                  %s205 = sphi %s163, %s163
                  %s206 = sphi %s160, %s160
                $region58: #{srfbn_hg_forward.45} parent=54 // loop_header_branch
                  %203 = sbr.rel (%p201) target = $region62
                $region59: #{srfbn_hg_forward.45} parent=54 // loop_body
                  %v207 = vld [vmem:[%s205] sm:$0xff]
                  %208 = vst [vmem:[%s206] sm:$0xff] %v207
                  %v209 = vld [vmem:[%s205 + $0x10] sm:$0xff]
                  %210 = vst [vmem:[%s206 + $0x8] sm:$0xff] %v209
                  %v211 = vld [vmem:[%s205 + $0x20] sm:$0xff]
                  %212 = vst [vmem:[%s206 + $0x10] sm:$0xff] %v211
                  %v213 = vld [vmem:[%s205 + $0x30] sm:$0xff]
                  %214 = vst [vmem:[%s206 + $0x18] sm:$0xff] %v213
                  %v215 = vld [vmem:[%s205 + $0x40] sm:$0xff]
                  %216 = vst [vmem:[%s206 + $0x20] sm:$0xff] %v215
                  %v217 = vld [vmem:[%s205 + $0x50] sm:$0xff]
                  %218 = vst [vmem:[%s206 + $0x28] sm:$0xff] %v217
                  %v219 = vld [vmem:[%s205 + $0x60] sm:$0xff]
                  %220 = vst [vmem:[%s206 + $0x30] sm:$0xff] %v219
                  %v221 = vld [vmem:[%s205 + $0x70] sm:$0xff]
                  %222 = vst [vmem:[%s206 + $0x38] sm:$0xff] %v221
                  %v223 = vld [vmem:[%s205 + $0x80] sm:$0xff]
                  %224 = vst [vmem:[%s206 + $0x40] sm:$0xff] %v223
                $region60: #{srfbn_hg_forward.45} parent=54 // loop_footer
                  %s204 = sadd.s32 1, %s200
                $region61: #{srfbn_hg_forward.45} parent=54 // loop_footer_branch
                  %199 = sbr.rel target = $region57
                $region62: #{srfbn_hg_forward.45} parent=54 // loop_exit
                  _
              $region55: #{srfbn_hg_forward.45} parent=39 // pred_fallthru
                _
              // Predicated region
              $region63: #{srfbn_hg_forward.45} parent=39 // pred_check
                _
              $region64: #{srfbn_hg_forward.45} parent=39 // pred_check_branch
                %226 = sbr.rel target = $region66
              $region65: #{srfbn_hg_forward.45} parent=39 // pred_region
                _
              $region66: #{srfbn_hg_forward.45} parent=39 // pred_fallthru
                _
            $region40: #{srfbn_hg_forward.45} parent=35 // pred_fallthru
              _
            // Predicated region
            $region41: #{srfbn_hg_forward.45} parent=35 // pred_check
              _
            $region42: #{srfbn_hg_forward.45} parent=35 // pred_check_branch
              %169 = sbr.rel target = $region44
            $region43: #{srfbn_hg_forward.45} parent=35 // pred_region
              loop: start=0, step=1, limit=1
              $region45: #{srfbn_hg_forward.45} parent=43 // loop_pre_header
                _
              $region46: #{srfbn_hg_forward.45} parent=43 // loop_header
                %s172 = sphi 0, %s176
                %p173 = scmp.ge.s32.totalorder %s172, 1
                %s177 = sphi %s163, %s163
                %s178 = sphi %s160, %s160
              $region47: #{srfbn_hg_forward.45} parent=43 // loop_header_branch
                %175 = sbr.rel (%p173) target = $region51
              $region48: #{srfbn_hg_forward.45} parent=43 // loop_body
                %v179 = vld [vmem:[%s177] sm:$0xff]
                %180 = vst [vmem:[%s178] sm:$0xff] %v179
                %v181 = vld [vmem:[%s177 + $0x10] sm:$0xff]
                %182 = vst [vmem:[%s178 + $0x8] sm:$0xff] %v181
                %v183 = vld [vmem:[%s177 + $0x20] sm:$0xff]
                %184 = vst [vmem:[%s178 + $0x10] sm:$0xff] %v183
                %v185 = vld [vmem:[%s177 + $0x30] sm:$0xff]
                %186 = vst [vmem:[%s178 + $0x18] sm:$0xff] %v185
                %v187 = vld [vmem:[%s177 + $0x40] sm:$0xff]
                %188 = vst [vmem:[%s178 + $0x20] sm:$0xff] %v187
                %v189 = vld [vmem:[%s177 + $0x50] sm:$0xff]
                %190 = vst [vmem:[%s178 + $0x28] sm:$0xff] %v189
                %v191 = vld [vmem:[%s177 + $0x60] sm:$0xff]
                %192 = vst [vmem:[%s178 + $0x30] sm:$0xff] %v191
                %v193 = vld [vmem:[%s177 + $0x70] sm:$0xff]
                %194 = vst [vmem:[%s178 + $0x38] sm:$0xff] %v193
                %v195 = vld [vmem:[%s177 + $0x80] sm:$0xff]
                %196 = vst [vmem:[%s178 + $0x40] sm:$0xff] %v195
              $region49: #{srfbn_hg_forward.45} parent=43 // loop_footer
                %s176 = sadd.s32 1, %s172
              $region50: #{srfbn_hg_forward.45} parent=43 // loop_footer_branch
                %171 = sbr.rel target = $region46
              $region51: #{srfbn_hg_forward.45} parent=43 // loop_exit
                _
            $region44: #{srfbn_hg_forward.45} parent=35 // pred_fallthru
              _
          $region36: #{srfbn_hg_forward.45} parent=31 // pred_fallthru
            _
          %227 = vnop
        $region32: #{srfbn_hg_forward.45} parent=27 // pred_fallthru
          _
      $region28: #{srfbn_hg_forward.45} parent=5 // pred_fallthru
        _
      %p228 = scmp.le.s32.totalorder 1, %s11
      %p229 = scmp.lt.s32.totalorder %s11, 3
      %p230 = pnand %p228, %p229
      %p231 = pneg %p230
      // Predicated region
      $region67: #{srfbn_hg_forward.45} parent=5 // pred_check
        _
      $region68: #{srfbn_hg_forward.45} parent=5 // pred_check_branch
        %233 = sbr.rel (%p230) target = $region70
      $region69: #{srfbn_hg_forward.45} parent=5 // pred_region
        %s234 = ssub.s32 %s11, 1
        %s235 = sand.u32 %s45, 1
        %s236 = sand.u32 %s45, 1
        %s237 = smul.addr %s236, 72
        %s238 = scalar_lea.vmem [#allocation3], %s237
        // Predicated region
        $region71: #{srfbn_hg_forward.45} parent=69 // pred_check
          %p239 = pneg %p58
        $region72: #{srfbn_hg_forward.45} parent=69 // pred_check_branch
          %241 = sbr.rel (%p239) target = $region74
        $region73: #{srfbn_hg_forward.45} parent=69 // pred_region
          _
        $region74: #{srfbn_hg_forward.45} parent=69 // pred_fallthru
          _
        %p242 = pneg %p32
        %p243 = pneg %p29
        %s244 = sand.u32 %s45, 1
        %s245 = sand.u32 %s45, 1
        %s246 = smul.addr %s245, 72
        %s247 = scalar_lea.vmem [#allocation3], %s246
        %p248 = pneg %p58
        %p249 = pneg %p55
        %p250 = pneg %p79
        %p251 = pneg %p76
        %p252 = pneg %p100
        %p253 = pneg %p97
        %p254 = pneg %p126
        %p255 = pneg %p123
        %s256 = smul.u32 2, %s16
        %p257 = scmp.lt.s32.totalorder %s256, 3
        %s258 = scalar_select %p257, %s256, 3
        %s259 = smul.addr %s258, 8
        %s260 = scalar_lea.vmem %s4, %s259
        %s261 = smul.u32 2, %s16
        %s262 = smul.u32 2, %s16
        %p263 = scmp.lt.s32.totalorder %s262, 3
        %s264 = scalar_select %p263, %s262, 3
        %s265 = smul.addr %s264, 8
        %s266 = scalar_lea.vmem %s4, %s265
        %s267 = smul.u32 2, %s16
        %v269 = vld [vmem:[%s0] sm:$0xf]
        %v270 = vld [vmem:[%s238] sm:$0xff]
        %v271 = vld [vmem:[%s238 + $0x8] sm:$0xff]
        %v272 = vld [vmem:[%s238 + $0x10] sm:$0xff]
        %v273 = vld [vmem:[%s238 + $0x18] sm:$0xff]
        %v274 = vld [vmem:[%s238 + $0x20] sm:$0xff]
        %v275 = vld [vmem:[%s238 + $0x28] sm:$0xff]
        %v276 = vld [vmem:[%s238 + $0x30] sm:$0xff]
        %v277 = vld [vmem:[%s238 + $0x38] sm:$0xff]
        %v278 = vld [vmem:[%s238 + $0x40] sm:$0xff]
        %v279 = vld [vmem:[%s2] sm:$0xff]
        %281 = vset.pattern.permute.xlu0 0
        %282 = vperm.xlu0 %281, %v279
        %v283 = vpop.permute.xlu0 %282
        %v294 = vunpack.c.l.b16 %v270
        %v295 = vunpack.c.h.b16 %v270
        %v296 = vunpack.c.l.b16 %v271
        %v297 = vunpack.c.h.b16 %v271
        %v298 = vunpack.c.l.b16 %v272
        %v299 = vunpack.c.h.b16 %v272
        %v300 = vunpack.c.l.b16 %v273
        %v301 = vunpack.c.h.b16 %v273
        %v302 = vunpack.c.l.b16 %v274
        %v303 = vunpack.c.h.b16 %v274
        %v304 = vunpack.c.l.b16 %v275
        %v305 = vunpack.c.h.b16 %v275
        %v306 = vunpack.c.l.b16 %v276
        %v307 = vunpack.c.h.b16 %v276
        %v308 = vunpack.c.l.b16 %v277
        %v309 = vunpack.c.h.b16 %v277
        %v310 = vunpack.c.l.b16 %v278
        %v311 = vunpack.c.h.b16 %v278
        %v312 = vpack.c.b16 %v296, %v294
        %v313 = vpack.c.b16 %v297, %v295
        %v314 = vpack.c.b16 %v300, %v298
        %v315 = vpack.c.b16 %v301, %v299
        %v316 = vpack.c.b16 %v304, %v302
        %v317 = vpack.c.b16 %v305, %v303
        %v318 = vpack.c.b16 %v308, %v306
        %v319 = vpack.c.b16 %v309, %v307
        %v320 = vpack.c.b16 %v310, %v310
        %v321 = vpack.c.b16 %v311, %v311
        %vm330 = vcmask 588800
        %v332 = vsel %vm330, %v269, 0
        %vm334 = vcmask 1043456
        %v336 = vsel %vm334, %v320, 0
        %v339 = vsel %vm334, %v321, 0
        %341 = vmatprep.subr.bf16.mxu0 %v313
        %342 = vmatpush1.bf16.msra.mxu0 %v312
        %343 = vmatprep.subr.bf16.mxu0 %v315
        %344 = vmatpush1.bf16.msra.mxu0 %v314
        %345 = vmatprep.subr.bf16.mxu0 %v317
        %346 = vmatpush1.bf16.msra.mxu0 %v316
        %347 = vmatprep.subr.bf16.mxu0 %v319
        %348 = vmatpush1.bf16.msra.mxu0 %v318
        %349 = vmatprep.subr.bf16.mxu0 %v339
        %350 = vmatpush1.bf16.msra.mxu0 %v336
        %351 = vmatprep.subr.bf16.mxu0 0
        %352 = vmatpush1.bf16.msra.mxu0 0
        %353 = vmatprep.subr.bf16.mxu0 0
        %354 = vmatpush1.bf16.msra.mxu0 0
        %355 = vmatprep.subr.bf16.mxu0 0
        %356 = vmatpush1.bf16.msra.mxu0 0
        %357 = vmatprep.subr.bf16.mxu0 0
        %358 = vmatpush1.bf16.msra.mxu0 0
        %359 = vmatprep.subr.bf16.mxu0 0
        %360 = vmatpush1.bf16.msra.mxu0 0
        %361 = vmatprep.subr.bf16.mxu0 0
        %362 = vmatpush1.bf16.msra.mxu0 0
        %363 = vmatprep.subr.bf16.mxu0 0
        %364 = vmatpush1.bf16.msra.mxu0 0
        %365 = vmatprep.subr.bf16.mxu0 0
        %366 = vmatpush1.bf16.msra.mxu0 0
        %367 = vmatprep.subr.bf16.mxu0 0
        %368 = vmatpush1.bf16.msra.mxu0 0
        %369 = vmatprep.subr.bf16.mxu0 0
        %370 = vmatpush1.bf16.msra.mxu0 0
        %371 = vmatprep.subr.bf16.mxu0 0
        %372 = vmatpush1.bf16.msra.mxu0 0
        %373 = vmatprep.mubr.bf16.mxu0 0
        %374 = vmatmul.mubr.bf16.gmra.mrb[0].mxu0 %v332
        %v375 = vpop.f32.mrb[0].mxu0
        %v376 = vadd.f32 %v283, %v375
        %v377 = vpop.f32.mrb[0].mxu0
        %v378 = vadd.f32 %v283, %v377
        %v379 = vpop.f32.mrb[0].mxu0
        %v380 = vpop.f32.mrb[0].mxu0
        %381 = vdwg.mxu0
        %s382 = sld [smem:[#allocation2]]
        %vm383 = vcmp.ge.f32.partialorder %v376, 0.0
        %vm384 = vcmp.ge.f32.partialorder %v378, 0.0
        %v385 = vstv %s382
        %v386 = vmul.f32 %v385, %v376
        %v387 = vmul.f32 %v385, %v378
        %v388 = vsel %vm383, %v376, %v386
        %v389 = vsel %vm384, %v378, %v387
        %390 = vst [vmem:[%s266] sm:$0xff] %v388
        %391 = vst [vmem:[%s266 + $0x8] sm:$0xff] %v389
        %s392 = smul.u32 2, %s16
        %p393 = scmp.lt.s32.totalorder %s392, 3
        %s394 = scalar_select %p393, %s392, 3
        %s395 = smul.addr %s394, 8
        %s396 = scalar_lea.vmem %s4, %s395
        // Predicated region
        $region75: #{srfbn_hg_forward.45} parent=69 // pred_check
          %p397 = pneg %p123
        $region76: #{srfbn_hg_forward.45} parent=69 // pred_check_branch
          %399 = sbr.rel (%p397) target = $region78
        $region77: #{srfbn_hg_forward.45} parent=69 // pred_region
          %s400 = smul.u32 2, %s16
        $region78: #{srfbn_hg_forward.45} parent=69 // pred_fallthru
          _
      $region70: #{srfbn_hg_forward.45} parent=5 // pred_fallthru
        _
      %p401 = scmp.le.s32.totalorder 2, %s11
      // Predicated region
      $region79: #{srfbn_hg_forward.45} parent=5 // pred_check
        %p402 = pneg %p401
      $region80: #{srfbn_hg_forward.45} parent=5 // pred_check_branch
        %404 = sbr.rel (%p402) target = $region82
      $region81: #{srfbn_hg_forward.45} parent=5 // pred_region
        %s405 = ssub.s32 %s11, 2
        // Predicated region
        $region83: #{srfbn_hg_forward.45} parent=81 // pred_check
          %p406 = pneg %p129
        $region84: #{srfbn_hg_forward.45} parent=81 // pred_check_branch
          %408 = sbr.rel (%p406) target = $region86
        $region85: #{srfbn_hg_forward.45} parent=81 // pred_region
          %s409 = smul.u32 2, %s17
          %p410 = scmp.lt.s32.totalorder %s409, 3
          %s411 = scalar_select %p410, %s409, 3
          %s412 = smul.addr %s411, 8
          %s413 = scalar_lea.vmem %s4, %s412
        $region86: #{srfbn_hg_forward.45} parent=81 // pred_fallthru
          _
      $region82: #{srfbn_hg_forward.45} parent=5 // pred_fallthru
        _
    $region6: #{srfbn_hg_forward.45} parent=1 // loop_footer
      %s15 = sadd.s32 1, %s11
    $region7: #{srfbn_hg_forward.45} parent=1 // loop_footer_branch
      %10 = sbr.rel target = $region3
    $region8: #{srfbn_hg_forward.45} parent=1 // loop_exit
      _

// kernel: srfbn_hg_forward.48
$region0: #{srfbn_hg_forward.48}
  #allocation0 [shape = 'u32[]', space=smem, size = 0x4, offset = 0x4, fixed_abs, tag = 'smem constant byte address 0x4 - core index']
  #allocation1 [shape = 'u32[144,128]{1,0:T(1,128)}', space=vmem, size = 0x12000, scoped, tag = 'internal scratch']
  #allocation2 [shape = 'f32[1]{0:T(128)S(6)}', space=smem, size = 0x200, scoped, tag = 'scoped memory for srfbn_hg_forward.48']
  %s0 = inlined_call_operand.vmem [shape: bf16[5,8], index: 0, kind: input, shape index: {}]
  %s1 = inlined_call_operand.vmem [shape: bf16[8,512], index: 1, kind: input, shape index: {}]
  %s2 = inlined_call_operand.vmem [shape: f32[5,1], index: 2, kind: input, shape index: {}]
  %s3 = inlined_call_operand.<no memory space> [shape: f32[1], index: 3, kind: input, shape index: {}]
  %s4 = inlined_call_operand.vmem [shape: f32[5,512], index: 4, kind: output, shape index: {}]
  %s5 = sld [smem:[#allocation0]]
  $region49: #{srfbn_hg_forward.48} parent=0
    _
  %s7 = ssub.s32 1, %s5
  %s8 = scalar_select 0, %s7, %s5
  %9 = sst [smem:[#allocation2]] %s3
  loop: start=0, step=1, limit=4
  $region2: #{srfbn_hg_forward.48} parent=0 // loop_pre_header
    _
  $region3: #{srfbn_hg_forward.48} parent=0 // loop_header
    %s11 = sphi 0, %s15
    %p12 = scmp.ge.s32.totalorder %s11, 4
    %s19 = sphi 0, %s19
    %s21 = sphi 0, %s19
    %s22 = sphi 0, %s21
    %s36 = sphi 0, %s22
    %s42 = sphi 0, %s44
    %s45 = sphi 0, %s42
    %s46 = sphi 0, %s45
    %s62 = sphi 0, %s46
    %s66 = sphi 0, %s66
    %s68 = sphi 0, %s66
    %s69 = sphi 0, %s68
    %s83 = sphi 0, %s69
    %s87 = sphi 0, %s87
    %s89 = sphi 0, %s87
    %s90 = sphi 0, %s89
    %s104 = sphi 0, %s90
    %s110 = sphi 0, %s112
    %s113 = sphi 0, %s110
    %s114 = sphi 0, %s113
    %s130 = sphi 0, %s114
  $region4: #{srfbn_hg_forward.48} parent=0 // loop_header_branch
    %14 = sbr.rel (%p12) target = $region8
  $region5: #{srfbn_hg_forward.48} parent=0 // loop_body
    %s16 = ssub.s32 %s11, 1
    %s17 = ssub.s32 %s11, 2
    %s18 = sadd.s32 %s11, 1
    %s20 = sadd.s32 %s19, 1
    %p23 = scmp.eq.s32.totalorder %s11, 1
    %p24 = scmp.ne.s32.totalorder %s19, %s21
    %p25 = scmp.eq.s32.totalorder %s11, 0
    %p26 = por %p24, %p25
    %p27 = scmp.ne.s32.totalorder %s19, %s21
    %p28 = scmp.eq.s32.totalorder %s16, 1
    %p29 = por %p27, %p28
    %p30 = scmp.ne.s32.totalorder %s21, %s22
    %p31 = scmp.eq.s32.totalorder %s16, 0
    %p32 = por %p30, %p31
    %p33 = scmp.ne.s32.totalorder %s21, %s22
    %p34 = scmp.eq.s32.totalorder %s17, 1
    %p35 = por %p33, %p34
    %p37 = scmp.ne.s32.totalorder %s22, %s36
    %p38 = scmp.eq.s32.totalorder %s17, 0
    %p39 = por %p37, %p38
    %s40 = ssub.s32 %s11, %s18
    %p41 = scmp.eq.s32.totalorder %s40, 0
    %s43 = sadd.s32 %s42, 1
    %s44 = scalar_select %p41, %s42, %s43
    %p47 = pneg %p41
    %p48 = scmp.eq.s32.totalorder %s11, 1
    %p49 = por %p47, %p48
    %p50 = scmp.ne.s32.totalorder %s42, %s45
    %p51 = scmp.eq.s32.totalorder %s11, 0
    %p52 = por %p50, %p51
    %p53 = scmp.ne.s32.totalorder %s42, %s45
    %p54 = scmp.eq.s32.totalorder %s16, 1
    %p55 = por %p53, %p54
    %p56 = scmp.ne.s32.totalorder %s45, %s46
    %p57 = scmp.eq.s32.totalorder %s16, 0
    %p58 = por %p56, %p57
    %p59 = scmp.ne.s32.totalorder %s45, %s46
    %p60 = scmp.eq.s32.totalorder %s17, 1
    %p61 = por %p59, %p60
    %p63 = scmp.ne.s32.totalorder %s46, %s62
    %p64 = scmp.eq.s32.totalorder %s17, 0
    %p65 = por %p63, %p64
    %s67 = sadd.s32 %s66, 1
    %p70 = scmp.eq.s32.totalorder %s11, 1
    %p71 = scmp.ne.s32.totalorder %s66, %s68
    %p72 = scmp.eq.s32.totalorder %s11, 0
    %p73 = por %p71, %p72
    %p74 = scmp.ne.s32.totalorder %s66, %s68
    %p75 = scmp.eq.s32.totalorder %s16, 1
    %p76 = por %p74, %p75
    %p77 = scmp.ne.s32.totalorder %s68, %s69
    %p78 = scmp.eq.s32.totalorder %s16, 0
    %p79 = por %p77, %p78
    %p80 = scmp.ne.s32.totalorder %s68, %s69
    %p81 = scmp.eq.s32.totalorder %s17, 1
    %p82 = por %p80, %p81
    %p84 = scmp.ne.s32.totalorder %s69, %s83
    %p85 = scmp.eq.s32.totalorder %s17, 0
    %p86 = por %p84, %p85
    %s88 = sadd.s32 %s87, 1
    %p91 = scmp.eq.s32.totalorder %s11, 1
    %p92 = scmp.ne.s32.totalorder %s87, %s89
    %p93 = scmp.eq.s32.totalorder %s11, 0
    %p94 = por %p92, %p93
    %p95 = scmp.ne.s32.totalorder %s87, %s89
    %p96 = scmp.eq.s32.totalorder %s16, 1
    %p97 = por %p95, %p96
    %p98 = scmp.ne.s32.totalorder %s89, %s90
    %p99 = scmp.eq.s32.totalorder %s16, 0
    %p100 = por %p98, %p99
    %p101 = scmp.ne.s32.totalorder %s89, %s90
    %p102 = scmp.eq.s32.totalorder %s17, 1
    %p103 = por %p101, %p102
    %p105 = scmp.ne.s32.totalorder %s90, %s104
    %p106 = scmp.eq.s32.totalorder %s17, 0
    %p107 = por %p105, %p106
    %s108 = ssub.s32 %s11, %s18
    %p109 = scmp.eq.s32.totalorder %s108, 0
    %s111 = sadd.s32 %s110, 1
    %s112 = scalar_select %p109, %s110, %s111
    %p115 = pneg %p109
    %p116 = scmp.eq.s32.totalorder %s11, 1
    %p117 = por %p115, %p116
    %p118 = scmp.ne.s32.totalorder %s110, %s113
    %p119 = scmp.eq.s32.totalorder %s11, 0
    %p120 = por %p118, %p119
    %p121 = scmp.ne.s32.totalorder %s110, %s113
    %p122 = scmp.eq.s32.totalorder %s16, 1
    %p123 = por %p121, %p122
    %p124 = scmp.ne.s32.totalorder %s113, %s114
    %p125 = scmp.eq.s32.totalorder %s16, 0
    %p126 = por %p124, %p125
    %p127 = scmp.ne.s32.totalorder %s113, %s114
    %p128 = scmp.eq.s32.totalorder %s17, 1
    %p129 = por %p127, %p128
    %p131 = scmp.ne.s32.totalorder %s114, %s130
    %p132 = scmp.eq.s32.totalorder %s17, 0
    %p133 = por %p131, %p132
    %p134 = scmp.le.s32.totalorder 1, %s11
    %p135 = scmp.lt.s32.totalorder %s11, 3
    %p136 = pnand %p134, %p135
    %p137 = pneg %p136
    // Predicated region
    $region9: #{srfbn_hg_forward.48} parent=5 // pred_check
      _
    $region10: #{srfbn_hg_forward.48} parent=5 // pred_check_branch
      %139 = sbr.rel (%p136) target = $region12
    $region11: #{srfbn_hg_forward.48} parent=5 // pred_region
      %s140 = ssub.s32 %s11, 1
      // Predicated region
      $region13: #{srfbn_hg_forward.48} parent=11 // pred_check
        %p141 = pneg %p32
      $region14: #{srfbn_hg_forward.48} parent=11 // pred_check_branch
        %143 = sbr.rel (%p141) target = $region16
      $region15: #{srfbn_hg_forward.48} parent=11 // pred_region
        _
      $region16: #{srfbn_hg_forward.48} parent=11 // pred_fallthru
        _
      // Predicated region
      $region17: #{srfbn_hg_forward.48} parent=11 // pred_check
        %p144 = pneg %p79
      $region18: #{srfbn_hg_forward.48} parent=11 // pred_check_branch
        %146 = sbr.rel (%p144) target = $region20
      $region19: #{srfbn_hg_forward.48} parent=11 // pred_region
        _
      $region20: #{srfbn_hg_forward.48} parent=11 // pred_fallthru
        _
      // Predicated region
      $region21: #{srfbn_hg_forward.48} parent=11 // pred_check
        %p147 = pneg %p100
      $region22: #{srfbn_hg_forward.48} parent=11 // pred_check_branch
        %149 = sbr.rel (%p147) target = $region24
      $region23: #{srfbn_hg_forward.48} parent=11 // pred_region
        _
      $region24: #{srfbn_hg_forward.48} parent=11 // pred_fallthru
        _
    $region12: #{srfbn_hg_forward.48} parent=5 // pred_fallthru
      _
    %p150 = scmp.lt.s32.totalorder %s11, 2
    // Predicated region
    $region25: #{srfbn_hg_forward.48} parent=5 // pred_check
      %p151 = pneg %p150
    $region26: #{srfbn_hg_forward.48} parent=5 // pred_check_branch
      %153 = sbr.rel (%p151) target = $region28
    $region27: #{srfbn_hg_forward.48} parent=5 // pred_region
      // Predicated region
      $region29: #{srfbn_hg_forward.48} parent=27 // pred_check
        %p154 = pneg %p52
      $region30: #{srfbn_hg_forward.48} parent=27 // pred_check_branch
        %156 = sbr.rel (%p154) target = $region32
      $region31: #{srfbn_hg_forward.48} parent=27 // pred_region
        %s157 = smul.u32 2, %s11
        %p158 = scmp.lt.s32.totalorder %s157, 3
        %s159 = scalar_select %p158, %s157, 3
        %s160 = smul.addr %s159, 4
        %s161 = scalar_lea.vmem %s1, %s160
        %s162 = smul.u32 2, %s11
      $region32: #{srfbn_hg_forward.48} parent=27 // pred_fallthru
        _
    $region28: #{srfbn_hg_forward.48} parent=5 // pred_fallthru
      _
    %p163 = scmp.le.s32.totalorder 1, %s11
    %p164 = scmp.lt.s32.totalorder %s11, 3
    %p165 = pnand %p163, %p164
    %p166 = pneg %p165
    // Predicated region
    $region33: #{srfbn_hg_forward.48} parent=5 // pred_check
      _
    $region34: #{srfbn_hg_forward.48} parent=5 // pred_check_branch
      %168 = sbr.rel (%p165) target = $region36
    $region35: #{srfbn_hg_forward.48} parent=5 // pred_region
      %s169 = ssub.s32 %s11, 1
      %p170 = pneg %p32
      %p171 = pneg %p29
      %s172 = smul.u32 2, %s16
      %p173 = scmp.lt.s32.totalorder %s172, 3
      %s174 = scalar_select %p173, %s172, 3
      %s175 = smul.addr %s174, 4
      %s176 = scalar_lea.vmem %s1, %s175
      %p177 = pneg %p58
      %p178 = pneg %p55
      %p179 = pneg %p79
      %p180 = pneg %p76
      %p181 = pneg %p100
      %p182 = pneg %p97
      %p183 = pneg %p126
      %p184 = pneg %p123
      %s185 = smul.u32 2, %s16
      %p186 = scmp.lt.s32.totalorder %s185, 3
      %s187 = scalar_select %p186, %s185, 3
      %s188 = smul.addr %s187, 8
      %s189 = scalar_lea.vmem %s4, %s188
      %s190 = smul.u32 2, %s16
      %p191 = scmp.lt.s32.totalorder %s190, 3
      %s192 = scalar_select %p191, %s190, 3
      %s193 = smul.addr %s192, 4
      %s194 = scalar_lea.vmem %s1, %s193
      %s195 = smul.u32 2, %s16
      %s196 = smul.u32 2, %s16
      %p197 = scmp.lt.s32.totalorder %s196, 3
      %s198 = scalar_select %p197, %s196, 3
      %s199 = smul.addr %s198, 8
      %s200 = scalar_lea.vmem %s4, %s199
      %s201 = smul.u32 2, %s16
      %v203 = vld [vmem:[%s0] sm:$0x7]
      %v204 = vld [vmem:[%s194] sm:$0xff]
      %v205 = vld [vmem:[%s2] sm:$0x1f]
      %207 = vset.pattern.permute.xlu0 0
      %208 = vperm.xlu0 %207, %v205
      %v209 = vpop.permute.xlu0 %208
      %v212 = vunpack.c.l.b16 %v204
      %v213 = vunpack.c.h.b16 %v204
      %v214 = vpack.c.b16 %v212, %v212
      %v215 = vpack.c.b16 %v213, %v213
      %vm216 = vcmask 64512
      %v218 = vsel %vm216, %v203, 0
      %vm220 = vcmask 1043456
      %v222 = vsel %vm220, %v214, 0
      %v225 = vsel %vm220, %v215, 0
      %227 = vmatprep.subr.bf16.mxu0 %v225
      %228 = vmatpush1.bf16.msra.mxu0 %v222
      %229 = vmatprep.subr.bf16.mxu0 0
      %230 = vmatpush1.bf16.msra.mxu0 0
      %231 = vmatprep.subr.bf16.mxu0 0
      %232 = vmatpush1.bf16.msra.mxu0 0
      %233 = vmatprep.subr.bf16.mxu0 0
      %234 = vmatpush1.bf16.msra.mxu0 0
      %235 = vmatprep.subr.bf16.mxu0 0
      %236 = vmatpush1.bf16.msra.mxu0 0
      %237 = vmatprep.subr.bf16.mxu0 0
      %238 = vmatpush1.bf16.msra.mxu0 0
      %239 = vmatprep.subr.bf16.mxu0 0
      %240 = vmatpush1.bf16.msra.mxu0 0
      %241 = vmatprep.subr.bf16.mxu0 0
      %242 = vmatpush1.bf16.msra.mxu0 0
      %243 = vmatprep.subr.bf16.mxu0 0
      %244 = vmatpush1.bf16.msra.mxu0 0
      %245 = vmatprep.subr.bf16.mxu0 0
      %246 = vmatpush1.bf16.msra.mxu0 0
      %247 = vmatprep.subr.bf16.mxu0 0
      %248 = vmatpush1.bf16.msra.mxu0 0
      %249 = vmatprep.subr.bf16.mxu0 0
      %250 = vmatpush1.bf16.msra.mxu0 0
      %251 = vmatprep.subr.bf16.mxu0 0
      %252 = vmatpush1.bf16.msra.mxu0 0
      %253 = vmatprep.subr.bf16.mxu0 0
      %254 = vmatpush1.bf16.msra.mxu0 0
      %255 = vmatprep.subr.bf16.mxu0 0
      %256 = vmatpush1.bf16.msra.mxu0 0
      %257 = vmatprep.subr.bf16.mxu0 0
      %258 = vmatpush1.bf16.msra.mxu0 0
      %259 = vmatprep.mubr.bf16.mxu0 0
      %260 = vmatmul.mubr.bf16.gmra.mrb[0].mxu0 %v218
      %v261 = vpop.f32.mrb[0].mxu0
      %v262 = vadd.f32 %v209, %v261
      %v263 = vpop.f32.mrb[0].mxu0
      %v264 = vadd.f32 %v209, %v263
      %v265 = vpop.f32.mrb[0].mxu0
      %v266 = vpop.f32.mrb[0].mxu0
      %267 = vdwg.mxu0
      %s268 = sld [smem:[#allocation2]]
      %vm269 = vcmp.ge.f32.partialorder %v262, 0.0
      %vm270 = vcmp.ge.f32.partialorder %v264, 0.0
      %v271 = vstv %s268
      %v272 = vmul.f32 %v271, %v262
      %v273 = vmul.f32 %v271, %v264
      %v274 = vsel %vm269, %v262, %v272
      %v275 = vsel %vm270, %v264, %v273
      %276 = vst [vmem:[%s200] sm:$0x1f] %v274
      %277 = vst [vmem:[%s200 + $0x8] sm:$0x1f] %v275
      %s278 = smul.u32 2, %s16
      %p279 = scmp.lt.s32.totalorder %s278, 3
      %s280 = scalar_select %p279, %s278, 3
      %s281 = smul.addr %s280, 8
      %s282 = scalar_lea.vmem %s4, %s281
      // Predicated region
      $region37: #{srfbn_hg_forward.48} parent=35 // pred_check
        %p283 = pneg %p123
      $region38: #{srfbn_hg_forward.48} parent=35 // pred_check_branch
        %285 = sbr.rel (%p283) target = $region40
      $region39: #{srfbn_hg_forward.48} parent=35 // pred_region
        %s286 = smul.u32 2, %s16
      $region40: #{srfbn_hg_forward.48} parent=35 // pred_fallthru
        _
    $region36: #{srfbn_hg_forward.48} parent=5 // pred_fallthru
      _
    %p287 = scmp.le.s32.totalorder 2, %s11
    // Predicated region
    $region41: #{srfbn_hg_forward.48} parent=5 // pred_check
      %p288 = pneg %p287
    $region42: #{srfbn_hg_forward.48} parent=5 // pred_check_branch
      %290 = sbr.rel (%p288) target = $region44
    $region43: #{srfbn_hg_forward.48} parent=5 // pred_region
      %s291 = ssub.s32 %s11, 2
      // Predicated region
      $region45: #{srfbn_hg_forward.48} parent=43 // pred_check
        %p292 = pneg %p129
      $region46: #{srfbn_hg_forward.48} parent=43 // pred_check_branch
        %294 = sbr.rel (%p292) target = $region48
      $region47: #{srfbn_hg_forward.48} parent=43 // pred_region
        %s295 = smul.u32 2, %s17
        %p296 = scmp.lt.s32.totalorder %s295, 3
        %s297 = scalar_select %p296, %s295, 3
        %s298 = smul.addr %s297, 8
        %s299 = scalar_lea.vmem %s4, %s298
      $region48: #{srfbn_hg_forward.48} parent=43 // pred_fallthru
        _
    $region44: #{srfbn_hg_forward.48} parent=5 // pred_fallthru
      _
  $region6: #{srfbn_hg_forward.48} parent=0 // loop_footer
    %s15 = sadd.s32 1, %s11
  $region7: #{srfbn_hg_forward.48} parent=0 // loop_footer_branch
    %10 = sbr.rel target = $region3
  $region8: #{srfbn_hg_forward.48} parent=0 // loop_exit
    _

// kernel: srfbn_hg_forward.49
$region0: #{srfbn_hg_forward.49}
  #allocation0 [shape = 'u32[]', space=smem, size = 0x4, offset = 0x4, fixed_abs, tag = 'smem constant byte address 0x4 - core index']
  #allocation1 [shape = 'u32[144,128]{1,0:T(1,128)}', space=vmem, size = 0x12000, scoped, tag = 'internal scratch']
  #allocation2 [shape = 'f32[1]{0:T(128)S(6)}', space=smem, size = 0x200, scoped, tag = 'scoped memory for srfbn_hg_forward.49']
  %s0 = inlined_call_operand.vmem [shape: bf16[8,21], index: 0, kind: input, shape index: {}]
  %s1 = inlined_call_operand.vmem [shape: bf16[21,512], index: 1, kind: input, shape index: {}]
  %s2 = inlined_call_operand.vmem [shape: f32[8,1], index: 2, kind: input, shape index: {}]
  %s3 = inlined_call_operand.<no memory space> [shape: f32[1], index: 3, kind: input, shape index: {}]
  %s4 = inlined_call_operand.vmem [shape: f32[8,512], index: 4, kind: output, shape index: {}]
  %s5 = sld [smem:[#allocation0]]
  $region87: #{srfbn_hg_forward.49} parent=0
    _
  %s7 = ssub.s32 1, %s5
  %s8 = scalar_select 0, %s7, %s5
  %9 = sst [smem:[#allocation2]] %s3
  $region1: #{srfbn_hg_forward.49} parent=0
    #allocation3 [shape = 'u8[24576]{0}', space=vmem, size = 0x6000, scoped, tag = 'input window, operand 1']
    loop: start=0, step=1, limit=4
    $region2: #{srfbn_hg_forward.49} parent=1 // loop_pre_header
      _
    $region3: #{srfbn_hg_forward.49} parent=1 // loop_header
      %s11 = sphi 0, %s15
      %p12 = scmp.ge.s32.totalorder %s11, 4
      %s19 = sphi 0, %s19
      %s21 = sphi 0, %s19
      %s22 = sphi 0, %s21
      %s36 = sphi 0, %s22
      %s42 = sphi 0, %s44
      %s45 = sphi 0, %s42
      %s46 = sphi 0, %s45
      %s62 = sphi 0, %s46
      %s66 = sphi 0, %s66
      %s68 = sphi 0, %s66
      %s69 = sphi 0, %s68
      %s83 = sphi 0, %s69
      %s87 = sphi 0, %s87
      %s89 = sphi 0, %s87
      %s90 = sphi 0, %s89
      %s104 = sphi 0, %s90
      %s110 = sphi 0, %s112
      %s113 = sphi 0, %s110
      %s114 = sphi 0, %s113
      %s130 = sphi 0, %s114
    $region4: #{srfbn_hg_forward.49} parent=1 // loop_header_branch
      %14 = sbr.rel (%p12) target = $region8
    $region5: #{srfbn_hg_forward.49} parent=1 // loop_body
      %s16 = ssub.s32 %s11, 1
      %s17 = ssub.s32 %s11, 2
      %s18 = sadd.s32 %s11, 1
      %s20 = sadd.s32 %s19, 1
      %p23 = scmp.eq.s32.totalorder %s11, 1
      %p24 = scmp.ne.s32.totalorder %s19, %s21
      %p25 = scmp.eq.s32.totalorder %s11, 0
      %p26 = por %p24, %p25
      %p27 = scmp.ne.s32.totalorder %s19, %s21
      %p28 = scmp.eq.s32.totalorder %s16, 1
      %p29 = por %p27, %p28
      %p30 = scmp.ne.s32.totalorder %s21, %s22
      %p31 = scmp.eq.s32.totalorder %s16, 0
      %p32 = por %p30, %p31
      %p33 = scmp.ne.s32.totalorder %s21, %s22
      %p34 = scmp.eq.s32.totalorder %s17, 1
      %p35 = por %p33, %p34
      %p37 = scmp.ne.s32.totalorder %s22, %s36
      %p38 = scmp.eq.s32.totalorder %s17, 0
      %p39 = por %p37, %p38
      %s40 = ssub.s32 %s11, %s18
      %p41 = scmp.eq.s32.totalorder %s40, 0
      %s43 = sadd.s32 %s42, 1
      %s44 = scalar_select %p41, %s42, %s43
      %p47 = pneg %p41
      %p48 = scmp.eq.s32.totalorder %s11, 1
      %p49 = por %p47, %p48
      %p50 = scmp.ne.s32.totalorder %s42, %s45
      %p51 = scmp.eq.s32.totalorder %s11, 0
      %p52 = por %p50, %p51
      %p53 = scmp.ne.s32.totalorder %s42, %s45
      %p54 = scmp.eq.s32.totalorder %s16, 1
      %p55 = por %p53, %p54
      %p56 = scmp.ne.s32.totalorder %s45, %s46
      %p57 = scmp.eq.s32.totalorder %s16, 0
      %p58 = por %p56, %p57
      %p59 = scmp.ne.s32.totalorder %s45, %s46
      %p60 = scmp.eq.s32.totalorder %s17, 1
      %p61 = por %p59, %p60
      %p63 = scmp.ne.s32.totalorder %s46, %s62
      %p64 = scmp.eq.s32.totalorder %s17, 0
      %p65 = por %p63, %p64
      %s67 = sadd.s32 %s66, 1
      %p70 = scmp.eq.s32.totalorder %s11, 1
      %p71 = scmp.ne.s32.totalorder %s66, %s68
      %p72 = scmp.eq.s32.totalorder %s11, 0
      %p73 = por %p71, %p72
      %p74 = scmp.ne.s32.totalorder %s66, %s68
      %p75 = scmp.eq.s32.totalorder %s16, 1
      %p76 = por %p74, %p75
      %p77 = scmp.ne.s32.totalorder %s68, %s69
      %p78 = scmp.eq.s32.totalorder %s16, 0
      %p79 = por %p77, %p78
      %p80 = scmp.ne.s32.totalorder %s68, %s69
      %p81 = scmp.eq.s32.totalorder %s17, 1
      %p82 = por %p80, %p81
      %p84 = scmp.ne.s32.totalorder %s69, %s83
      %p85 = scmp.eq.s32.totalorder %s17, 0
      %p86 = por %p84, %p85
      %s88 = sadd.s32 %s87, 1
      %p91 = scmp.eq.s32.totalorder %s11, 1
      %p92 = scmp.ne.s32.totalorder %s87, %s89
      %p93 = scmp.eq.s32.totalorder %s11, 0
      %p94 = por %p92, %p93
      %p95 = scmp.ne.s32.totalorder %s87, %s89
      %p96 = scmp.eq.s32.totalorder %s16, 1
      %p97 = por %p95, %p96
      %p98 = scmp.ne.s32.totalorder %s89, %s90
      %p99 = scmp.eq.s32.totalorder %s16, 0
      %p100 = por %p98, %p99
      %p101 = scmp.ne.s32.totalorder %s89, %s90
      %p102 = scmp.eq.s32.totalorder %s17, 1
      %p103 = por %p101, %p102
      %p105 = scmp.ne.s32.totalorder %s90, %s104
      %p106 = scmp.eq.s32.totalorder %s17, 0
      %p107 = por %p105, %p106
      %s108 = ssub.s32 %s11, %s18
      %p109 = scmp.eq.s32.totalorder %s108, 0
      %s111 = sadd.s32 %s110, 1
      %s112 = scalar_select %p109, %s110, %s111
      %p115 = pneg %p109
      %p116 = scmp.eq.s32.totalorder %s11, 1
      %p117 = por %p115, %p116
      %p118 = scmp.ne.s32.totalorder %s110, %s113
      %p119 = scmp.eq.s32.totalorder %s11, 0
      %p120 = por %p118, %p119
      %p121 = scmp.ne.s32.totalorder %s110, %s113
      %p122 = scmp.eq.s32.totalorder %s16, 1
      %p123 = por %p121, %p122
      %p124 = scmp.ne.s32.totalorder %s113, %s114
      %p125 = scmp.eq.s32.totalorder %s16, 0
      %p126 = por %p124, %p125
      %p127 = scmp.ne.s32.totalorder %s113, %s114
      %p128 = scmp.eq.s32.totalorder %s17, 1
      %p129 = por %p127, %p128
      %p131 = scmp.ne.s32.totalorder %s114, %s130
      %p132 = scmp.eq.s32.totalorder %s17, 0
      %p133 = por %p131, %p132
      %p134 = scmp.le.s32.totalorder 1, %s11
      %p135 = scmp.lt.s32.totalorder %s11, 3
      %p136 = pnand %p134, %p135
      %p137 = pneg %p136
      // Predicated region
      $region9: #{srfbn_hg_forward.49} parent=5 // pred_check
        _
      $region10: #{srfbn_hg_forward.49} parent=5 // pred_check_branch
        %139 = sbr.rel (%p136) target = $region12
      $region11: #{srfbn_hg_forward.49} parent=5 // pred_region
        %s140 = ssub.s32 %s11, 1
        // Predicated region
        $region13: #{srfbn_hg_forward.49} parent=11 // pred_check
          %p141 = pneg %p32
        $region14: #{srfbn_hg_forward.49} parent=11 // pred_check_branch
          %143 = sbr.rel (%p141) target = $region16
        $region15: #{srfbn_hg_forward.49} parent=11 // pred_region
          _
        $region16: #{srfbn_hg_forward.49} parent=11 // pred_fallthru
          _
        // Predicated region
        $region17: #{srfbn_hg_forward.49} parent=11 // pred_check
          %p144 = pneg %p79
        $region18: #{srfbn_hg_forward.49} parent=11 // pred_check_branch
          %146 = sbr.rel (%p144) target = $region20
        $region19: #{srfbn_hg_forward.49} parent=11 // pred_region
          _
        $region20: #{srfbn_hg_forward.49} parent=11 // pred_fallthru
          _
        // Predicated region
        $region21: #{srfbn_hg_forward.49} parent=11 // pred_check
          %p147 = pneg %p100
        $region22: #{srfbn_hg_forward.49} parent=11 // pred_check_branch
          %149 = sbr.rel (%p147) target = $region24
        $region23: #{srfbn_hg_forward.49} parent=11 // pred_region
          _
        $region24: #{srfbn_hg_forward.49} parent=11 // pred_fallthru
          _
      $region12: #{srfbn_hg_forward.49} parent=5 // pred_fallthru
        _
      %p150 = scmp.lt.s32.totalorder %s11, 2
      // Predicated region
      $region25: #{srfbn_hg_forward.49} parent=5 // pred_check
        %p151 = pneg %p150
      $region26: #{srfbn_hg_forward.49} parent=5 // pred_check_branch
        %153 = sbr.rel (%p151) target = $region28
      $region27: #{srfbn_hg_forward.49} parent=5 // pred_region
        // Predicated region
        $region29: #{srfbn_hg_forward.49} parent=27 // pred_check
          %p154 = pneg %p52
        $region30: #{srfbn_hg_forward.49} parent=27 // pred_check_branch
          %156 = sbr.rel (%p154) target = $region32
        $region31: #{srfbn_hg_forward.49} parent=27 // pred_region
          %s157 = sand.u32 %s42, 1
          %s158 = sand.u32 %s42, 1
          %s159 = smul.addr %s158, 24
          %s160 = scalar_lea.vmem [#allocation3], %s159
          %s161 = smul.u32 2, %s11
          %s162 = smul.addr %s161, 4
          %s163 = scalar_lea.vmem %s1, %s162
          // Predicated region
          $region33: #{srfbn_hg_forward.49} parent=31 // pred_check
            _
          $region34: #{srfbn_hg_forward.49} parent=31 // pred_check_branch
            %165 = sbr.rel (0) target = $region36
          $region35: #{srfbn_hg_forward.49} parent=31 // pred_region
            // Predicated region
            $region37: #{srfbn_hg_forward.49} parent=35 // pred_check
              _
            $region38: #{srfbn_hg_forward.49} parent=35 // pred_check_branch
              %167 = sbr.rel (0) target = $region40
            $region39: #{srfbn_hg_forward.49} parent=35 // pred_region
              // Predicated region
              $region52: #{srfbn_hg_forward.49} parent=39 // pred_check
                _
              $region53: #{srfbn_hg_forward.49} parent=39 // pred_check_branch
                %186 = sbr.rel (0) target = $region55
              $region54: #{srfbn_hg_forward.49} parent=39 // pred_region
                loop: start=0, step=1, limit=1
                $region56: #{srfbn_hg_forward.49} parent=54 // loop_pre_header
                  _
                $region57: #{srfbn_hg_forward.49} parent=54 // loop_header
                  %s188 = sphi 0, %s192
                  %p189 = scmp.ge.s32.totalorder %s188, 1
                  %s193 = sphi %s163, %s163
                  %s194 = sphi %s160, %s160
                $region58: #{srfbn_hg_forward.49} parent=54 // loop_header_branch
                  %191 = sbr.rel (%p189) target = $region62
                $region59: #{srfbn_hg_forward.49} parent=54 // loop_body
                  %v195 = vld [vmem:[%s193] sm:$0xff]
                  %196 = vst [vmem:[%s194] sm:$0xff] %v195
                  %v197 = vld [vmem:[%s193 + $0x10] sm:$0xff]
                  %198 = vst [vmem:[%s194 + $0x8] sm:$0xff] %v197
                  %v199 = vld [vmem:[%s193 + $0x20] sm:$0xff]
                  %200 = vst [vmem:[%s194 + $0x10] sm:$0xff] %v199
                $region60: #{srfbn_hg_forward.49} parent=54 // loop_footer
                  %s192 = sadd.s32 1, %s188
                $region61: #{srfbn_hg_forward.49} parent=54 // loop_footer_branch
                  %187 = sbr.rel target = $region57
                $region62: #{srfbn_hg_forward.49} parent=54 // loop_exit
                  _
              $region55: #{srfbn_hg_forward.49} parent=39 // pred_fallthru
                _
              // Predicated region
              $region63: #{srfbn_hg_forward.49} parent=39 // pred_check
                _
              $region64: #{srfbn_hg_forward.49} parent=39 // pred_check_branch
                %202 = sbr.rel target = $region66
              $region65: #{srfbn_hg_forward.49} parent=39 // pred_region
                _
              $region66: #{srfbn_hg_forward.49} parent=39 // pred_fallthru
                _
            $region40: #{srfbn_hg_forward.49} parent=35 // pred_fallthru
              _
            // Predicated region
            $region41: #{srfbn_hg_forward.49} parent=35 // pred_check
              _
            $region42: #{srfbn_hg_forward.49} parent=35 // pred_check_branch
              %169 = sbr.rel target = $region44
            $region43: #{srfbn_hg_forward.49} parent=35 // pred_region
              loop: start=0, step=1, limit=1
              $region45: #{srfbn_hg_forward.49} parent=43 // loop_pre_header
                _
              $region46: #{srfbn_hg_forward.49} parent=43 // loop_header
                %s172 = sphi 0, %s176
                %p173 = scmp.ge.s32.totalorder %s172, 1
                %s177 = sphi %s163, %s163
                %s178 = sphi %s160, %s160
              $region47: #{srfbn_hg_forward.49} parent=43 // loop_header_branch
                %175 = sbr.rel (%p173) target = $region51
              $region48: #{srfbn_hg_forward.49} parent=43 // loop_body
                %v179 = vld [vmem:[%s177] sm:$0xff]
                %180 = vst [vmem:[%s178] sm:$0xff] %v179
                %v181 = vld [vmem:[%s177 + $0x10] sm:$0xff]
                %182 = vst [vmem:[%s178 + $0x8] sm:$0xff] %v181
                %v183 = vld [vmem:[%s177 + $0x20] sm:$0xff]
                %184 = vst [vmem:[%s178 + $0x10] sm:$0xff] %v183
              $region49: #{srfbn_hg_forward.49} parent=43 // loop_footer
                %s176 = sadd.s32 1, %s172
              $region50: #{srfbn_hg_forward.49} parent=43 // loop_footer_branch
                %171 = sbr.rel target = $region46
              $region51: #{srfbn_hg_forward.49} parent=43 // loop_exit
                _
            $region44: #{srfbn_hg_forward.49} parent=35 // pred_fallthru
              _
          $region36: #{srfbn_hg_forward.49} parent=31 // pred_fallthru
            _
          %203 = vnop
        $region32: #{srfbn_hg_forward.49} parent=27 // pred_fallthru
          _
      $region28: #{srfbn_hg_forward.49} parent=5 // pred_fallthru
        _
      %p204 = scmp.le.s32.totalorder 1, %s11
      %p205 = scmp.lt.s32.totalorder %s11, 3
      %p206 = pnand %p204, %p205
      %p207 = pneg %p206
      // Predicated region
      $region67: #{srfbn_hg_forward.49} parent=5 // pred_check
        _
      $region68: #{srfbn_hg_forward.49} parent=5 // pred_check_branch
        %209 = sbr.rel (%p206) target = $region70
      $region69: #{srfbn_hg_forward.49} parent=5 // pred_region
        %s210 = ssub.s32 %s11, 1
        %s211 = sand.u32 %s45, 1
        %s212 = sand.u32 %s45, 1
        %s213 = smul.addr %s212, 24
        %s214 = scalar_lea.vmem [#allocation3], %s213
        // Predicated region
        $region71: #{srfbn_hg_forward.49} parent=69 // pred_check
          %p215 = pneg %p58
        $region72: #{srfbn_hg_forward.49} parent=69 // pred_check_branch
          %217 = sbr.rel (%p215) target = $region74
        $region73: #{srfbn_hg_forward.49} parent=69 // pred_region
          _
        $region74: #{srfbn_hg_forward.49} parent=69 // pred_fallthru
          _
        %p218 = pneg %p32
        %p219 = pneg %p29
        %s220 = sand.u32 %s45, 1
        %s221 = sand.u32 %s45, 1
        %s222 = smul.addr %s221, 24
        %s223 = scalar_lea.vmem [#allocation3], %s222
        %p224 = pneg %p58
        %p225 = pneg %p55
        %p226 = pneg %p79
        %p227 = pneg %p76
        %p228 = pneg %p100
        %p229 = pneg %p97
        %p230 = pneg %p126
        %p231 = pneg %p123
        %s232 = smul.u32 2, %s16
        %p233 = scmp.lt.s32.totalorder %s232, 3
        %s234 = scalar_select %p233, %s232, 3
        %s235 = smul.addr %s234, 8
        %s236 = scalar_lea.vmem %s4, %s235
        %s237 = smul.u32 2, %s16
        %s238 = smul.u32 2, %s16
        %p239 = scmp.lt.s32.totalorder %s238, 3
        %s240 = scalar_select %p239, %s238, 3
        %s241 = smul.addr %s240, 8
        %s242 = scalar_lea.vmem %s4, %s241
        %s243 = smul.u32 2, %s16
        %v245 = vld [vmem:[%s0] sm:$0xf]
        %v246 = vld [vmem:[%s214] sm:$0xff]
        %v247 = vld [vmem:[%s214 + $0x8] sm:$0xff]
        %v248 = vld [vmem:[%s214 + $0x10] sm:$0x77]
        %v249 = vld [vmem:[%s2] sm:$0xff]
        %251 = vset.pattern.permute.xlu0 0
        %252 = vperm.xlu0 %251, %v249
        %v253 = vpop.permute.xlu0 %252
        %v258 = vunpack.c.l.b16 %v246
        %v259 = vunpack.c.h.b16 %v246
        %v260 = vunpack.c.l.b16 %v247
        %v261 = vunpack.c.h.b16 %v247
        %v262 = vunpack.c.l.b16 %v248
        %v263 = vunpack.c.h.b16 %v248
        %v264 = vpack.c.b16 %v260, %v258
        %v265 = vpack.c.b16 %v261, %v259
        %v266 = vpack.c.b16 %v262, %v262
        %v267 = vpack.c.b16 %v263, %v263
        %vm270 = vcmask 171008
        %v272 = vsel %vm270, %v245, 0
        %vm274 = vcmask 1041408
        %vm275 = vcmask 1042432
        %v276 = vsel %vm274, 4294967295, 65535
        %v277 = vsel %vm275, %v276, 0
        %v279 = vand.u32 %v266, %v277
        %v282 = vand.u32 %v267, %v277
        %284 = vmatprep.subr.bf16.mxu0 %v265
        %285 = vmatpush1.bf16.msra.mxu0 %v264
        %286 = vmatprep.subr.bf16.mxu0 %v282
        %287 = vmatpush1.bf16.msra.mxu0 %v279
        %288 = vmatprep.subr.bf16.mxu0 0
        %289 = vmatpush1.bf16.msra.mxu0 0
        %290 = vmatprep.subr.bf16.mxu0 0
        %291 = vmatpush1.bf16.msra.mxu0 0
        %292 = vmatprep.subr.bf16.mxu0 0
        %293 = vmatpush1.bf16.msra.mxu0 0
        %294 = vmatprep.subr.bf16.mxu0 0
        %295 = vmatpush1.bf16.msra.mxu0 0
        %296 = vmatprep.subr.bf16.mxu0 0
        %297 = vmatpush1.bf16.msra.mxu0 0
        %298 = vmatprep.subr.bf16.mxu0 0
        %299 = vmatpush1.bf16.msra.mxu0 0
        %300 = vmatprep.subr.bf16.mxu0 0
        %301 = vmatpush1.bf16.msra.mxu0 0
        %302 = vmatprep.subr.bf16.mxu0 0
        %303 = vmatpush1.bf16.msra.mxu0 0
        %304 = vmatprep.subr.bf16.mxu0 0
        %305 = vmatpush1.bf16.msra.mxu0 0
        %306 = vmatprep.subr.bf16.mxu0 0
        %307 = vmatpush1.bf16.msra.mxu0 0
        %308 = vmatprep.subr.bf16.mxu0 0
        %309 = vmatpush1.bf16.msra.mxu0 0
        %310 = vmatprep.subr.bf16.mxu0 0
        %311 = vmatpush1.bf16.msra.mxu0 0
        %312 = vmatprep.subr.bf16.mxu0 0
        %313 = vmatpush1.bf16.msra.mxu0 0
        %314 = vmatprep.subr.bf16.mxu0 0
        %315 = vmatpush1.bf16.msra.mxu0 0
        %316 = vmatprep.mubr.bf16.mxu0 0
        %317 = vmatmul.mubr.bf16.gmra.mrb[0].mxu0 %v272
        %v318 = vpop.f32.mrb[0].mxu0
        %v319 = vadd.f32 %v253, %v318
        %v320 = vpop.f32.mrb[0].mxu0
        %v321 = vadd.f32 %v253, %v320
        %v322 = vpop.f32.mrb[0].mxu0
        %v323 = vpop.f32.mrb[0].mxu0
        %324 = vdwg.mxu0
        %s325 = sld [smem:[#allocation2]]
        %vm326 = vcmp.ge.f32.partialorder %v319, 0.0
        %vm327 = vcmp.ge.f32.partialorder %v321, 0.0
        %v328 = vstv %s325
        %v329 = vmul.f32 %v328, %v319
        %v330 = vmul.f32 %v328, %v321
        %v331 = vsel %vm326, %v319, %v329
        %v332 = vsel %vm327, %v321, %v330
        %333 = vst [vmem:[%s242] sm:$0xff] %v331
        %334 = vst [vmem:[%s242 + $0x8] sm:$0xff] %v332
        %s335 = smul.u32 2, %s16
        %p336 = scmp.lt.s32.totalorder %s335, 3
        %s337 = scalar_select %p336, %s335, 3
        %s338 = smul.addr %s337, 8
        %s339 = scalar_lea.vmem %s4, %s338
        // Predicated region
        $region75: #{srfbn_hg_forward.49} parent=69 // pred_check
          %p340 = pneg %p123
        $region76: #{srfbn_hg_forward.49} parent=69 // pred_check_branch
          %342 = sbr.rel (%p340) target = $region78
        $region77: #{srfbn_hg_forward.49} parent=69 // pred_region
          %s343 = smul.u32 2, %s16
        $region78: #{srfbn_hg_forward.49} parent=69 // pred_fallthru
          _
      $region70: #{srfbn_hg_forward.49} parent=5 // pred_fallthru
        _
      %p344 = scmp.le.s32.totalorder 2, %s11
      // Predicated region
      $region79: #{srfbn_hg_forward.49} parent=5 // pred_check
        %p345 = pneg %p344
      $region80: #{srfbn_hg_forward.49} parent=5 // pred_check_branch
        %347 = sbr.rel (%p345) target = $region82
      $region81: #{srfbn_hg_forward.49} parent=5 // pred_region
        %s348 = ssub.s32 %s11, 2
        // Predicated region
        $region83: #{srfbn_hg_forward.49} parent=81 // pred_check
          %p349 = pneg %p129
        $region84: #{srfbn_hg_forward.49} parent=81 // pred_check_branch
          %351 = sbr.rel (%p349) target = $region86
        $region85: #{srfbn_hg_forward.49} parent=81 // pred_region
          %s352 = smul.u32 2, %s17
          %p353 = scmp.lt.s32.totalorder %s352, 3
          %s354 = scalar_select %p353, %s352, 3
          %s355 = smul.addr %s354, 8
          %s356 = scalar_lea.vmem %s4, %s355
        $region86: #{srfbn_hg_forward.49} parent=81 // pred_fallthru
          _
      $region82: #{srfbn_hg_forward.49} parent=5 // pred_fallthru
        _
    $region6: #{srfbn_hg_forward.49} parent=1 // loop_footer
      %s15 = sadd.s32 1, %s11
    $region7: #{srfbn_hg_forward.49} parent=1 // loop_footer_branch
      %10 = sbr.rel target = $region3
    $region8: #{srfbn_hg_forward.49} parent=1 // loop_exit
      _

</llo_original>
